<compile_context>
chip_gen: v7x
topology: tpu7x:2x2x1
jax: 0.10.0
libtpu: 0.0.40
codegen_flags: <defaults>
</compile_context>

<pallas_src>
import jax
import jax.numpy as jnp
from jax.experimental import pallas as pl
from jax.experimental.pallas import tpu as pltpu

N_IN = 28 * 28                                              # 784
DIMS = [N_IN, N_IN // 2, N_IN // 4, N_IN // 8, N_IN // 16,
        N_IN // 8, N_IN // 4, N_IN // 2, N_IN]              # [784,392,196,98,49,98,196,392,784]
N_LAYERS = len(DIMS) - 1                                    # 8
ENC_OUT = DIMS[4]                                           # 49 (bottleneck width)
LANE = 128
TILE_B = 256                                                # batch tile (fills MXU M)


def _round_up(n, m):
    return ((n + m - 1) // m) * m


# Kernel-internal widths: interior dims lane-padded, first-K / last-N kept at 784.
KDIMS = [DIMS[0]] + [_round_up(d, LANE) for d in DIMS[1:-1]] + [DIMS[-1]]
# -> [784, 512, 256, 128, 128, 128, 256, 512, 784]


def _autoencoder_kernel(x_ref, *refs):
    # refs = (w1..w8 [bf16], b1..b8 [f32], enc_out_ref, dec_out_ref)
    w_refs = refs[:N_LAYERS]
    b_refs = refs[N_LAYERS:2 * N_LAYERS]
    enc_out_ref = refs[2 * N_LAYERS]
    dec_out_ref = refs[2 * N_LAYERS + 1]

    h = x_ref[...]                                  # bf16 (TILE_B, 784) — no up-cast
    for li in range(N_LAYERS):
        h = jnp.dot(h.astype(jnp.bfloat16), w_refs[li][...],
                    preferred_element_type=jnp.float32)
        h = h + b_refs[li][...]
        if li == 3:
            # Bottleneck Linear has NO activation in the PyTorch model (encoder ends
            # with nn.Linear); padded lanes 49..127 are exactly 0 (zero w/b padding).
            enc_out_ref[...] = h[:, :ENC_OUT].astype(enc_out_ref.dtype)
        elif li == N_LAYERS - 1:
            dec_out_ref[...] = jax.nn.sigmoid(h).astype(dec_out_ref.dtype)
        else:
            h = jnp.maximum(h, 0.0)


@jax.jit
def autoencoder_forward(x, weights_pad, biases_pad):
    """x: (B, 784), ideally bf16 (f32 accepted, cast once).
    weights_pad[i]: (KDIMS[i], KDIMS[i+1]) bf16. biases_pad[i]: (1, KDIMS[i+1]) f32."""
    B, F = x.shape
    assert F == N_IN
    x = x.astype(jnp.bfloat16)                     # no-op when the caller passes bf16
    B_pad = _round_up(max(B, TILE_B), TILE_B)
    if B_pad != B:                                 # only traced when B % TILE_B != 0
        x = jnp.zeros((B_pad, N_IN), jnp.bfloat16).at[:B].set(x)

    grid = (B_pad // TILE_B,)

    in_specs = [pl.BlockSpec((TILE_B, N_IN), lambda i: (i, 0))]
    # weights / biases: full blocks, constant index_map -> VMEM-resident across steps
    in_specs += [pl.BlockSpec(w.shape, lambda i: (0, 0)) for w in weights_pad]
    in_specs += [pl.BlockSpec(b.shape, lambda i: (0, 0)) for b in biases_pad]

    out_specs = (
        pl.BlockSpec((TILE_B, ENC_OUT), lambda i: (i, 0)),
        pl.BlockSpec((TILE_B, N_IN), lambda i: (i, 0)),
    )
    out_shape = (
        jax.ShapeDtypeStruct((B_pad, ENC_OUT), jnp.bfloat16),   # encoded, true width
        jax.ShapeDtypeStruct((B_pad, N_IN), jnp.bfloat16),      # decoded, true width
    )

    flops = 2 * B_pad * sum(KDIMS[i] * KDIMS[i + 1] for i in range(N_LAYERS))
    transcendentals = B_pad * N_IN                              # final sigmoid
    bytes_accessed = (
        B_pad * N_IN * 2                                        # x (bf16)
        + sum(int(w.size) * 2 for w in weights_pad)             # weights (bf16)
        + sum(int(b.size) * 4 for b in biases_pad)              # biases (f32)
        + B_pad * ENC_OUT * 2 + B_pad * N_IN * 2                # outputs (bf16)
    )

    enc, dec = pl.pallas_call(
        _autoencoder_kernel,
        grid=grid,
        in_specs=in_specs,
        out_specs=out_specs,
        out_shape=out_shape,
        compiler_params=pltpu.CompilerParams(
            dimension_semantics=("parallel",),      # megacore sharding on v7x
            vmem_limit_bytes=48 << 20,              # fits v7x's 64 MiB physical VMEM
        ),
        cost_estimate=pl.CostEstimate(
            flops=flops,
            transcendentals=transcendentals,
            bytes_accessed=bytes_accessed,
        ),
    )(x, *weights_pad, *biases_pad)

    if B_pad != B:                                  # only traced when batch was padded
        enc, dec = enc[:B], dec[:B]
    return enc, dec


def init_params(key):
    """PyTorch Linear default init U(-k, k), k = 1/sqrt(fan_in).
    Weights pre-transposed to (in, out); biases (1, out); all f32."""
    weights, biases = [], []
    for fan_in, fan_out in zip(DIMS[:-1], DIMS[1:]):
        key, kw, kb = jax.random.split(key, 3)
        bound = 1.0 / float(fan_in) ** 0.5
        weights.append(jax.random.uniform(kw, (fan_in, fan_out), jnp.float32, -bound, bound))
        biases.append(jax.random.uniform(kb, (1, fan_out), jnp.float32, -bound, bound))
    return weights, biases


def pad_params(weights, biases):
    """Zero-pad to kernel widths; weights -> bf16 (MXU full rate), biases stay f32."""
    weights_pad, biases_pad = [], []
    for li, (w, b) in enumerate(zip(weights, biases)):
        in_k, out_k = KDIMS[li], KDIMS[li + 1]
        wp = jnp.zeros((in_k, out_k), jnp.float32).at[:w.shape[0], :w.shape[1]].set(w)
        bp = jnp.zeros((1, out_k), jnp.float32).at[:, :b.shape[1]].set(b)
        weights_pad.append(wp.astype(jnp.bfloat16))
        biases_pad.append(bp)
    return weights_pad, biases_pad


def reference_forward_f32(x, weights, biases):
    """Pure-JAX f32 reference matching the PyTorch forward exactly."""
    h = x
    encoded = None
    for i in range(N_LAYERS):
        h = h @ weights[i] + biases[i]
        if i == 3:
            encoded = h
        elif i == N_LAYERS - 1:
            h = jax.nn.sigmoid(h)
        else:
            h = jnp.maximum(h, 0.0)
    return encoded, h


def reference_forward_matched(x_bf16, weights_pad, biases_pad):
    """Pure-JAX reference mimicking the kernel math: bf16 dot inputs, f32 accum, bf16 out."""
    h = x_bf16
    encoded = None
    for i in range(N_LAYERS):
        h = jnp.dot(h.astype(jnp.bfloat16), weights_pad[i],
                    preferred_element_type=jnp.float32) + biases_pad[i]
        if i == 3:
            encoded = h[:, :ENC_OUT].astype(jnp.bfloat16)
        elif i == N_LAYERS - 1:
            h = jax.nn.sigmoid(h)
        else:
            h = jnp.maximum(h, 0.0)
    return encoded, h.astype(jnp.bfloat16)


if __name__ == "__main__":
    key = jax.random.PRNGKey(0)
    key, kx = jax.random.split(key)

    # 8 grid steps of TILE_B=256 (>=4 per TensorCore on v7x); weights <10% of HBM bytes.
    B = 2048
    x_f32 = jax.random.uniform(kx, (B, N_IN), jnp.float32)   # MNIST-like pixels in [0, 1)
    x = x_f32.astype(jnp.bfloat16)                           # input lives in HBM as bf16

    weights_f32, biases_f32 = init_params(key)
    weights_pad, biases_pad = pad_params(weights_f32, biases_f32)

    encoded, decoded = autoencoder_forward(x, weights_pad, biases_pad)
    jax.block_until_ready((encoded, decoded))

    assert encoded.shape == (B, ENC_OUT) and decoded.shape == (B, N_IN)
    assert encoded.dtype == jnp.bfloat16 and decoded.dtype == jnp.bfloat16

    enc32 = encoded.astype(jnp.float32)
    dec32 = decoded.astype(jnp.float32)

    # Kernel exactness vs. a reference using the same bf16-input/weight, f32-accum math.
    m_enc, m_dec = reference_forward_matched(x, weights_pad, biases_pad)
    assert jnp.allclose(enc32, m_enc.astype(jnp.float32), atol=2e-2, rtol=2e-2)
    assert jnp.allclose(dec32, m_dec.astype(jnp.float32), atol=2e-2, rtol=2e-2)

    # Semantic fidelity vs. the full-f32 PyTorch-equivalent reference (loose tolerance
    # accounts only for bf16 quantization of input / weights / outputs).
    f_enc, f_dec = reference_forward_f32(x.astype(jnp.float32), weights_f32, biases_f32)
    assert jnp.allclose(enc32, f_enc, atol=1e-1, rtol=1e-1)
    assert jnp.allclose(dec32, f_dec, atol=5e-2, rtol=5e-2)

    print("KERNEL_OK")
</pallas_src>

<mosaic_0001>
module attributes {stable_mosaic.version = 11 : i64} {
  func.func @_autoencoder_kernel(%arg0: i32, %arg1: memref<256x784xbf16, #tpu.memory_space<vmem>>, %arg2: memref<784x512xbf16, #tpu.memory_space<vmem>>, %arg3: memref<512x256xbf16, #tpu.memory_space<vmem>>, %arg4: memref<256x128xbf16, #tpu.memory_space<vmem>>, %arg5: memref<128x128xbf16, #tpu.memory_space<vmem>>, %arg6: memref<128x128xbf16, #tpu.memory_space<vmem>>, %arg7: memref<128x256xbf16, #tpu.memory_space<vmem>>, %arg8: memref<256x512xbf16, #tpu.memory_space<vmem>>, %arg9: memref<512x784xbf16, #tpu.memory_space<vmem>>, %arg10: memref<1x512xf32, #tpu.memory_space<vmem>>, %arg11: memref<1x256xf32, #tpu.memory_space<vmem>>, %arg12: memref<1x128xf32, #tpu.memory_space<vmem>>, %arg13: memref<1x128xf32, #tpu.memory_space<vmem>>, %arg14: memref<1x128xf32, #tpu.memory_space<vmem>>, %arg15: memref<1x256xf32, #tpu.memory_space<vmem>>, %arg16: memref<1x512xf32, #tpu.memory_space<vmem>>, %arg17: memref<1x784xf32, #tpu.memory_space<vmem>>, %arg18: memref<256x49xbf16, #tpu.memory_space<vmem>>, %arg19: memref<256x784xbf16, #tpu.memory_space<vmem>>) attributes {dimension_semantics = [#tpu.dimension_semantics<parallel>], iteration_bounds = array<i64: 8>, scalar_prefetch = 0 : i64, scratch_operands = 0 : i64, tpu.core_type = #tpu.core_type<tc>, window_params = [{transform_indices = @transform_0, window_bounds = array<i64: 256, 784>}, {pipeline_mode = #tpu.pipeline_mode<synchronous>, transform_indices = @transform_1, window_bounds = array<i64: 784, 512>}, {pipeline_mode = #tpu.pipeline_mode<synchronous>, transform_indices = @transform_2, window_bounds = array<i64: 512, 256>}, {pipeline_mode = #tpu.pipeline_mode<synchronous>, transform_indices = @transform_3, window_bounds = array<i64: 256, 128>}, {pipeline_mode = #tpu.pipeline_mode<synchronous>, transform_indices = @transform_4, window_bounds = array<i64: 128, 128>}, {pipeline_mode = #tpu.pipeline_mode<synchronous>, transform_indices = @transform_5, window_bounds = array<i64: 128, 128>}, {pipeline_mode = #tpu.pipeline_mode<synchronous>, transform_indices = @transform_6, window_bounds = array<i64: 128, 256>}, {pipeline_mode = #tpu.pipeline_mode<synchronous>, transform_indices = @transform_7, window_bounds = array<i64: 256, 512>}, {pipeline_mode = #tpu.pipeline_mode<synchronous>, transform_indices = @transform_8, window_bounds = array<i64: 512, 784>}, {pipeline_mode = #tpu.pipeline_mode<synchronous>, transform_indices = @transform_9, window_bounds = array<i64: 1, 512>}, {pipeline_mode = #tpu.pipeline_mode<synchronous>, transform_indices = @transform_10, window_bounds = array<i64: 1, 256>}, {pipeline_mode = #tpu.pipeline_mode<synchronous>, transform_indices = @transform_11, window_bounds = array<i64: 1, 128>}, {pipeline_mode = #tpu.pipeline_mode<synchronous>, transform_indices = @transform_12, window_bounds = array<i64: 1, 128>}, {pipeline_mode = #tpu.pipeline_mode<synchronous>, transform_indices = @transform_13, window_bounds = array<i64: 1, 128>}, {pipeline_mode = #tpu.pipeline_mode<synchronous>, transform_indices = @transform_14, window_bounds = array<i64: 1, 256>}, {pipeline_mode = #tpu.pipeline_mode<synchronous>, transform_indices = @transform_15, window_bounds = array<i64: 1, 512>}, {pipeline_mode = #tpu.pipeline_mode<synchronous>, transform_indices = @transform_16, window_bounds = array<i64: 1, 784>}, {transform_indices = @transform_17, window_bounds = array<i64: 256, 49>}, {transform_indices = @transform_18, window_bounds = array<i64: 256, 784>}]} {
    %c0 = arith.constant 0 : index
    %c0_0 = arith.constant 0 : index
    %0 = vector.load %arg1[%c0, %c0_0] : memref<256x784xbf16, #tpu.memory_space<vmem>>, vector<256x784xbf16>
    %c0_1 = arith.constant 0 : index
    %c0_2 = arith.constant 0 : index
    %1 = vector.load %arg2[%c0_1, %c0_2] : memref<784x512xbf16, #tpu.memory_space<vmem>>, vector<784x512xbf16>
    %cst = arith.constant dense<0.000000e+00> : vector<256x512xf32>
    %2 = tpu.matmul %0, %1, %cst {dimension_numbers = #tpu.dot_dimension_numbers<[1], [0], [0], [1], [0, 0, 1, 1], [], []>} : vector<256x784xbf16>, vector<784x512xbf16>, vector<256x512xf32> -> vector<256x512xf32>
    %c0_3 = arith.constant 0 : index
    %c0_4 = arith.constant 0 : index
    %3 = vector.load %arg10[%c0_3, %c0_4] : memref<1x512xf32, #tpu.memory_space<vmem>>, vector<1x512xf32>
    %4 = vector.broadcast %3 : vector<1x512xf32> to vector<256x512xf32>
    %5 = arith.addf %2, %4 : vector<256x512xf32>
    %cst_5 = arith.constant 0.000000e+00 : f32
    %6 = vector.broadcast %cst_5 : f32 to vector<256x512xf32>
    %7 = arith.maximumf %5, %6 : vector<256x512xf32>
    %8 = arith.truncf %7 : vector<256x512xf32> to vector<256x512xbf16>
    %c0_6 = arith.constant 0 : index
    %c0_7 = arith.constant 0 : index
    %9 = vector.load %arg3[%c0_6, %c0_7] : memref<512x256xbf16, #tpu.memory_space<vmem>>, vector<512x256xbf16>
    %cst_8 = arith.constant dense<0.000000e+00> : vector<256x256xf32>
    %10 = tpu.matmul %8, %9, %cst_8 {dimension_numbers = #tpu.dot_dimension_numbers<[1], [0], [0], [1], [0, 0, 1, 1], [], []>} : vector<256x512xbf16>, vector<512x256xbf16>, vector<256x256xf32> -> vector<256x256xf32>
    %c0_9 = arith.constant 0 : index
    %c0_10 = arith.constant 0 : index
    %11 = vector.load %arg11[%c0_9, %c0_10] : memref<1x256xf32, #tpu.memory_space<vmem>>, vector<1x256xf32>
    %12 = vector.broadcast %11 : vector<1x256xf32> to vector<256x256xf32>
    %13 = arith.addf %10, %12 : vector<256x256xf32>
    %cst_11 = arith.constant 0.000000e+00 : f32
    %14 = vector.broadcast %cst_11 : f32 to vector<256x256xf32>
    %15 = arith.maximumf %13, %14 : vector<256x256xf32>
    %16 = arith.truncf %15 : vector<256x256xf32> to vector<256x256xbf16>
    %c0_12 = arith.constant 0 : index
    %c0_13 = arith.constant 0 : index
    %17 = vector.load %arg4[%c0_12, %c0_13] : memref<256x128xbf16, #tpu.memory_space<vmem>>, vector<256x128xbf16>
    %cst_14 = arith.constant dense<0.000000e+00> : vector<256x128xf32>
    %18 = tpu.matmul %16, %17, %cst_14 {dimension_numbers = #tpu.dot_dimension_numbers<[1], [0], [0], [1], [0, 0, 1, 1], [], []>} : vector<256x256xbf16>, vector<256x128xbf16>, vector<256x128xf32> -> vector<256x128xf32>
    %c0_15 = arith.constant 0 : index
    %c0_16 = arith.constant 0 : index
    %19 = vector.load %arg12[%c0_15, %c0_16] : memref<1x128xf32, #tpu.memory_space<vmem>>, vector<1x128xf32>
    %20 = vector.broadcast %19 : vector<1x128xf32> to vector<256x128xf32>
    %21 = arith.addf %18, %20 : vector<256x128xf32>
    %cst_17 = arith.constant 0.000000e+00 : f32
    %22 = vector.broadcast %cst_17 : f32 to vector<256x128xf32>
    %23 = arith.maximumf %21, %22 : vector<256x128xf32>
    %24 = arith.truncf %23 : vector<256x128xf32> to vector<256x128xbf16>
    %c0_18 = arith.constant 0 : index
    %c0_19 = arith.constant 0 : index
    %25 = vector.load %arg5[%c0_18, %c0_19] : memref<128x128xbf16, #tpu.memory_space<vmem>>, vector<128x128xbf16>
    %cst_20 = arith.constant dense<0.000000e+00> : vector<256x128xf32>
    %26 = tpu.matmul %24, %25, %cst_20 {dimension_numbers = #tpu.dot_dimension_numbers<[1], [0], [0], [1], [0, 0, 1, 1], [], []>} : vector<256x128xbf16>, vector<128x128xbf16>, vector<256x128xf32> -> vector<256x128xf32>
    %c0_21 = arith.constant 0 : index
    %c0_22 = arith.constant 0 : index
    %27 = vector.load %arg13[%c0_21, %c0_22] : memref<1x128xf32, #tpu.memory_space<vmem>>, vector<1x128xf32>
    %28 = vector.broadcast %27 : vector<1x128xf32> to vector<256x128xf32>
    %29 = arith.addf %26, %28 : vector<256x128xf32>
    %30 = vector.extract_strided_slice %29 {offsets = [0, 0], sizes = [256, 49], strides = [1, 1]} : vector<256x128xf32> to vector<256x49xf32>
    %31 = arith.truncf %30 : vector<256x49xf32> to vector<256x49xbf16>
    %c0_23 = arith.constant 0 : index
    %c0_24 = arith.constant 0 : index
    %32 = vector.load %arg18[%c0_23, %c0_24] : memref<256x49xbf16, #tpu.memory_space<vmem>>, vector<256x49xbf16>
    tpu.vector_store %arg18[%c0_23, %c0_24], %31 {strides = array<i32>} : memref<256x49xbf16, #tpu.memory_space<vmem>>, vector<256x49xbf16>,
    %33 = arith.truncf %29 : vector<256x128xf32> to vector<256x128xbf16>
    %c0_25 = arith.constant 0 : index
    %c0_26 = arith.constant 0 : index
    %34 = vector.load %arg6[%c0_25, %c0_26] : memref<128x128xbf16, #tpu.memory_space<vmem>>, vector<128x128xbf16>
    %cst_27 = arith.constant dense<0.000000e+00> : vector<256x128xf32>
    %35 = tpu.matmul %33, %34, %cst_27 {dimension_numbers = #tpu.dot_dimension_numbers<[1], [0], [0], [1], [0, 0, 1, 1], [], []>} : vector<256x128xbf16>, vector<128x128xbf16>, vector<256x128xf32> -> vector<256x128xf32>
    %c0_28 = arith.constant 0 : index
    %c0_29 = arith.constant 0 : index
    %36 = vector.load %arg14[%c0_28, %c0_29] : memref<1x128xf32, #tpu.memory_space<vmem>>, vector<1x128xf32>
    %37 = vector.broadcast %36 : vector<1x128xf32> to vector<256x128xf32>
    %38 = arith.addf %35, %37 : vector<256x128xf32>
    %cst_30 = arith.constant 0.000000e+00 : f32
    %39 = vector.broadcast %cst_30 : f32 to vector<256x128xf32>
    %40 = arith.maximumf %38, %39 : vector<256x128xf32>
    %41 = arith.truncf %40 : vector<256x128xf32> to vector<256x128xbf16>
    %c0_31 = arith.constant 0 : index
    %c0_32 = arith.constant 0 : index
    %42 = vector.load %arg7[%c0_31, %c0_32] : memref<128x256xbf16, #tpu.memory_space<vmem>>, vector<128x256xbf16>
    %cst_33 = arith.constant dense<0.000000e+00> : vector<256x256xf32>
    %43 = tpu.matmul %41, %42, %cst_33 {dimension_numbers = #tpu.dot_dimension_numbers<[1], [0], [0], [1], [0, 0, 1, 1], [], []>} : vector<256x128xbf16>, vector<128x256xbf16>, vector<256x256xf32> -> vector<256x256xf32>
    %c0_34 = arith.constant 0 : index
    %c0_35 = arith.constant 0 : index
    %44 = vector.load %arg15[%c0_34, %c0_35] : memref<1x256xf32, #tpu.memory_space<vmem>>, vector<1x256xf32>
    %45 = vector.broadcast %44 : vector<1x256xf32> to vector<256x256xf32>
    %46 = arith.addf %43, %45 : vector<256x256xf32>
    %cst_36 = arith.constant 0.000000e+00 : f32
    %47 = vector.broadcast %cst_36 : f32 to vector<256x256xf32>
    %48 = arith.maximumf %46, %47 : vector<256x256xf32>
    %49 = arith.truncf %48 : vector<256x256xf32> to vector<256x256xbf16>
    %c0_37 = arith.constant 0 : index
    %c0_38 = arith.constant 0 : index
    %50 = vector.load %arg8[%c0_37, %c0_38] : memref<256x512xbf16, #tpu.memory_space<vmem>>, vector<256x512xbf16>
    %cst_39 = arith.constant dense<0.000000e+00> : vector<256x512xf32>
    %51 = tpu.matmul %49, %50, %cst_39 {dimension_numbers = #tpu.dot_dimension_numbers<[1], [0], [0], [1], [0, 0, 1, 1], [], []>} : vector<256x256xbf16>, vector<256x512xbf16>, vector<256x512xf32> -> vector<256x512xf32>
    %c0_40 = arith.constant 0 : index
    %c0_41 = arith.constant 0 : index
    %52 = vector.load %arg16[%c0_40, %c0_41] : memref<1x512xf32, #tpu.memory_space<vmem>>, vector<1x512xf32>
    %53 = vector.broadcast %52 : vector<1x512xf32> to vector<256x512xf32>
    %54 = arith.addf %51, %53 : vector<256x512xf32>
    %cst_42 = arith.constant 0.000000e+00 : f32
    %55 = vector.broadcast %cst_42 : f32 to vector<256x512xf32>
    %56 = arith.maximumf %54, %55 : vector<256x512xf32>
    %57 = arith.truncf %56 : vector<256x512xf32> to vector<256x512xbf16>
    %c0_43 = arith.constant 0 : index
    %c0_44 = arith.constant 0 : index
    %58 = vector.load %arg9[%c0_43, %c0_44] : memref<512x784xbf16, #tpu.memory_space<vmem>>, vector<512x784xbf16>
    %cst_45 = arith.constant dense<0.000000e+00> : vector<256x784xf32>
    %59 = tpu.matmul %57, %58, %cst_45 {dimension_numbers = #tpu.dot_dimension_numbers<[1], [0], [0], [1], [0, 0, 1, 1], [], []>} : vector<256x512xbf16>, vector<512x784xbf16>, vector<256x784xf32> -> vector<256x784xf32>
    %c0_46 = arith.constant 0 : index
    %c0_47 = arith.constant 0 : index
    %60 = vector.load %arg17[%c0_46, %c0_47] : memref<1x784xf32, #tpu.memory_space<vmem>>, vector<1x784xf32>
    %61 = vector.broadcast %60 : vector<1x784xf32> to vector<256x784xf32>
    %62 = arith.addf %59, %61 : vector<256x784xf32>
    %63 = arith.negf %62 : vector<256x784xf32>
    %64 = math.exp %63 : vector<256x784xf32>
    %cst_48 = arith.constant 1.000000e+00 : f32
    %65 = vector.broadcast %cst_48 : f32 to vector<256x784xf32>
    %66 = arith.addf %65, %64 : vector<256x784xf32>
    %67 = arith.divf %65, %66 : vector<256x784xf32>
    %68 = arith.truncf %67 : vector<256x784xf32> to vector<256x784xbf16>
    %c0_49 = arith.constant 0 : index
    %c0_50 = arith.constant 0 : index
    %69 = vector.load %arg19[%c0_49, %c0_50] : memref<256x784xbf16, #tpu.memory_space<vmem>>, vector<256x784xbf16>
    tpu.vector_store %arg19[%c0_49, %c0_50], %68 {strides = array<i32>} : memref<256x784xbf16, #tpu.memory_space<vmem>>, vector<256x784xbf16>,
    return
  }
  func.func @transform_0(%arg0: i32) -> (i32, i32) {
    %c0_i32 = arith.constant 0 : i32
    %c0_i32_0 = arith.constant 0 : i32
    return %arg0, %c0_i32 : i32, i32
  }
  func.func @transform_1(%arg0: i32) -> (i32, i32) {
    %c0_i32 = arith.constant 0 : i32
    %c0_i32_0 = arith.constant 0 : i32
    %c0_i32_1 = arith.constant 0 : i32
    return %c0_i32, %c0_i32_0 : i32, i32
  }
  func.func @transform_2(%arg0: i32) -> (i32, i32) {
    %c0_i32 = arith.constant 0 : i32
    %c0_i32_0 = arith.constant 0 : i32
    %c0_i32_1 = arith.constant 0 : i32
    return %c0_i32, %c0_i32_0 : i32, i32
  }
  func.func @transform_3(%arg0: i32) -> (i32, i32) {
    %c0_i32 = arith.constant 0 : i32
    %c0_i32_0 = arith.constant 0 : i32
    %c0_i32_1 = arith.constant 0 : i32
    return %c0_i32, %c0_i32_0 : i32, i32
  }
  func.func @transform_4(%arg0: i32) -> (i32, i32) {
    %c0_i32 = arith.constant 0 : i32
    %c0_i32_0 = arith.constant 0 : i32
    %c0_i32_1 = arith.constant 0 : i32
    return %c0_i32, %c0_i32_0 : i32, i32
  }
  func.func @transform_5(%arg0: i32) -> (i32, i32) {
    %c0_i32 = arith.constant 0 : i32
    %c0_i32_0 = arith.constant 0 : i32
    %c0_i32_1 = arith.constant 0 : i32
    return %c0_i32, %c0_i32_0 : i32, i32
  }
  func.func @transform_6(%arg0: i32) -> (i32, i32) {
    %c0_i32 = arith.constant 0 : i32
    %c0_i32_0 = arith.constant 0 : i32
    %c0_i32_1 = arith.constant 0 : i32
    return %c0_i32, %c0_i32_0 : i32, i32
  }
  func.func @transform_7(%arg0: i32) -> (i32, i32) {
    %c0_i32 = arith.constant 0 : i32
    %c0_i32_0 = arith.constant 0 : i32
    %c0_i32_1 = arith.constant 0 : i32
    return %c0_i32, %c0_i32_0 : i32, i32
  }
  func.func @transform_8(%arg0: i32) -> (i32, i32) {
    %c0_i32 = arith.constant 0 : i32
    %c0_i32_0 = arith.constant 0 : i32
    %c0_i32_1 = arith.constant 0 : i32
    return %c0_i32, %c0_i32_0 : i32, i32
  }
  func.func @transform_9(%arg0: i32) -> (i32, i32) {
    %c0_i32 = arith.constant 0 : i32
    %c0_i32_0 = arith.constant 0 : i32
    %c0_i32_1 = arith.constant 0 : i32
    return %c0_i32, %c0_i32_0 : i32, i32
  }
  func.func @transform_10(%arg0: i32) -> (i32, i32) {
    %c0_i32 = arith.constant 0 : i32
    %c0_i32_0 = arith.constant 0 : i32
    %c0_i32_1 = arith.constant 0 : i32
    return %c0_i32, %c0_i32_0 : i32, i32
  }
  func.func @transform_11(%arg0: i32) -> (i32, i32) {
    %c0_i32 = arith.constant 0 : i32
    %c0_i32_0 = arith.constant 0 : i32
    %c0_i32_1 = arith.constant 0 : i32
    return %c0_i32, %c0_i32_0 : i32, i32
  }
  func.func @transform_12(%arg0: i32) -> (i32, i32) {
    %c0_i32 = arith.constant 0 : i32
    %c0_i32_0 = arith.constant 0 : i32
    %c0_i32_1 = arith.constant 0 : i32
    return %c0_i32, %c0_i32_0 : i32, i32
  }
  func.func @transform_13(%arg0: i32) -> (i32, i32) {
    %c0_i32 = arith.constant 0 : i32
    %c0_i32_0 = arith.constant 0 : i32
    %c0_i32_1 = arith.constant 0 : i32
    return %c0_i32, %c0_i32_0 : i32, i32
  }
  func.func @transform_14(%arg0: i32) -> (i32, i32) {
    %c0_i32 = arith.constant 0 : i32
    %c0_i32_0 = arith.constant 0 : i32
    %c0_i32_1 = arith.constant 0 : i32
    return %c0_i32, %c0_i32_0 : i32, i32
  }
  func.func @transform_15(%arg0: i32) -> (i32, i32) {
    %c0_i32 = arith.constant 0 : i32
    %c0_i32_0 = arith.constant 0 : i32
    %c0_i32_1 = arith.constant 0 : i32
    return %c0_i32, %c0_i32_0 : i32, i32
  }
  func.func @transform_16(%arg0: i32) -> (i32, i32) {
    %c0_i32 = arith.constant 0 : i32
    %c0_i32_0 = arith.constant 0 : i32
    %c0_i32_1 = arith.constant 0 : i32
    return %c0_i32, %c0_i32_0 : i32, i32
  }
  func.func @transform_17(%arg0: i32) -> (i32, i32) {
    %c0_i32 = arith.constant 0 : i32
    %c0_i32_0 = arith.constant 0 : i32
    return %arg0, %c0_i32 : i32, i32
  }
  func.func @transform_18(%arg0: i32) -> (i32, i32) {
    %c0_i32 = arith.constant 0 : i32
    %c0_i32_0 = arith.constant 0 : i32
    return %arg0, %c0_i32 : i32, i32
  }
}

</mosaic_0001>

<llo_original>
// kernel: autoencoder_forward.1
$region0: #{autoencoder_forward.1}
  #allocation0 [shape = 'u32[]', space=smem, size = 0x4, offset = 0x4, fixed_abs, tag = 'smem constant byte address 0x4 - core index']
  #allocation1 [shape = 'u32[144,128]{1,0:T(1,128)}', space=vmem, size = 0x12000, scoped, tag = 'internal scratch']
  %s0 = inlined_call_operand.vmem [shape: bf16[2048,784], index: 0, kind: input, shape index: {}]
  %s1 = inlined_call_operand.vmem [shape: bf16[784,512], index: 1, kind: input, shape index: {}]
  %s2 = inlined_call_operand.vmem [shape: bf16[512,256], index: 2, kind: input, shape index: {}]
  %s3 = inlined_call_operand.vmem [shape: bf16[256,128], index: 3, kind: input, shape index: {}]
  %s4 = inlined_call_operand.vmem [shape: bf16[128,128], index: 4, kind: input, shape index: {}]
  %s5 = inlined_call_operand.vmem [shape: bf16[128,128], index: 5, kind: input, shape index: {}]
  %s6 = inlined_call_operand.vmem [shape: bf16[128,256], index: 6, kind: input, shape index: {}]
  %s7 = inlined_call_operand.vmem [shape: bf16[256,512], index: 7, kind: input, shape index: {}]
  %s8 = inlined_call_operand.vmem [shape: bf16[512,784], index: 8, kind: input, shape index: {}]
  %s9 = inlined_call_operand.vmem [shape: f32[1,512], index: 9, kind: input, shape index: {}]
  %s10 = inlined_call_operand.vmem [shape: f32[1,256], index: 10, kind: input, shape index: {}]
  %s11 = inlined_call_operand.vmem [shape: f32[1,128], index: 11, kind: input, shape index: {}]
  %s12 = inlined_call_operand.vmem [shape: f32[1,128], index: 12, kind: input, shape index: {}]
  %s13 = inlined_call_operand.vmem [shape: f32[1,128], index: 13, kind: input, shape index: {}]
  %s14 = inlined_call_operand.vmem [shape: f32[1,256], index: 14, kind: input, shape index: {}]
  %s15 = inlined_call_operand.vmem [shape: f32[1,512], index: 15, kind: input, shape index: {}]
  %s16 = inlined_call_operand.vmem [shape: f32[1,784], index: 16, kind: input, shape index: {}]
  %s17 = inlined_call_operand.vmem [shape: bf16[2048,49], index: 17, kind: output, shape index: {0}]
  %s18 = inlined_call_operand.vmem [shape: bf16[2048,784], index: 18, kind: output, shape index: {1}]
  %19 = xla_tuple %s17, %s18
  %s20 = sld [smem:[#allocation0]]
  $region109: #{autoencoder_forward.1} parent=0
    _
  %s22 = ssub.s32 1, %s20
  %s23 = scalar_select 0, %s22, %s20
  loop: start=0, step=1, limit=10
  $region2: #{autoencoder_forward.1} parent=0 // loop_pre_header
    _
  $region3: #{autoencoder_forward.1} parent=0 // loop_header
    %s25 = sphi 0, %s29
    %p26 = scmp.ge.s32.totalorder %s25, 10
    %s35 = sphi 0, %s37
    %s38 = sphi 0, %s35
    %s39 = sphi 0, %s38
    %s55 = sphi 0, %s39
    %s59 = sphi 0, %s59
    %s61 = sphi 0, %s59
    %s62 = sphi 0, %s61
    %s76 = sphi 0, %s62
    %s80 = sphi 0, %s80
    %s82 = sphi 0, %s80
    %s83 = sphi 0, %s82
    %s97 = sphi 0, %s83
    %s101 = sphi 0, %s101
    %s103 = sphi 0, %s101
    %s104 = sphi 0, %s103
    %s118 = sphi 0, %s104
    %s122 = sphi 0, %s122
    %s124 = sphi 0, %s122
    %s125 = sphi 0, %s124
    %s139 = sphi 0, %s125
    %s143 = sphi 0, %s143
    %s145 = sphi 0, %s143
    %s146 = sphi 0, %s145
    %s160 = sphi 0, %s146
    %s164 = sphi 0, %s164
    %s166 = sphi 0, %s164
    %s167 = sphi 0, %s166
    %s181 = sphi 0, %s167
    %s185 = sphi 0, %s185
    %s187 = sphi 0, %s185
    %s188 = sphi 0, %s187
    %s202 = sphi 0, %s188
    %s206 = sphi 0, %s206
    %s208 = sphi 0, %s206
    %s209 = sphi 0, %s208
    %s223 = sphi 0, %s209
    %s227 = sphi 0, %s227
    %s229 = sphi 0, %s227
    %s230 = sphi 0, %s229
    %s244 = sphi 0, %s230
    %s248 = sphi 0, %s248
    %s250 = sphi 0, %s248
    %s251 = sphi 0, %s250
    %s265 = sphi 0, %s251
    %s269 = sphi 0, %s269
    %s271 = sphi 0, %s269
    %s272 = sphi 0, %s271
    %s286 = sphi 0, %s272
    %s290 = sphi 0, %s290
    %s292 = sphi 0, %s290
    %s293 = sphi 0, %s292
    %s307 = sphi 0, %s293
    %s311 = sphi 0, %s311
    %s313 = sphi 0, %s311
    %s314 = sphi 0, %s313
    %s328 = sphi 0, %s314
    %s332 = sphi 0, %s332
    %s334 = sphi 0, %s332
    %s335 = sphi 0, %s334
    %s349 = sphi 0, %s335
    %s353 = sphi 0, %s353
    %s355 = sphi 0, %s353
    %s356 = sphi 0, %s355
    %s370 = sphi 0, %s356
    %s374 = sphi 0, %s374
    %s376 = sphi 0, %s374
    %s377 = sphi 0, %s376
    %s391 = sphi 0, %s377
    %s397 = sphi 0, %s399
    %s400 = sphi 0, %s397
    %s401 = sphi 0, %s400
    %s417 = sphi 0, %s401
    %s423 = sphi 0, %s425
    %s426 = sphi 0, %s423
    %s427 = sphi 0, %s426
    %s443 = sphi 0, %s427
  $region4: #{autoencoder_forward.1} parent=0 // loop_header_branch
    %28 = sbr.rel (%p26) target = $region8
  $region5: #{autoencoder_forward.1} parent=0 // loop_body
    %s30 = ssub.s32 %s25, 1
    %s31 = ssub.s32 %s25, 2
    %s32 = sadd.s32 %s25, 1
    %s33 = ssub.s32 %s25, %s32
    %p34 = scmp.eq.s32.totalorder %s33, 0
    %s36 = sadd.s32 %s35, 1
    %s37 = scalar_select %p34, %s35, %s36
    %p40 = pneg %p34
    %p41 = scmp.eq.s32.totalorder %s25, 7
    %p42 = por %p40, %p41
    %p43 = scmp.ne.s32.totalorder %s35, %s38
    %p44 = scmp.eq.s32.totalorder %s25, 0
    %p45 = por %p43, %p44
    %p46 = scmp.ne.s32.totalorder %s35, %s38
    %p47 = scmp.eq.s32.totalorder %s30, 7
    %p48 = por %p46, %p47
    %p49 = scmp.ne.s32.totalorder %s38, %s39
    %p50 = scmp.eq.s32.totalorder %s30, 0
    %p51 = por %p49, %p50
    %p52 = scmp.ne.s32.totalorder %s38, %s39
    %p53 = scmp.eq.s32.totalorder %s31, 7
    %p54 = por %p52, %p53
    %p56 = scmp.ne.s32.totalorder %s39, %s55
    %p57 = scmp.eq.s32.totalorder %s31, 0
    %p58 = por %p56, %p57
    %s60 = sadd.s32 %s59, 1
    %p63 = scmp.eq.s32.totalorder %s25, 7
    %p64 = scmp.ne.s32.totalorder %s59, %s61
    %p65 = scmp.eq.s32.totalorder %s25, 0
    %p66 = por %p64, %p65
    %p67 = scmp.ne.s32.totalorder %s59, %s61
    %p68 = scmp.eq.s32.totalorder %s30, 7
    %p69 = por %p67, %p68
    %p70 = scmp.ne.s32.totalorder %s61, %s62
    %p71 = scmp.eq.s32.totalorder %s30, 0
    %p72 = por %p70, %p71
    %p73 = scmp.ne.s32.totalorder %s61, %s62
    %p74 = scmp.eq.s32.totalorder %s31, 7
    %p75 = por %p73, %p74
    %p77 = scmp.ne.s32.totalorder %s62, %s76
    %p78 = scmp.eq.s32.totalorder %s31, 0
    %p79 = por %p77, %p78
    %s81 = sadd.s32 %s80, 1
    %p84 = scmp.eq.s32.totalorder %s25, 7
    %p85 = scmp.ne.s32.totalorder %s80, %s82
    %p86 = scmp.eq.s32.totalorder %s25, 0
    %p87 = por %p85, %p86
    %p88 = scmp.ne.s32.totalorder %s80, %s82
    %p89 = scmp.eq.s32.totalorder %s30, 7
    %p90 = por %p88, %p89
    %p91 = scmp.ne.s32.totalorder %s82, %s83
    %p92 = scmp.eq.s32.totalorder %s30, 0
    %p93 = por %p91, %p92
    %p94 = scmp.ne.s32.totalorder %s82, %s83
    %p95 = scmp.eq.s32.totalorder %s31, 7
    %p96 = por %p94, %p95
    %p98 = scmp.ne.s32.totalorder %s83, %s97
    %p99 = scmp.eq.s32.totalorder %s31, 0
    %p100 = por %p98, %p99
    %s102 = sadd.s32 %s101, 1
    %p105 = scmp.eq.s32.totalorder %s25, 7
    %p106 = scmp.ne.s32.totalorder %s101, %s103
    %p107 = scmp.eq.s32.totalorder %s25, 0
    %p108 = por %p106, %p107
    %p109 = scmp.ne.s32.totalorder %s101, %s103
    %p110 = scmp.eq.s32.totalorder %s30, 7
    %p111 = por %p109, %p110
    %p112 = scmp.ne.s32.totalorder %s103, %s104
    %p113 = scmp.eq.s32.totalorder %s30, 0
    %p114 = por %p112, %p113
    %p115 = scmp.ne.s32.totalorder %s103, %s104
    %p116 = scmp.eq.s32.totalorder %s31, 7
    %p117 = por %p115, %p116
    %p119 = scmp.ne.s32.totalorder %s104, %s118
    %p120 = scmp.eq.s32.totalorder %s31, 0
    %p121 = por %p119, %p120
    %s123 = sadd.s32 %s122, 1
    %p126 = scmp.eq.s32.totalorder %s25, 7
    %p127 = scmp.ne.s32.totalorder %s122, %s124
    %p128 = scmp.eq.s32.totalorder %s25, 0
    %p129 = por %p127, %p128
    %p130 = scmp.ne.s32.totalorder %s122, %s124
    %p131 = scmp.eq.s32.totalorder %s30, 7
    %p132 = por %p130, %p131
    %p133 = scmp.ne.s32.totalorder %s124, %s125
    %p134 = scmp.eq.s32.totalorder %s30, 0
    %p135 = por %p133, %p134
    %p136 = scmp.ne.s32.totalorder %s124, %s125
    %p137 = scmp.eq.s32.totalorder %s31, 7
    %p138 = por %p136, %p137
    %p140 = scmp.ne.s32.totalorder %s125, %s139
    %p141 = scmp.eq.s32.totalorder %s31, 0
    %p142 = por %p140, %p141
    %s144 = sadd.s32 %s143, 1
    %p147 = scmp.eq.s32.totalorder %s25, 7
    %p148 = scmp.ne.s32.totalorder %s143, %s145
    %p149 = scmp.eq.s32.totalorder %s25, 0
    %p150 = por %p148, %p149
    %p151 = scmp.ne.s32.totalorder %s143, %s145
    %p152 = scmp.eq.s32.totalorder %s30, 7
    %p153 = por %p151, %p152
    %p154 = scmp.ne.s32.totalorder %s145, %s146
    %p155 = scmp.eq.s32.totalorder %s30, 0
    %p156 = por %p154, %p155
    %p157 = scmp.ne.s32.totalorder %s145, %s146
    %p158 = scmp.eq.s32.totalorder %s31, 7
    %p159 = por %p157, %p158
    %p161 = scmp.ne.s32.totalorder %s146, %s160
    %p162 = scmp.eq.s32.totalorder %s31, 0
    %p163 = por %p161, %p162
    %s165 = sadd.s32 %s164, 1
    %p168 = scmp.eq.s32.totalorder %s25, 7
    %p169 = scmp.ne.s32.totalorder %s164, %s166
    %p170 = scmp.eq.s32.totalorder %s25, 0
    %p171 = por %p169, %p170
    %p172 = scmp.ne.s32.totalorder %s164, %s166
    %p173 = scmp.eq.s32.totalorder %s30, 7
    %p174 = por %p172, %p173
    %p175 = scmp.ne.s32.totalorder %s166, %s167
    %p176 = scmp.eq.s32.totalorder %s30, 0
    %p177 = por %p175, %p176
    %p178 = scmp.ne.s32.totalorder %s166, %s167
    %p179 = scmp.eq.s32.totalorder %s31, 7
    %p180 = por %p178, %p179
    %p182 = scmp.ne.s32.totalorder %s167, %s181
    %p183 = scmp.eq.s32.totalorder %s31, 0
    %p184 = por %p182, %p183
    %s186 = sadd.s32 %s185, 1
    %p189 = scmp.eq.s32.totalorder %s25, 7
    %p190 = scmp.ne.s32.totalorder %s185, %s187
    %p191 = scmp.eq.s32.totalorder %s25, 0
    %p192 = por %p190, %p191
    %p193 = scmp.ne.s32.totalorder %s185, %s187
    %p194 = scmp.eq.s32.totalorder %s30, 7
    %p195 = por %p193, %p194
    %p196 = scmp.ne.s32.totalorder %s187, %s188
    %p197 = scmp.eq.s32.totalorder %s30, 0
    %p198 = por %p196, %p197
    %p199 = scmp.ne.s32.totalorder %s187, %s188
    %p200 = scmp.eq.s32.totalorder %s31, 7
    %p201 = por %p199, %p200
    %p203 = scmp.ne.s32.totalorder %s188, %s202
    %p204 = scmp.eq.s32.totalorder %s31, 0
    %p205 = por %p203, %p204
    %s207 = sadd.s32 %s206, 1
    %p210 = scmp.eq.s32.totalorder %s25, 7
    %p211 = scmp.ne.s32.totalorder %s206, %s208
    %p212 = scmp.eq.s32.totalorder %s25, 0
    %p213 = por %p211, %p212
    %p214 = scmp.ne.s32.totalorder %s206, %s208
    %p215 = scmp.eq.s32.totalorder %s30, 7
    %p216 = por %p214, %p215
    %p217 = scmp.ne.s32.totalorder %s208, %s209
    %p218 = scmp.eq.s32.totalorder %s30, 0
    %p219 = por %p217, %p218
    %p220 = scmp.ne.s32.totalorder %s208, %s209
    %p221 = scmp.eq.s32.totalorder %s31, 7
    %p222 = por %p220, %p221
    %p224 = scmp.ne.s32.totalorder %s209, %s223
    %p225 = scmp.eq.s32.totalorder %s31, 0
    %p226 = por %p224, %p225
    %s228 = sadd.s32 %s227, 1
    %p231 = scmp.eq.s32.totalorder %s25, 7
    %p232 = scmp.ne.s32.totalorder %s227, %s229
    %p233 = scmp.eq.s32.totalorder %s25, 0
    %p234 = por %p232, %p233
    %p235 = scmp.ne.s32.totalorder %s227, %s229
    %p236 = scmp.eq.s32.totalorder %s30, 7
    %p237 = por %p235, %p236
    %p238 = scmp.ne.s32.totalorder %s229, %s230
    %p239 = scmp.eq.s32.totalorder %s30, 0
    %p240 = por %p238, %p239
    %p241 = scmp.ne.s32.totalorder %s229, %s230
    %p242 = scmp.eq.s32.totalorder %s31, 7
    %p243 = por %p241, %p242
    %p245 = scmp.ne.s32.totalorder %s230, %s244
    %p246 = scmp.eq.s32.totalorder %s31, 0
    %p247 = por %p245, %p246
    %s249 = sadd.s32 %s248, 1
    %p252 = scmp.eq.s32.totalorder %s25, 7
    %p253 = scmp.ne.s32.totalorder %s248, %s250
    %p254 = scmp.eq.s32.totalorder %s25, 0
    %p255 = por %p253, %p254
    %p256 = scmp.ne.s32.totalorder %s248, %s250
    %p257 = scmp.eq.s32.totalorder %s30, 7
    %p258 = por %p256, %p257
    %p259 = scmp.ne.s32.totalorder %s250, %s251
    %p260 = scmp.eq.s32.totalorder %s30, 0
    %p261 = por %p259, %p260
    %p262 = scmp.ne.s32.totalorder %s250, %s251
    %p263 = scmp.eq.s32.totalorder %s31, 7
    %p264 = por %p262, %p263
    %p266 = scmp.ne.s32.totalorder %s251, %s265
    %p267 = scmp.eq.s32.totalorder %s31, 0
    %p268 = por %p266, %p267
    %s270 = sadd.s32 %s269, 1
    %p273 = scmp.eq.s32.totalorder %s25, 7
    %p274 = scmp.ne.s32.totalorder %s269, %s271
    %p275 = scmp.eq.s32.totalorder %s25, 0
    %p276 = por %p274, %p275
    %p277 = scmp.ne.s32.totalorder %s269, %s271
    %p278 = scmp.eq.s32.totalorder %s30, 7
    %p279 = por %p277, %p278
    %p280 = scmp.ne.s32.totalorder %s271, %s272
    %p281 = scmp.eq.s32.totalorder %s30, 0
    %p282 = por %p280, %p281
    %p283 = scmp.ne.s32.totalorder %s271, %s272
    %p284 = scmp.eq.s32.totalorder %s31, 7
    %p285 = por %p283, %p284
    %p287 = scmp.ne.s32.totalorder %s272, %s286
    %p288 = scmp.eq.s32.totalorder %s31, 0
    %p289 = por %p287, %p288
    %s291 = sadd.s32 %s290, 1
    %p294 = scmp.eq.s32.totalorder %s25, 7
    %p295 = scmp.ne.s32.totalorder %s290, %s292
    %p296 = scmp.eq.s32.totalorder %s25, 0
    %p297 = por %p295, %p296
    %p298 = scmp.ne.s32.totalorder %s290, %s292
    %p299 = scmp.eq.s32.totalorder %s30, 7
    %p300 = por %p298, %p299
    %p301 = scmp.ne.s32.totalorder %s292, %s293
    %p302 = scmp.eq.s32.totalorder %s30, 0
    %p303 = por %p301, %p302
    %p304 = scmp.ne.s32.totalorder %s292, %s293
    %p305 = scmp.eq.s32.totalorder %s31, 7
    %p306 = por %p304, %p305
    %p308 = scmp.ne.s32.totalorder %s293, %s307
    %p309 = scmp.eq.s32.totalorder %s31, 0
    %p310 = por %p308, %p309
    %s312 = sadd.s32 %s311, 1
    %p315 = scmp.eq.s32.totalorder %s25, 7
    %p316 = scmp.ne.s32.totalorder %s311, %s313
    %p317 = scmp.eq.s32.totalorder %s25, 0
    %p318 = por %p316, %p317
    %p319 = scmp.ne.s32.totalorder %s311, %s313
    %p320 = scmp.eq.s32.totalorder %s30, 7
    %p321 = por %p319, %p320
    %p322 = scmp.ne.s32.totalorder %s313, %s314
    %p323 = scmp.eq.s32.totalorder %s30, 0
    %p324 = por %p322, %p323
    %p325 = scmp.ne.s32.totalorder %s313, %s314
    %p326 = scmp.eq.s32.totalorder %s31, 7
    %p327 = por %p325, %p326
    %p329 = scmp.ne.s32.totalorder %s314, %s328
    %p330 = scmp.eq.s32.totalorder %s31, 0
    %p331 = por %p329, %p330
    %s333 = sadd.s32 %s332, 1
    %p336 = scmp.eq.s32.totalorder %s25, 7
    %p337 = scmp.ne.s32.totalorder %s332, %s334
    %p338 = scmp.eq.s32.totalorder %s25, 0
    %p339 = por %p337, %p338
    %p340 = scmp.ne.s32.totalorder %s332, %s334
    %p341 = scmp.eq.s32.totalorder %s30, 7
    %p342 = por %p340, %p341
    %p343 = scmp.ne.s32.totalorder %s334, %s335
    %p344 = scmp.eq.s32.totalorder %s30, 0
    %p345 = por %p343, %p344
    %p346 = scmp.ne.s32.totalorder %s334, %s335
    %p347 = scmp.eq.s32.totalorder %s31, 7
    %p348 = por %p346, %p347
    %p350 = scmp.ne.s32.totalorder %s335, %s349
    %p351 = scmp.eq.s32.totalorder %s31, 0
    %p352 = por %p350, %p351
    %s354 = sadd.s32 %s353, 1
    %p357 = scmp.eq.s32.totalorder %s25, 7
    %p358 = scmp.ne.s32.totalorder %s353, %s355
    %p359 = scmp.eq.s32.totalorder %s25, 0
    %p360 = por %p358, %p359
    %p361 = scmp.ne.s32.totalorder %s353, %s355
    %p362 = scmp.eq.s32.totalorder %s30, 7
    %p363 = por %p361, %p362
    %p364 = scmp.ne.s32.totalorder %s355, %s356
    %p365 = scmp.eq.s32.totalorder %s30, 0
    %p366 = por %p364, %p365
    %p367 = scmp.ne.s32.totalorder %s355, %s356
    %p368 = scmp.eq.s32.totalorder %s31, 7
    %p369 = por %p367, %p368
    %p371 = scmp.ne.s32.totalorder %s356, %s370
    %p372 = scmp.eq.s32.totalorder %s31, 0
    %p373 = por %p371, %p372
    %s375 = sadd.s32 %s374, 1
    %p378 = scmp.eq.s32.totalorder %s25, 7
    %p379 = scmp.ne.s32.totalorder %s374, %s376
    %p380 = scmp.eq.s32.totalorder %s25, 0
    %p381 = por %p379, %p380
    %p382 = scmp.ne.s32.totalorder %s374, %s376
    %p383 = scmp.eq.s32.totalorder %s30, 7
    %p384 = por %p382, %p383
    %p385 = scmp.ne.s32.totalorder %s376, %s377
    %p386 = scmp.eq.s32.totalorder %s30, 0
    %p387 = por %p385, %p386
    %p388 = scmp.ne.s32.totalorder %s376, %s377
    %p389 = scmp.eq.s32.totalorder %s31, 7
    %p390 = por %p388, %p389
    %p392 = scmp.ne.s32.totalorder %s377, %s391
    %p393 = scmp.eq.s32.totalorder %s31, 0
    %p394 = por %p392, %p393
    %s395 = ssub.s32 %s25, %s32
    %p396 = scmp.eq.s32.totalorder %s395, 0
    %s398 = sadd.s32 %s397, 1
    %s399 = scalar_select %p396, %s397, %s398
    %p402 = pneg %p396
    %p403 = scmp.eq.s32.totalorder %s25, 7
    %p404 = por %p402, %p403
    %p405 = scmp.ne.s32.totalorder %s397, %s400
    %p406 = scmp.eq.s32.totalorder %s25, 0
    %p407 = por %p405, %p406
    %p408 = scmp.ne.s32.totalorder %s397, %s400
    %p409 = scmp.eq.s32.totalorder %s30, 7
    %p410 = por %p408, %p409
    %p411 = scmp.ne.s32.totalorder %s400, %s401
    %p412 = scmp.eq.s32.totalorder %s30, 0
    %p413 = por %p411, %p412
    %p414 = scmp.ne.s32.totalorder %s400, %s401
    %p415 = scmp.eq.s32.totalorder %s31, 7
    %p416 = por %p414, %p415
    %p418 = scmp.ne.s32.totalorder %s401, %s417
    %p419 = scmp.eq.s32.totalorder %s31, 0
    %p420 = por %p418, %p419
    %s421 = ssub.s32 %s25, %s32
    %p422 = scmp.eq.s32.totalorder %s421, 0
    %s424 = sadd.s32 %s423, 1
    %s425 = scalar_select %p422, %s423, %s424
    %p428 = pneg %p422
    %p429 = scmp.eq.s32.totalorder %s25, 7
    %p430 = por %p428, %p429
    %p431 = scmp.ne.s32.totalorder %s423, %s426
    %p432 = scmp.eq.s32.totalorder %s25, 0
    %p433 = por %p431, %p432
    %p434 = scmp.ne.s32.totalorder %s423, %s426
    %p435 = scmp.eq.s32.totalorder %s30, 7
    %p436 = por %p434, %p435
    %p437 = scmp.ne.s32.totalorder %s426, %s427
    %p438 = scmp.eq.s32.totalorder %s30, 0
    %p439 = por %p437, %p438
    %p440 = scmp.ne.s32.totalorder %s426, %s427
    %p441 = scmp.eq.s32.totalorder %s31, 7
    %p442 = por %p440, %p441
    %p444 = scmp.ne.s32.totalorder %s427, %s443
    %p445 = scmp.eq.s32.totalorder %s31, 0
    %p446 = por %p444, %p445
    %p447 = scmp.le.s32.totalorder 1, %s25
    %p448 = scmp.lt.s32.totalorder %s25, 9
    %p449 = pnand %p447, %p448
    %p450 = pneg %p449
    // Predicated region
    $region9: #{autoencoder_forward.1} parent=5 // pred_check
      _
    $region10: #{autoencoder_forward.1} parent=5 // pred_check_branch
      %452 = sbr.rel (%p449) target = $region12
    $region11: #{autoencoder_forward.1} parent=5 // pred_region
      %s453 = ssub.s32 %s25, 1
      // Predicated region
      $region13: #{autoencoder_forward.1} parent=11 // pred_check
        %p454 = pneg %p72
      $region14: #{autoencoder_forward.1} parent=11 // pred_check_branch
        %456 = sbr.rel (%p454) target = $region16
      $region15: #{autoencoder_forward.1} parent=11 // pred_region
        _
      $region16: #{autoencoder_forward.1} parent=11 // pred_fallthru
        _
      // Predicated region
      $region17: #{autoencoder_forward.1} parent=11 // pred_check
        %p457 = pneg %p93
      $region18: #{autoencoder_forward.1} parent=11 // pred_check_branch
        %459 = sbr.rel (%p457) target = $region20
      $region19: #{autoencoder_forward.1} parent=11 // pred_region
        _
      $region20: #{autoencoder_forward.1} parent=11 // pred_fallthru
        _
      // Predicated region
      $region21: #{autoencoder_forward.1} parent=11 // pred_check
        %p460 = pneg %p114
      $region22: #{autoencoder_forward.1} parent=11 // pred_check_branch
        %462 = sbr.rel (%p460) target = $region24
      $region23: #{autoencoder_forward.1} parent=11 // pred_region
        _
      $region24: #{autoencoder_forward.1} parent=11 // pred_fallthru
        _
      // Predicated region
      $region25: #{autoencoder_forward.1} parent=11 // pred_check
        %p463 = pneg %p135
      $region26: #{autoencoder_forward.1} parent=11 // pred_check_branch
        %465 = sbr.rel (%p463) target = $region28
      $region27: #{autoencoder_forward.1} parent=11 // pred_region
        _
      $region28: #{autoencoder_forward.1} parent=11 // pred_fallthru
        _
      // Predicated region
      $region29: #{autoencoder_forward.1} parent=11 // pred_check
        %p466 = pneg %p156
      $region30: #{autoencoder_forward.1} parent=11 // pred_check_branch
        %468 = sbr.rel (%p466) target = $region32
      $region31: #{autoencoder_forward.1} parent=11 // pred_region
        _
      $region32: #{autoencoder_forward.1} parent=11 // pred_fallthru
        _
      // Predicated region
      $region33: #{autoencoder_forward.1} parent=11 // pred_check
        %p469 = pneg %p177
      $region34: #{autoencoder_forward.1} parent=11 // pred_check_branch
        %471 = sbr.rel (%p469) target = $region36
      $region35: #{autoencoder_forward.1} parent=11 // pred_region
        _
      $region36: #{autoencoder_forward.1} parent=11 // pred_fallthru
        _
      // Predicated region
      $region37: #{autoencoder_forward.1} parent=11 // pred_check
        %p472 = pneg %p198
      $region38: #{autoencoder_forward.1} parent=11 // pred_check_branch
        %474 = sbr.rel (%p472) target = $region40
      $region39: #{autoencoder_forward.1} parent=11 // pred_region
        _
      $region40: #{autoencoder_forward.1} parent=11 // pred_fallthru
        _
      // Predicated region
      $region41: #{autoencoder_forward.1} parent=11 // pred_check
        %p475 = pneg %p219
      $region42: #{autoencoder_forward.1} parent=11 // pred_check_branch
        %477 = sbr.rel (%p475) target = $region44
      $region43: #{autoencoder_forward.1} parent=11 // pred_region
        _
      $region44: #{autoencoder_forward.1} parent=11 // pred_fallthru
        _
      // Predicated region
      $region45: #{autoencoder_forward.1} parent=11 // pred_check
        %p478 = pneg %p240
      $region46: #{autoencoder_forward.1} parent=11 // pred_check_branch
        %480 = sbr.rel (%p478) target = $region48
      $region47: #{autoencoder_forward.1} parent=11 // pred_region
        _
      $region48: #{autoencoder_forward.1} parent=11 // pred_fallthru
        _
      // Predicated region
      $region49: #{autoencoder_forward.1} parent=11 // pred_check
        %p481 = pneg %p261
      $region50: #{autoencoder_forward.1} parent=11 // pred_check_branch
        %483 = sbr.rel (%p481) target = $region52
      $region51: #{autoencoder_forward.1} parent=11 // pred_region
        _
      $region52: #{autoencoder_forward.1} parent=11 // pred_fallthru
        _
      // Predicated region
      $region53: #{autoencoder_forward.1} parent=11 // pred_check
        %p484 = pneg %p282
      $region54: #{autoencoder_forward.1} parent=11 // pred_check_branch
        %486 = sbr.rel (%p484) target = $region56
      $region55: #{autoencoder_forward.1} parent=11 // pred_region
        _
      $region56: #{autoencoder_forward.1} parent=11 // pred_fallthru
        _
      // Predicated region
      $region57: #{autoencoder_forward.1} parent=11 // pred_check
        %p487 = pneg %p303
      $region58: #{autoencoder_forward.1} parent=11 // pred_check_branch
        %489 = sbr.rel (%p487) target = $region60
      $region59: #{autoencoder_forward.1} parent=11 // pred_region
        _
      $region60: #{autoencoder_forward.1} parent=11 // pred_fallthru
        _
      // Predicated region
      $region61: #{autoencoder_forward.1} parent=11 // pred_check
        %p490 = pneg %p324
      $region62: #{autoencoder_forward.1} parent=11 // pred_check_branch
        %492 = sbr.rel (%p490) target = $region64
      $region63: #{autoencoder_forward.1} parent=11 // pred_region
        _
      $region64: #{autoencoder_forward.1} parent=11 // pred_fallthru
        _
      // Predicated region
      $region65: #{autoencoder_forward.1} parent=11 // pred_check
        %p493 = pneg %p345
      $region66: #{autoencoder_forward.1} parent=11 // pred_check_branch
        %495 = sbr.rel (%p493) target = $region68
      $region67: #{autoencoder_forward.1} parent=11 // pred_region
        _
      $region68: #{autoencoder_forward.1} parent=11 // pred_fallthru
        _
      // Predicated region
      $region69: #{autoencoder_forward.1} parent=11 // pred_check
        %p496 = pneg %p366
      $region70: #{autoencoder_forward.1} parent=11 // pred_check_branch
        %498 = sbr.rel (%p496) target = $region72
      $region71: #{autoencoder_forward.1} parent=11 // pred_region
        _
      $region72: #{autoencoder_forward.1} parent=11 // pred_fallthru
        _
      // Predicated region
      $region73: #{autoencoder_forward.1} parent=11 // pred_check
        %p499 = pneg %p387
      $region74: #{autoencoder_forward.1} parent=11 // pred_check_branch
        %501 = sbr.rel (%p499) target = $region76
      $region75: #{autoencoder_forward.1} parent=11 // pred_region
        _
      $region76: #{autoencoder_forward.1} parent=11 // pred_fallthru
        _
    $region12: #{autoencoder_forward.1} parent=5 // pred_fallthru
      _
    %p502 = scmp.lt.s32.totalorder %s25, 8
    // Predicated region
    $region77: #{autoencoder_forward.1} parent=5 // pred_check
      %p503 = pneg %p502
    $region78: #{autoencoder_forward.1} parent=5 // pred_check_branch
      %505 = sbr.rel (%p503) target = $region80
    $region79: #{autoencoder_forward.1} parent=5 // pred_region
      // Predicated region
      $region81: #{autoencoder_forward.1} parent=79 // pred_check
        %p506 = pneg %p45
      $region82: #{autoencoder_forward.1} parent=79 // pred_check_branch
        %508 = sbr.rel (%p506) target = $region84
      $region83: #{autoencoder_forward.1} parent=79 // pred_region
        %s509 = smul.u32 32, %s25
        %p510 = scmp.lt.s32.totalorder %s509, 255
        %s511 = scalar_select %p510, %s509, 255
        %s512 = smul.addr %s511, 7
        %s513 = smul.addr %s512, 4
        %s514 = scalar_lea.vmem %s0, %s513
        %s515 = smul.u32 32, %s25
      $region84: #{autoencoder_forward.1} parent=79 // pred_fallthru
        _
    $region80: #{autoencoder_forward.1} parent=5 // pred_fallthru
      _
    %p516 = scmp.le.s32.totalorder 1, %s25
    %p517 = scmp.lt.s32.totalorder %s25, 9
    %p518 = pnand %p516, %p517
    %p519 = pneg %p518
    // Predicated region
    $region85: #{autoencoder_forward.1} parent=5 // pred_check
      _
    $region86: #{autoencoder_forward.1} parent=5 // pred_check_branch
      %521 = sbr.rel (%p518) target = $region88
    $region87: #{autoencoder_forward.1} parent=5 // pred_region
      %s522 = ssub.s32 %s25, 1
      %s523 = smul.u32 32, %s30
      %p524 = scmp.lt.s32.totalorder %s523, 255
      %s525 = scalar_select %p524, %s523, 255
      %s526 = smul.addr %s525, 7
      %s527 = smul.addr %s526, 4
      %s528 = scalar_lea.vmem %s0, %s527
      %p529 = pneg %p51
      %p530 = pneg %p48
      %p531 = pneg %p72
      %p532 = pneg %p69
      %p533 = pneg %p93
      %p534 = pneg %p90
      %p535 = pneg %p114
      %p536 = pneg %p111
      %p537 = pneg %p135
      %p538 = pneg %p132
      %p539 = pneg %p156
      %p540 = pneg %p153
      %p541 = pneg %p177
      %p542 = pneg %p174
      %p543 = pneg %p198
      %p544 = pneg %p195
      %p545 = pneg %p219
      %p546 = pneg %p216
      %p547 = pneg %p240
      %p548 = pneg %p237
      %p549 = pneg %p261
      %p550 = pneg %p258
      %p551 = pneg %p282
      %p552 = pneg %p279
      %p553 = pneg %p303
      %p554 = pneg %p300
      %p555 = pneg %p324
      %p556 = pneg %p321
      %p557 = pneg %p345
      %p558 = pneg %p342
      %p559 = pneg %p366
      %p560 = pneg %p363
      %p561 = pneg %p387
      %p562 = pneg %p384
      %p563 = pneg %p413
      %p564 = pneg %p410
      %s565 = smul.u32 32, %s30
      %p566 = scmp.lt.s32.totalorder %s565, 255
      %s567 = scalar_select %p566, %s565, 255
      %s568 = smul.addr %s567, 4
      %s569 = scalar_lea.vmem %s17, %s568
      %p570 = pneg %p439
      %p571 = pneg %p436
      %s572 = smul.u32 32, %s30
      %p573 = scmp.lt.s32.totalorder %s572, 255
      %s574 = scalar_select %p573, %s572, 255
      %s575 = smul.addr %s574, 7
      %s576 = smul.addr %s575, 4
      %s577 = scalar_lea.vmem %s18, %s576
      %s578 = smul.u32 32, %s30
      %p579 = scmp.lt.s32.totalorder %s578, 255
      %s580 = scalar_select %p579, %s578, 255
      %s581 = smul.addr %s580, 7
      %s582 = smul.addr %s581, 4
      %s583 = scalar_lea.vmem %s0, %s582
      %s584 = smul.u32 32, %s30
      %s585 = smul.u32 32, %s30
      %p586 = scmp.lt.s32.totalorder %s585, 255
      %s587 = scalar_select %p586, %s585, 255
      %s588 = smul.addr %s587, 4
      %s589 = scalar_lea.vmem %s17, %s588
      %s590 = smul.u32 32, %s30
      %s591 = smul.u32 32, %s30
      %p592 = scmp.lt.s32.totalorder %s591, 255
      %s593 = scalar_select %p592, %s591, 255
      %s594 = smul.addr %s593, 7
      %s595 = smul.addr %s594, 4
      %s596 = scalar_lea.vmem %s18, %s595
      %s597 = smul.u32 32, %s30
      %v599 = vld [vmem:[%s583] sm:$0xff]
      %v600 = vld [vmem:[%s583 + $0x8] sm:$0xff]
      %v601 = vld [vmem:[%s583 + $0x10] sm:$0xff]
      %v602 = vld [vmem:[%s583 + $0x18] sm:$0xf]
      %v603 = vld [vmem:[%s583 + $0x1c] sm:$0xff]
      %v604 = vld [vmem:[%s583 + $0x24] sm:$0xff]
      %v605 = vld [vmem:[%s583 + $0x2c] sm:$0xff]
      %v606 = vld [vmem:[%s583 + $0x34] sm:$0xf]
      %v607 = vld [vmem:[%s583 + $0x38] sm:$0xff]
      %v608 = vld [vmem:[%s583 + $0x40] sm:$0xff]
      %v609 = vld [vmem:[%s583 + $0x48] sm:$0xff]
      %v610 = vld [vmem:[%s583 + $0x50] sm:$0xf]
      %v611 = vld [vmem:[%s583 + $0x54] sm:$0xff]
      %v612 = vld [vmem:[%s583 + $0x5c] sm:$0xff]
      %v613 = vld [vmem:[%s583 + $0x64] sm:$0xff]
      %v614 = vld [vmem:[%s583 + $0x6c] sm:$0xf]
      %v615 = vld [vmem:[%s583 + $0x70] sm:$0xff]
      %v616 = vld [vmem:[%s583 + $0x78] sm:$0xff]
      %v617 = vld [vmem:[%s583 + $0x80] sm:$0xff]
      %v618 = vld [vmem:[%s583 + $0x88] sm:$0xf]
      %v619 = vld [vmem:[%s583 + $0x8c] sm:$0xff]
      %v620 = vld [vmem:[%s583 + $0x94] sm:$0xff]
      %v621 = vld [vmem:[%s583 + $0x9c] sm:$0xff]
      %v622 = vld [vmem:[%s583 + $0xa4] sm:$0xf]
      %v623 = vld [vmem:[%s583 + $0xa8] sm:$0xff]
      %v624 = vld [vmem:[%s583 + $0xb0] sm:$0xff]
      %v625 = vld [vmem:[%s583 + $0xb8] sm:$0xff]
      %v626 = vld [vmem:[%s583 + $0xc0] sm:$0xf]
      %v627 = vld [vmem:[%s583 + $0xc4] sm:$0xff]
      %v628 = vld [vmem:[%s583 + $0xcc] sm:$0xff]
      %v629 = vld [vmem:[%s583 + $0xd4] sm:$0xff]
      %v630 = vld [vmem:[%s583 + $0xdc] sm:$0xf]
      %v631 = vld [vmem:[%s583 + $0xe0] sm:$0xff]
      %v632 = vld [vmem:[%s583 + $0xe8] sm:$0xff]
      %v633 = vld [vmem:[%s583 + $0xf0] sm:$0xff]
      %v634 = vld [vmem:[%s583 + $0xf8] sm:$0xf]
      %v635 = vld [vmem:[%s583 + $0xfc] sm:$0xff]
      %v636 = vld [vmem:[%s583 + $0x104] sm:$0xff]
      %v637 = vld [vmem:[%s583 + $0x10c] sm:$0xff]
      %v638 = vld [vmem:[%s583 + $0x114] sm:$0xf]
      %v639 = vld [vmem:[%s583 + $0x118] sm:$0xff]
      %v640 = vld [vmem:[%s583 + $0x120] sm:$0xff]
      %v641 = vld [vmem:[%s583 + $0x128] sm:$0xff]
      %v642 = vld [vmem:[%s583 + $0x130] sm:$0xf]
      %v643 = vld [vmem:[%s583 + $0x134] sm:$0xff]
      %v644 = vld [vmem:[%s583 + $0x13c] sm:$0xff]
      %v645 = vld [vmem:[%s583 + $0x144] sm:$0xff]
      %v646 = vld [vmem:[%s583 + $0x14c] sm:$0xf]
      %v647 = vld [vmem:[%s583 + $0x150] sm:$0xff]
      %v648 = vld [vmem:[%s583 + $0x158] sm:$0xff]
      %v649 = vld [vmem:[%s583 + $0x160] sm:$0xff]
      %v650 = vld [vmem:[%s583 + $0x168] sm:$0xf]
      %v651 = vld [vmem:[%s583 + $0x16c] sm:$0xff]
      %v652 = vld [vmem:[%s583 + $0x174] sm:$0xff]
      %v653 = vld [vmem:[%s583 + $0x17c] sm:$0xff]
      %v654 = vld [vmem:[%s583 + $0x184] sm:$0xf]
      %v655 = vld [vmem:[%s583 + $0x188] sm:$0xff]
      %v656 = vld [vmem:[%s583 + $0x190] sm:$0xff]
      %v657 = vld [vmem:[%s583 + $0x198] sm:$0xff]
      %v658 = vld [vmem:[%s583 + $0x1a0] sm:$0xf]
      %v659 = vld [vmem:[%s583 + $0x1a4] sm:$0xff]
      %v660 = vld [vmem:[%s583 + $0x1ac] sm:$0xff]
      %v661 = vld [vmem:[%s583 + $0x1b4] sm:$0xff]
      %v662 = vld [vmem:[%s583 + $0x1bc] sm:$0xf]
      %v663 = vld [vmem:[%s583 + $0x1c0] sm:$0xff]
      %v664 = vld [vmem:[%s583 + $0x1c8] sm:$0xff]
      %v665 = vld [vmem:[%s583 + $0x1d0] sm:$0xff]
      %v666 = vld [vmem:[%s583 + $0x1d8] sm:$0xf]
      %v667 = vld [vmem:[%s583 + $0x1dc] sm:$0xff]
      %v668 = vld [vmem:[%s583 + $0x1e4] sm:$0xff]
      %v669 = vld [vmem:[%s583 + $0x1ec] sm:$0xff]
      %v670 = vld [vmem:[%s583 + $0x1f4] sm:$0xf]
      %v671 = vld [vmem:[%s583 + $0x1f8] sm:$0xff]
      %v672 = vld [vmem:[%s583 + $0x200] sm:$0xff]
      %v673 = vld [vmem:[%s583 + $0x208] sm:$0xff]
      %v674 = vld [vmem:[%s583 + $0x210] sm:$0xf]
      %v675 = vld [vmem:[%s583 + $0x214] sm:$0xff]
      %v676 = vld [vmem:[%s583 + $0x21c] sm:$0xff]
      %v677 = vld [vmem:[%s583 + $0x224] sm:$0xff]
      %v678 = vld [vmem:[%s583 + $0x22c] sm:$0xf]
      %v679 = vld [vmem:[%s583 + $0x230] sm:$0xff]
      %v680 = vld [vmem:[%s583 + $0x238] sm:$0xff]
      %v681 = vld [vmem:[%s583 + $0x240] sm:$0xff]
      %v682 = vld [vmem:[%s583 + $0x248] sm:$0xf]
      %v683 = vld [vmem:[%s583 + $0x24c] sm:$0xff]
      %v684 = vld [vmem:[%s583 + $0x254] sm:$0xff]
      %v685 = vld [vmem:[%s583 + $0x25c] sm:$0xff]
      %v686 = vld [vmem:[%s583 + $0x264] sm:$0xf]
      %v687 = vld [vmem:[%s583 + $0x268] sm:$0xff]
      %v688 = vld [vmem:[%s583 + $0x270] sm:$0xff]
      %v689 = vld [vmem:[%s583 + $0x278] sm:$0xff]
      %v690 = vld [vmem:[%s583 + $0x280] sm:$0xf]
      %v691 = vld [vmem:[%s583 + $0x284] sm:$0xff]
      %v692 = vld [vmem:[%s583 + $0x28c] sm:$0xff]
      %v693 = vld [vmem:[%s583 + $0x294] sm:$0xff]
      %v694 = vld [vmem:[%s583 + $0x29c] sm:$0xf]
      %v695 = vld [vmem:[%s583 + $0x2a0] sm:$0xff]
      %v696 = vld [vmem:[%s583 + $0x2a8] sm:$0xff]
      %v697 = vld [vmem:[%s583 + $0x2b0] sm:$0xff]
      %v698 = vld [vmem:[%s583 + $0x2b8] sm:$0xf]
      %v699 = vld [vmem:[%s583 + $0x2bc] sm:$0xff]
      %v700 = vld [vmem:[%s583 + $0x2c4] sm:$0xff]
      %v701 = vld [vmem:[%s583 + $0x2cc] sm:$0xff]
      %v702 = vld [vmem:[%s583 + $0x2d4] sm:$0xf]
      %v703 = vld [vmem:[%s583 + $0x2d8] sm:$0xff]
      %v704 = vld [vmem:[%s583 + $0x2e0] sm:$0xff]
      %v705 = vld [vmem:[%s583 + $0x2e8] sm:$0xff]
      %v706 = vld [vmem:[%s583 + $0x2f0] sm:$0xf]
      %v707 = vld [vmem:[%s583 + $0x2f4] sm:$0xff]
      %v708 = vld [vmem:[%s583 + $0x2fc] sm:$0xff]
      %v709 = vld [vmem:[%s583 + $0x304] sm:$0xff]
      %v710 = vld [vmem:[%s583 + $0x30c] sm:$0xf]
      %v711 = vld [vmem:[%s583 + $0x310] sm:$0xff]
      %v712 = vld [vmem:[%s583 + $0x318] sm:$0xff]
      %v713 = vld [vmem:[%s583 + $0x320] sm:$0xff]
      %v714 = vld [vmem:[%s583 + $0x328] sm:$0xf]
      %v715 = vld [vmem:[%s583 + $0x32c] sm:$0xff]
      %v716 = vld [vmem:[%s583 + $0x334] sm:$0xff]
      %v717 = vld [vmem:[%s583 + $0x33c] sm:$0xff]
      %v718 = vld [vmem:[%s583 + $0x344] sm:$0xf]
      %v719 = vld [vmem:[%s583 + $0x348] sm:$0xff]
      %v720 = vld [vmem:[%s583 + $0x350] sm:$0xff]
      %v721 = vld [vmem:[%s583 + $0x358] sm:$0xff]
      %v722 = vld [vmem:[%s583 + $0x360] sm:$0xf]
      %v723 = vld [vmem:[%s583 + $0x364] sm:$0xff]
      %v724 = vld [vmem:[%s583 + $0x36c] sm:$0xff]
      %v725 = vld [vmem:[%s583 + $0x374] sm:$0xff]
      %v726 = vld [vmem:[%s583 + $0x37c] sm:$0xf]
      %v727 = vld [vmem:[%s1] sm:$0xff]
      %v728 = vld [vmem:[%s1 + $0x8] sm:$0xff]
      %v729 = vld [vmem:[%s1 + $0x10] sm:$0xff]
      %v730 = vld [vmem:[%s1 + $0x18] sm:$0xff]
      %v731 = vld [vmem:[%s1 + $0x20] sm:$0xff]
      %v732 = vld [vmem:[%s1 + $0x28] sm:$0xff]
      %v733 = vld [vmem:[%s1 + $0x30] sm:$0xff]
      %v734 = vld [vmem:[%s1 + $0x38] sm:$0xff]
      %v735 = vld [vmem:[%s1 + $0x40] sm:$0xff]
      %v736 = vld [vmem:[%s1 + $0x48] sm:$0xff]
      %v737 = vld [vmem:[%s1 + $0x50] sm:$0xff]
      %v738 = vld [vmem:[%s1 + $0x58] sm:$0xff]
      %v739 = vld [vmem:[%s1 + $0x60] sm:$0xff]
      %v740 = vld [vmem:[%s1 + $0x68] sm:$0xff]
      %v741 = vld [vmem:[%s1 + $0x70] sm:$0xff]
      %v742 = vld [vmem:[%s1 + $0x78] sm:$0xff]
      %v743 = vld [vmem:[%s1 + $0x80] sm:$0xff]
      %v744 = vld [vmem:[%s1 + $0x88] sm:$0xff]
      %v745 = vld [vmem:[%s1 + $0x90] sm:$0xff]
      %v746 = vld [vmem:[%s1 + $0x98] sm:$0xff]
      %v747 = vld [vmem:[%s1 + $0xa0] sm:$0xff]
      %v748 = vld [vmem:[%s1 + $0xa8] sm:$0xff]
      %v749 = vld [vmem:[%s1 + $0xb0] sm:$0xff]
      %v750 = vld [vmem:[%s1 + $0xb8] sm:$0xff]
      %v751 = vld [vmem:[%s1 + $0xc0] sm:$0xff]
      %v752 = vld [vmem:[%s1 + $0xc8] sm:$0xff]
      %v753 = vld [vmem:[%s1 + $0xd0] sm:$0xff]
      %v754 = vld [vmem:[%s1 + $0xd8] sm:$0xff]
      %v755 = vld [vmem:[%s1 + $0xe0] sm:$0xff]
      %v756 = vld [vmem:[%s1 + $0xe8] sm:$0xff]
      %v757 = vld [vmem:[%s1 + $0xf0] sm:$0xff]
      %v758 = vld [vmem:[%s1 + $0xf8] sm:$0xff]
      %v759 = vld [vmem:[%s1 + $0x100] sm:$0xff]
      %v760 = vld [vmem:[%s1 + $0x108] sm:$0xff]
      %v761 = vld [vmem:[%s1 + $0x110] sm:$0xff]
      %v762 = vld [vmem:[%s1 + $0x118] sm:$0xff]
      %v763 = vld [vmem:[%s1 + $0x120] sm:$0xff]
      %v764 = vld [vmem:[%s1 + $0x128] sm:$0xff]
      %v765 = vld [vmem:[%s1 + $0x130] sm:$0xff]
      %v766 = vld [vmem:[%s1 + $0x138] sm:$0xff]
      %v767 = vld [vmem:[%s1 + $0x140] sm:$0xff]
      %v768 = vld [vmem:[%s1 + $0x148] sm:$0xff]
      %v769 = vld [vmem:[%s1 + $0x150] sm:$0xff]
      %v770 = vld [vmem:[%s1 + $0x158] sm:$0xff]
      %v771 = vld [vmem:[%s1 + $0x160] sm:$0xff]
      %v772 = vld [vmem:[%s1 + $0x168] sm:$0xff]
      %v773 = vld [vmem:[%s1 + $0x170] sm:$0xff]
      %v774 = vld [vmem:[%s1 + $0x178] sm:$0xff]
      %v775 = vld [vmem:[%s1 + $0x180] sm:$0xff]
      %v776 = vld [vmem:[%s1 + $0x188] sm:$0xff]
      %v777 = vld [vmem:[%s1 + $0x190] sm:$0xff]
      %v778 = vld [vmem:[%s1 + $0x198] sm:$0xff]
      %v779 = vld [vmem:[%s1 + $0x1a0] sm:$0xff]
      %v780 = vld [vmem:[%s1 + $0x1a8] sm:$0xff]
      %v781 = vld [vmem:[%s1 + $0x1b0] sm:$0xff]
      %v782 = vld [vmem:[%s1 + $0x1b8] sm:$0xff]
      %v783 = vld [vmem:[%s1 + $0x1c0] sm:$0xff]
      %v784 = vld [vmem:[%s1 + $0x1c8] sm:$0xff]
      %v785 = vld [vmem:[%s1 + $0x1d0] sm:$0xff]
      %v786 = vld [vmem:[%s1 + $0x1d8] sm:$0xff]
      %v787 = vld [vmem:[%s1 + $0x1e0] sm:$0xff]
      %v788 = vld [vmem:[%s1 + $0x1e8] sm:$0xff]
      %v789 = vld [vmem:[%s1 + $0x1f0] sm:$0xff]
      %v790 = vld [vmem:[%s1 + $0x1f8] sm:$0xff]
      %v791 = vld [vmem:[%s1 + $0x200] sm:$0xff]
      %v792 = vld [vmem:[%s1 + $0x208] sm:$0xff]
      %v793 = vld [vmem:[%s1 + $0x210] sm:$0xff]
      %v794 = vld [vmem:[%s1 + $0x218] sm:$0xff]
      %v795 = vld [vmem:[%s1 + $0x220] sm:$0xff]
      %v796 = vld [vmem:[%s1 + $0x228] sm:$0xff]
      %v797 = vld [vmem:[%s1 + $0x230] sm:$0xff]
      %v798 = vld [vmem:[%s1 + $0x238] sm:$0xff]
      %v799 = vld [vmem:[%s1 + $0x240] sm:$0xff]
      %v800 = vld [vmem:[%s1 + $0x248] sm:$0xff]
      %v801 = vld [vmem:[%s1 + $0x250] sm:$0xff]
      %v802 = vld [vmem:[%s1 + $0x258] sm:$0xff]
      %v803 = vld [vmem:[%s1 + $0x260] sm:$0xff]
      %v804 = vld [vmem:[%s1 + $0x268] sm:$0xff]
      %v805 = vld [vmem:[%s1 + $0x270] sm:$0xff]
      %v806 = vld [vmem:[%s1 + $0x278] sm:$0xff]
      %v807 = vld [vmem:[%s1 + $0x280] sm:$0xff]
      %v808 = vld [vmem:[%s1 + $0x288] sm:$0xff]
      %v809 = vld [vmem:[%s1 + $0x290] sm:$0xff]
      %v810 = vld [vmem:[%s1 + $0x298] sm:$0xff]
      %v811 = vld [vmem:[%s1 + $0x2a0] sm:$0xff]
      %v812 = vld [vmem:[%s1 + $0x2a8] sm:$0xff]
      %v813 = vld [vmem:[%s1 + $0x2b0] sm:$0xff]
      %v814 = vld [vmem:[%s1 + $0x2b8] sm:$0xff]
      %v815 = vld [vmem:[%s1 + $0x2c0] sm:$0xff]
      %v816 = vld [vmem:[%s1 + $0x2c8] sm:$0xff]
      %v817 = vld [vmem:[%s1 + $0x2d0] sm:$0xff]
      %v818 = vld [vmem:[%s1 + $0x2d8] sm:$0xff]
      %v819 = vld [vmem:[%s1 + $0x2e0] sm:$0xff]
      %v820 = vld [vmem:[%s1 + $0x2e8] sm:$0xff]
      %v821 = vld [vmem:[%s1 + $0x2f0] sm:$0xff]
      %v822 = vld [vmem:[%s1 + $0x2f8] sm:$0xff]
      %v823 = vld [vmem:[%s1 + $0x300] sm:$0xff]
      %v824 = vld [vmem:[%s1 + $0x308] sm:$0xff]
      %v825 = vld [vmem:[%s1 + $0x310] sm:$0xff]
      %v826 = vld [vmem:[%s1 + $0x318] sm:$0xff]
      %v827 = vld [vmem:[%s1 + $0x320] sm:$0xff]
      %v828 = vld [vmem:[%s1 + $0x328] sm:$0xff]
      %v829 = vld [vmem:[%s1 + $0x330] sm:$0xff]
      %v830 = vld [vmem:[%s1 + $0x338] sm:$0xff]
      %v831 = vld [vmem:[%s1 + $0x340] sm:$0xff]
      %v832 = vld [vmem:[%s1 + $0x348] sm:$0xff]
      %v833 = vld [vmem:[%s1 + $0x350] sm:$0xff]
      %v834 = vld [vmem:[%s1 + $0x358] sm:$0xff]
      %v835 = vld [vmem:[%s1 + $0x360] sm:$0xff]
      %v836 = vld [vmem:[%s1 + $0x368] sm:$0xff]
      %v837 = vld [vmem:[%s1 + $0x370] sm:$0xff]
      %v838 = vld [vmem:[%s1 + $0x378] sm:$0xff]
      %v839 = vld [vmem:[%s1 + $0x380] sm:$0xff]
      %v840 = vld [vmem:[%s1 + $0x388] sm:$0xff]
      %v841 = vld [vmem:[%s1 + $0x390] sm:$0xff]
      %v842 = vld [vmem:[%s1 + $0x398] sm:$0xff]
      %v843 = vld [vmem:[%s1 + $0x3a0] sm:$0xff]
      %v844 = vld [vmem:[%s1 + $0x3a8] sm:$0xff]
      %v845 = vld [vmem:[%s1 + $0x3b0] sm:$0xff]
      %v846 = vld [vmem:[%s1 + $0x3b8] sm:$0xff]
      %v847 = vld [vmem:[%s1 + $0x3c0] sm:$0xff]
      %v848 = vld [vmem:[%s1 + $0x3c8] sm:$0xff]
      %v849 = vld [vmem:[%s1 + $0x3d0] sm:$0xff]
      %v850 = vld [vmem:[%s1 + $0x3d8] sm:$0xff]
      %v851 = vld [vmem:[%s1 + $0x3e0] sm:$0xff]
      %v852 = vld [vmem:[%s1 + $0x3e8] sm:$0xff]
      %v853 = vld [vmem:[%s1 + $0x3f0] sm:$0xff]
      %v854 = vld [vmem:[%s1 + $0x3f8] sm:$0xff]
      %v855 = vld [vmem:[%s1 + $0x400] sm:$0xff]
      %v856 = vld [vmem:[%s1 + $0x408] sm:$0xff]
      %v857 = vld [vmem:[%s1 + $0x410] sm:$0xff]
      %v858 = vld [vmem:[%s1 + $0x418] sm:$0xff]
      %v859 = vld [vmem:[%s1 + $0x420] sm:$0xff]
      %v860 = vld [vmem:[%s1 + $0x428] sm:$0xff]
      %v861 = vld [vmem:[%s1 + $0x430] sm:$0xff]
      %v862 = vld [vmem:[%s1 + $0x438] sm:$0xff]
      %v863 = vld [vmem:[%s1 + $0x440] sm:$0xff]
      %v864 = vld [vmem:[%s1 + $0x448] sm:$0xff]
      %v865 = vld [vmem:[%s1 + $0x450] sm:$0xff]
      %v866 = vld [vmem:[%s1 + $0x458] sm:$0xff]
      %v867 = vld [vmem:[%s1 + $0x460] sm:$0xff]
      %v868 = vld [vmem:[%s1 + $0x468] sm:$0xff]
      %v869 = vld [vmem:[%s1 + $0x470] sm:$0xff]
      %v870 = vld [vmem:[%s1 + $0x478] sm:$0xff]
      %v871 = vld [vmem:[%s1 + $0x480] sm:$0xff]
      %v872 = vld [vmem:[%s1 + $0x488] sm:$0xff]
      %v873 = vld [vmem:[%s1 + $0x490] sm:$0xff]
      %v874 = vld [vmem:[%s1 + $0x498] sm:$0xff]
      %v875 = vld [vmem:[%s1 + $0x4a0] sm:$0xff]
      %v876 = vld [vmem:[%s1 + $0x4a8] sm:$0xff]
      %v877 = vld [vmem:[%s1 + $0x4b0] sm:$0xff]
      %v878 = vld [vmem:[%s1 + $0x4b8] sm:$0xff]
      %v879 = vld [vmem:[%s1 + $0x4c0] sm:$0xff]
      %v880 = vld [vmem:[%s1 + $0x4c8] sm:$0xff]
      %v881 = vld [vmem:[%s1 + $0x4d0] sm:$0xff]
      %v882 = vld [vmem:[%s1 + $0x4d8] sm:$0xff]
      %v883 = vld [vmem:[%s1 + $0x4e0] sm:$0xff]
      %v884 = vld [vmem:[%s1 + $0x4e8] sm:$0xff]
      %v885 = vld [vmem:[%s1 + $0x4f0] sm:$0xff]
      %v886 = vld [vmem:[%s1 + $0x4f8] sm:$0xff]
      %v887 = vld [vmem:[%s1 + $0x500] sm:$0xff]
      %v888 = vld [vmem:[%s1 + $0x508] sm:$0xff]
      %v889 = vld [vmem:[%s1 + $0x510] sm:$0xff]
      %v890 = vld [vmem:[%s1 + $0x518] sm:$0xff]
      %v891 = vld [vmem:[%s1 + $0x520] sm:$0xff]
      %v892 = vld [vmem:[%s1 + $0x528] sm:$0xff]
      %v893 = vld [vmem:[%s1 + $0x530] sm:$0xff]
      %v894 = vld [vmem:[%s1 + $0x538] sm:$0xff]
      %v895 = vld [vmem:[%s1 + $0x540] sm:$0xff]
      %v896 = vld [vmem:[%s1 + $0x548] sm:$0xff]
      %v897 = vld [vmem:[%s1 + $0x550] sm:$0xff]
      %v898 = vld [vmem:[%s1 + $0x558] sm:$0xff]
      %v899 = vld [vmem:[%s1 + $0x560] sm:$0xff]
      %v900 = vld [vmem:[%s1 + $0x568] sm:$0xff]
      %v901 = vld [vmem:[%s1 + $0x570] sm:$0xff]
      %v902 = vld [vmem:[%s1 + $0x578] sm:$0xff]
      %v903 = vld [vmem:[%s1 + $0x580] sm:$0xff]
      %v904 = vld [vmem:[%s1 + $0x588] sm:$0xff]
      %v905 = vld [vmem:[%s1 + $0x590] sm:$0xff]
      %v906 = vld [vmem:[%s1 + $0x598] sm:$0xff]
      %v907 = vld [vmem:[%s1 + $0x5a0] sm:$0xff]
      %v908 = vld [vmem:[%s1 + $0x5a8] sm:$0xff]
      %v909 = vld [vmem:[%s1 + $0x5b0] sm:$0xff]
      %v910 = vld [vmem:[%s1 + $0x5b8] sm:$0xff]
      %v911 = vld [vmem:[%s1 + $0x5c0] sm:$0xff]
      %v912 = vld [vmem:[%s1 + $0x5c8] sm:$0xff]
      %v913 = vld [vmem:[%s1 + $0x5d0] sm:$0xff]
      %v914 = vld [vmem:[%s1 + $0x5d8] sm:$0xff]
      %v915 = vld [vmem:[%s1 + $0x5e0] sm:$0xff]
      %v916 = vld [vmem:[%s1 + $0x5e8] sm:$0xff]
      %v917 = vld [vmem:[%s1 + $0x5f0] sm:$0xff]
      %v918 = vld [vmem:[%s1 + $0x5f8] sm:$0xff]
      %v919 = vld [vmem:[%s1 + $0x600] sm:$0xff]
      %v920 = vld [vmem:[%s1 + $0x608] sm:$0xff]
      %v921 = vld [vmem:[%s1 + $0x610] sm:$0xff]
      %v922 = vld [vmem:[%s1 + $0x618] sm:$0xff]
      %v923 = vld [vmem:[%s9] sm:$0xf]
      %v925 = vlaneseq
      %v926 = vshrl.u32 %v925, 7
      %v927 = vsub.s32 0, %v926
      %v928 = vrot.slane %v923, %v927
      %v929 = vlaneseq
      %v930 = vshrl.u32 %v929, 7
      %v931 = vsub.s32 1, %v930
      %v932 = vrot.slane %v923, %v931
      %v933 = vlaneseq
      %v934 = vshrl.u32 %v933, 7
      %v935 = vsub.s32 2, %v934
      %v936 = vrot.slane %v923, %v935
      %v937 = vlaneseq
      %v938 = vshrl.u32 %v937, 7
      %v939 = vsub.s32 3, %v938
      %v940 = vrot.slane %v923, %v939
      %v1073 = vunpack.c.l.b16 %v599
      %v1074 = vunpack.c.h.b16 %v599
      %v1075 = vunpack.c.l.b16 %v600
      %v1076 = vunpack.c.h.b16 %v600
      %v1077 = vunpack.c.l.b16 %v601
      %v1078 = vunpack.c.h.b16 %v601
      %v1079 = vunpack.c.l.b16 %v602
      %v1080 = vunpack.c.l.b16 %v603
      %v1081 = vunpack.c.h.b16 %v603
      %v1082 = vunpack.c.l.b16 %v604
      %v1083 = vunpack.c.h.b16 %v604
      %v1084 = vunpack.c.l.b16 %v605
      %v1085 = vunpack.c.h.b16 %v605
      %v1086 = vunpack.c.l.b16 %v606
      %v1087 = vunpack.c.l.b16 %v607
      %v1088 = vunpack.c.h.b16 %v607
      %v1089 = vunpack.c.l.b16 %v608
      %v1090 = vunpack.c.h.b16 %v608
      %v1091 = vunpack.c.l.b16 %v609
      %v1092 = vunpack.c.h.b16 %v609
      %v1093 = vunpack.c.l.b16 %v610
      %v1094 = vunpack.c.l.b16 %v611
      %v1095 = vunpack.c.h.b16 %v611
      %v1096 = vunpack.c.l.b16 %v612
      %v1097 = vunpack.c.h.b16 %v612
      %v1098 = vunpack.c.l.b16 %v613
      %v1099 = vunpack.c.h.b16 %v613
      %v1100 = vunpack.c.l.b16 %v614
      %v1101 = vunpack.c.l.b16 %v615
      %v1102 = vunpack.c.h.b16 %v615
      %v1103 = vunpack.c.l.b16 %v616
      %v1104 = vunpack.c.h.b16 %v616
      %v1105 = vunpack.c.l.b16 %v617
      %v1106 = vunpack.c.h.b16 %v617
      %v1107 = vunpack.c.l.b16 %v618
      %v1108 = vunpack.c.l.b16 %v619
      %v1109 = vunpack.c.h.b16 %v619
      %v1110 = vunpack.c.l.b16 %v620
      %v1111 = vunpack.c.h.b16 %v620
      %v1112 = vunpack.c.l.b16 %v621
      %v1113 = vunpack.c.h.b16 %v621
      %v1114 = vunpack.c.l.b16 %v622
      %v1115 = vunpack.c.l.b16 %v623
      %v1116 = vunpack.c.h.b16 %v623
      %v1117 = vunpack.c.l.b16 %v624
      %v1118 = vunpack.c.h.b16 %v624
      %v1119 = vunpack.c.l.b16 %v625
      %v1120 = vunpack.c.h.b16 %v625
      %v1121 = vunpack.c.l.b16 %v626
      %v1122 = vunpack.c.l.b16 %v627
      %v1123 = vunpack.c.h.b16 %v627
      %v1124 = vunpack.c.l.b16 %v628
      %v1125 = vunpack.c.h.b16 %v628
      %v1126 = vunpack.c.l.b16 %v629
      %v1127 = vunpack.c.h.b16 %v629
      %v1128 = vunpack.c.l.b16 %v630
      %v1129 = vunpack.c.l.b16 %v631
      %v1130 = vunpack.c.h.b16 %v631
      %v1131 = vunpack.c.l.b16 %v632
      %v1132 = vunpack.c.h.b16 %v632
      %v1133 = vunpack.c.l.b16 %v633
      %v1134 = vunpack.c.h.b16 %v633
      %v1135 = vunpack.c.l.b16 %v634
      %v1136 = vunpack.c.l.b16 %v635
      %v1137 = vunpack.c.h.b16 %v635
      %v1138 = vunpack.c.l.b16 %v636
      %v1139 = vunpack.c.h.b16 %v636
      %v1140 = vunpack.c.l.b16 %v637
      %v1141 = vunpack.c.h.b16 %v637
      %v1142 = vunpack.c.l.b16 %v638
      %v1143 = vunpack.c.l.b16 %v639
      %v1144 = vunpack.c.h.b16 %v639
      %v1145 = vunpack.c.l.b16 %v640
      %v1146 = vunpack.c.h.b16 %v640
      %v1147 = vunpack.c.l.b16 %v641
      %v1148 = vunpack.c.h.b16 %v641
      %v1149 = vunpack.c.l.b16 %v642
      %v1150 = vunpack.c.l.b16 %v643
      %v1151 = vunpack.c.h.b16 %v643
      %v1152 = vunpack.c.l.b16 %v644
      %v1153 = vunpack.c.h.b16 %v644
      %v1154 = vunpack.c.l.b16 %v645
      %v1155 = vunpack.c.h.b16 %v645
      %v1156 = vunpack.c.l.b16 %v646
      %v1157 = vunpack.c.l.b16 %v647
      %v1158 = vunpack.c.h.b16 %v647
      %v1159 = vunpack.c.l.b16 %v648
      %v1160 = vunpack.c.h.b16 %v648
      %v1161 = vunpack.c.l.b16 %v649
      %v1162 = vunpack.c.h.b16 %v649
      %v1163 = vunpack.c.l.b16 %v650
      %v1164 = vunpack.c.l.b16 %v651
      %v1165 = vunpack.c.h.b16 %v651
      %v1166 = vunpack.c.l.b16 %v652
      %v1167 = vunpack.c.h.b16 %v652
      %v1168 = vunpack.c.l.b16 %v653
      %v1169 = vunpack.c.h.b16 %v653
      %v1170 = vunpack.c.l.b16 %v654
      %v1171 = vunpack.c.l.b16 %v655
      %v1172 = vunpack.c.h.b16 %v655
      %v1173 = vunpack.c.l.b16 %v656
      %v1174 = vunpack.c.h.b16 %v656
      %v1175 = vunpack.c.l.b16 %v657
      %v1176 = vunpack.c.h.b16 %v657
      %v1177 = vunpack.c.l.b16 %v658
      %v1178 = vunpack.c.l.b16 %v659
      %v1179 = vunpack.c.h.b16 %v659
      %v1180 = vunpack.c.l.b16 %v660
      %v1181 = vunpack.c.h.b16 %v660
      %v1182 = vunpack.c.l.b16 %v661
      %v1183 = vunpack.c.h.b16 %v661
      %v1184 = vunpack.c.l.b16 %v662
      %v1185 = vunpack.c.l.b16 %v663
      %v1186 = vunpack.c.h.b16 %v663
      %v1187 = vunpack.c.l.b16 %v664
      %v1188 = vunpack.c.h.b16 %v664
      %v1189 = vunpack.c.l.b16 %v665
      %v1190 = vunpack.c.h.b16 %v665
      %v1191 = vunpack.c.l.b16 %v666
      %v1192 = vunpack.c.l.b16 %v667
      %v1193 = vunpack.c.h.b16 %v667
      %v1194 = vunpack.c.l.b16 %v668
      %v1195 = vunpack.c.h.b16 %v668
      %v1196 = vunpack.c.l.b16 %v669
      %v1197 = vunpack.c.h.b16 %v669
      %v1198 = vunpack.c.l.b16 %v670
      %v1199 = vunpack.c.l.b16 %v671
      %v1200 = vunpack.c.h.b16 %v671
      %v1201 = vunpack.c.l.b16 %v672
      %v1202 = vunpack.c.h.b16 %v672
      %v1203 = vunpack.c.l.b16 %v673
      %v1204 = vunpack.c.h.b16 %v673
      %v1205 = vunpack.c.l.b16 %v674
      %v1206 = vunpack.c.l.b16 %v675
      %v1207 = vunpack.c.h.b16 %v675
      %v1208 = vunpack.c.l.b16 %v676
      %v1209 = vunpack.c.h.b16 %v676
      %v1210 = vunpack.c.l.b16 %v677
      %v1211 = vunpack.c.h.b16 %v677
      %v1212 = vunpack.c.l.b16 %v678
      %v1213 = vunpack.c.l.b16 %v679
      %v1214 = vunpack.c.h.b16 %v679
      %v1215 = vunpack.c.l.b16 %v680
      %v1216 = vunpack.c.h.b16 %v680
      %v1217 = vunpack.c.l.b16 %v681
      %v1218 = vunpack.c.h.b16 %v681
      %v1219 = vunpack.c.l.b16 %v682
      %v1220 = vunpack.c.l.b16 %v683
      %v1221 = vunpack.c.h.b16 %v683
      %v1222 = vunpack.c.l.b16 %v684
      %v1223 = vunpack.c.h.b16 %v684
      %v1224 = vunpack.c.l.b16 %v685
      %v1225 = vunpack.c.h.b16 %v685
      %v1226 = vunpack.c.l.b16 %v686
      %v1227 = vunpack.c.l.b16 %v687
      %v1228 = vunpack.c.h.b16 %v687
      %v1229 = vunpack.c.l.b16 %v688
      %v1230 = vunpack.c.h.b16 %v688
      %v1231 = vunpack.c.l.b16 %v689
      %v1232 = vunpack.c.h.b16 %v689
      %v1233 = vunpack.c.l.b16 %v690
      %v1234 = vunpack.c.l.b16 %v691
      %v1235 = vunpack.c.h.b16 %v691
      %v1236 = vunpack.c.l.b16 %v692
      %v1237 = vunpack.c.h.b16 %v692
      %v1238 = vunpack.c.l.b16 %v693
      %v1239 = vunpack.c.h.b16 %v693
      %v1240 = vunpack.c.l.b16 %v694
      %v1241 = vunpack.c.l.b16 %v695
      %v1242 = vunpack.c.h.b16 %v695
      %v1243 = vunpack.c.l.b16 %v696
      %v1244 = vunpack.c.h.b16 %v696
      %v1245 = vunpack.c.l.b16 %v697
      %v1246 = vunpack.c.h.b16 %v697
      %v1247 = vunpack.c.l.b16 %v698
      %v1248 = vunpack.c.l.b16 %v699
      %v1249 = vunpack.c.h.b16 %v699
      %v1250 = vunpack.c.l.b16 %v700
      %v1251 = vunpack.c.h.b16 %v700
      %v1252 = vunpack.c.l.b16 %v701
      %v1253 = vunpack.c.h.b16 %v701
      %v1254 = vunpack.c.l.b16 %v702
      %v1255 = vunpack.c.l.b16 %v703
      %v1256 = vunpack.c.h.b16 %v703
      %v1257 = vunpack.c.l.b16 %v704
      %v1258 = vunpack.c.h.b16 %v704
      %v1259 = vunpack.c.l.b16 %v705
      %v1260 = vunpack.c.h.b16 %v705
      %v1261 = vunpack.c.l.b16 %v706
      %v1262 = vunpack.c.l.b16 %v707
      %v1263 = vunpack.c.h.b16 %v707
      %v1264 = vunpack.c.l.b16 %v708
      %v1265 = vunpack.c.h.b16 %v708
      %v1266 = vunpack.c.l.b16 %v709
      %v1267 = vunpack.c.h.b16 %v709
      %v1268 = vunpack.c.l.b16 %v710
      %v1269 = vunpack.c.l.b16 %v711
      %v1270 = vunpack.c.h.b16 %v711
      %v1271 = vunpack.c.l.b16 %v712
      %v1272 = vunpack.c.h.b16 %v712
      %v1273 = vunpack.c.l.b16 %v713
      %v1274 = vunpack.c.h.b16 %v713
      %v1275 = vunpack.c.l.b16 %v714
      %v1276 = vunpack.c.l.b16 %v715
      %v1277 = vunpack.c.h.b16 %v715
      %v1278 = vunpack.c.l.b16 %v716
      %v1279 = vunpack.c.h.b16 %v716
      %v1280 = vunpack.c.l.b16 %v717
      %v1281 = vunpack.c.h.b16 %v717
      %v1282 = vunpack.c.l.b16 %v718
      %v1283 = vunpack.c.l.b16 %v719
      %v1284 = vunpack.c.h.b16 %v719
      %v1285 = vunpack.c.l.b16 %v720
      %v1286 = vunpack.c.h.b16 %v720
      %v1287 = vunpack.c.l.b16 %v721
      %v1288 = vunpack.c.h.b16 %v721
      %v1289 = vunpack.c.l.b16 %v722
      %v1290 = vunpack.c.l.b16 %v723
      %v1291 = vunpack.c.h.b16 %v723
      %v1292 = vunpack.c.l.b16 %v724
      %v1293 = vunpack.c.h.b16 %v724
      %v1294 = vunpack.c.l.b16 %v725
      %v1295 = vunpack.c.h.b16 %v725
      %v1296 = vunpack.c.l.b16 %v726
      %v1297 = vpack.c.b16 %v1080, %v1073
      %v1298 = vpack.c.b16 %v1081, %v1074
      %v1299 = vpack.c.b16 %v1082, %v1075
      %v1300 = vpack.c.b16 %v1083, %v1076
      %v1301 = vpack.c.b16 %v1084, %v1077
      %v1302 = vpack.c.b16 %v1085, %v1078
      %v1303 = vpack.c.b16 %v1086, %v1079
      %v1304 = vpack.c.b16 %v1094, %v1087
      %v1305 = vpack.c.b16 %v1095, %v1088
      %v1306 = vpack.c.b16 %v1096, %v1089
      %v1307 = vpack.c.b16 %v1097, %v1090
      %v1308 = vpack.c.b16 %v1098, %v1091
      %v1309 = vpack.c.b16 %v1099, %v1092
      %v1310 = vpack.c.b16 %v1100, %v1093
      %v1311 = vpack.c.b16 %v1108, %v1101
      %v1312 = vpack.c.b16 %v1109, %v1102
      %v1313 = vpack.c.b16 %v1110, %v1103
      %v1314 = vpack.c.b16 %v1111, %v1104
      %v1315 = vpack.c.b16 %v1112, %v1105
      %v1316 = vpack.c.b16 %v1113, %v1106
      %v1317 = vpack.c.b16 %v1114, %v1107
      %v1318 = vpack.c.b16 %v1122, %v1115
      %v1319 = vpack.c.b16 %v1123, %v1116
      %v1320 = vpack.c.b16 %v1124, %v1117
      %v1321 = vpack.c.b16 %v1125, %v1118
      %v1322 = vpack.c.b16 %v1126, %v1119
      %v1323 = vpack.c.b16 %v1127, %v1120
      %v1324 = vpack.c.b16 %v1128, %v1121
      %v1325 = vpack.c.b16 %v1136, %v1129
      %v1326 = vpack.c.b16 %v1137, %v1130
      %v1327 = vpack.c.b16 %v1138, %v1131
      %v1328 = vpack.c.b16 %v1139, %v1132
      %v1329 = vpack.c.b16 %v1140, %v1133
      %v1330 = vpack.c.b16 %v1141, %v1134
      %v1331 = vpack.c.b16 %v1142, %v1135
      %v1332 = vpack.c.b16 %v1150, %v1143
      %v1333 = vpack.c.b16 %v1151, %v1144
      %v1334 = vpack.c.b16 %v1152, %v1145
      %v1335 = vpack.c.b16 %v1153, %v1146
      %v1336 = vpack.c.b16 %v1154, %v1147
      %v1337 = vpack.c.b16 %v1155, %v1148
      %v1338 = vpack.c.b16 %v1156, %v1149
      %v1339 = vpack.c.b16 %v1164, %v1157
      %v1340 = vpack.c.b16 %v1165, %v1158
      %v1341 = vpack.c.b16 %v1166, %v1159
      %v1342 = vpack.c.b16 %v1167, %v1160
      %v1343 = vpack.c.b16 %v1168, %v1161
      %v1344 = vpack.c.b16 %v1169, %v1162
      %v1345 = vpack.c.b16 %v1170, %v1163
      %v1346 = vpack.c.b16 %v1178, %v1171
      %v1347 = vpack.c.b16 %v1179, %v1172
      %v1348 = vpack.c.b16 %v1180, %v1173
      %v1349 = vpack.c.b16 %v1181, %v1174
      %v1350 = vpack.c.b16 %v1182, %v1175
      %v1351 = vpack.c.b16 %v1183, %v1176
      %v1352 = vpack.c.b16 %v1184, %v1177
      %v1353 = vpack.c.b16 %v1192, %v1185
      %v1354 = vpack.c.b16 %v1193, %v1186
      %v1355 = vpack.c.b16 %v1194, %v1187
      %v1356 = vpack.c.b16 %v1195, %v1188
      %v1357 = vpack.c.b16 %v1196, %v1189
      %v1358 = vpack.c.b16 %v1197, %v1190
      %v1359 = vpack.c.b16 %v1198, %v1191
      %v1360 = vpack.c.b16 %v1206, %v1199
      %v1361 = vpack.c.b16 %v1207, %v1200
      %v1362 = vpack.c.b16 %v1208, %v1201
      %v1363 = vpack.c.b16 %v1209, %v1202
      %v1364 = vpack.c.b16 %v1210, %v1203
      %v1365 = vpack.c.b16 %v1211, %v1204
      %v1366 = vpack.c.b16 %v1212, %v1205
      %v1367 = vpack.c.b16 %v1220, %v1213
      %v1368 = vpack.c.b16 %v1221, %v1214
      %v1369 = vpack.c.b16 %v1222, %v1215
      %v1370 = vpack.c.b16 %v1223, %v1216
      %v1371 = vpack.c.b16 %v1224, %v1217
      %v1372 = vpack.c.b16 %v1225, %v1218
      %v1373 = vpack.c.b16 %v1226, %v1219
      %v1374 = vpack.c.b16 %v1234, %v1227
      %v1375 = vpack.c.b16 %v1235, %v1228
      %v1376 = vpack.c.b16 %v1236, %v1229
      %v1377 = vpack.c.b16 %v1237, %v1230
      %v1378 = vpack.c.b16 %v1238, %v1231
      %v1379 = vpack.c.b16 %v1239, %v1232
      %v1380 = vpack.c.b16 %v1240, %v1233
      %v1381 = vpack.c.b16 %v1248, %v1241
      %v1382 = vpack.c.b16 %v1249, %v1242
      %v1383 = vpack.c.b16 %v1250, %v1243
      %v1384 = vpack.c.b16 %v1251, %v1244
      %v1385 = vpack.c.b16 %v1252, %v1245
      %v1386 = vpack.c.b16 %v1253, %v1246
      %v1387 = vpack.c.b16 %v1254, %v1247
      %v1388 = vpack.c.b16 %v1262, %v1255
      %v1389 = vpack.c.b16 %v1263, %v1256
      %v1390 = vpack.c.b16 %v1264, %v1257
      %v1391 = vpack.c.b16 %v1265, %v1258
      %v1392 = vpack.c.b16 %v1266, %v1259
      %v1393 = vpack.c.b16 %v1267, %v1260
      %v1394 = vpack.c.b16 %v1268, %v1261
      %v1395 = vpack.c.b16 %v1276, %v1269
      %v1396 = vpack.c.b16 %v1277, %v1270
      %v1397 = vpack.c.b16 %v1278, %v1271
      %v1398 = vpack.c.b16 %v1279, %v1272
      %v1399 = vpack.c.b16 %v1280, %v1273
      %v1400 = vpack.c.b16 %v1281, %v1274
      %v1401 = vpack.c.b16 %v1282, %v1275
      %v1402 = vpack.c.b16 %v1290, %v1283
      %v1403 = vpack.c.b16 %v1291, %v1284
      %v1404 = vpack.c.b16 %v1292, %v1285
      %v1405 = vpack.c.b16 %v1293, %v1286
      %v1406 = vpack.c.b16 %v1294, %v1287
      %v1407 = vpack.c.b16 %v1295, %v1288
      %v1408 = vpack.c.b16 %v1296, %v1289
      %v1701 = vunpack.c.l.b16 %v727
      %v1702 = vunpack.c.h.b16 %v727
      %v1703 = vunpack.c.l.b16 %v728
      %v1704 = vunpack.c.h.b16 %v728
      %v1705 = vunpack.c.l.b16 %v729
      %v1706 = vunpack.c.h.b16 %v729
      %v1707 = vunpack.c.l.b16 %v730
      %v1708 = vunpack.c.h.b16 %v730
      %v1709 = vunpack.c.l.b16 %v731
      %v1710 = vunpack.c.h.b16 %v731
      %v1711 = vunpack.c.l.b16 %v732
      %v1712 = vunpack.c.h.b16 %v732
      %v1713 = vunpack.c.l.b16 %v733
      %v1714 = vunpack.c.h.b16 %v733
      %v1715 = vunpack.c.l.b16 %v734
      %v1716 = vunpack.c.h.b16 %v734
      %v1717 = vunpack.c.l.b16 %v735
      %v1718 = vunpack.c.h.b16 %v735
      %v1719 = vunpack.c.l.b16 %v736
      %v1720 = vunpack.c.h.b16 %v736
      %v1721 = vunpack.c.l.b16 %v737
      %v1722 = vunpack.c.h.b16 %v737
      %v1723 = vunpack.c.l.b16 %v738
      %v1724 = vunpack.c.h.b16 %v738
      %v1725 = vunpack.c.l.b16 %v739
      %v1726 = vunpack.c.h.b16 %v739
      %v1727 = vunpack.c.l.b16 %v740
      %v1728 = vunpack.c.h.b16 %v740
      %v1729 = vunpack.c.l.b16 %v741
      %v1730 = vunpack.c.h.b16 %v741
      %v1731 = vunpack.c.l.b16 %v742
      %v1732 = vunpack.c.h.b16 %v742
      %v1733 = vunpack.c.l.b16 %v743
      %v1734 = vunpack.c.h.b16 %v743
      %v1735 = vunpack.c.l.b16 %v744
      %v1736 = vunpack.c.h.b16 %v744
      %v1737 = vunpack.c.l.b16 %v745
      %v1738 = vunpack.c.h.b16 %v745
      %v1739 = vunpack.c.l.b16 %v746
      %v1740 = vunpack.c.h.b16 %v746
      %v1741 = vunpack.c.l.b16 %v747
      %v1742 = vunpack.c.h.b16 %v747
      %v1743 = vunpack.c.l.b16 %v748
      %v1744 = vunpack.c.h.b16 %v748
      %v1745 = vunpack.c.l.b16 %v749
      %v1746 = vunpack.c.h.b16 %v749
      %v1747 = vunpack.c.l.b16 %v750
      %v1748 = vunpack.c.h.b16 %v750
      %v1749 = vunpack.c.l.b16 %v751
      %v1750 = vunpack.c.h.b16 %v751
      %v1751 = vunpack.c.l.b16 %v752
      %v1752 = vunpack.c.h.b16 %v752
      %v1753 = vunpack.c.l.b16 %v753
      %v1754 = vunpack.c.h.b16 %v753
      %v1755 = vunpack.c.l.b16 %v754
      %v1756 = vunpack.c.h.b16 %v754
      %v1757 = vunpack.c.l.b16 %v755
      %v1758 = vunpack.c.h.b16 %v755
      %v1759 = vunpack.c.l.b16 %v756
      %v1760 = vunpack.c.h.b16 %v756
      %v1761 = vunpack.c.l.b16 %v757
      %v1762 = vunpack.c.h.b16 %v757
      %v1763 = vunpack.c.l.b16 %v758
      %v1764 = vunpack.c.h.b16 %v758
      %v1765 = vunpack.c.l.b16 %v759
      %v1766 = vunpack.c.h.b16 %v759
      %v1767 = vunpack.c.l.b16 %v760
      %v1768 = vunpack.c.h.b16 %v760
      %v1769 = vunpack.c.l.b16 %v761
      %v1770 = vunpack.c.h.b16 %v761
      %v1771 = vunpack.c.l.b16 %v762
      %v1772 = vunpack.c.h.b16 %v762
      %v1773 = vunpack.c.l.b16 %v763
      %v1774 = vunpack.c.h.b16 %v763
      %v1775 = vunpack.c.l.b16 %v764
      %v1776 = vunpack.c.h.b16 %v764
      %v1777 = vunpack.c.l.b16 %v765
      %v1778 = vunpack.c.h.b16 %v765
      %v1779 = vunpack.c.l.b16 %v766
      %v1780 = vunpack.c.h.b16 %v766
      %v1781 = vunpack.c.l.b16 %v767
      %v1782 = vunpack.c.h.b16 %v767
      %v1783 = vunpack.c.l.b16 %v768
      %v1784 = vunpack.c.h.b16 %v768
      %v1785 = vunpack.c.l.b16 %v769
      %v1786 = vunpack.c.h.b16 %v769
      %v1787 = vunpack.c.l.b16 %v770
      %v1788 = vunpack.c.h.b16 %v770
      %v1789 = vunpack.c.l.b16 %v771
      %v1790 = vunpack.c.h.b16 %v771
      %v1791 = vunpack.c.l.b16 %v772
      %v1792 = vunpack.c.h.b16 %v772
      %v1793 = vunpack.c.l.b16 %v773
      %v1794 = vunpack.c.h.b16 %v773
      %v1795 = vunpack.c.l.b16 %v774
      %v1796 = vunpack.c.h.b16 %v774
      %v1797 = vunpack.c.l.b16 %v775
      %v1798 = vunpack.c.h.b16 %v775
      %v1799 = vunpack.c.l.b16 %v776
      %v1800 = vunpack.c.h.b16 %v776
      %v1801 = vunpack.c.l.b16 %v777
      %v1802 = vunpack.c.h.b16 %v777
      %v1803 = vunpack.c.l.b16 %v778
      %v1804 = vunpack.c.h.b16 %v778
      %v1805 = vunpack.c.l.b16 %v779
      %v1806 = vunpack.c.h.b16 %v779
      %v1807 = vunpack.c.l.b16 %v780
      %v1808 = vunpack.c.h.b16 %v780
      %v1809 = vunpack.c.l.b16 %v781
      %v1810 = vunpack.c.h.b16 %v781
      %v1811 = vunpack.c.l.b16 %v782
      %v1812 = vunpack.c.h.b16 %v782
      %v1813 = vunpack.c.l.b16 %v783
      %v1814 = vunpack.c.h.b16 %v783
      %v1815 = vunpack.c.l.b16 %v784
      %v1816 = vunpack.c.h.b16 %v784
      %v1817 = vunpack.c.l.b16 %v785
      %v1818 = vunpack.c.h.b16 %v785
      %v1819 = vunpack.c.l.b16 %v786
      %v1820 = vunpack.c.h.b16 %v786
      %v1821 = vunpack.c.l.b16 %v787
      %v1822 = vunpack.c.h.b16 %v787
      %v1823 = vunpack.c.l.b16 %v788
      %v1824 = vunpack.c.h.b16 %v788
      %v1825 = vunpack.c.l.b16 %v789
      %v1826 = vunpack.c.h.b16 %v789
      %v1827 = vunpack.c.l.b16 %v790
      %v1828 = vunpack.c.h.b16 %v790
      %v1829 = vunpack.c.l.b16 %v791
      %v1830 = vunpack.c.h.b16 %v791
      %v1831 = vunpack.c.l.b16 %v792
      %v1832 = vunpack.c.h.b16 %v792
      %v1833 = vunpack.c.l.b16 %v793
      %v1834 = vunpack.c.h.b16 %v793
      %v1835 = vunpack.c.l.b16 %v794
      %v1836 = vunpack.c.h.b16 %v794
      %v1837 = vunpack.c.l.b16 %v795
      %v1838 = vunpack.c.h.b16 %v795
      %v1839 = vunpack.c.l.b16 %v796
      %v1840 = vunpack.c.h.b16 %v796
      %v1841 = vunpack.c.l.b16 %v797
      %v1842 = vunpack.c.h.b16 %v797
      %v1843 = vunpack.c.l.b16 %v798
      %v1844 = vunpack.c.h.b16 %v798
      %v1845 = vunpack.c.l.b16 %v799
      %v1846 = vunpack.c.h.b16 %v799
      %v1847 = vunpack.c.l.b16 %v800
      %v1848 = vunpack.c.h.b16 %v800
      %v1849 = vunpack.c.l.b16 %v801
      %v1850 = vunpack.c.h.b16 %v801
      %v1851 = vunpack.c.l.b16 %v802
      %v1852 = vunpack.c.h.b16 %v802
      %v1853 = vunpack.c.l.b16 %v803
      %v1854 = vunpack.c.h.b16 %v803
      %v1855 = vunpack.c.l.b16 %v804
      %v1856 = vunpack.c.h.b16 %v804
      %v1857 = vunpack.c.l.b16 %v805
      %v1858 = vunpack.c.h.b16 %v805
      %v1859 = vunpack.c.l.b16 %v806
      %v1860 = vunpack.c.h.b16 %v806
      %v1861 = vunpack.c.l.b16 %v807
      %v1862 = vunpack.c.h.b16 %v807
      %v1863 = vunpack.c.l.b16 %v808
      %v1864 = vunpack.c.h.b16 %v808
      %v1865 = vunpack.c.l.b16 %v809
      %v1866 = vunpack.c.h.b16 %v809
      %v1867 = vunpack.c.l.b16 %v810
      %v1868 = vunpack.c.h.b16 %v810
      %v1869 = vunpack.c.l.b16 %v811
      %v1870 = vunpack.c.h.b16 %v811
      %v1871 = vunpack.c.l.b16 %v812
      %v1872 = vunpack.c.h.b16 %v812
      %v1873 = vunpack.c.l.b16 %v813
      %v1874 = vunpack.c.h.b16 %v813
      %v1875 = vunpack.c.l.b16 %v814
      %v1876 = vunpack.c.h.b16 %v814
      %v1877 = vunpack.c.l.b16 %v815
      %v1878 = vunpack.c.h.b16 %v815
      %v1879 = vunpack.c.l.b16 %v816
      %v1880 = vunpack.c.h.b16 %v816
      %v1881 = vunpack.c.l.b16 %v817
      %v1882 = vunpack.c.h.b16 %v817
      %v1883 = vunpack.c.l.b16 %v818
      %v1884 = vunpack.c.h.b16 %v818
      %v1885 = vunpack.c.l.b16 %v819
      %v1886 = vunpack.c.h.b16 %v819
      %v1887 = vunpack.c.l.b16 %v820
      %v1888 = vunpack.c.h.b16 %v820
      %v1889 = vunpack.c.l.b16 %v821
      %v1890 = vunpack.c.h.b16 %v821
      %v1891 = vunpack.c.l.b16 %v822
      %v1892 = vunpack.c.h.b16 %v822
      %v1893 = vunpack.c.l.b16 %v823
      %v1894 = vunpack.c.h.b16 %v823
      %v1895 = vunpack.c.l.b16 %v824
      %v1896 = vunpack.c.h.b16 %v824
      %v1897 = vunpack.c.l.b16 %v825
      %v1898 = vunpack.c.h.b16 %v825
      %v1899 = vunpack.c.l.b16 %v826
      %v1900 = vunpack.c.h.b16 %v826
      %v1901 = vunpack.c.l.b16 %v827
      %v1902 = vunpack.c.h.b16 %v827
      %v1903 = vunpack.c.l.b16 %v828
      %v1904 = vunpack.c.h.b16 %v828
      %v1905 = vunpack.c.l.b16 %v829
      %v1906 = vunpack.c.h.b16 %v829
      %v1907 = vunpack.c.l.b16 %v830
      %v1908 = vunpack.c.h.b16 %v830
      %v1909 = vunpack.c.l.b16 %v831
      %v1910 = vunpack.c.h.b16 %v831
      %v1911 = vunpack.c.l.b16 %v832
      %v1912 = vunpack.c.h.b16 %v832
      %v1913 = vunpack.c.l.b16 %v833
      %v1914 = vunpack.c.h.b16 %v833
      %v1915 = vunpack.c.l.b16 %v834
      %v1916 = vunpack.c.h.b16 %v834
      %v1917 = vunpack.c.l.b16 %v835
      %v1918 = vunpack.c.h.b16 %v835
      %v1919 = vunpack.c.l.b16 %v836
      %v1920 = vunpack.c.h.b16 %v836
      %v1921 = vunpack.c.l.b16 %v837
      %v1922 = vunpack.c.h.b16 %v837
      %v1923 = vunpack.c.l.b16 %v838
      %v1924 = vunpack.c.h.b16 %v838
      %v1925 = vunpack.c.l.b16 %v839
      %v1926 = vunpack.c.h.b16 %v839
      %v1927 = vunpack.c.l.b16 %v840
      %v1928 = vunpack.c.h.b16 %v840
      %v1929 = vunpack.c.l.b16 %v841
      %v1930 = vunpack.c.h.b16 %v841
      %v1931 = vunpack.c.l.b16 %v842
      %v1932 = vunpack.c.h.b16 %v842
      %v1933 = vunpack.c.l.b16 %v843
      %v1934 = vunpack.c.h.b16 %v843
      %v1935 = vunpack.c.l.b16 %v844
      %v1936 = vunpack.c.h.b16 %v844
      %v1937 = vunpack.c.l.b16 %v845
      %v1938 = vunpack.c.h.b16 %v845
      %v1939 = vunpack.c.l.b16 %v846
      %v1940 = vunpack.c.h.b16 %v846
      %v1941 = vunpack.c.l.b16 %v847
      %v1942 = vunpack.c.h.b16 %v847
      %v1943 = vunpack.c.l.b16 %v848
      %v1944 = vunpack.c.h.b16 %v848
      %v1945 = vunpack.c.l.b16 %v849
      %v1946 = vunpack.c.h.b16 %v849
      %v1947 = vunpack.c.l.b16 %v850
      %v1948 = vunpack.c.h.b16 %v850
      %v1949 = vunpack.c.l.b16 %v851
      %v1950 = vunpack.c.h.b16 %v851
      %v1951 = vunpack.c.l.b16 %v852
      %v1952 = vunpack.c.h.b16 %v852
      %v1953 = vunpack.c.l.b16 %v853
      %v1954 = vunpack.c.h.b16 %v853
      %v1955 = vunpack.c.l.b16 %v854
      %v1956 = vunpack.c.h.b16 %v854
      %v1957 = vunpack.c.l.b16 %v855
      %v1958 = vunpack.c.h.b16 %v855
      %v1959 = vunpack.c.l.b16 %v856
      %v1960 = vunpack.c.h.b16 %v856
      %v1961 = vunpack.c.l.b16 %v857
      %v1962 = vunpack.c.h.b16 %v857
      %v1963 = vunpack.c.l.b16 %v858
      %v1964 = vunpack.c.h.b16 %v858
      %v1965 = vunpack.c.l.b16 %v859
      %v1966 = vunpack.c.h.b16 %v859
      %v1967 = vunpack.c.l.b16 %v860
      %v1968 = vunpack.c.h.b16 %v860
      %v1969 = vunpack.c.l.b16 %v861
      %v1970 = vunpack.c.h.b16 %v861
      %v1971 = vunpack.c.l.b16 %v862
      %v1972 = vunpack.c.h.b16 %v862
      %v1973 = vunpack.c.l.b16 %v863
      %v1974 = vunpack.c.h.b16 %v863
      %v1975 = vunpack.c.l.b16 %v864
      %v1976 = vunpack.c.h.b16 %v864
      %v1977 = vunpack.c.l.b16 %v865
      %v1978 = vunpack.c.h.b16 %v865
      %v1979 = vunpack.c.l.b16 %v866
      %v1980 = vunpack.c.h.b16 %v866
      %v1981 = vunpack.c.l.b16 %v867
      %v1982 = vunpack.c.h.b16 %v867
      %v1983 = vunpack.c.l.b16 %v868
      %v1984 = vunpack.c.h.b16 %v868
      %v1985 = vunpack.c.l.b16 %v869
      %v1986 = vunpack.c.h.b16 %v869
      %v1987 = vunpack.c.l.b16 %v870
      %v1988 = vunpack.c.h.b16 %v870
      %v1989 = vunpack.c.l.b16 %v871
      %v1990 = vunpack.c.h.b16 %v871
      %v1991 = vunpack.c.l.b16 %v872
      %v1992 = vunpack.c.h.b16 %v872
      %v1993 = vunpack.c.l.b16 %v873
      %v1994 = vunpack.c.h.b16 %v873
      %v1995 = vunpack.c.l.b16 %v874
      %v1996 = vunpack.c.h.b16 %v874
      %v1997 = vunpack.c.l.b16 %v875
      %v1998 = vunpack.c.h.b16 %v875
      %v1999 = vunpack.c.l.b16 %v876
      %v2000 = vunpack.c.h.b16 %v876
      %v2001 = vunpack.c.l.b16 %v877
      %v2002 = vunpack.c.h.b16 %v877
      %v2003 = vunpack.c.l.b16 %v878
      %v2004 = vunpack.c.h.b16 %v878
      %v2005 = vunpack.c.l.b16 %v879
      %v2006 = vunpack.c.h.b16 %v879
      %v2007 = vunpack.c.l.b16 %v880
      %v2008 = vunpack.c.h.b16 %v880
      %v2009 = vunpack.c.l.b16 %v881
      %v2010 = vunpack.c.h.b16 %v881
      %v2011 = vunpack.c.l.b16 %v882
      %v2012 = vunpack.c.h.b16 %v882
      %v2013 = vunpack.c.l.b16 %v883
      %v2014 = vunpack.c.h.b16 %v883
      %v2015 = vunpack.c.l.b16 %v884
      %v2016 = vunpack.c.h.b16 %v884
      %v2017 = vunpack.c.l.b16 %v885
      %v2018 = vunpack.c.h.b16 %v885
      %v2019 = vunpack.c.l.b16 %v886
      %v2020 = vunpack.c.h.b16 %v886
      %v2021 = vunpack.c.l.b16 %v887
      %v2022 = vunpack.c.h.b16 %v887
      %v2023 = vunpack.c.l.b16 %v888
      %v2024 = vunpack.c.h.b16 %v888
      %v2025 = vunpack.c.l.b16 %v889
      %v2026 = vunpack.c.h.b16 %v889
      %v2027 = vunpack.c.l.b16 %v890
      %v2028 = vunpack.c.h.b16 %v890
      %v2029 = vunpack.c.l.b16 %v891
      %v2030 = vunpack.c.h.b16 %v891
      %v2031 = vunpack.c.l.b16 %v892
      %v2032 = vunpack.c.h.b16 %v892
      %v2033 = vunpack.c.l.b16 %v893
      %v2034 = vunpack.c.h.b16 %v893
      %v2035 = vunpack.c.l.b16 %v894
      %v2036 = vunpack.c.h.b16 %v894
      %v2037 = vunpack.c.l.b16 %v895
      %v2038 = vunpack.c.h.b16 %v895
      %v2039 = vunpack.c.l.b16 %v896
      %v2040 = vunpack.c.h.b16 %v896
      %v2041 = vunpack.c.l.b16 %v897
      %v2042 = vunpack.c.h.b16 %v897
      %v2043 = vunpack.c.l.b16 %v898
      %v2044 = vunpack.c.h.b16 %v898
      %v2045 = vunpack.c.l.b16 %v899
      %v2046 = vunpack.c.h.b16 %v899
      %v2047 = vunpack.c.l.b16 %v900
      %v2048 = vunpack.c.h.b16 %v900
      %v2049 = vunpack.c.l.b16 %v901
      %v2050 = vunpack.c.h.b16 %v901
      %v2051 = vunpack.c.l.b16 %v902
      %v2052 = vunpack.c.h.b16 %v902
      %v2053 = vunpack.c.l.b16 %v903
      %v2054 = vunpack.c.h.b16 %v903
      %v2055 = vunpack.c.l.b16 %v904
      %v2056 = vunpack.c.h.b16 %v904
      %v2057 = vunpack.c.l.b16 %v905
      %v2058 = vunpack.c.h.b16 %v905
      %v2059 = vunpack.c.l.b16 %v906
      %v2060 = vunpack.c.h.b16 %v906
      %v2061 = vunpack.c.l.b16 %v907
      %v2062 = vunpack.c.h.b16 %v907
      %v2063 = vunpack.c.l.b16 %v908
      %v2064 = vunpack.c.h.b16 %v908
      %v2065 = vunpack.c.l.b16 %v909
      %v2066 = vunpack.c.h.b16 %v909
      %v2067 = vunpack.c.l.b16 %v910
      %v2068 = vunpack.c.h.b16 %v910
      %v2069 = vunpack.c.l.b16 %v911
      %v2070 = vunpack.c.h.b16 %v911
      %v2071 = vunpack.c.l.b16 %v912
      %v2072 = vunpack.c.h.b16 %v912
      %v2073 = vunpack.c.l.b16 %v913
      %v2074 = vunpack.c.h.b16 %v913
      %v2075 = vunpack.c.l.b16 %v914
      %v2076 = vunpack.c.h.b16 %v914
      %v2077 = vunpack.c.l.b16 %v915
      %v2078 = vunpack.c.h.b16 %v915
      %v2079 = vunpack.c.l.b16 %v916
      %v2080 = vunpack.c.h.b16 %v916
      %v2081 = vunpack.c.l.b16 %v917
      %v2082 = vunpack.c.h.b16 %v917
      %v2083 = vunpack.c.l.b16 %v918
      %v2084 = vunpack.c.h.b16 %v918
      %v2085 = vunpack.c.l.b16 %v919
      %v2086 = vunpack.c.h.b16 %v919
      %v2087 = vunpack.c.l.b16 %v920
      %v2088 = vunpack.c.h.b16 %v920
      %v2089 = vunpack.c.l.b16 %v921
      %v2090 = vunpack.c.h.b16 %v921
      %v2091 = vunpack.c.l.b16 %v922
      %v2092 = vunpack.c.h.b16 %v922
      %v2093 = vpack.c.b16 %v1705, %v1701
      %v2094 = vpack.c.b16 %v1706, %v1702
      %v2095 = vpack.c.b16 %v1707, %v1703
      %v2096 = vpack.c.b16 %v1708, %v1704
      %v2097 = vpack.c.b16 %v1713, %v1709
      %v2098 = vpack.c.b16 %v1714, %v1710
      %v2099 = vpack.c.b16 %v1715, %v1711
      %v2100 = vpack.c.b16 %v1716, %v1712
      %v2101 = vpack.c.b16 %v1721, %v1717
      %v2102 = vpack.c.b16 %v1722, %v1718
      %v2103 = vpack.c.b16 %v1723, %v1719
      %v2104 = vpack.c.b16 %v1724, %v1720
      %v2105 = vpack.c.b16 %v1729, %v1725
      %v2106 = vpack.c.b16 %v1730, %v1726
      %v2107 = vpack.c.b16 %v1731, %v1727
      %v2108 = vpack.c.b16 %v1732, %v1728
      %v2109 = vpack.c.b16 %v1737, %v1733
      %v2110 = vpack.c.b16 %v1738, %v1734
      %v2111 = vpack.c.b16 %v1739, %v1735
      %v2112 = vpack.c.b16 %v1740, %v1736
      %v2113 = vpack.c.b16 %v1745, %v1741
      %v2114 = vpack.c.b16 %v1746, %v1742
      %v2115 = vpack.c.b16 %v1747, %v1743
      %v2116 = vpack.c.b16 %v1748, %v1744
      %v2117 = vpack.c.b16 %v1753, %v1749
      %v2118 = vpack.c.b16 %v1754, %v1750
      %v2119 = vpack.c.b16 %v1755, %v1751
      %v2120 = vpack.c.b16 %v1756, %v1752
      %v2121 = vpack.c.b16 %v1761, %v1757
      %v2122 = vpack.c.b16 %v1762, %v1758
      %v2123 = vpack.c.b16 %v1763, %v1759
      %v2124 = vpack.c.b16 %v1764, %v1760
      %v2125 = vpack.c.b16 %v1769, %v1765
      %v2126 = vpack.c.b16 %v1770, %v1766
      %v2127 = vpack.c.b16 %v1771, %v1767
      %v2128 = vpack.c.b16 %v1772, %v1768
      %v2129 = vpack.c.b16 %v1777, %v1773
      %v2130 = vpack.c.b16 %v1778, %v1774
      %v2131 = vpack.c.b16 %v1779, %v1775
      %v2132 = vpack.c.b16 %v1780, %v1776
      %v2133 = vpack.c.b16 %v1785, %v1781
      %v2134 = vpack.c.b16 %v1786, %v1782
      %v2135 = vpack.c.b16 %v1787, %v1783
      %v2136 = vpack.c.b16 %v1788, %v1784
      %v2137 = vpack.c.b16 %v1793, %v1789
      %v2138 = vpack.c.b16 %v1794, %v1790
      %v2139 = vpack.c.b16 %v1795, %v1791
      %v2140 = vpack.c.b16 %v1796, %v1792
      %v2141 = vpack.c.b16 %v1801, %v1797
      %v2142 = vpack.c.b16 %v1802, %v1798
      %v2143 = vpack.c.b16 %v1803, %v1799
      %v2144 = vpack.c.b16 %v1804, %v1800
      %v2145 = vpack.c.b16 %v1809, %v1805
      %v2146 = vpack.c.b16 %v1810, %v1806
      %v2147 = vpack.c.b16 %v1811, %v1807
      %v2148 = vpack.c.b16 %v1812, %v1808
      %v2149 = vpack.c.b16 %v1817, %v1813
      %v2150 = vpack.c.b16 %v1818, %v1814
      %v2151 = vpack.c.b16 %v1819, %v1815
      %v2152 = vpack.c.b16 %v1820, %v1816
      %v2153 = vpack.c.b16 %v1825, %v1821
      %v2154 = vpack.c.b16 %v1826, %v1822
      %v2155 = vpack.c.b16 %v1827, %v1823
      %v2156 = vpack.c.b16 %v1828, %v1824
      %v2157 = vpack.c.b16 %v1833, %v1829
      %v2158 = vpack.c.b16 %v1834, %v1830
      %v2159 = vpack.c.b16 %v1835, %v1831
      %v2160 = vpack.c.b16 %v1836, %v1832
      %v2161 = vpack.c.b16 %v1841, %v1837
      %v2162 = vpack.c.b16 %v1842, %v1838
      %v2163 = vpack.c.b16 %v1843, %v1839
      %v2164 = vpack.c.b16 %v1844, %v1840
      %v2165 = vpack.c.b16 %v1849, %v1845
      %v2166 = vpack.c.b16 %v1850, %v1846
      %v2167 = vpack.c.b16 %v1851, %v1847
      %v2168 = vpack.c.b16 %v1852, %v1848
      %v2169 = vpack.c.b16 %v1857, %v1853
      %v2170 = vpack.c.b16 %v1858, %v1854
      %v2171 = vpack.c.b16 %v1859, %v1855
      %v2172 = vpack.c.b16 %v1860, %v1856
      %v2173 = vpack.c.b16 %v1865, %v1861
      %v2174 = vpack.c.b16 %v1866, %v1862
      %v2175 = vpack.c.b16 %v1867, %v1863
      %v2176 = vpack.c.b16 %v1868, %v1864
      %v2177 = vpack.c.b16 %v1873, %v1869
      %v2178 = vpack.c.b16 %v1874, %v1870
      %v2179 = vpack.c.b16 %v1875, %v1871
      %v2180 = vpack.c.b16 %v1876, %v1872
      %v2181 = vpack.c.b16 %v1881, %v1877
      %v2182 = vpack.c.b16 %v1882, %v1878
      %v2183 = vpack.c.b16 %v1883, %v1879
      %v2184 = vpack.c.b16 %v1884, %v1880
      %v2185 = vpack.c.b16 %v1889, %v1885
      %v2186 = vpack.c.b16 %v1890, %v1886
      %v2187 = vpack.c.b16 %v1891, %v1887
      %v2188 = vpack.c.b16 %v1892, %v1888
      %v2189 = vpack.c.b16 %v1897, %v1893
      %v2190 = vpack.c.b16 %v1898, %v1894
      %v2191 = vpack.c.b16 %v1899, %v1895
      %v2192 = vpack.c.b16 %v1900, %v1896
      %v2193 = vpack.c.b16 %v1905, %v1901
      %v2194 = vpack.c.b16 %v1906, %v1902
      %v2195 = vpack.c.b16 %v1907, %v1903
      %v2196 = vpack.c.b16 %v1908, %v1904
      %v2197 = vpack.c.b16 %v1913, %v1909
      %v2198 = vpack.c.b16 %v1914, %v1910
      %v2199 = vpack.c.b16 %v1915, %v1911
      %v2200 = vpack.c.b16 %v1916, %v1912
      %v2201 = vpack.c.b16 %v1921, %v1917
      %v2202 = vpack.c.b16 %v1922, %v1918
      %v2203 = vpack.c.b16 %v1923, %v1919
      %v2204 = vpack.c.b16 %v1924, %v1920
      %v2205 = vpack.c.b16 %v1929, %v1925
      %v2206 = vpack.c.b16 %v1930, %v1926
      %v2207 = vpack.c.b16 %v1931, %v1927
      %v2208 = vpack.c.b16 %v1932, %v1928
      %v2209 = vpack.c.b16 %v1937, %v1933
      %v2210 = vpack.c.b16 %v1938, %v1934
      %v2211 = vpack.c.b16 %v1939, %v1935
      %v2212 = vpack.c.b16 %v1940, %v1936
      %v2213 = vpack.c.b16 %v1945, %v1941
      %v2214 = vpack.c.b16 %v1946, %v1942
      %v2215 = vpack.c.b16 %v1947, %v1943
      %v2216 = vpack.c.b16 %v1948, %v1944
      %v2217 = vpack.c.b16 %v1953, %v1949
      %v2218 = vpack.c.b16 %v1954, %v1950
      %v2219 = vpack.c.b16 %v1955, %v1951
      %v2220 = vpack.c.b16 %v1956, %v1952
      %v2221 = vpack.c.b16 %v1961, %v1957
      %v2222 = vpack.c.b16 %v1962, %v1958
      %v2223 = vpack.c.b16 %v1963, %v1959
      %v2224 = vpack.c.b16 %v1964, %v1960
      %v2225 = vpack.c.b16 %v1969, %v1965
      %v2226 = vpack.c.b16 %v1970, %v1966
      %v2227 = vpack.c.b16 %v1971, %v1967
      %v2228 = vpack.c.b16 %v1972, %v1968
      %v2229 = vpack.c.b16 %v1977, %v1973
      %v2230 = vpack.c.b16 %v1978, %v1974
      %v2231 = vpack.c.b16 %v1979, %v1975
      %v2232 = vpack.c.b16 %v1980, %v1976
      %v2233 = vpack.c.b16 %v1985, %v1981
      %v2234 = vpack.c.b16 %v1986, %v1982
      %v2235 = vpack.c.b16 %v1987, %v1983
      %v2236 = vpack.c.b16 %v1988, %v1984
      %v2237 = vpack.c.b16 %v1993, %v1989
      %v2238 = vpack.c.b16 %v1994, %v1990
      %v2239 = vpack.c.b16 %v1995, %v1991
      %v2240 = vpack.c.b16 %v1996, %v1992
      %v2241 = vpack.c.b16 %v2001, %v1997
      %v2242 = vpack.c.b16 %v2002, %v1998
      %v2243 = vpack.c.b16 %v2003, %v1999
      %v2244 = vpack.c.b16 %v2004, %v2000
      %v2245 = vpack.c.b16 %v2009, %v2005
      %v2246 = vpack.c.b16 %v2010, %v2006
      %v2247 = vpack.c.b16 %v2011, %v2007
      %v2248 = vpack.c.b16 %v2012, %v2008
      %v2249 = vpack.c.b16 %v2017, %v2013
      %v2250 = vpack.c.b16 %v2018, %v2014
      %v2251 = vpack.c.b16 %v2019, %v2015
      %v2252 = vpack.c.b16 %v2020, %v2016
      %v2253 = vpack.c.b16 %v2025, %v2021
      %v2254 = vpack.c.b16 %v2026, %v2022
      %v2255 = vpack.c.b16 %v2027, %v2023
      %v2256 = vpack.c.b16 %v2028, %v2024
      %v2257 = vpack.c.b16 %v2033, %v2029
      %v2258 = vpack.c.b16 %v2034, %v2030
      %v2259 = vpack.c.b16 %v2035, %v2031
      %v2260 = vpack.c.b16 %v2036, %v2032
      %v2261 = vpack.c.b16 %v2041, %v2037
      %v2262 = vpack.c.b16 %v2042, %v2038
      %v2263 = vpack.c.b16 %v2043, %v2039
      %v2264 = vpack.c.b16 %v2044, %v2040
      %v2265 = vpack.c.b16 %v2049, %v2045
      %v2266 = vpack.c.b16 %v2050, %v2046
      %v2267 = vpack.c.b16 %v2051, %v2047
      %v2268 = vpack.c.b16 %v2052, %v2048
      %v2269 = vpack.c.b16 %v2057, %v2053
      %v2270 = vpack.c.b16 %v2058, %v2054
      %v2271 = vpack.c.b16 %v2059, %v2055
      %v2272 = vpack.c.b16 %v2060, %v2056
      %v2273 = vpack.c.b16 %v2065, %v2061
      %v2274 = vpack.c.b16 %v2066, %v2062
      %v2275 = vpack.c.b16 %v2067, %v2063
      %v2276 = vpack.c.b16 %v2068, %v2064
      %v2277 = vpack.c.b16 %v2073, %v2069
      %v2278 = vpack.c.b16 %v2074, %v2070
      %v2279 = vpack.c.b16 %v2075, %v2071
      %v2280 = vpack.c.b16 %v2076, %v2072
      %v2281 = vpack.c.b16 %v2081, %v2077
      %v2282 = vpack.c.b16 %v2082, %v2078
      %v2283 = vpack.c.b16 %v2083, %v2079
      %v2284 = vpack.c.b16 %v2084, %v2080
      %v2285 = vpack.c.b16 %v2089, %v2085
      %v2286 = vpack.c.b16 %v2090, %v2086
      %v2287 = vpack.c.b16 %v2091, %v2087
      %v2288 = vpack.c.b16 %v2092, %v2088
      %vm2485 = vcmask 130048
      %v2487 = vsel %vm2485, %v1303, 0
      %v2490 = vsel %vm2485, %v1310, 0
      %v2493 = vsel %vm2485, %v1317, 0
      %v2496 = vsel %vm2485, %v1324, 0
      %v2499 = vsel %vm2485, %v1331, 0
      %v2502 = vsel %vm2485, %v1338, 0
      %v2505 = vsel %vm2485, %v1345, 0
      %v2508 = vsel %vm2485, %v1352, 0
      %v2511 = vsel %vm2485, %v1359, 0
      %v2514 = vsel %vm2485, %v1366, 0
      %v2517 = vsel %vm2485, %v1373, 0
      %v2520 = vsel %vm2485, %v1380, 0
      %v2523 = vsel %vm2485, %v1387, 0
      %v2526 = vsel %vm2485, %v1394, 0
      %v2529 = vsel %vm2485, %v1401, 0
      %v2532 = vsel %vm2485, %v1408, 0
      %2534 = vmatprep.subr.bf16.mxu0 %v2094
      %2535 = vmatpush1.bf16.msra.mxu0 %v2093
      %2536 = vmatprep.subr.bf16.mxu0 %v2098
      %2537 = vmatpush1.bf16.msra.mxu0 %v2097
      %2538 = vmatprep.subr.bf16.mxu0 %v2102
      %2539 = vmatpush1.bf16.msra.mxu0 %v2101
      %2540 = vmatprep.subr.bf16.mxu0 %v2106
      %2541 = vmatpush1.bf16.msra.mxu0 %v2105
      %2542 = vmatprep.subr.bf16.mxu0 %v2110
      %2543 = vmatpush1.bf16.msra.mxu0 %v2109
      %2544 = vmatprep.subr.bf16.mxu0 %v2114
      %2545 = vmatpush1.bf16.msra.mxu0 %v2113
      %2546 = vmatprep.subr.bf16.mxu0 %v2118
      %2547 = vmatpush1.bf16.msra.mxu0 %v2117
      %2548 = vmatprep.subr.bf16.mxu0 %v2122
      %2549 = vmatpush1.bf16.msra.mxu0 %v2121
      %2550 = vmatprep.subr.bf16.mxu0 %v2126
      %2551 = vmatpush1.bf16.msra.mxu0 %v2125
      %2552 = vmatprep.subr.bf16.mxu0 %v2130
      %2553 = vmatpush1.bf16.msra.mxu0 %v2129
      %2554 = vmatprep.subr.bf16.mxu0 %v2134
      %2555 = vmatpush1.bf16.msra.mxu0 %v2133
      %2556 = vmatprep.subr.bf16.mxu0 %v2138
      %2557 = vmatpush1.bf16.msra.mxu0 %v2137
      %2558 = vmatprep.subr.bf16.mxu0 %v2142
      %2559 = vmatpush1.bf16.msra.mxu0 %v2141
      %2560 = vmatprep.subr.bf16.mxu0 %v2146
      %2561 = vmatpush1.bf16.msra.mxu0 %v2145
      %2562 = vmatprep.subr.bf16.mxu0 %v2150
      %2563 = vmatpush1.bf16.msra.mxu0 %v2149
      %2564 = vmatprep.subr.bf16.mxu0 %v2154
      %2565 = vmatpush1.bf16.msra.mxu0 %v2153
      %2566 = vmatprep.mubr.bf16.mxu0 %v1298
      %2567 = vmatmul.mubr.bf16.gmra.mrb[0].mxu0 %v1297
      %v2568 = vpop.f32.mrb[0].mxu0
      %v2569 = vadd.f32 %v928, %v2568
      %v2570 = vpop.f32.mrb[0].mxu0
      %v2571 = vadd.f32 %v932, %v2570
      %v2572 = vpop.f32.mrb[0].mxu0
      %v2573 = vadd.f32 %v928, %v2572
      %v2574 = vpop.f32.mrb[0].mxu0
      %v2575 = vadd.f32 %v932, %v2574
      %2576 = vmatprep.mubr.bf16.mxu0 %v1305
      %2577 = vmatmul.mubr.bf16.gmra.mrb[0].mxu0 %v1304
      %v2578 = vpop.f32.mrb[0].mxu0
      %v2579 = vadd.f32 %v928, %v2578
      %v2580 = vpop.f32.mrb[0].mxu0
      %v2581 = vadd.f32 %v932, %v2580
      %v2582 = vpop.f32.mrb[0].mxu0
      %v2583 = vadd.f32 %v928, %v2582
      %v2584 = vpop.f32.mrb[0].mxu0
      %v2585 = vadd.f32 %v932, %v2584
      %2586 = vmatprep.mubr.bf16.mxu0 %v1312
      %2587 = vmatmul.mubr.bf16.gmra.mrb[0].mxu0 %v1311
      %v2588 = vpop.f32.mrb[0].mxu0
      %v2589 = vadd.f32 %v928, %v2588
      %v2590 = vpop.f32.mrb[0].mxu0
      %v2591 = vadd.f32 %v932, %v2590
      %v2592 = vpop.f32.mrb[0].mxu0
      %v2593 = vadd.f32 %v928, %v2592
      %v2594 = vpop.f32.mrb[0].mxu0
      %v2595 = vadd.f32 %v932, %v2594
      %2596 = vmatprep.mubr.bf16.mxu0 %v1319
      %2597 = vmatmul.mubr.bf16.gmra.mrb[0].mxu0 %v1318
      %v2598 = vpop.f32.mrb[0].mxu0
      %v2599 = vadd.f32 %v928, %v2598
      %v2600 = vpop.f32.mrb[0].mxu0
      %v2601 = vadd.f32 %v932, %v2600
      %v2602 = vpop.f32.mrb[0].mxu0
      %v2603 = vadd.f32 %v928, %v2602
      %v2604 = vpop.f32.mrb[0].mxu0
      %v2605 = vadd.f32 %v932, %v2604
      %2606 = vmatprep.mubr.bf16.mxu0 %v1326
      %2607 = vmatmul.mubr.bf16.gmra.mrb[0].mxu0 %v1325
      %v2608 = vpop.f32.mrb[0].mxu0
      %v2609 = vadd.f32 %v928, %v2608
      %v2610 = vpop.f32.mrb[0].mxu0
      %v2611 = vadd.f32 %v932, %v2610
      %v2612 = vpop.f32.mrb[0].mxu0
      %v2613 = vadd.f32 %v928, %v2612
      %v2614 = vpop.f32.mrb[0].mxu0
      %v2615 = vadd.f32 %v932, %v2614
      %2616 = vmatprep.mubr.bf16.mxu0 %v1333
      %2617 = vmatmul.mubr.bf16.gmra.mrb[0].mxu0 %v1332
      %v2618 = vpop.f32.mrb[0].mxu0
      %v2619 = vadd.f32 %v928, %v2618
      %v2620 = vpop.f32.mrb[0].mxu0
      %v2621 = vadd.f32 %v932, %v2620
      %v2622 = vpop.f32.mrb[0].mxu0
      %v2623 = vadd.f32 %v928, %v2622
      %v2624 = vpop.f32.mrb[0].mxu0
      %v2625 = vadd.f32 %v932, %v2624
      %2626 = vmatprep.mubr.bf16.mxu0 %v1340
      %2627 = vmatmul.mubr.bf16.gmra.mrb[0].mxu0 %v1339
      %v2628 = vpop.f32.mrb[0].mxu0
      %v2629 = vadd.f32 %v928, %v2628
      %v2630 = vpop.f32.mrb[0].mxu0
      %v2631 = vadd.f32 %v932, %v2630
      %v2632 = vpop.f32.mrb[0].mxu0
      %v2633 = vadd.f32 %v928, %v2632
      %v2634 = vpop.f32.mrb[0].mxu0
      %v2635 = vadd.f32 %v932, %v2634
      %2636 = vmatprep.mubr.bf16.mxu0 %v1347
      %2637 = vmatmul.mubr.bf16.gmra.mrb[0].mxu0 %v1346
      %v2638 = vpop.f32.mrb[0].mxu0
      %v2639 = vadd.f32 %v928, %v2638
      %v2640 = vpop.f32.mrb[0].mxu0
      %v2641 = vadd.f32 %v932, %v2640
      %v2642 = vpop.f32.mrb[0].mxu0
      %v2643 = vadd.f32 %v928, %v2642
      %v2644 = vpop.f32.mrb[0].mxu0
      %v2645 = vadd.f32 %v932, %v2644
      %2646 = vmatprep.mubr.bf16.mxu0 %v1354
      %2647 = vmatmul.mubr.bf16.gmra.mrb[0].mxu0 %v1353
      %v2648 = vpop.f32.mrb[0].mxu0
      %v2649 = vadd.f32 %v928, %v2648
      %v2650 = vpop.f32.mrb[0].mxu0
      %v2651 = vadd.f32 %v932, %v2650
      %v2652 = vpop.f32.mrb[0].mxu0
      %v2653 = vadd.f32 %v928, %v2652
      %v2654 = vpop.f32.mrb[0].mxu0
      %v2655 = vadd.f32 %v932, %v2654
      %2656 = vmatprep.mubr.bf16.mxu0 %v1361
      %2657 = vmatmul.mubr.bf16.gmra.mrb[0].mxu0 %v1360
      %v2658 = vpop.f32.mrb[0].mxu0
      %v2659 = vadd.f32 %v928, %v2658
      %v2660 = vpop.f32.mrb[0].mxu0
      %v2661 = vadd.f32 %v932, %v2660
      %v2662 = vpop.f32.mrb[0].mxu0
      %v2663 = vadd.f32 %v928, %v2662
      %v2664 = vpop.f32.mrb[0].mxu0
      %v2665 = vadd.f32 %v932, %v2664
      %2666 = vmatprep.mubr.bf16.mxu0 %v1368
      %2667 = vmatmul.mubr.bf16.gmra.mrb[0].mxu0 %v1367
      %v2668 = vpop.f32.mrb[0].mxu0
      %v2669 = vadd.f32 %v928, %v2668
      %v2670 = vpop.f32.mrb[0].mxu0
      %v2671 = vadd.f32 %v932, %v2670
      %v2672 = vpop.f32.mrb[0].mxu0
      %v2673 = vadd.f32 %v928, %v2672
      %v2674 = vpop.f32.mrb[0].mxu0
      %v2675 = vadd.f32 %v932, %v2674
      %2676 = vmatprep.mubr.bf16.mxu0 %v1375
      %2677 = vmatmul.mubr.bf16.gmra.mrb[0].mxu0 %v1374
      %v2678 = vpop.f32.mrb[0].mxu0
      %v2679 = vadd.f32 %v928, %v2678
      %v2680 = vpop.f32.mrb[0].mxu0
      %v2681 = vadd.f32 %v932, %v2680
      %v2682 = vpop.f32.mrb[0].mxu0
      %v2683 = vadd.f32 %v928, %v2682
      %v2684 = vpop.f32.mrb[0].mxu0
      %v2685 = vadd.f32 %v932, %v2684
      %2686 = vmatprep.mubr.bf16.mxu0 %v1382
      %2687 = vmatmul.mubr.bf16.gmra.mrb[0].mxu0 %v1381
      %v2688 = vpop.f32.mrb[0].mxu0
      %v2689 = vadd.f32 %v928, %v2688
      %v2690 = vpop.f32.mrb[0].mxu0
      %v2691 = vadd.f32 %v932, %v2690
      %v2692 = vpop.f32.mrb[0].mxu0
      %v2693 = vadd.f32 %v928, %v2692
      %v2694 = vpop.f32.mrb[0].mxu0
      %v2695 = vadd.f32 %v932, %v2694
      %2696 = vmatprep.mubr.bf16.mxu0 %v1389
      %2697 = vmatmul.mubr.bf16.gmra.mrb[0].mxu0 %v1388
      %v2698 = vpop.f32.mrb[0].mxu0
      %v2699 = vadd.f32 %v928, %v2698
      %v2700 = vpop.f32.mrb[0].mxu0
      %v2701 = vadd.f32 %v932, %v2700
      %v2702 = vpop.f32.mrb[0].mxu0
      %v2703 = vadd.f32 %v928, %v2702
      %v2704 = vpop.f32.mrb[0].mxu0
      %v2705 = vadd.f32 %v932, %v2704
      %2706 = vmatprep.mubr.bf16.mxu0 %v1396
      %2707 = vmatmul.mubr.bf16.gmra.mrb[0].mxu0 %v1395
      %v2708 = vpop.f32.mrb[0].mxu0
      %v2709 = vadd.f32 %v928, %v2708
      %v2710 = vpop.f32.mrb[0].mxu0
      %v2711 = vadd.f32 %v932, %v2710
      %v2712 = vpop.f32.mrb[0].mxu0
      %v2713 = vadd.f32 %v928, %v2712
      %v2714 = vpop.f32.mrb[0].mxu0
      %v2715 = vadd.f32 %v932, %v2714
      %2716 = vmatprep.mubr.bf16.mxu0 %v1403
      %2717 = vmatmul.mubr.bf16.gmra.mrb[0].mxu0 %v1402
      %v2718 = vpop.f32.mrb[0].mxu0
      %v2719 = vadd.f32 %v928, %v2718
      %v2720 = vpop.f32.mrb[0].mxu0
      %v2721 = vadd.f32 %v932, %v2720
      %v2722 = vpop.f32.mrb[0].mxu0
      %v2723 = vadd.f32 %v928, %v2722
      %v2724 = vpop.f32.mrb[0].mxu0
      %v2725 = vadd.f32 %v932, %v2724
      %2726 = vdwg.mxu0
      %2727 = vmatprep.subr.bf16.mxu0 %v2158
      %2728 = vmatpush1.bf16.msra.mxu0 %v2157
      %2729 = vmatprep.subr.bf16.mxu0 %v2162
      %2730 = vmatpush1.bf16.msra.mxu0 %v2161
      %2731 = vmatprep.subr.bf16.mxu0 %v2166
      %2732 = vmatpush1.bf16.msra.mxu0 %v2165
      %2733 = vmatprep.subr.bf16.mxu0 %v2170
      %2734 = vmatpush1.bf16.msra.mxu0 %v2169
      %2735 = vmatprep.subr.bf16.mxu0 %v2174
      %2736 = vmatpush1.bf16.msra.mxu0 %v2173
      %2737 = vmatprep.subr.bf16.mxu0 %v2178
      %2738 = vmatpush1.bf16.msra.mxu0 %v2177
      %2739 = vmatprep.subr.bf16.mxu0 %v2182
      %2740 = vmatpush1.bf16.msra.mxu0 %v2181
      %2741 = vmatprep.subr.bf16.mxu0 %v2186
      %2742 = vmatpush1.bf16.msra.mxu0 %v2185
      %2743 = vmatprep.subr.bf16.mxu0 %v2190
      %2744 = vmatpush1.bf16.msra.mxu0 %v2189
      %2745 = vmatprep.subr.bf16.mxu0 %v2194
      %2746 = vmatpush1.bf16.msra.mxu0 %v2193
      %2747 = vmatprep.subr.bf16.mxu0 %v2198
      %2748 = vmatpush1.bf16.msra.mxu0 %v2197
      %2749 = vmatprep.subr.bf16.mxu0 %v2202
      %2750 = vmatpush1.bf16.msra.mxu0 %v2201
      %2751 = vmatprep.subr.bf16.mxu0 %v2206
      %2752 = vmatpush1.bf16.msra.mxu0 %v2205
      %2753 = vmatprep.subr.bf16.mxu0 %v2210
      %2754 = vmatpush1.bf16.msra.mxu0 %v2209
      %2755 = vmatprep.subr.bf16.mxu0 %v2214
      %2756 = vmatpush1.bf16.msra.mxu0 %v2213
      %2757 = vmatprep.subr.bf16.mxu0 %v2218
      %2758 = vmatpush1.bf16.msra.mxu0 %v2217
      %2759 = vmatprep.mubr.bf16.mxu0 %v1300
      %2760 = vmatmul.mubr.bf16.gmra.mrb[0].mxu0 %v1299
      %v2761 = vpop.f32.mrb[0].mxu0
      %v2762 = vadd.f32 %v2569, %v2761
      %v2763 = vpop.f32.mrb[0].mxu0
      %v2764 = vadd.f32 %v2571, %v2763
      %v2765 = vpop.f32.mrb[0].mxu0
      %v2766 = vadd.f32 %v2573, %v2765
      %v2767 = vpop.f32.mrb[0].mxu0
      %v2768 = vadd.f32 %v2575, %v2767
      %2769 = vmatprep.mubr.bf16.mxu0 %v1307
      %2770 = vmatmul.mubr.bf16.gmra.mrb[0].mxu0 %v1306
      %v2771 = vpop.f32.mrb[0].mxu0
      %v2772 = vadd.f32 %v2579, %v2771
      %v2773 = vpop.f32.mrb[0].mxu0
      %v2774 = vadd.f32 %v2581, %v2773
      %v2775 = vpop.f32.mrb[0].mxu0
      %v2776 = vadd.f32 %v2583, %v2775
      %v2777 = vpop.f32.mrb[0].mxu0
      %v2778 = vadd.f32 %v2585, %v2777
      %2779 = vmatprep.mubr.bf16.mxu0 %v1314
      %2780 = vmatmul.mubr.bf16.gmra.mrb[0].mxu0 %v1313
      %v2781 = vpop.f32.mrb[0].mxu0
      %v2782 = vadd.f32 %v2589, %v2781
      %v2783 = vpop.f32.mrb[0].mxu0
      %v2784 = vadd.f32 %v2591, %v2783
      %v2785 = vpop.f32.mrb[0].mxu0
      %v2786 = vadd.f32 %v2593, %v2785
      %v2787 = vpop.f32.mrb[0].mxu0
      %v2788 = vadd.f32 %v2595, %v2787
      %2789 = vmatprep.mubr.bf16.mxu0 %v1321
      %2790 = vmatmul.mubr.bf16.gmra.mrb[0].mxu0 %v1320
      %v2791 = vpop.f32.mrb[0].mxu0
      %v2792 = vadd.f32 %v2599, %v2791
      %v2793 = vpop.f32.mrb[0].mxu0
      %v2794 = vadd.f32 %v2601, %v2793
      %v2795 = vpop.f32.mrb[0].mxu0
      %v2796 = vadd.f32 %v2603, %v2795
      %v2797 = vpop.f32.mrb[0].mxu0
      %v2798 = vadd.f32 %v2605, %v2797
      %2799 = vmatprep.mubr.bf16.mxu0 %v1328
      %2800 = vmatmul.mubr.bf16.gmra.mrb[0].mxu0 %v1327
      %v2801 = vpop.f32.mrb[0].mxu0
      %v2802 = vadd.f32 %v2609, %v2801
      %v2803 = vpop.f32.mrb[0].mxu0
      %v2804 = vadd.f32 %v2611, %v2803
      %v2805 = vpop.f32.mrb[0].mxu0
      %v2806 = vadd.f32 %v2613, %v2805
      %v2807 = vpop.f32.mrb[0].mxu0
      %v2808 = vadd.f32 %v2615, %v2807
      %2809 = vmatprep.mubr.bf16.mxu0 %v1335
      %2810 = vmatmul.mubr.bf16.gmra.mrb[0].mxu0 %v1334
      %v2811 = vpop.f32.mrb[0].mxu0
      %v2812 = vadd.f32 %v2619, %v2811
      %v2813 = vpop.f32.mrb[0].mxu0
      %v2814 = vadd.f32 %v2621, %v2813
      %v2815 = vpop.f32.mrb[0].mxu0
      %v2816 = vadd.f32 %v2623, %v2815
      %v2817 = vpop.f32.mrb[0].mxu0
      %v2818 = vadd.f32 %v2625, %v2817
      %2819 = vmatprep.mubr.bf16.mxu0 %v1342
      %2820 = vmatmul.mubr.bf16.gmra.mrb[0].mxu0 %v1341
      %v2821 = vpop.f32.mrb[0].mxu0
      %v2822 = vadd.f32 %v2629, %v2821
      %v2823 = vpop.f32.mrb[0].mxu0
      %v2824 = vadd.f32 %v2631, %v2823
      %v2825 = vpop.f32.mrb[0].mxu0
      %v2826 = vadd.f32 %v2633, %v2825
      %v2827 = vpop.f32.mrb[0].mxu0
      %v2828 = vadd.f32 %v2635, %v2827
      %2829 = vmatprep.mubr.bf16.mxu0 %v1349
      %2830 = vmatmul.mubr.bf16.gmra.mrb[0].mxu0 %v1348
      %v2831 = vpop.f32.mrb[0].mxu0
      %v2832 = vadd.f32 %v2639, %v2831
      %v2833 = vpop.f32.mrb[0].mxu0
      %v2834 = vadd.f32 %v2641, %v2833
      %v2835 = vpop.f32.mrb[0].mxu0
      %v2836 = vadd.f32 %v2643, %v2835
      %v2837 = vpop.f32.mrb[0].mxu0
      %v2838 = vadd.f32 %v2645, %v2837
      %2839 = vmatprep.mubr.bf16.mxu0 %v1356
      %2840 = vmatmul.mubr.bf16.gmra.mrb[0].mxu0 %v1355
      %v2841 = vpop.f32.mrb[0].mxu0
      %v2842 = vadd.f32 %v2649, %v2841
      %v2843 = vpop.f32.mrb[0].mxu0
      %v2844 = vadd.f32 %v2651, %v2843
      %v2845 = vpop.f32.mrb[0].mxu0
      %v2846 = vadd.f32 %v2653, %v2845
      %v2847 = vpop.f32.mrb[0].mxu0
      %v2848 = vadd.f32 %v2655, %v2847
      %2849 = vmatprep.mubr.bf16.mxu0 %v1363
      %2850 = vmatmul.mubr.bf16.gmra.mrb[0].mxu0 %v1362
      %v2851 = vpop.f32.mrb[0].mxu0
      %v2852 = vadd.f32 %v2659, %v2851
      %v2853 = vpop.f32.mrb[0].mxu0
      %v2854 = vadd.f32 %v2661, %v2853
      %v2855 = vpop.f32.mrb[0].mxu0
      %v2856 = vadd.f32 %v2663, %v2855
      %v2857 = vpop.f32.mrb[0].mxu0
      %v2858 = vadd.f32 %v2665, %v2857
      %2859 = vmatprep.mubr.bf16.mxu0 %v1370
      %2860 = vmatmul.mubr.bf16.gmra.mrb[0].mxu0 %v1369
      %v2861 = vpop.f32.mrb[0].mxu0
      %v2862 = vadd.f32 %v2669, %v2861
      %v2863 = vpop.f32.mrb[0].mxu0
      %v2864 = vadd.f32 %v2671, %v2863
      %v2865 = vpop.f32.mrb[0].mxu0
      %v2866 = vadd.f32 %v2673, %v2865
      %v2867 = vpop.f32.mrb[0].mxu0
      %v2868 = vadd.f32 %v2675, %v2867
      %2869 = vmatprep.mubr.bf16.mxu0 %v1377
      %2870 = vmatmul.mubr.bf16.gmra.mrb[0].mxu0 %v1376
      %v2871 = vpop.f32.mrb[0].mxu0
      %v2872 = vadd.f32 %v2679, %v2871
      %v2873 = vpop.f32.mrb[0].mxu0
      %v2874 = vadd.f32 %v2681, %v2873
      %v2875 = vpop.f32.mrb[0].mxu0
      %v2876 = vadd.f32 %v2683, %v2875
      %v2877 = vpop.f32.mrb[0].mxu0
      %v2878 = vadd.f32 %v2685, %v2877
      %2879 = vmatprep.mubr.bf16.mxu0 %v1384
      %2880 = vmatmul.mubr.bf16.gmra.mrb[0].mxu0 %v1383
      %v2881 = vpop.f32.mrb[0].mxu0
      %v2882 = vadd.f32 %v2689, %v2881
      %v2883 = vpop.f32.mrb[0].mxu0
      %v2884 = vadd.f32 %v2691, %v2883
      %v2885 = vpop.f32.mrb[0].mxu0
      %v2886 = vadd.f32 %v2693, %v2885
      %v2887 = vpop.f32.mrb[0].mxu0
      %v2888 = vadd.f32 %v2695, %v2887
      %2889 = vmatprep.mubr.bf16.mxu0 %v1391
      %2890 = vmatmul.mubr.bf16.gmra.mrb[0].mxu0 %v1390
      %v2891 = vpop.f32.mrb[0].mxu0
      %v2892 = vadd.f32 %v2699, %v2891
      %v2893 = vpop.f32.mrb[0].mxu0
      %v2894 = vadd.f32 %v2701, %v2893
      %v2895 = vpop.f32.mrb[0].mxu0
      %v2896 = vadd.f32 %v2703, %v2895
      %v2897 = vpop.f32.mrb[0].mxu0
      %v2898 = vadd.f32 %v2705, %v2897
      %2899 = vmatprep.mubr.bf16.mxu0 %v1398
      %2900 = vmatmul.mubr.bf16.gmra.mrb[0].mxu0 %v1397
      %v2901 = vpop.f32.mrb[0].mxu0
      %v2902 = vadd.f32 %v2709, %v2901
      %v2903 = vpop.f32.mrb[0].mxu0
      %v2904 = vadd.f32 %v2711, %v2903
      %v2905 = vpop.f32.mrb[0].mxu0
      %v2906 = vadd.f32 %v2713, %v2905
      %v2907 = vpop.f32.mrb[0].mxu0
      %v2908 = vadd.f32 %v2715, %v2907
      %2909 = vmatprep.mubr.bf16.mxu0 %v1405
      %2910 = vmatmul.mubr.bf16.gmra.mrb[0].mxu0 %v1404
      %v2911 = vpop.f32.mrb[0].mxu0
      %v2912 = vadd.f32 %v2719, %v2911
      %v2913 = vpop.f32.mrb[0].mxu0
      %v2914 = vadd.f32 %v2721, %v2913
      %v2915 = vpop.f32.mrb[0].mxu0
      %v2916 = vadd.f32 %v2723, %v2915
      %v2917 = vpop.f32.mrb[0].mxu0
      %v2918 = vadd.f32 %v2725, %v2917
      %2919 = vdwg.mxu0
      %2920 = vmatprep.subr.bf16.mxu0 %v2222
      %2921 = vmatpush1.bf16.msra.mxu0 %v2221
      %2922 = vmatprep.subr.bf16.mxu0 %v2226
      %2923 = vmatpush1.bf16.msra.mxu0 %v2225
      %2924 = vmatprep.subr.bf16.mxu0 %v2230
      %2925 = vmatpush1.bf16.msra.mxu0 %v2229
      %2926 = vmatprep.subr.bf16.mxu0 %v2234
      %2927 = vmatpush1.bf16.msra.mxu0 %v2233
      %2928 = vmatprep.subr.bf16.mxu0 %v2238
      %2929 = vmatpush1.bf16.msra.mxu0 %v2237
      %2930 = vmatprep.subr.bf16.mxu0 %v2242
      %2931 = vmatpush1.bf16.msra.mxu0 %v2241
      %2932 = vmatprep.subr.bf16.mxu0 %v2246
      %2933 = vmatpush1.bf16.msra.mxu0 %v2245
      %2934 = vmatprep.subr.bf16.mxu0 %v2250
      %2935 = vmatpush1.bf16.msra.mxu0 %v2249
      %2936 = vmatprep.subr.bf16.mxu0 %v2254
      %2937 = vmatpush1.bf16.msra.mxu0 %v2253
      %2938 = vmatprep.subr.bf16.mxu0 %v2258
      %2939 = vmatpush1.bf16.msra.mxu0 %v2257
      %2940 = vmatprep.subr.bf16.mxu0 %v2262
      %2941 = vmatpush1.bf16.msra.mxu0 %v2261
      %2942 = vmatprep.subr.bf16.mxu0 %v2266
      %2943 = vmatpush1.bf16.msra.mxu0 %v2265
      %2944 = vmatprep.subr.bf16.mxu0 %v2270
      %2945 = vmatpush1.bf16.msra.mxu0 %v2269
      %2946 = vmatprep.subr.bf16.mxu0 %v2274
      %2947 = vmatpush1.bf16.msra.mxu0 %v2273
      %2948 = vmatprep.subr.bf16.mxu0 %v2278
      %2949 = vmatpush1.bf16.msra.mxu0 %v2277
      %2950 = vmatprep.subr.bf16.mxu0 %v2282
      %2951 = vmatpush1.bf16.msra.mxu0 %v2281
      %2952 = vmatprep.mubr.bf16.mxu0 %v1302
      %2953 = vmatmul.mubr.bf16.gmra.mrb[0].mxu0 %v1301
      %v2954 = vpop.f32.mrb[0].mxu0
      %v2955 = vadd.f32 %v2762, %v2954
      %v2956 = vpop.f32.mrb[0].mxu0
      %v2957 = vadd.f32 %v2764, %v2956
      %v2958 = vpop.f32.mrb[0].mxu0
      %v2959 = vadd.f32 %v2766, %v2958
      %v2960 = vpop.f32.mrb[0].mxu0
      %v2961 = vadd.f32 %v2768, %v2960
      %2962 = vmatprep.mubr.bf16.mxu0 %v1309
      %2963 = vmatmul.mubr.bf16.gmra.mrb[0].mxu0 %v1308
      %v2964 = vpop.f32.mrb[0].mxu0
      %v2965 = vadd.f32 %v2772, %v2964
      %v2966 = vpop.f32.mrb[0].mxu0
      %v2967 = vadd.f32 %v2774, %v2966
      %v2968 = vpop.f32.mrb[0].mxu0
      %v2969 = vadd.f32 %v2776, %v2968
      %v2970 = vpop.f32.mrb[0].mxu0
      %v2971 = vadd.f32 %v2778, %v2970
      %2972 = vmatprep.mubr.bf16.mxu0 %v1316
      %2973 = vmatmul.mubr.bf16.gmra.mrb[0].mxu0 %v1315
      %v2974 = vpop.f32.mrb[0].mxu0
      %v2975 = vadd.f32 %v2782, %v2974
      %v2976 = vpop.f32.mrb[0].mxu0
      %v2977 = vadd.f32 %v2784, %v2976
      %v2978 = vpop.f32.mrb[0].mxu0
      %v2979 = vadd.f32 %v2786, %v2978
      %v2980 = vpop.f32.mrb[0].mxu0
      %v2981 = vadd.f32 %v2788, %v2980
      %2982 = vmatprep.mubr.bf16.mxu0 %v1323
      %2983 = vmatmul.mubr.bf16.gmra.mrb[0].mxu0 %v1322
      %v2984 = vpop.f32.mrb[0].mxu0
      %v2985 = vadd.f32 %v2792, %v2984
      %v2986 = vpop.f32.mrb[0].mxu0
      %v2987 = vadd.f32 %v2794, %v2986
      %v2988 = vpop.f32.mrb[0].mxu0
      %v2989 = vadd.f32 %v2796, %v2988
      %v2990 = vpop.f32.mrb[0].mxu0
      %v2991 = vadd.f32 %v2798, %v2990
      %2992 = vmatprep.mubr.bf16.mxu0 %v1330
      %2993 = vmatmul.mubr.bf16.gmra.mrb[0].mxu0 %v1329
      %v2994 = vpop.f32.mrb[0].mxu0
      %v2995 = vadd.f32 %v2802, %v2994
      %v2996 = vpop.f32.mrb[0].mxu0
      %v2997 = vadd.f32 %v2804, %v2996
      %v2998 = vpop.f32.mrb[0].mxu0
      %v2999 = vadd.f32 %v2806, %v2998
      %v3000 = vpop.f32.mrb[0].mxu0
      %v3001 = vadd.f32 %v2808, %v3000
      %3002 = vmatprep.mubr.bf16.mxu0 %v1337
      %3003 = vmatmul.mubr.bf16.gmra.mrb[0].mxu0 %v1336
      %v3004 = vpop.f32.mrb[0].mxu0
      %v3005 = vadd.f32 %v2812, %v3004
      %v3006 = vpop.f32.mrb[0].mxu0
      %v3007 = vadd.f32 %v2814, %v3006
      %v3008 = vpop.f32.mrb[0].mxu0
      %v3009 = vadd.f32 %v2816, %v3008
      %v3010 = vpop.f32.mrb[0].mxu0
      %v3011 = vadd.f32 %v2818, %v3010
      %3012 = vmatprep.mubr.bf16.mxu0 %v1344
      %3013 = vmatmul.mubr.bf16.gmra.mrb[0].mxu0 %v1343
      %v3014 = vpop.f32.mrb[0].mxu0
      %v3015 = vadd.f32 %v2822, %v3014
      %v3016 = vpop.f32.mrb[0].mxu0
      %v3017 = vadd.f32 %v2824, %v3016
      %v3018 = vpop.f32.mrb[0].mxu0
      %v3019 = vadd.f32 %v2826, %v3018
      %v3020 = vpop.f32.mrb[0].mxu0
      %v3021 = vadd.f32 %v2828, %v3020
      %3022 = vmatprep.mubr.bf16.mxu0 %v1351
      %3023 = vmatmul.mubr.bf16.gmra.mrb[0].mxu0 %v1350
      %v3024 = vpop.f32.mrb[0].mxu0
      %v3025 = vadd.f32 %v2832, %v3024
      %v3026 = vpop.f32.mrb[0].mxu0
      %v3027 = vadd.f32 %v2834, %v3026
      %v3028 = vpop.f32.mrb[0].mxu0
      %v3029 = vadd.f32 %v2836, %v3028
      %v3030 = vpop.f32.mrb[0].mxu0
      %v3031 = vadd.f32 %v2838, %v3030
      %3032 = vmatprep.mubr.bf16.mxu0 %v1358
      %3033 = vmatmul.mubr.bf16.gmra.mrb[0].mxu0 %v1357
      %v3034 = vpop.f32.mrb[0].mxu0
      %v3035 = vadd.f32 %v2842, %v3034
      %v3036 = vpop.f32.mrb[0].mxu0
      %v3037 = vadd.f32 %v2844, %v3036
      %v3038 = vpop.f32.mrb[0].mxu0
      %v3039 = vadd.f32 %v2846, %v3038
      %v3040 = vpop.f32.mrb[0].mxu0
      %v3041 = vadd.f32 %v2848, %v3040
      %3042 = vmatprep.mubr.bf16.mxu0 %v1365
      %3043 = vmatmul.mubr.bf16.gmra.mrb[0].mxu0 %v1364
      %v3044 = vpop.f32.mrb[0].mxu0
      %v3045 = vadd.f32 %v2852, %v3044
      %v3046 = vpop.f32.mrb[0].mxu0
      %v3047 = vadd.f32 %v2854, %v3046
      %v3048 = vpop.f32.mrb[0].mxu0
      %v3049 = vadd.f32 %v2856, %v3048
      %v3050 = vpop.f32.mrb[0].mxu0
      %v3051 = vadd.f32 %v2858, %v3050
      %3052 = vmatprep.mubr.bf16.mxu0 %v1372
      %3053 = vmatmul.mubr.bf16.gmra.mrb[0].mxu0 %v1371
      %v3054 = vpop.f32.mrb[0].mxu0
      %v3055 = vadd.f32 %v2862, %v3054
      %v3056 = vpop.f32.mrb[0].mxu0
      %v3057 = vadd.f32 %v2864, %v3056
      %v3058 = vpop.f32.mrb[0].mxu0
      %v3059 = vadd.f32 %v2866, %v3058
      %v3060 = vpop.f32.mrb[0].mxu0
      %v3061 = vadd.f32 %v2868, %v3060
      %3062 = vmatprep.mubr.bf16.mxu0 %v1379
      %3063 = vmatmul.mubr.bf16.gmra.mrb[0].mxu0 %v1378
      %v3064 = vpop.f32.mrb[0].mxu0
      %v3065 = vadd.f32 %v2872, %v3064
      %v3066 = vpop.f32.mrb[0].mxu0
      %v3067 = vadd.f32 %v2874, %v3066
      %v3068 = vpop.f32.mrb[0].mxu0
      %v3069 = vadd.f32 %v2876, %v3068
      %v3070 = vpop.f32.mrb[0].mxu0
      %v3071 = vadd.f32 %v2878, %v3070
      %3072 = vmatprep.mubr.bf16.mxu0 %v1386
      %3073 = vmatmul.mubr.bf16.gmra.mrb[0].mxu0 %v1385
      %v3074 = vpop.f32.mrb[0].mxu0
      %v3075 = vadd.f32 %v2882, %v3074
      %v3076 = vpop.f32.mrb[0].mxu0
      %v3077 = vadd.f32 %v2884, %v3076
      %v3078 = vpop.f32.mrb[0].mxu0
      %v3079 = vadd.f32 %v2886, %v3078
      %v3080 = vpop.f32.mrb[0].mxu0
      %v3081 = vadd.f32 %v2888, %v3080
      %3082 = vmatprep.mubr.bf16.mxu0 %v1393
      %3083 = vmatmul.mubr.bf16.gmra.mrb[0].mxu0 %v1392
      %v3084 = vpop.f32.mrb[0].mxu0
      %v3085 = vadd.f32 %v2892, %v3084
      %v3086 = vpop.f32.mrb[0].mxu0
      %v3087 = vadd.f32 %v2894, %v3086
      %v3088 = vpop.f32.mrb[0].mxu0
      %v3089 = vadd.f32 %v2896, %v3088
      %v3090 = vpop.f32.mrb[0].mxu0
      %v3091 = vadd.f32 %v2898, %v3090
      %3092 = vmatprep.mubr.bf16.mxu0 %v1400
      %3093 = vmatmul.mubr.bf16.gmra.mrb[0].mxu0 %v1399
      %v3094 = vpop.f32.mrb[0].mxu0
      %v3095 = vadd.f32 %v2902, %v3094
      %v3096 = vpop.f32.mrb[0].mxu0
      %v3097 = vadd.f32 %v2904, %v3096
      %v3098 = vpop.f32.mrb[0].mxu0
      %v3099 = vadd.f32 %v2906, %v3098
      %v3100 = vpop.f32.mrb[0].mxu0
      %v3101 = vadd.f32 %v2908, %v3100
      %3102 = vmatprep.mubr.bf16.mxu0 %v1407
      %3103 = vmatmul.mubr.bf16.gmra.mrb[0].mxu0 %v1406
      %v3104 = vpop.f32.mrb[0].mxu0
      %v3105 = vadd.f32 %v2912, %v3104
      %v3106 = vpop.f32.mrb[0].mxu0
      %v3107 = vadd.f32 %v2914, %v3106
      %v3108 = vpop.f32.mrb[0].mxu0
      %v3109 = vadd.f32 %v2916, %v3108
      %v3110 = vpop.f32.mrb[0].mxu0
      %v3111 = vadd.f32 %v2918, %v3110
      %3112 = vdwg.mxu0
      %3113 = vmatprep.subr.bf16.mxu0 %v2286
      %3114 = vmatpush1.bf16.msra.mxu0 %v2285
      %3115 = vmatprep.subr.bf16.mxu0 0
      %3116 = vmatpush1.bf16.msra.mxu0 0
      %3117 = vmatprep.subr.bf16.mxu0 0
      %3118 = vmatpush1.bf16.msra.mxu0 0
      %3119 = vmatprep.subr.bf16.mxu0 0
      %3120 = vmatpush1.bf16.msra.mxu0 0
      %3121 = vmatprep.subr.bf16.mxu0 0
      %3122 = vmatpush1.bf16.msra.mxu0 0
      %3123 = vmatprep.subr.bf16.mxu0 0
      %3124 = vmatpush1.bf16.msra.mxu0 0
      %3125 = vmatprep.subr.bf16.mxu0 0
      %3126 = vmatpush1.bf16.msra.mxu0 0
      %3127 = vmatprep.subr.bf16.mxu0 0
      %3128 = vmatpush1.bf16.msra.mxu0 0
      %3129 = vmatprep.subr.bf16.mxu0 0
      %3130 = vmatpush1.bf16.msra.mxu0 0
      %3131 = vmatprep.subr.bf16.mxu0 0
      %3132 = vmatpush1.bf16.msra.mxu0 0
      %3133 = vmatprep.subr.bf16.mxu0 0
      %3134 = vmatpush1.bf16.msra.mxu0 0
      %3135 = vmatprep.subr.bf16.mxu0 0
      %3136 = vmatpush1.bf16.msra.mxu0 0
      %3137 = vmatprep.subr.bf16.mxu0 0
      %3138 = vmatpush1.bf16.msra.mxu0 0
      %3139 = vmatprep.subr.bf16.mxu0 0
      %3140 = vmatpush1.bf16.msra.mxu0 0
      %3141 = vmatprep.subr.bf16.mxu0 0
      %3142 = vmatpush1.bf16.msra.mxu0 0
      %3143 = vmatprep.subr.bf16.mxu0 0
      %3144 = vmatpush1.bf16.msra.mxu0 0
      %3145 = vmatprep.mubr.bf16.mxu0 0
      %3146 = vmatmul.mubr.bf16.gmra.mrb[0].mxu0 %v2487
      %v3147 = vpop.f32.mrb[0].mxu0
      %v3148 = vadd.f32 %v2955, %v3147
      %v3149 = vpop.f32.mrb[0].mxu0
      %v3150 = vadd.f32 %v2957, %v3149
      %v3151 = vpop.f32.mrb[0].mxu0
      %v3152 = vadd.f32 %v2959, %v3151
      %v3153 = vpop.f32.mrb[0].mxu0
      %v3154 = vadd.f32 %v2961, %v3153
      %3155 = vmatprep.mubr.bf16.mxu0 0
      %3156 = vmatmul.mubr.bf16.gmra.mrb[0].mxu0 %v2490
      %v3157 = vpop.f32.mrb[0].mxu0
      %v3158 = vadd.f32 %v2965, %v3157
      %v3159 = vpop.f32.mrb[0].mxu0
      %v3160 = vadd.f32 %v2967, %v3159
      %v3161 = vpop.f32.mrb[0].mxu0
      %v3162 = vadd.f32 %v2969, %v3161
      %v3163 = vpop.f32.mrb[0].mxu0
      %v3164 = vadd.f32 %v2971, %v3163
      %3165 = vmatprep.mubr.bf16.mxu0 0
      %3166 = vmatmul.mubr.bf16.gmra.mrb[0].mxu0 %v2493
      %v3167 = vpop.f32.mrb[0].mxu0
      %v3168 = vadd.f32 %v2975, %v3167
      %v3169 = vpop.f32.mrb[0].mxu0
      %v3170 = vadd.f32 %v2977, %v3169
      %v3171 = vpop.f32.mrb[0].mxu0
      %v3172 = vadd.f32 %v2979, %v3171
      %v3173 = vpop.f32.mrb[0].mxu0
      %v3174 = vadd.f32 %v2981, %v3173
      %3175 = vmatprep.mubr.bf16.mxu0 0
      %3176 = vmatmul.mubr.bf16.gmra.mrb[0].mxu0 %v2496
      %v3177 = vpop.f32.mrb[0].mxu0
      %v3178 = vadd.f32 %v2985, %v3177
      %v3179 = vpop.f32.mrb[0].mxu0
      %v3180 = vadd.f32 %v2987, %v3179
      %v3181 = vpop.f32.mrb[0].mxu0
      %v3182 = vadd.f32 %v2989, %v3181
      %v3183 = vpop.f32.mrb[0].mxu0
      %v3184 = vadd.f32 %v2991, %v3183
      %3185 = vmatprep.mubr.bf16.mxu0 0
      %3186 = vmatmul.mubr.bf16.gmra.mrb[0].mxu0 %v2499
      %v3187 = vpop.f32.mrb[0].mxu0
      %v3188 = vadd.f32 %v2995, %v3187
      %v3189 = vpop.f32.mrb[0].mxu0
      %v3190 = vadd.f32 %v2997, %v3189
      %v3191 = vpop.f32.mrb[0].mxu0
      %v3192 = vadd.f32 %v2999, %v3191
      %v3193 = vpop.f32.mrb[0].mxu0
      %v3194 = vadd.f32 %v3001, %v3193
      %3195 = vmatprep.mubr.bf16.mxu0 0
      %3196 = vmatmul.mubr.bf16.gmra.mrb[0].mxu0 %v2502
      %v3197 = vpop.f32.mrb[0].mxu0
      %v3198 = vadd.f32 %v3005, %v3197
      %v3199 = vpop.f32.mrb[0].mxu0
      %v3200 = vadd.f32 %v3007, %v3199
      %v3201 = vpop.f32.mrb[0].mxu0
      %v3202 = vadd.f32 %v3009, %v3201
      %v3203 = vpop.f32.mrb[0].mxu0
      %v3204 = vadd.f32 %v3011, %v3203
      %3205 = vmatprep.mubr.bf16.mxu0 0
      %3206 = vmatmul.mubr.bf16.gmra.mrb[0].mxu0 %v2505
      %v3207 = vpop.f32.mrb[0].mxu0
      %v3208 = vadd.f32 %v3015, %v3207
      %v3209 = vpop.f32.mrb[0].mxu0
      %v3210 = vadd.f32 %v3017, %v3209
      %v3211 = vpop.f32.mrb[0].mxu0
      %v3212 = vadd.f32 %v3019, %v3211
      %v3213 = vpop.f32.mrb[0].mxu0
      %v3214 = vadd.f32 %v3021, %v3213
      %3215 = vmatprep.mubr.bf16.mxu0 0
      %3216 = vmatmul.mubr.bf16.gmra.mrb[0].mxu0 %v2508
      %v3217 = vpop.f32.mrb[0].mxu0
      %v3218 = vadd.f32 %v3025, %v3217
      %v3219 = vpop.f32.mrb[0].mxu0
      %v3220 = vadd.f32 %v3027, %v3219
      %v3221 = vpop.f32.mrb[0].mxu0
      %v3222 = vadd.f32 %v3029, %v3221
      %v3223 = vpop.f32.mrb[0].mxu0
      %v3224 = vadd.f32 %v3031, %v3223
      %3225 = vmatprep.mubr.bf16.mxu0 0
      %3226 = vmatmul.mubr.bf16.gmra.mrb[0].mxu0 %v2511
      %v3227 = vpop.f32.mrb[0].mxu0
      %v3228 = vadd.f32 %v3035, %v3227
      %v3229 = vpop.f32.mrb[0].mxu0
      %v3230 = vadd.f32 %v3037, %v3229
      %v3231 = vpop.f32.mrb[0].mxu0
      %v3232 = vadd.f32 %v3039, %v3231
      %v3233 = vpop.f32.mrb[0].mxu0
      %v3234 = vadd.f32 %v3041, %v3233
      %3235 = vmatprep.mubr.bf16.mxu0 0
      %3236 = vmatmul.mubr.bf16.gmra.mrb[0].mxu0 %v2514
      %v3237 = vpop.f32.mrb[0].mxu0
      %v3238 = vadd.f32 %v3045, %v3237
      %v3239 = vpop.f32.mrb[0].mxu0
      %v3240 = vadd.f32 %v3047, %v3239
      %v3241 = vpop.f32.mrb[0].mxu0
      %v3242 = vadd.f32 %v3049, %v3241
      %v3243 = vpop.f32.mrb[0].mxu0
      %v3244 = vadd.f32 %v3051, %v3243
      %3245 = vmatprep.mubr.bf16.mxu0 0
      %3246 = vmatmul.mubr.bf16.gmra.mrb[0].mxu0 %v2517
      %v3247 = vpop.f32.mrb[0].mxu0
      %v3248 = vadd.f32 %v3055, %v3247
      %v3249 = vpop.f32.mrb[0].mxu0
      %v3250 = vadd.f32 %v3057, %v3249
      %v3251 = vpop.f32.mrb[0].mxu0
      %v3252 = vadd.f32 %v3059, %v3251
      %v3253 = vpop.f32.mrb[0].mxu0
      %v3254 = vadd.f32 %v3061, %v3253
      %3255 = vmatprep.mubr.bf16.mxu0 0
      %3256 = vmatmul.mubr.bf16.gmra.mrb[0].mxu0 %v2520
      %v3257 = vpop.f32.mrb[0].mxu0
      %v3258 = vadd.f32 %v3065, %v3257
      %v3259 = vpop.f32.mrb[0].mxu0
      %v3260 = vadd.f32 %v3067, %v3259
      %v3261 = vpop.f32.mrb[0].mxu0
      %v3262 = vadd.f32 %v3069, %v3261
      %v3263 = vpop.f32.mrb[0].mxu0
      %v3264 = vadd.f32 %v3071, %v3263
      %3265 = vmatprep.mubr.bf16.mxu0 0
      %3266 = vmatmul.mubr.bf16.gmra.mrb[0].mxu0 %v2523
      %v3267 = vpop.f32.mrb[0].mxu0
      %v3268 = vadd.f32 %v3075, %v3267
      %v3269 = vpop.f32.mrb[0].mxu0
      %v3270 = vadd.f32 %v3077, %v3269
      %v3271 = vpop.f32.mrb[0].mxu0
      %v3272 = vadd.f32 %v3079, %v3271
      %v3273 = vpop.f32.mrb[0].mxu0
      %v3274 = vadd.f32 %v3081, %v3273
      %3275 = vmatprep.mubr.bf16.mxu0 0
      %3276 = vmatmul.mubr.bf16.gmra.mrb[0].mxu0 %v2526
      %v3277 = vpop.f32.mrb[0].mxu0
      %v3278 = vadd.f32 %v3085, %v3277
      %v3279 = vpop.f32.mrb[0].mxu0
      %v3280 = vadd.f32 %v3087, %v3279
      %v3281 = vpop.f32.mrb[0].mxu0
      %v3282 = vadd.f32 %v3089, %v3281
      %v3283 = vpop.f32.mrb[0].mxu0
      %v3284 = vadd.f32 %v3091, %v3283
      %3285 = vmatprep.mubr.bf16.mxu0 0
      %3286 = vmatmul.mubr.bf16.gmra.mrb[0].mxu0 %v2529
      %v3287 = vpop.f32.mrb[0].mxu0
      %v3288 = vadd.f32 %v3095, %v3287
      %v3289 = vpop.f32.mrb[0].mxu0
      %v3290 = vadd.f32 %v3097, %v3289
      %v3291 = vpop.f32.mrb[0].mxu0
      %v3292 = vadd.f32 %v3099, %v3291
      %v3293 = vpop.f32.mrb[0].mxu0
      %v3294 = vadd.f32 %v3101, %v3293
      %3295 = vmatprep.mubr.bf16.mxu0 0
      %3296 = vmatmul.mubr.bf16.gmra.mrb[0].mxu0 %v2532
      %v3297 = vpop.f32.mrb[0].mxu0
      %v3298 = vadd.f32 %v3105, %v3297
      %v3299 = vpop.f32.mrb[0].mxu0
      %v3300 = vadd.f32 %v3107, %v3299
      %v3301 = vpop.f32.mrb[0].mxu0
      %v3302 = vadd.f32 %v3109, %v3301
      %v3303 = vpop.f32.mrb[0].mxu0
      %v3304 = vadd.f32 %v3111, %v3303
      %3305 = vdwg.mxu0
      %3306 = vmatprep.subr.bf16.mxu0 %v2096
      %3307 = vmatpush1.bf16.msra.mxu0 %v2095
      %3308 = vmatprep.subr.bf16.mxu0 %v2100
      %3309 = vmatpush1.bf16.msra.mxu0 %v2099
      %3310 = vmatprep.subr.bf16.mxu0 %v2104
      %3311 = vmatpush1.bf16.msra.mxu0 %v2103
      %3312 = vmatprep.subr.bf16.mxu0 %v2108
      %3313 = vmatpush1.bf16.msra.mxu0 %v2107
      %3314 = vmatprep.subr.bf16.mxu0 %v2112
      %3315 = vmatpush1.bf16.msra.mxu0 %v2111
      %3316 = vmatprep.subr.bf16.mxu0 %v2116
      %3317 = vmatpush1.bf16.msra.mxu0 %v2115
      %3318 = vmatprep.subr.bf16.mxu0 %v2120
      %3319 = vmatpush1.bf16.msra.mxu0 %v2119
      %3320 = vmatprep.subr.bf16.mxu0 %v2124
      %3321 = vmatpush1.bf16.msra.mxu0 %v2123
      %3322 = vmatprep.subr.bf16.mxu0 %v2128
      %3323 = vmatpush1.bf16.msra.mxu0 %v2127
      %3324 = vmatprep.subr.bf16.mxu0 %v2132
      %3325 = vmatpush1.bf16.msra.mxu0 %v2131
      %3326 = vmatprep.subr.bf16.mxu0 %v2136
      %3327 = vmatpush1.bf16.msra.mxu0 %v2135
      %3328 = vmatprep.subr.bf16.mxu0 %v2140
      %3329 = vmatpush1.bf16.msra.mxu0 %v2139
      %3330 = vmatprep.subr.bf16.mxu0 %v2144
      %3331 = vmatpush1.bf16.msra.mxu0 %v2143
      %3332 = vmatprep.subr.bf16.mxu0 %v2148
      %3333 = vmatpush1.bf16.msra.mxu0 %v2147
      %3334 = vmatprep.subr.bf16.mxu0 %v2152
      %3335 = vmatpush1.bf16.msra.mxu0 %v2151
      %3336 = vmatprep.subr.bf16.mxu0 %v2156
      %3337 = vmatpush1.bf16.msra.mxu0 %v2155
      %3338 = vmatprep.mubr.bf16.mxu0 %v1298
      %3339 = vmatmul.mubr.bf16.gmra.mrb[0].mxu0 %v1297
      %v3340 = vpop.f32.mrb[0].mxu0
      %v3341 = vadd.f32 %v936, %v3340
      %v3342 = vpop.f32.mrb[0].mxu0
      %v3343 = vadd.f32 %v940, %v3342
      %v3344 = vpop.f32.mrb[0].mxu0
      %v3345 = vadd.f32 %v936, %v3344
      %v3346 = vpop.f32.mrb[0].mxu0
      %v3347 = vadd.f32 %v940, %v3346
      %3348 = vmatprep.mubr.bf16.mxu0 %v1305
      %3349 = vmatmul.mubr.bf16.gmra.mrb[0].mxu0 %v1304
      %v3350 = vpop.f32.mrb[0].mxu0
      %v3351 = vadd.f32 %v936, %v3350
      %v3352 = vpop.f32.mrb[0].mxu0
      %v3353 = vadd.f32 %v940, %v3352
      %v3354 = vpop.f32.mrb[0].mxu0
      %v3355 = vadd.f32 %v936, %v3354
      %v3356 = vpop.f32.mrb[0].mxu0
      %v3357 = vadd.f32 %v940, %v3356
      %3358 = vmatprep.mubr.bf16.mxu0 %v1312
      %3359 = vmatmul.mubr.bf16.gmra.mrb[0].mxu0 %v1311
      %v3360 = vpop.f32.mrb[0].mxu0
      %v3361 = vadd.f32 %v936, %v3360
      %v3362 = vpop.f32.mrb[0].mxu0
      %v3363 = vadd.f32 %v940, %v3362
      %v3364 = vpop.f32.mrb[0].mxu0
      %v3365 = vadd.f32 %v936, %v3364
      %v3366 = vpop.f32.mrb[0].mxu0
      %v3367 = vadd.f32 %v940, %v3366
      %3368 = vmatprep.mubr.bf16.mxu0 %v1319
      %3369 = vmatmul.mubr.bf16.gmra.mrb[0].mxu0 %v1318
      %v3370 = vpop.f32.mrb[0].mxu0
      %v3371 = vadd.f32 %v936, %v3370
      %v3372 = vpop.f32.mrb[0].mxu0
      %v3373 = vadd.f32 %v940, %v3372
      %v3374 = vpop.f32.mrb[0].mxu0
      %v3375 = vadd.f32 %v936, %v3374
      %v3376 = vpop.f32.mrb[0].mxu0
      %v3377 = vadd.f32 %v940, %v3376
      %3378 = vmatprep.mubr.bf16.mxu0 %v1326
      %3379 = vmatmul.mubr.bf16.gmra.mrb[0].mxu0 %v1325
      %v3380 = vpop.f32.mrb[0].mxu0
      %v3381 = vadd.f32 %v936, %v3380
      %v3382 = vpop.f32.mrb[0].mxu0
      %v3383 = vadd.f32 %v940, %v3382
      %v3384 = vpop.f32.mrb[0].mxu0
      %v3385 = vadd.f32 %v936, %v3384
      %v3386 = vpop.f32.mrb[0].mxu0
      %v3387 = vadd.f32 %v940, %v3386
      %3388 = vmatprep.mubr.bf16.mxu0 %v1333
      %3389 = vmatmul.mubr.bf16.gmra.mrb[0].mxu0 %v1332
      %v3390 = vpop.f32.mrb[0].mxu0
      %v3391 = vadd.f32 %v936, %v3390
      %v3392 = vpop.f32.mrb[0].mxu0
      %v3393 = vadd.f32 %v940, %v3392
      %v3394 = vpop.f32.mrb[0].mxu0
      %v3395 = vadd.f32 %v936, %v3394
      %v3396 = vpop.f32.mrb[0].mxu0
      %v3397 = vadd.f32 %v940, %v3396
      %3398 = vmatprep.mubr.bf16.mxu0 %v1340
      %3399 = vmatmul.mubr.bf16.gmra.mrb[0].mxu0 %v1339
      %v3400 = vpop.f32.mrb[0].mxu0
      %v3401 = vadd.f32 %v936, %v3400
      %v3402 = vpop.f32.mrb[0].mxu0
      %v3403 = vadd.f32 %v940, %v3402
      %v3404 = vpop.f32.mrb[0].mxu0
      %v3405 = vadd.f32 %v936, %v3404
      %v3406 = vpop.f32.mrb[0].mxu0
      %v3407 = vadd.f32 %v940, %v3406
      %3408 = vmatprep.mubr.bf16.mxu0 %v1347
      %3409 = vmatmul.mubr.bf16.gmra.mrb[0].mxu0 %v1346
      %v3410 = vpop.f32.mrb[0].mxu0
      %v3411 = vadd.f32 %v936, %v3410
      %v3412 = vpop.f32.mrb[0].mxu0
      %v3413 = vadd.f32 %v940, %v3412
      %v3414 = vpop.f32.mrb[0].mxu0
      %v3415 = vadd.f32 %v936, %v3414
      %v3416 = vpop.f32.mrb[0].mxu0
      %v3417 = vadd.f32 %v940, %v3416
      %3418 = vmatprep.mubr.bf16.mxu0 %v1354
      %3419 = vmatmul.mubr.bf16.gmra.mrb[0].mxu0 %v1353
      %v3420 = vpop.f32.mrb[0].mxu0
      %v3421 = vadd.f32 %v936, %v3420
      %v3422 = vpop.f32.mrb[0].mxu0
      %v3423 = vadd.f32 %v940, %v3422
      %v3424 = vpop.f32.mrb[0].mxu0
      %v3425 = vadd.f32 %v936, %v3424
      %v3426 = vpop.f32.mrb[0].mxu0
      %v3427 = vadd.f32 %v940, %v3426
      %3428 = vmatprep.mubr.bf16.mxu0 %v1361
      %3429 = vmatmul.mubr.bf16.gmra.mrb[0].mxu0 %v1360
      %v3430 = vpop.f32.mrb[0].mxu0
      %v3431 = vadd.f32 %v936, %v3430
      %v3432 = vpop.f32.mrb[0].mxu0
      %v3433 = vadd.f32 %v940, %v3432
      %v3434 = vpop.f32.mrb[0].mxu0
      %v3435 = vadd.f32 %v936, %v3434
      %v3436 = vpop.f32.mrb[0].mxu0
      %v3437 = vadd.f32 %v940, %v3436
      %3438 = vmatprep.mubr.bf16.mxu0 %v1368
      %3439 = vmatmul.mubr.bf16.gmra.mrb[0].mxu0 %v1367
      %v3440 = vpop.f32.mrb[0].mxu0
      %v3441 = vadd.f32 %v936, %v3440
      %v3442 = vpop.f32.mrb[0].mxu0
      %v3443 = vadd.f32 %v940, %v3442
      %v3444 = vpop.f32.mrb[0].mxu0
      %v3445 = vadd.f32 %v936, %v3444
      %v3446 = vpop.f32.mrb[0].mxu0
      %v3447 = vadd.f32 %v940, %v3446
      %3448 = vmatprep.mubr.bf16.mxu0 %v1375
      %3449 = vmatmul.mubr.bf16.gmra.mrb[0].mxu0 %v1374
      %v3450 = vpop.f32.mrb[0].mxu0
      %v3451 = vadd.f32 %v936, %v3450
      %v3452 = vpop.f32.mrb[0].mxu0
      %v3453 = vadd.f32 %v940, %v3452
      %v3454 = vpop.f32.mrb[0].mxu0
      %v3455 = vadd.f32 %v936, %v3454
      %v3456 = vpop.f32.mrb[0].mxu0
      %v3457 = vadd.f32 %v940, %v3456
      %3458 = vmatprep.mubr.bf16.mxu0 %v1382
      %3459 = vmatmul.mubr.bf16.gmra.mrb[0].mxu0 %v1381
      %v3460 = vpop.f32.mrb[0].mxu0
      %v3461 = vadd.f32 %v936, %v3460
      %v3462 = vpop.f32.mrb[0].mxu0
      %v3463 = vadd.f32 %v940, %v3462
      %v3464 = vpop.f32.mrb[0].mxu0
      %v3465 = vadd.f32 %v936, %v3464
      %v3466 = vpop.f32.mrb[0].mxu0
      %v3467 = vadd.f32 %v940, %v3466
      %3468 = vmatprep.mubr.bf16.mxu0 %v1389
      %3469 = vmatmul.mubr.bf16.gmra.mrb[0].mxu0 %v1388
      %v3470 = vpop.f32.mrb[0].mxu0
      %v3471 = vadd.f32 %v936, %v3470
      %v3472 = vpop.f32.mrb[0].mxu0
      %v3473 = vadd.f32 %v940, %v3472
      %v3474 = vpop.f32.mrb[0].mxu0
      %v3475 = vadd.f32 %v936, %v3474
      %v3476 = vpop.f32.mrb[0].mxu0
      %v3477 = vadd.f32 %v940, %v3476
      %3478 = vmatprep.mubr.bf16.mxu0 %v1396
      %3479 = vmatmul.mubr.bf16.gmra.mrb[0].mxu0 %v1395
      %v3480 = vpop.f32.mrb[0].mxu0
      %v3481 = vadd.f32 %v936, %v3480
      %v3482 = vpop.f32.mrb[0].mxu0
      %v3483 = vadd.f32 %v940, %v3482
      %v3484 = vpop.f32.mrb[0].mxu0
      %v3485 = vadd.f32 %v936, %v3484
      %v3486 = vpop.f32.mrb[0].mxu0
      %v3487 = vadd.f32 %v940, %v3486
      %3488 = vmatprep.mubr.bf16.mxu0 %v1403
      %3489 = vmatmul.mubr.bf16.gmra.mrb[0].mxu0 %v1402
      %v3490 = vpop.f32.mrb[0].mxu0
      %v3491 = vadd.f32 %v936, %v3490
      %v3492 = vpop.f32.mrb[0].mxu0
      %v3493 = vadd.f32 %v940, %v3492
      %v3494 = vpop.f32.mrb[0].mxu0
      %v3495 = vadd.f32 %v936, %v3494
      %v3496 = vpop.f32.mrb[0].mxu0
      %v3497 = vadd.f32 %v940, %v3496
      %3498 = vdwg.mxu0
      %3499 = vmatprep.subr.bf16.mxu0 %v2160
      %3500 = vmatpush1.bf16.msra.mxu0 %v2159
      %3501 = vmatprep.subr.bf16.mxu0 %v2164
      %3502 = vmatpush1.bf16.msra.mxu0 %v2163
      %3503 = vmatprep.subr.bf16.mxu0 %v2168
      %3504 = vmatpush1.bf16.msra.mxu0 %v2167
      %3505 = vmatprep.subr.bf16.mxu0 %v2172
      %3506 = vmatpush1.bf16.msra.mxu0 %v2171
      %3507 = vmatprep.subr.bf16.mxu0 %v2176
      %3508 = vmatpush1.bf16.msra.mxu0 %v2175
      %3509 = vmatprep.subr.bf16.mxu0 %v2180
      %3510 = vmatpush1.bf16.msra.mxu0 %v2179
      %3511 = vmatprep.subr.bf16.mxu0 %v2184
      %3512 = vmatpush1.bf16.msra.mxu0 %v2183
      %3513 = vmatprep.subr.bf16.mxu0 %v2188
      %3514 = vmatpush1.bf16.msra.mxu0 %v2187
      %3515 = vmatprep.subr.bf16.mxu0 %v2192
      %3516 = vmatpush1.bf16.msra.mxu0 %v2191
      %3517 = vmatprep.subr.bf16.mxu0 %v2196
      %3518 = vmatpush1.bf16.msra.mxu0 %v2195
      %3519 = vmatprep.subr.bf16.mxu0 %v2200
      %3520 = vmatpush1.bf16.msra.mxu0 %v2199
      %3521 = vmatprep.subr.bf16.mxu0 %v2204
      %3522 = vmatpush1.bf16.msra.mxu0 %v2203
      %3523 = vmatprep.subr.bf16.mxu0 %v2208
      %3524 = vmatpush1.bf16.msra.mxu0 %v2207
      %3525 = vmatprep.subr.bf16.mxu0 %v2212
      %3526 = vmatpush1.bf16.msra.mxu0 %v2211
      %3527 = vmatprep.subr.bf16.mxu0 %v2216
      %3528 = vmatpush1.bf16.msra.mxu0 %v2215
      %3529 = vmatprep.subr.bf16.mxu0 %v2220
      %3530 = vmatpush1.bf16.msra.mxu0 %v2219
      %3531 = vmatprep.mubr.bf16.mxu0 %v1300
      %3532 = vmatmul.mubr.bf16.gmra.mrb[0].mxu0 %v1299
      %v3533 = vpop.f32.mrb[0].mxu0
      %v3534 = vadd.f32 %v3341, %v3533
      %v3535 = vpop.f32.mrb[0].mxu0
      %v3536 = vadd.f32 %v3343, %v3535
      %v3537 = vpop.f32.mrb[0].mxu0
      %v3538 = vadd.f32 %v3345, %v3537
      %v3539 = vpop.f32.mrb[0].mxu0
      %v3540 = vadd.f32 %v3347, %v3539
      %3541 = vmatprep.mubr.bf16.mxu0 %v1307
      %3542 = vmatmul.mubr.bf16.gmra.mrb[0].mxu0 %v1306
      %v3543 = vpop.f32.mrb[0].mxu0
      %v3544 = vadd.f32 %v3351, %v3543
      %v3545 = vpop.f32.mrb[0].mxu0
      %v3546 = vadd.f32 %v3353, %v3545
      %v3547 = vpop.f32.mrb[0].mxu0
      %v3548 = vadd.f32 %v3355, %v3547
      %v3549 = vpop.f32.mrb[0].mxu0
      %v3550 = vadd.f32 %v3357, %v3549
      %3551 = vmatprep.mubr.bf16.mxu0 %v1314
      %3552 = vmatmul.mubr.bf16.gmra.mrb[0].mxu0 %v1313
      %v3553 = vpop.f32.mrb[0].mxu0
      %v3554 = vadd.f32 %v3361, %v3553
      %v3555 = vpop.f32.mrb[0].mxu0
      %v3556 = vadd.f32 %v3363, %v3555
      %v3557 = vpop.f32.mrb[0].mxu0
      %v3558 = vadd.f32 %v3365, %v3557
      %v3559 = vpop.f32.mrb[0].mxu0
      %v3560 = vadd.f32 %v3367, %v3559
      %3561 = vmatprep.mubr.bf16.mxu0 %v1321
      %3562 = vmatmul.mubr.bf16.gmra.mrb[0].mxu0 %v1320
      %v3563 = vpop.f32.mrb[0].mxu0
      %v3564 = vadd.f32 %v3371, %v3563
      %v3565 = vpop.f32.mrb[0].mxu0
      %v3566 = vadd.f32 %v3373, %v3565
      %v3567 = vpop.f32.mrb[0].mxu0
      %v3568 = vadd.f32 %v3375, %v3567
      %v3569 = vpop.f32.mrb[0].mxu0
      %v3570 = vadd.f32 %v3377, %v3569
      %3571 = vmatprep.mubr.bf16.mxu0 %v1328
      %3572 = vmatmul.mubr.bf16.gmra.mrb[0].mxu0 %v1327
      %v3573 = vpop.f32.mrb[0].mxu0
      %v3574 = vadd.f32 %v3381, %v3573
      %v3575 = vpop.f32.mrb[0].mxu0
      %v3576 = vadd.f32 %v3383, %v3575
      %v3577 = vpop.f32.mrb[0].mxu0
      %v3578 = vadd.f32 %v3385, %v3577
      %v3579 = vpop.f32.mrb[0].mxu0
      %v3580 = vadd.f32 %v3387, %v3579
      %3581 = vmatprep.mubr.bf16.mxu0 %v1335
      %3582 = vmatmul.mubr.bf16.gmra.mrb[0].mxu0 %v1334
      %v3583 = vpop.f32.mrb[0].mxu0
      %v3584 = vadd.f32 %v3391, %v3583
      %v3585 = vpop.f32.mrb[0].mxu0
      %v3586 = vadd.f32 %v3393, %v3585
      %v3587 = vpop.f32.mrb[0].mxu0
      %v3588 = vadd.f32 %v3395, %v3587
      %v3589 = vpop.f32.mrb[0].mxu0
      %v3590 = vadd.f32 %v3397, %v3589
      %3591 = vmatprep.mubr.bf16.mxu0 %v1342
      %3592 = vmatmul.mubr.bf16.gmra.mrb[0].mxu0 %v1341
      %v3593 = vpop.f32.mrb[0].mxu0
      %v3594 = vadd.f32 %v3401, %v3593
      %v3595 = vpop.f32.mrb[0].mxu0
      %v3596 = vadd.f32 %v3403, %v3595
      %v3597 = vpop.f32.mrb[0].mxu0
      %v3598 = vadd.f32 %v3405, %v3597
      %v3599 = vpop.f32.mrb[0].mxu0
      %v3600 = vadd.f32 %v3407, %v3599
      %3601 = vmatprep.mubr.bf16.mxu0 %v1349
      %3602 = vmatmul.mubr.bf16.gmra.mrb[0].mxu0 %v1348
      %v3603 = vpop.f32.mrb[0].mxu0
      %v3604 = vadd.f32 %v3411, %v3603
      %v3605 = vpop.f32.mrb[0].mxu0
      %v3606 = vadd.f32 %v3413, %v3605
      %v3607 = vpop.f32.mrb[0].mxu0
      %v3608 = vadd.f32 %v3415, %v3607
      %v3609 = vpop.f32.mrb[0].mxu0
      %v3610 = vadd.f32 %v3417, %v3609
      %3611 = vmatprep.mubr.bf16.mxu0 %v1356
      %3612 = vmatmul.mubr.bf16.gmra.mrb[0].mxu0 %v1355
      %v3613 = vpop.f32.mrb[0].mxu0
      %v3614 = vadd.f32 %v3421, %v3613
      %v3615 = vpop.f32.mrb[0].mxu0
      %v3616 = vadd.f32 %v3423, %v3615
      %v3617 = vpop.f32.mrb[0].mxu0
      %v3618 = vadd.f32 %v3425, %v3617
      %v3619 = vpop.f32.mrb[0].mxu0
      %v3620 = vadd.f32 %v3427, %v3619
      %3621 = vmatprep.mubr.bf16.mxu0 %v1363
      %3622 = vmatmul.mubr.bf16.gmra.mrb[0].mxu0 %v1362
      %v3623 = vpop.f32.mrb[0].mxu0
      %v3624 = vadd.f32 %v3431, %v3623
      %v3625 = vpop.f32.mrb[0].mxu0
      %v3626 = vadd.f32 %v3433, %v3625
      %v3627 = vpop.f32.mrb[0].mxu0
      %v3628 = vadd.f32 %v3435, %v3627
      %v3629 = vpop.f32.mrb[0].mxu0
      %v3630 = vadd.f32 %v3437, %v3629
      %3631 = vmatprep.mubr.bf16.mxu0 %v1370
      %3632 = vmatmul.mubr.bf16.gmra.mrb[0].mxu0 %v1369
      %v3633 = vpop.f32.mrb[0].mxu0
      %v3634 = vadd.f32 %v3441, %v3633
      %v3635 = vpop.f32.mrb[0].mxu0
      %v3636 = vadd.f32 %v3443, %v3635
      %v3637 = vpop.f32.mrb[0].mxu0
      %v3638 = vadd.f32 %v3445, %v3637
      %v3639 = vpop.f32.mrb[0].mxu0
      %v3640 = vadd.f32 %v3447, %v3639
      %3641 = vmatprep.mubr.bf16.mxu0 %v1377
      %3642 = vmatmul.mubr.bf16.gmra.mrb[0].mxu0 %v1376
      %v3643 = vpop.f32.mrb[0].mxu0
      %v3644 = vadd.f32 %v3451, %v3643
      %v3645 = vpop.f32.mrb[0].mxu0
      %v3646 = vadd.f32 %v3453, %v3645
      %v3647 = vpop.f32.mrb[0].mxu0
      %v3648 = vadd.f32 %v3455, %v3647
      %v3649 = vpop.f32.mrb[0].mxu0
      %v3650 = vadd.f32 %v3457, %v3649
      %3651 = vmatprep.mubr.bf16.mxu0 %v1384
      %3652 = vmatmul.mubr.bf16.gmra.mrb[0].mxu0 %v1383
      %v3653 = vpop.f32.mrb[0].mxu0
      %v3654 = vadd.f32 %v3461, %v3653
      %v3655 = vpop.f32.mrb[0].mxu0
      %v3656 = vadd.f32 %v3463, %v3655
      %v3657 = vpop.f32.mrb[0].mxu0
      %v3658 = vadd.f32 %v3465, %v3657
      %v3659 = vpop.f32.mrb[0].mxu0
      %v3660 = vadd.f32 %v3467, %v3659
      %3661 = vmatprep.mubr.bf16.mxu0 %v1391
      %3662 = vmatmul.mubr.bf16.gmra.mrb[0].mxu0 %v1390
      %v3663 = vpop.f32.mrb[0].mxu0
      %v3664 = vadd.f32 %v3471, %v3663
      %v3665 = vpop.f32.mrb[0].mxu0
      %v3666 = vadd.f32 %v3473, %v3665
      %v3667 = vpop.f32.mrb[0].mxu0
      %v3668 = vadd.f32 %v3475, %v3667
      %v3669 = vpop.f32.mrb[0].mxu0
      %v3670 = vadd.f32 %v3477, %v3669
      %3671 = vmatprep.mubr.bf16.mxu0 %v1398
      %3672 = vmatmul.mubr.bf16.gmra.mrb[0].mxu0 %v1397
      %v3673 = vpop.f32.mrb[0].mxu0
      %v3674 = vadd.f32 %v3481, %v3673
      %v3675 = vpop.f32.mrb[0].mxu0
      %v3676 = vadd.f32 %v3483, %v3675
      %v3677 = vpop.f32.mrb[0].mxu0
      %v3678 = vadd.f32 %v3485, %v3677
      %v3679 = vpop.f32.mrb[0].mxu0
      %v3680 = vadd.f32 %v3487, %v3679
      %3681 = vmatprep.mubr.bf16.mxu0 %v1405
      %3682 = vmatmul.mubr.bf16.gmra.mrb[0].mxu0 %v1404
      %v3683 = vpop.f32.mrb[0].mxu0
      %v3684 = vadd.f32 %v3491, %v3683
      %v3685 = vpop.f32.mrb[0].mxu0
      %v3686 = vadd.f32 %v3493, %v3685
      %v3687 = vpop.f32.mrb[0].mxu0
      %v3688 = vadd.f32 %v3495, %v3687
      %v3689 = vpop.f32.mrb[0].mxu0
      %v3690 = vadd.f32 %v3497, %v3689
      %3691 = vdwg.mxu0
      %3692 = vmatprep.subr.bf16.mxu0 %v2224
      %3693 = vmatpush1.bf16.msra.mxu0 %v2223
      %3694 = vmatprep.subr.bf16.mxu0 %v2228
      %3695 = vmatpush1.bf16.msra.mxu0 %v2227
      %3696 = vmatprep.subr.bf16.mxu0 %v2232
      %3697 = vmatpush1.bf16.msra.mxu0 %v2231
      %3698 = vmatprep.subr.bf16.mxu0 %v2236
      %3699 = vmatpush1.bf16.msra.mxu0 %v2235
      %3700 = vmatprep.subr.bf16.mxu0 %v2240
      %3701 = vmatpush1.bf16.msra.mxu0 %v2239
      %3702 = vmatprep.subr.bf16.mxu0 %v2244
      %3703 = vmatpush1.bf16.msra.mxu0 %v2243
      %3704 = vmatprep.subr.bf16.mxu0 %v2248
      %3705 = vmatpush1.bf16.msra.mxu0 %v2247
      %3706 = vmatprep.subr.bf16.mxu0 %v2252
      %3707 = vmatpush1.bf16.msra.mxu0 %v2251
      %3708 = vmatprep.subr.bf16.mxu0 %v2256
      %3709 = vmatpush1.bf16.msra.mxu0 %v2255
      %3710 = vmatprep.subr.bf16.mxu0 %v2260
      %3711 = vmatpush1.bf16.msra.mxu0 %v2259
      %3712 = vmatprep.subr.bf16.mxu0 %v2264
      %3713 = vmatpush1.bf16.msra.mxu0 %v2263
      %3714 = vmatprep.subr.bf16.mxu0 %v2268
      %3715 = vmatpush1.bf16.msra.mxu0 %v2267
      %3716 = vmatprep.subr.bf16.mxu0 %v2272
      %3717 = vmatpush1.bf16.msra.mxu0 %v2271
      %3718 = vmatprep.subr.bf16.mxu0 %v2276
      %3719 = vmatpush1.bf16.msra.mxu0 %v2275
      %3720 = vmatprep.subr.bf16.mxu0 %v2280
      %3721 = vmatpush1.bf16.msra.mxu0 %v2279
      %3722 = vmatprep.subr.bf16.mxu0 %v2284
      %3723 = vmatpush1.bf16.msra.mxu0 %v2283
      %3724 = vmatprep.mubr.bf16.mxu0 %v1302
      %3725 = vmatmul.mubr.bf16.gmra.mrb[0].mxu0 %v1301
      %v3726 = vpop.f32.mrb[0].mxu0
      %v3727 = vadd.f32 %v3534, %v3726
      %v3728 = vpop.f32.mrb[0].mxu0
      %v3729 = vadd.f32 %v3536, %v3728
      %v3730 = vpop.f32.mrb[0].mxu0
      %v3731 = vadd.f32 %v3538, %v3730
      %v3732 = vpop.f32.mrb[0].mxu0
      %v3733 = vadd.f32 %v3540, %v3732
      %3734 = vmatprep.mubr.bf16.mxu0 %v1309
      %3735 = vmatmul.mubr.bf16.gmra.mrb[0].mxu0 %v1308
      %v3736 = vpop.f32.mrb[0].mxu0
      %v3737 = vadd.f32 %v3544, %v3736
      %v3738 = vpop.f32.mrb[0].mxu0
      %v3739 = vadd.f32 %v3546, %v3738
      %v3740 = vpop.f32.mrb[0].mxu0
      %v3741 = vadd.f32 %v3548, %v3740
      %v3742 = vpop.f32.mrb[0].mxu0
      %v3743 = vadd.f32 %v3550, %v3742
      %3744 = vmatprep.mubr.bf16.mxu0 %v1316
      %3745 = vmatmul.mubr.bf16.gmra.mrb[0].mxu0 %v1315
      %v3746 = vpop.f32.mrb[0].mxu0
      %v3747 = vadd.f32 %v3554, %v3746
      %v3748 = vpop.f32.mrb[0].mxu0
      %v3749 = vadd.f32 %v3556, %v3748
      %v3750 = vpop.f32.mrb[0].mxu0
      %v3751 = vadd.f32 %v3558, %v3750
      %v3752 = vpop.f32.mrb[0].mxu0
      %v3753 = vadd.f32 %v3560, %v3752
      %3754 = vmatprep.mubr.bf16.mxu0 %v1323
      %3755 = vmatmul.mubr.bf16.gmra.mrb[0].mxu0 %v1322
      %v3756 = vpop.f32.mrb[0].mxu0
      %v3757 = vadd.f32 %v3564, %v3756
      %v3758 = vpop.f32.mrb[0].mxu0
      %v3759 = vadd.f32 %v3566, %v3758
      %v3760 = vpop.f32.mrb[0].mxu0
      %v3761 = vadd.f32 %v3568, %v3760
      %v3762 = vpop.f32.mrb[0].mxu0
      %v3763 = vadd.f32 %v3570, %v3762
      %3764 = vmatprep.mubr.bf16.mxu0 %v1330
      %3765 = vmatmul.mubr.bf16.gmra.mrb[0].mxu0 %v1329
      %v3766 = vpop.f32.mrb[0].mxu0
      %v3767 = vadd.f32 %v3574, %v3766
      %v3768 = vpop.f32.mrb[0].mxu0
      %v3769 = vadd.f32 %v3576, %v3768
      %v3770 = vpop.f32.mrb[0].mxu0
      %v3771 = vadd.f32 %v3578, %v3770
      %v3772 = vpop.f32.mrb[0].mxu0
      %v3773 = vadd.f32 %v3580, %v3772
      %3774 = vmatprep.mubr.bf16.mxu0 %v1337
      %3775 = vmatmul.mubr.bf16.gmra.mrb[0].mxu0 %v1336
      %v3776 = vpop.f32.mrb[0].mxu0
      %v3777 = vadd.f32 %v3584, %v3776
      %v3778 = vpop.f32.mrb[0].mxu0
      %v3779 = vadd.f32 %v3586, %v3778
      %v3780 = vpop.f32.mrb[0].mxu0
      %v3781 = vadd.f32 %v3588, %v3780
      %v3782 = vpop.f32.mrb[0].mxu0
      %v3783 = vadd.f32 %v3590, %v3782
      %3784 = vmatprep.mubr.bf16.mxu0 %v1344
      %3785 = vmatmul.mubr.bf16.gmra.mrb[0].mxu0 %v1343
      %v3786 = vpop.f32.mrb[0].mxu0
      %v3787 = vadd.f32 %v3594, %v3786
      %v3788 = vpop.f32.mrb[0].mxu0
      %v3789 = vadd.f32 %v3596, %v3788
      %v3790 = vpop.f32.mrb[0].mxu0
      %v3791 = vadd.f32 %v3598, %v3790
      %v3792 = vpop.f32.mrb[0].mxu0
      %v3793 = vadd.f32 %v3600, %v3792
      %3794 = vmatprep.mubr.bf16.mxu0 %v1351
      %3795 = vmatmul.mubr.bf16.gmra.mrb[0].mxu0 %v1350
      %v3796 = vpop.f32.mrb[0].mxu0
      %v3797 = vadd.f32 %v3604, %v3796
      %v3798 = vpop.f32.mrb[0].mxu0
      %v3799 = vadd.f32 %v3606, %v3798
      %v3800 = vpop.f32.mrb[0].mxu0
      %v3801 = vadd.f32 %v3608, %v3800
      %v3802 = vpop.f32.mrb[0].mxu0
      %v3803 = vadd.f32 %v3610, %v3802
      %3804 = vmatprep.mubr.bf16.mxu0 %v1358
      %3805 = vmatmul.mubr.bf16.gmra.mrb[0].mxu0 %v1357
      %v3806 = vpop.f32.mrb[0].mxu0
      %v3807 = vadd.f32 %v3614, %v3806
      %v3808 = vpop.f32.mrb[0].mxu0
      %v3809 = vadd.f32 %v3616, %v3808
      %v3810 = vpop.f32.mrb[0].mxu0
      %v3811 = vadd.f32 %v3618, %v3810
      %v3812 = vpop.f32.mrb[0].mxu0
      %v3813 = vadd.f32 %v3620, %v3812
      %3814 = vmatprep.mubr.bf16.mxu0 %v1365
      %3815 = vmatmul.mubr.bf16.gmra.mrb[0].mxu0 %v1364
      %v3816 = vpop.f32.mrb[0].mxu0
      %v3817 = vadd.f32 %v3624, %v3816
      %v3818 = vpop.f32.mrb[0].mxu0
      %v3819 = vadd.f32 %v3626, %v3818
      %v3820 = vpop.f32.mrb[0].mxu0
      %v3821 = vadd.f32 %v3628, %v3820
      %v3822 = vpop.f32.mrb[0].mxu0
      %v3823 = vadd.f32 %v3630, %v3822
      %3824 = vmatprep.mubr.bf16.mxu0 %v1372
      %3825 = vmatmul.mubr.bf16.gmra.mrb[0].mxu0 %v1371
      %v3826 = vpop.f32.mrb[0].mxu0
      %v3827 = vadd.f32 %v3634, %v3826
      %v3828 = vpop.f32.mrb[0].mxu0
      %v3829 = vadd.f32 %v3636, %v3828
      %v3830 = vpop.f32.mrb[0].mxu0
      %v3831 = vadd.f32 %v3638, %v3830
      %v3832 = vpop.f32.mrb[0].mxu0
      %v3833 = vadd.f32 %v3640, %v3832
      %3834 = vmatprep.mubr.bf16.mxu0 %v1379
      %3835 = vmatmul.mubr.bf16.gmra.mrb[0].mxu0 %v1378
      %v3836 = vpop.f32.mrb[0].mxu0
      %v3837 = vadd.f32 %v3644, %v3836
      %v3838 = vpop.f32.mrb[0].mxu0
      %v3839 = vadd.f32 %v3646, %v3838
      %v3840 = vpop.f32.mrb[0].mxu0
      %v3841 = vadd.f32 %v3648, %v3840
      %v3842 = vpop.f32.mrb[0].mxu0
      %v3843 = vadd.f32 %v3650, %v3842
      %3844 = vmatprep.mubr.bf16.mxu0 %v1386
      %3845 = vmatmul.mubr.bf16.gmra.mrb[0].mxu0 %v1385
      %v3846 = vpop.f32.mrb[0].mxu0
      %v3847 = vadd.f32 %v3654, %v3846
      %v3848 = vpop.f32.mrb[0].mxu0
      %v3849 = vadd.f32 %v3656, %v3848
      %v3850 = vpop.f32.mrb[0].mxu0
      %v3851 = vadd.f32 %v3658, %v3850
      %v3852 = vpop.f32.mrb[0].mxu0
      %v3853 = vadd.f32 %v3660, %v3852
      %3854 = vmatprep.mubr.bf16.mxu0 %v1393
      %3855 = vmatmul.mubr.bf16.gmra.mrb[0].mxu0 %v1392
      %v3856 = vpop.f32.mrb[0].mxu0
      %v3857 = vadd.f32 %v3664, %v3856
      %v3858 = vpop.f32.mrb[0].mxu0
      %v3859 = vadd.f32 %v3666, %v3858
      %v3860 = vpop.f32.mrb[0].mxu0
      %v3861 = vadd.f32 %v3668, %v3860
      %v3862 = vpop.f32.mrb[0].mxu0
      %v3863 = vadd.f32 %v3670, %v3862
      %3864 = vmatprep.mubr.bf16.mxu0 %v1400
      %3865 = vmatmul.mubr.bf16.gmra.mrb[0].mxu0 %v1399
      %v3866 = vpop.f32.mrb[0].mxu0
      %v3867 = vadd.f32 %v3674, %v3866
      %v3868 = vpop.f32.mrb[0].mxu0
      %v3869 = vadd.f32 %v3676, %v3868
      %v3870 = vpop.f32.mrb[0].mxu0
      %v3871 = vadd.f32 %v3678, %v3870
      %v3872 = vpop.f32.mrb[0].mxu0
      %v3873 = vadd.f32 %v3680, %v3872
      %3874 = vmatprep.mubr.bf16.mxu0 %v1407
      %3875 = vmatmul.mubr.bf16.gmra.mrb[0].mxu0 %v1406
      %v3876 = vpop.f32.mrb[0].mxu0
      %v3877 = vadd.f32 %v3684, %v3876
      %v3878 = vpop.f32.mrb[0].mxu0
      %v3879 = vadd.f32 %v3686, %v3878
      %v3880 = vpop.f32.mrb[0].mxu0
      %v3881 = vadd.f32 %v3688, %v3880
      %v3882 = vpop.f32.mrb[0].mxu0
      %v3883 = vadd.f32 %v3690, %v3882
      %3884 = vdwg.mxu0
      %3885 = vmatprep.subr.bf16.mxu0 %v2288
      %3886 = vmatpush1.bf16.msra.mxu0 %v2287
      %3887 = vmatprep.subr.bf16.mxu0 0
      %3888 = vmatpush1.bf16.msra.mxu0 0
      %3889 = vmatprep.subr.bf16.mxu0 0
      %3890 = vmatpush1.bf16.msra.mxu0 0
      %3891 = vmatprep.subr.bf16.mxu0 0
      %3892 = vmatpush1.bf16.msra.mxu0 0
      %3893 = vmatprep.subr.bf16.mxu0 0
      %3894 = vmatpush1.bf16.msra.mxu0 0
      %3895 = vmatprep.subr.bf16.mxu0 0
      %3896 = vmatpush1.bf16.msra.mxu0 0
      %3897 = vmatprep.subr.bf16.mxu0 0
      %3898 = vmatpush1.bf16.msra.mxu0 0
      %3899 = vmatprep.subr.bf16.mxu0 0
      %3900 = vmatpush1.bf16.msra.mxu0 0
      %3901 = vmatprep.subr.bf16.mxu0 0
      %3902 = vmatpush1.bf16.msra.mxu0 0
      %3903 = vmatprep.subr.bf16.mxu0 0
      %3904 = vmatpush1.bf16.msra.mxu0 0
      %3905 = vmatprep.subr.bf16.mxu0 0
      %3906 = vmatpush1.bf16.msra.mxu0 0
      %3907 = vmatprep.subr.bf16.mxu0 0
      %3908 = vmatpush1.bf16.msra.mxu0 0
      %3909 = vmatprep.subr.bf16.mxu0 0
      %3910 = vmatpush1.bf16.msra.mxu0 0
      %3911 = vmatprep.subr.bf16.mxu0 0
      %3912 = vmatpush1.bf16.msra.mxu0 0
      %3913 = vmatprep.subr.bf16.mxu0 0
      %3914 = vmatpush1.bf16.msra.mxu0 0
      %3915 = vmatprep.subr.bf16.mxu0 0
      %3916 = vmatpush1.bf16.msra.mxu0 0
      %3917 = vmatprep.mubr.bf16.mxu0 0
      %3918 = vmatmul.mubr.bf16.gmra.mrb[0].mxu0 %v2487
      %v3919 = vpop.f32.mrb[0].mxu0
      %v3920 = vadd.f32 %v3727, %v3919
      %v3921 = vpop.f32.mrb[0].mxu0
      %v3922 = vadd.f32 %v3729, %v3921
      %v3923 = vpop.f32.mrb[0].mxu0
      %v3924 = vadd.f32 %v3731, %v3923
      %v3925 = vpop.f32.mrb[0].mxu0
      %v3926 = vadd.f32 %v3733, %v3925
      %3927 = vmatprep.mubr.bf16.mxu0 0
      %3928 = vmatmul.mubr.bf16.gmra.mrb[0].mxu0 %v2490
      %v3929 = vpop.f32.mrb[0].mxu0
      %v3930 = vadd.f32 %v3737, %v3929
      %v3931 = vpop.f32.mrb[0].mxu0
      %v3932 = vadd.f32 %v3739, %v3931
      %v3933 = vpop.f32.mrb[0].mxu0
      %v3934 = vadd.f32 %v3741, %v3933
      %v3935 = vpop.f32.mrb[0].mxu0
      %v3936 = vadd.f32 %v3743, %v3935
      %3937 = vmatprep.mubr.bf16.mxu0 0
      %3938 = vmatmul.mubr.bf16.gmra.mrb[0].mxu0 %v2493
      %v3939 = vpop.f32.mrb[0].mxu0
      %v3940 = vadd.f32 %v3747, %v3939
      %v3941 = vpop.f32.mrb[0].mxu0
      %v3942 = vadd.f32 %v3749, %v3941
      %v3943 = vpop.f32.mrb[0].mxu0
      %v3944 = vadd.f32 %v3751, %v3943
      %v3945 = vpop.f32.mrb[0].mxu0
      %v3946 = vadd.f32 %v3753, %v3945
      %3947 = vmatprep.mubr.bf16.mxu0 0
      %3948 = vmatmul.mubr.bf16.gmra.mrb[0].mxu0 %v2496
      %v3949 = vpop.f32.mrb[0].mxu0
      %v3950 = vadd.f32 %v3757, %v3949
      %v3951 = vpop.f32.mrb[0].mxu0
      %v3952 = vadd.f32 %v3759, %v3951
      %v3953 = vpop.f32.mrb[0].mxu0
      %v3954 = vadd.f32 %v3761, %v3953
      %v3955 = vpop.f32.mrb[0].mxu0
      %v3956 = vadd.f32 %v3763, %v3955
      %3957 = vmatprep.mubr.bf16.mxu0 0
      %3958 = vmatmul.mubr.bf16.gmra.mrb[0].mxu0 %v2499
      %v3959 = vpop.f32.mrb[0].mxu0
      %v3960 = vadd.f32 %v3767, %v3959
      %v3961 = vpop.f32.mrb[0].mxu0
      %v3962 = vadd.f32 %v3769, %v3961
      %v3963 = vpop.f32.mrb[0].mxu0
      %v3964 = vadd.f32 %v3771, %v3963
      %v3965 = vpop.f32.mrb[0].mxu0
      %v3966 = vadd.f32 %v3773, %v3965
      %3967 = vmatprep.mubr.bf16.mxu0 0
      %3968 = vmatmul.mubr.bf16.gmra.mrb[0].mxu0 %v2502
      %v3969 = vpop.f32.mrb[0].mxu0
      %v3970 = vadd.f32 %v3777, %v3969
      %v3971 = vpop.f32.mrb[0].mxu0
      %v3972 = vadd.f32 %v3779, %v3971
      %v3973 = vpop.f32.mrb[0].mxu0
      %v3974 = vadd.f32 %v3781, %v3973
      %v3975 = vpop.f32.mrb[0].mxu0
      %v3976 = vadd.f32 %v3783, %v3975
      %3977 = vmatprep.mubr.bf16.mxu0 0
      %3978 = vmatmul.mubr.bf16.gmra.mrb[0].mxu0 %v2505
      %v3979 = vpop.f32.mrb[0].mxu0
      %v3980 = vadd.f32 %v3787, %v3979
      %v3981 = vpop.f32.mrb[0].mxu0
      %v3982 = vadd.f32 %v3789, %v3981
      %v3983 = vpop.f32.mrb[0].mxu0
      %v3984 = vadd.f32 %v3791, %v3983
      %v3985 = vpop.f32.mrb[0].mxu0
      %v3986 = vadd.f32 %v3793, %v3985
      %3987 = vmatprep.mubr.bf16.mxu0 0
      %3988 = vmatmul.mubr.bf16.gmra.mrb[0].mxu0 %v2508
      %v3989 = vpop.f32.mrb[0].mxu0
      %v3990 = vadd.f32 %v3797, %v3989
      %v3991 = vpop.f32.mrb[0].mxu0
      %v3992 = vadd.f32 %v3799, %v3991
      %v3993 = vpop.f32.mrb[0].mxu0
      %v3994 = vadd.f32 %v3801, %v3993
      %v3995 = vpop.f32.mrb[0].mxu0
      %v3996 = vadd.f32 %v3803, %v3995
      %3997 = vmatprep.mubr.bf16.mxu0 0
      %3998 = vmatmul.mubr.bf16.gmra.mrb[0].mxu0 %v2511
      %v3999 = vpop.f32.mrb[0].mxu0
      %v4000 = vadd.f32 %v3807, %v3999
      %v4001 = vpop.f32.mrb[0].mxu0
      %v4002 = vadd.f32 %v3809, %v4001
      %v4003 = vpop.f32.mrb[0].mxu0
      %v4004 = vadd.f32 %v3811, %v4003
      %v4005 = vpop.f32.mrb[0].mxu0
      %v4006 = vadd.f32 %v3813, %v4005
      %4007 = vmatprep.mubr.bf16.mxu0 0
      %4008 = vmatmul.mubr.bf16.gmra.mrb[0].mxu0 %v2514
      %v4009 = vpop.f32.mrb[0].mxu0
      %v4010 = vadd.f32 %v3817, %v4009
      %v4011 = vpop.f32.mrb[0].mxu0
      %v4012 = vadd.f32 %v3819, %v4011
      %v4013 = vpop.f32.mrb[0].mxu0
      %v4014 = vadd.f32 %v3821, %v4013
      %v4015 = vpop.f32.mrb[0].mxu0
      %v4016 = vadd.f32 %v3823, %v4015
      %4017 = vmatprep.mubr.bf16.mxu0 0
      %4018 = vmatmul.mubr.bf16.gmra.mrb[0].mxu0 %v2517
      %v4019 = vpop.f32.mrb[0].mxu0
      %v4020 = vadd.f32 %v3827, %v4019
      %v4021 = vpop.f32.mrb[0].mxu0
      %v4022 = vadd.f32 %v3829, %v4021
      %v4023 = vpop.f32.mrb[0].mxu0
      %v4024 = vadd.f32 %v3831, %v4023
      %v4025 = vpop.f32.mrb[0].mxu0
      %v4026 = vadd.f32 %v3833, %v4025
      %4027 = vmatprep.mubr.bf16.mxu0 0
      %4028 = vmatmul.mubr.bf16.gmra.mrb[0].mxu0 %v2520
      %v4029 = vpop.f32.mrb[0].mxu0
      %v4030 = vadd.f32 %v3837, %v4029
      %v4031 = vpop.f32.mrb[0].mxu0
      %v4032 = vadd.f32 %v3839, %v4031
      %v4033 = vpop.f32.mrb[0].mxu0
      %v4034 = vadd.f32 %v3841, %v4033
      %v4035 = vpop.f32.mrb[0].mxu0
      %v4036 = vadd.f32 %v3843, %v4035
      %4037 = vmatprep.mubr.bf16.mxu0 0
      %4038 = vmatmul.mubr.bf16.gmra.mrb[0].mxu0 %v2523
      %v4039 = vpop.f32.mrb[0].mxu0
      %v4040 = vadd.f32 %v3847, %v4039
      %v4041 = vpop.f32.mrb[0].mxu0
      %v4042 = vadd.f32 %v3849, %v4041
      %v4043 = vpop.f32.mrb[0].mxu0
      %v4044 = vadd.f32 %v3851, %v4043
      %v4045 = vpop.f32.mrb[0].mxu0
      %v4046 = vadd.f32 %v3853, %v4045
      %4047 = vmatprep.mubr.bf16.mxu0 0
      %4048 = vmatmul.mubr.bf16.gmra.mrb[0].mxu0 %v2526
      %v4049 = vpop.f32.mrb[0].mxu0
      %v4050 = vadd.f32 %v3857, %v4049
      %v4051 = vpop.f32.mrb[0].mxu0
      %v4052 = vadd.f32 %v3859, %v4051
      %v4053 = vpop.f32.mrb[0].mxu0
      %v4054 = vadd.f32 %v3861, %v4053
      %v4055 = vpop.f32.mrb[0].mxu0
      %v4056 = vadd.f32 %v3863, %v4055
      %4057 = vmatprep.mubr.bf16.mxu0 0
      %4058 = vmatmul.mubr.bf16.gmra.mrb[0].mxu0 %v2529
      %v4059 = vpop.f32.mrb[0].mxu0
      %v4060 = vadd.f32 %v3867, %v4059
      %v4061 = vpop.f32.mrb[0].mxu0
      %v4062 = vadd.f32 %v3869, %v4061
      %v4063 = vpop.f32.mrb[0].mxu0
      %v4064 = vadd.f32 %v3871, %v4063
      %v4065 = vpop.f32.mrb[0].mxu0
      %v4066 = vadd.f32 %v3873, %v4065
      %4067 = vmatprep.mubr.bf16.mxu0 0
      %4068 = vmatmul.mubr.bf16.gmra.mrb[0].mxu0 %v2532
      %v4069 = vpop.f32.mrb[0].mxu0
      %v4070 = vadd.f32 %v3877, %v4069
      %v4071 = vpop.f32.mrb[0].mxu0
      %v4072 = vadd.f32 %v3879, %v4071
      %v4073 = vpop.f32.mrb[0].mxu0
      %v4074 = vadd.f32 %v3881, %v4073
      %v4075 = vpop.f32.mrb[0].mxu0
      %v4076 = vadd.f32 %v3883, %v4075
      %4077 = vdwg.mxu0
      %v4078 = vmax.f32 %v3148, 0.0
      %v4079 = vmax.f32 %v3150, 0.0
      %v4080 = vmax.f32 %v3920, 0.0
      %v4081 = vmax.f32 %v3922, 0.0
      %v4082 = vmax.f32 %v3152, 0.0
      %v4083 = vmax.f32 %v3154, 0.0
      %v4084 = vmax.f32 %v3924, 0.0
      %v4085 = vmax.f32 %v3926, 0.0
      %v4086 = vmax.f32 %v3158, 0.0
      %v4087 = vmax.f32 %v3160, 0.0
      %v4088 = vmax.f32 %v3930, 0.0
      %v4089 = vmax.f32 %v3932, 0.0
      %v4090 = vmax.f32 %v3162, 0.0
      %v4091 = vmax.f32 %v3164, 0.0
      %v4092 = vmax.f32 %v3934, 0.0
      %v4093 = vmax.f32 %v3936, 0.0
      %v4094 = vmax.f32 %v3168, 0.0
      %v4095 = vmax.f32 %v3170, 0.0
      %v4096 = vmax.f32 %v3940, 0.0
      %v4097 = vmax.f32 %v3942, 0.0
      %v4098 = vmax.f32 %v3172, 0.0
      %v4099 = vmax.f32 %v3174, 0.0
      %v4100 = vmax.f32 %v3944, 0.0
      %v4101 = vmax.f32 %v3946, 0.0
      %v4102 = vmax.f32 %v3178, 0.0
      %v4103 = vmax.f32 %v3180, 0.0
      %v4104 = vmax.f32 %v3950, 0.0
      %v4105 = vmax.f32 %v3952, 0.0
      %v4106 = vmax.f32 %v3182, 0.0
      %v4107 = vmax.f32 %v3184, 0.0
      %v4108 = vmax.f32 %v3954, 0.0
      %v4109 = vmax.f32 %v3956, 0.0
      %v4110 = vmax.f32 %v3188, 0.0
      %v4111 = vmax.f32 %v3190, 0.0
      %v4112 = vmax.f32 %v3960, 0.0
      %v4113 = vmax.f32 %v3962, 0.0
      %v4114 = vmax.f32 %v3192, 0.0
      %v4115 = vmax.f32 %v3194, 0.0
      %v4116 = vmax.f32 %v3964, 0.0
      %v4117 = vmax.f32 %v3966, 0.0
      %v4118 = vmax.f32 %v3198, 0.0
      %v4119 = vmax.f32 %v3200, 0.0
      %v4120 = vmax.f32 %v3970, 0.0
      %v4121 = vmax.f32 %v3972, 0.0
      %v4122 = vmax.f32 %v3202, 0.0
      %v4123 = vmax.f32 %v3204, 0.0
      %v4124 = vmax.f32 %v3974, 0.0
      %v4125 = vmax.f32 %v3976, 0.0
      %v4126 = vmax.f32 %v3208, 0.0
      %v4127 = vmax.f32 %v3210, 0.0
      %v4128 = vmax.f32 %v3980, 0.0
      %v4129 = vmax.f32 %v3982, 0.0
      %v4130 = vmax.f32 %v3212, 0.0
      %v4131 = vmax.f32 %v3214, 0.0
      %v4132 = vmax.f32 %v3984, 0.0
      %v4133 = vmax.f32 %v3986, 0.0
      %v4134 = vmax.f32 %v3218, 0.0
      %v4135 = vmax.f32 %v3220, 0.0
      %v4136 = vmax.f32 %v3990, 0.0
      %v4137 = vmax.f32 %v3992, 0.0
      %v4138 = vmax.f32 %v3222, 0.0
      %v4139 = vmax.f32 %v3224, 0.0
      %v4140 = vmax.f32 %v3994, 0.0
      %v4141 = vmax.f32 %v3996, 0.0
      %v4142 = vmax.f32 %v3228, 0.0
      %v4143 = vmax.f32 %v3230, 0.0
      %v4144 = vmax.f32 %v4000, 0.0
      %v4145 = vmax.f32 %v4002, 0.0
      %v4146 = vmax.f32 %v3232, 0.0
      %v4147 = vmax.f32 %v3234, 0.0
      %v4148 = vmax.f32 %v4004, 0.0
      %v4149 = vmax.f32 %v4006, 0.0
      %v4150 = vmax.f32 %v3238, 0.0
      %v4151 = vmax.f32 %v3240, 0.0
      %v4152 = vmax.f32 %v4010, 0.0
      %v4153 = vmax.f32 %v4012, 0.0
      %v4154 = vmax.f32 %v3242, 0.0
      %v4155 = vmax.f32 %v3244, 0.0
      %v4156 = vmax.f32 %v4014, 0.0
      %v4157 = vmax.f32 %v4016, 0.0
      %v4158 = vmax.f32 %v3248, 0.0
      %v4159 = vmax.f32 %v3250, 0.0
      %v4160 = vmax.f32 %v4020, 0.0
      %v4161 = vmax.f32 %v4022, 0.0
      %v4162 = vmax.f32 %v3252, 0.0
      %v4163 = vmax.f32 %v3254, 0.0
      %v4164 = vmax.f32 %v4024, 0.0
      %v4165 = vmax.f32 %v4026, 0.0
      %v4166 = vmax.f32 %v3258, 0.0
      %v4167 = vmax.f32 %v3260, 0.0
      %v4168 = vmax.f32 %v4030, 0.0
      %v4169 = vmax.f32 %v4032, 0.0
      %v4170 = vmax.f32 %v3262, 0.0
      %v4171 = vmax.f32 %v3264, 0.0
      %v4172 = vmax.f32 %v4034, 0.0
      %v4173 = vmax.f32 %v4036, 0.0
      %v4174 = vmax.f32 %v3268, 0.0
      %v4175 = vmax.f32 %v3270, 0.0
      %v4176 = vmax.f32 %v4040, 0.0
      %v4177 = vmax.f32 %v4042, 0.0
      %v4178 = vmax.f32 %v3272, 0.0
      %v4179 = vmax.f32 %v3274, 0.0
      %v4180 = vmax.f32 %v4044, 0.0
      %v4181 = vmax.f32 %v4046, 0.0
      %v4182 = vmax.f32 %v3278, 0.0
      %v4183 = vmax.f32 %v3280, 0.0
      %v4184 = vmax.f32 %v4050, 0.0
      %v4185 = vmax.f32 %v4052, 0.0
      %v4186 = vmax.f32 %v3282, 0.0
      %v4187 = vmax.f32 %v3284, 0.0
      %v4188 = vmax.f32 %v4054, 0.0
      %v4189 = vmax.f32 %v4056, 0.0
      %v4190 = vmax.f32 %v3288, 0.0
      %v4191 = vmax.f32 %v3290, 0.0
      %v4192 = vmax.f32 %v4060, 0.0
      %v4193 = vmax.f32 %v4062, 0.0
      %v4194 = vmax.f32 %v3292, 0.0
      %v4195 = vmax.f32 %v3294, 0.0
      %v4196 = vmax.f32 %v4064, 0.0
      %v4197 = vmax.f32 %v4066, 0.0
      %v4198 = vmax.f32 %v3298, 0.0
      %v4199 = vmax.f32 %v3300, 0.0
      %v4200 = vmax.f32 %v4070, 0.0
      %v4201 = vmax.f32 %v4072, 0.0
      %v4202 = vmax.f32 %v3302, 0.0
      %v4203 = vmax.f32 %v3304, 0.0
      %v4204 = vmax.f32 %v4074, 0.0
      %v4205 = vmax.f32 %v4076, 0.0
      %v4206 = vpack.c.bf16 %v4082, %v4078
      %v4207 = vpack.c.bf16 %v4083, %v4079
      %v4208 = vpack.c.bf16 %v4084, %v4080
      %v4209 = vpack.c.bf16 %v4085, %v4081
      %v4210 = vpack.c.bf16 %v4090, %v4086
      %v4211 = vpack.c.bf16 %v4091, %v4087
      %v4212 = vpack.c.bf16 %v4092, %v4088
      %v4213 = vpack.c.bf16 %v4093, %v4089
      %v4214 = vpack.c.bf16 %v4098, %v4094
      %v4215 = vpack.c.bf16 %v4099, %v4095
      %v4216 = vpack.c.bf16 %v4100, %v4096
      %v4217 = vpack.c.bf16 %v4101, %v4097
      %v4218 = vpack.c.bf16 %v4106, %v4102
      %v4219 = vpack.c.bf16 %v4107, %v4103
      %v4220 = vpack.c.bf16 %v4108, %v4104
      %v4221 = vpack.c.bf16 %v4109, %v4105
      %v4222 = vpack.c.bf16 %v4114, %v4110
      %v4223 = vpack.c.bf16 %v4115, %v4111
      %v4224 = vpack.c.bf16 %v4116, %v4112
      %v4225 = vpack.c.bf16 %v4117, %v4113
      %v4226 = vpack.c.bf16 %v4122, %v4118
      %v4227 = vpack.c.bf16 %v4123, %v4119
      %v4228 = vpack.c.bf16 %v4124, %v4120
      %v4229 = vpack.c.bf16 %v4125, %v4121
      %v4230 = vpack.c.bf16 %v4130, %v4126
      %v4231 = vpack.c.bf16 %v4131, %v4127
      %v4232 = vpack.c.bf16 %v4132, %v4128
      %v4233 = vpack.c.bf16 %v4133, %v4129
      %v4234 = vpack.c.bf16 %v4138, %v4134
      %v4235 = vpack.c.bf16 %v4139, %v4135
      %v4236 = vpack.c.bf16 %v4140, %v4136
      %v4237 = vpack.c.bf16 %v4141, %v4137
      %v4238 = vpack.c.bf16 %v4146, %v4142
      %v4239 = vpack.c.bf16 %v4147, %v4143
      %v4240 = vpack.c.bf16 %v4148, %v4144
      %v4241 = vpack.c.bf16 %v4149, %v4145
      %v4242 = vpack.c.bf16 %v4154, %v4150
      %v4243 = vpack.c.bf16 %v4155, %v4151
      %v4244 = vpack.c.bf16 %v4156, %v4152
      %v4245 = vpack.c.bf16 %v4157, %v4153
      %v4246 = vpack.c.bf16 %v4162, %v4158
      %v4247 = vpack.c.bf16 %v4163, %v4159
      %v4248 = vpack.c.bf16 %v4164, %v4160
      %v4249 = vpack.c.bf16 %v4165, %v4161
      %v4250 = vpack.c.bf16 %v4170, %v4166
      %v4251 = vpack.c.bf16 %v4171, %v4167
      %v4252 = vpack.c.bf16 %v4172, %v4168
      %v4253 = vpack.c.bf16 %v4173, %v4169
      %v4254 = vpack.c.bf16 %v4178, %v4174
      %v4255 = vpack.c.bf16 %v4179, %v4175
      %v4256 = vpack.c.bf16 %v4180, %v4176
      %v4257 = vpack.c.bf16 %v4181, %v4177
      %v4258 = vpack.c.bf16 %v4186, %v4182
      %v4259 = vpack.c.bf16 %v4187, %v4183
      %v4260 = vpack.c.bf16 %v4188, %v4184
      %v4261 = vpack.c.bf16 %v4189, %v4185
      %v4262 = vpack.c.bf16 %v4194, %v4190
      %v4263 = vpack.c.bf16 %v4195, %v4191
      %v4264 = vpack.c.bf16 %v4196, %v4192
      %v4265 = vpack.c.bf16 %v4197, %v4193
      %v4266 = vpack.c.bf16 %v4202, %v4198
      %v4267 = vpack.c.bf16 %v4203, %v4199
      %v4268 = vpack.c.bf16 %v4204, %v4200
      %v4269 = vpack.c.bf16 %v4205, %v4201
      %v4270 = vld [vmem:[%s2] sm:$0xff]
      %v4271 = vld [vmem:[%s2 + $0x8] sm:$0xff]
      %v4272 = vld [vmem:[%s2 + $0x10] sm:$0xff]
      %v4273 = vld [vmem:[%s2 + $0x18] sm:$0xff]
      %v4274 = vld [vmem:[%s2 + $0x20] sm:$0xff]
      %v4275 = vld [vmem:[%s2 + $0x28] sm:$0xff]
      %v4276 = vld [vmem:[%s2 + $0x30] sm:$0xff]
      %v4277 = vld [vmem:[%s2 + $0x38] sm:$0xff]
      %v4278 = vld [vmem:[%s2 + $0x40] sm:$0xff]
      %v4279 = vld [vmem:[%s2 + $0x48] sm:$0xff]
      %v4280 = vld [vmem:[%s2 + $0x50] sm:$0xff]
      %v4281 = vld [vmem:[%s2 + $0x58] sm:$0xff]
      %v4282 = vld [vmem:[%s2 + $0x60] sm:$0xff]
      %v4283 = vld [vmem:[%s2 + $0x68] sm:$0xff]
      %v4284 = vld [vmem:[%s2 + $0x70] sm:$0xff]
      %v4285 = vld [vmem:[%s2 + $0x78] sm:$0xff]
      %v4286 = vld [vmem:[%s2 + $0x80] sm:$0xff]
      %v4287 = vld [vmem:[%s2 + $0x88] sm:$0xff]
      %v4288 = vld [vmem:[%s2 + $0x90] sm:$0xff]
      %v4289 = vld [vmem:[%s2 + $0x98] sm:$0xff]
      %v4290 = vld [vmem:[%s2 + $0xa0] sm:$0xff]
      %v4291 = vld [vmem:[%s2 + $0xa8] sm:$0xff]
      %v4292 = vld [vmem:[%s2 + $0xb0] sm:$0xff]
      %v4293 = vld [vmem:[%s2 + $0xb8] sm:$0xff]
      %v4294 = vld [vmem:[%s2 + $0xc0] sm:$0xff]
      %v4295 = vld [vmem:[%s2 + $0xc8] sm:$0xff]
      %v4296 = vld [vmem:[%s2 + $0xd0] sm:$0xff]
      %v4297 = vld [vmem:[%s2 + $0xd8] sm:$0xff]
      %v4298 = vld [vmem:[%s2 + $0xe0] sm:$0xff]
      %v4299 = vld [vmem:[%s2 + $0xe8] sm:$0xff]
      %v4300 = vld [vmem:[%s2 + $0xf0] sm:$0xff]
      %v4301 = vld [vmem:[%s2 + $0xf8] sm:$0xff]
      %v4302 = vld [vmem:[%s2 + $0x100] sm:$0xff]
      %v4303 = vld [vmem:[%s2 + $0x108] sm:$0xff]
      %v4304 = vld [vmem:[%s2 + $0x110] sm:$0xff]
      %v4305 = vld [vmem:[%s2 + $0x118] sm:$0xff]
      %v4306 = vld [vmem:[%s2 + $0x120] sm:$0xff]
      %v4307 = vld [vmem:[%s2 + $0x128] sm:$0xff]
      %v4308 = vld [vmem:[%s2 + $0x130] sm:$0xff]
      %v4309 = vld [vmem:[%s2 + $0x138] sm:$0xff]
      %v4310 = vld [vmem:[%s2 + $0x140] sm:$0xff]
      %v4311 = vld [vmem:[%s2 + $0x148] sm:$0xff]
      %v4312 = vld [vmem:[%s2 + $0x150] sm:$0xff]
      %v4313 = vld [vmem:[%s2 + $0x158] sm:$0xff]
      %v4314 = vld [vmem:[%s2 + $0x160] sm:$0xff]
      %v4315 = vld [vmem:[%s2 + $0x168] sm:$0xff]
      %v4316 = vld [vmem:[%s2 + $0x170] sm:$0xff]
      %v4317 = vld [vmem:[%s2 + $0x178] sm:$0xff]
      %v4318 = vld [vmem:[%s2 + $0x180] sm:$0xff]
      %v4319 = vld [vmem:[%s2 + $0x188] sm:$0xff]
      %v4320 = vld [vmem:[%s2 + $0x190] sm:$0xff]
      %v4321 = vld [vmem:[%s2 + $0x198] sm:$0xff]
      %v4322 = vld [vmem:[%s2 + $0x1a0] sm:$0xff]
      %v4323 = vld [vmem:[%s2 + $0x1a8] sm:$0xff]
      %v4324 = vld [vmem:[%s2 + $0x1b0] sm:$0xff]
      %v4325 = vld [vmem:[%s2 + $0x1b8] sm:$0xff]
      %v4326 = vld [vmem:[%s2 + $0x1c0] sm:$0xff]
      %v4327 = vld [vmem:[%s2 + $0x1c8] sm:$0xff]
      %v4328 = vld [vmem:[%s2 + $0x1d0] sm:$0xff]
      %v4329 = vld [vmem:[%s2 + $0x1d8] sm:$0xff]
      %v4330 = vld [vmem:[%s2 + $0x1e0] sm:$0xff]
      %v4331 = vld [vmem:[%s2 + $0x1e8] sm:$0xff]
      %v4332 = vld [vmem:[%s2 + $0x1f0] sm:$0xff]
      %v4333 = vld [vmem:[%s2 + $0x1f8] sm:$0xff]
      %v4334 = vld [vmem:[%s10] sm:$0x3]
      %v4336 = vlaneseq
      %v4337 = vshrl.u32 %v4336, 7
      %v4338 = vsub.s32 0, %v4337
      %v4339 = vrot.slane %v4334, %v4338
      %v4340 = vlaneseq
      %v4341 = vshrl.u32 %v4340, 7
      %v4342 = vsub.s32 1, %v4341
      %v4343 = vrot.slane %v4334, %v4342
      %v4410 = vunpack.c.l.b16 %v4270
      %v4411 = vunpack.c.h.b16 %v4270
      %v4412 = vunpack.c.l.b16 %v4271
      %v4413 = vunpack.c.h.b16 %v4271
      %v4414 = vunpack.c.l.b16 %v4272
      %v4415 = vunpack.c.h.b16 %v4272
      %v4416 = vunpack.c.l.b16 %v4273
      %v4417 = vunpack.c.h.b16 %v4273
      %v4418 = vunpack.c.l.b16 %v4274
      %v4419 = vunpack.c.h.b16 %v4274
      %v4420 = vunpack.c.l.b16 %v4275
      %v4421 = vunpack.c.h.b16 %v4275
      %v4422 = vunpack.c.l.b16 %v4276
      %v4423 = vunpack.c.h.b16 %v4276
      %v4424 = vunpack.c.l.b16 %v4277
      %v4425 = vunpack.c.h.b16 %v4277
      %v4426 = vunpack.c.l.b16 %v4278
      %v4427 = vunpack.c.h.b16 %v4278
      %v4428 = vunpack.c.l.b16 %v4279
      %v4429 = vunpack.c.h.b16 %v4279
      %v4430 = vunpack.c.l.b16 %v4280
      %v4431 = vunpack.c.h.b16 %v4280
      %v4432 = vunpack.c.l.b16 %v4281
      %v4433 = vunpack.c.h.b16 %v4281
      %v4434 = vunpack.c.l.b16 %v4282
      %v4435 = vunpack.c.h.b16 %v4282
      %v4436 = vunpack.c.l.b16 %v4283
      %v4437 = vunpack.c.h.b16 %v4283
      %v4438 = vunpack.c.l.b16 %v4284
      %v4439 = vunpack.c.h.b16 %v4284
      %v4440 = vunpack.c.l.b16 %v4285
      %v4441 = vunpack.c.h.b16 %v4285
      %v4442 = vunpack.c.l.b16 %v4286
      %v4443 = vunpack.c.h.b16 %v4286
      %v4444 = vunpack.c.l.b16 %v4287
      %v4445 = vunpack.c.h.b16 %v4287
      %v4446 = vunpack.c.l.b16 %v4288
      %v4447 = vunpack.c.h.b16 %v4288
      %v4448 = vunpack.c.l.b16 %v4289
      %v4449 = vunpack.c.h.b16 %v4289
      %v4450 = vunpack.c.l.b16 %v4290
      %v4451 = vunpack.c.h.b16 %v4290
      %v4452 = vunpack.c.l.b16 %v4291
      %v4453 = vunpack.c.h.b16 %v4291
      %v4454 = vunpack.c.l.b16 %v4292
      %v4455 = vunpack.c.h.b16 %v4292
      %v4456 = vunpack.c.l.b16 %v4293
      %v4457 = vunpack.c.h.b16 %v4293
      %v4458 = vunpack.c.l.b16 %v4294
      %v4459 = vunpack.c.h.b16 %v4294
      %v4460 = vunpack.c.l.b16 %v4295
      %v4461 = vunpack.c.h.b16 %v4295
      %v4462 = vunpack.c.l.b16 %v4296
      %v4463 = vunpack.c.h.b16 %v4296
      %v4464 = vunpack.c.l.b16 %v4297
      %v4465 = vunpack.c.h.b16 %v4297
      %v4466 = vunpack.c.l.b16 %v4298
      %v4467 = vunpack.c.h.b16 %v4298
      %v4468 = vunpack.c.l.b16 %v4299
      %v4469 = vunpack.c.h.b16 %v4299
      %v4470 = vunpack.c.l.b16 %v4300
      %v4471 = vunpack.c.h.b16 %v4300
      %v4472 = vunpack.c.l.b16 %v4301
      %v4473 = vunpack.c.h.b16 %v4301
      %v4474 = vunpack.c.l.b16 %v4302
      %v4475 = vunpack.c.h.b16 %v4302
      %v4476 = vunpack.c.l.b16 %v4303
      %v4477 = vunpack.c.h.b16 %v4303
      %v4478 = vunpack.c.l.b16 %v4304
      %v4479 = vunpack.c.h.b16 %v4304
      %v4480 = vunpack.c.l.b16 %v4305
      %v4481 = vunpack.c.h.b16 %v4305
      %v4482 = vunpack.c.l.b16 %v4306
      %v4483 = vunpack.c.h.b16 %v4306
      %v4484 = vunpack.c.l.b16 %v4307
      %v4485 = vunpack.c.h.b16 %v4307
      %v4486 = vunpack.c.l.b16 %v4308
      %v4487 = vunpack.c.h.b16 %v4308
      %v4488 = vunpack.c.l.b16 %v4309
      %v4489 = vunpack.c.h.b16 %v4309
      %v4490 = vunpack.c.l.b16 %v4310
      %v4491 = vunpack.c.h.b16 %v4310
      %v4492 = vunpack.c.l.b16 %v4311
      %v4493 = vunpack.c.h.b16 %v4311
      %v4494 = vunpack.c.l.b16 %v4312
      %v4495 = vunpack.c.h.b16 %v4312
      %v4496 = vunpack.c.l.b16 %v4313
      %v4497 = vunpack.c.h.b16 %v4313
      %v4498 = vunpack.c.l.b16 %v4314
      %v4499 = vunpack.c.h.b16 %v4314
      %v4500 = vunpack.c.l.b16 %v4315
      %v4501 = vunpack.c.h.b16 %v4315
      %v4502 = vunpack.c.l.b16 %v4316
      %v4503 = vunpack.c.h.b16 %v4316
      %v4504 = vunpack.c.l.b16 %v4317
      %v4505 = vunpack.c.h.b16 %v4317
      %v4506 = vunpack.c.l.b16 %v4318
      %v4507 = vunpack.c.h.b16 %v4318
      %v4508 = vunpack.c.l.b16 %v4319
      %v4509 = vunpack.c.h.b16 %v4319
      %v4510 = vunpack.c.l.b16 %v4320
      %v4511 = vunpack.c.h.b16 %v4320
      %v4512 = vunpack.c.l.b16 %v4321
      %v4513 = vunpack.c.h.b16 %v4321
      %v4514 = vunpack.c.l.b16 %v4322
      %v4515 = vunpack.c.h.b16 %v4322
      %v4516 = vunpack.c.l.b16 %v4323
      %v4517 = vunpack.c.h.b16 %v4323
      %v4518 = vunpack.c.l.b16 %v4324
      %v4519 = vunpack.c.h.b16 %v4324
      %v4520 = vunpack.c.l.b16 %v4325
      %v4521 = vunpack.c.h.b16 %v4325
      %v4522 = vunpack.c.l.b16 %v4326
      %v4523 = vunpack.c.h.b16 %v4326
      %v4524 = vunpack.c.l.b16 %v4327
      %v4525 = vunpack.c.h.b16 %v4327
      %v4526 = vunpack.c.l.b16 %v4328
      %v4527 = vunpack.c.h.b16 %v4328
      %v4528 = vunpack.c.l.b16 %v4329
      %v4529 = vunpack.c.h.b16 %v4329
      %v4530 = vunpack.c.l.b16 %v4330
      %v4531 = vunpack.c.h.b16 %v4330
      %v4532 = vunpack.c.l.b16 %v4331
      %v4533 = vunpack.c.h.b16 %v4331
      %v4534 = vunpack.c.l.b16 %v4332
      %v4535 = vunpack.c.h.b16 %v4332
      %v4536 = vunpack.c.l.b16 %v4333
      %v4537 = vunpack.c.h.b16 %v4333
      %v4538 = vpack.c.b16 %v4412, %v4410
      %v4539 = vpack.c.b16 %v4413, %v4411
      %v4540 = vpack.c.b16 %v4416, %v4414
      %v4541 = vpack.c.b16 %v4417, %v4415
      %v4542 = vpack.c.b16 %v4420, %v4418
      %v4543 = vpack.c.b16 %v4421, %v4419
      %v4544 = vpack.c.b16 %v4424, %v4422
      %v4545 = vpack.c.b16 %v4425, %v4423
      %v4546 = vpack.c.b16 %v4428, %v4426
      %v4547 = vpack.c.b16 %v4429, %v4427
      %v4548 = vpack.c.b16 %v4432, %v4430
      %v4549 = vpack.c.b16 %v4433, %v4431
      %v4550 = vpack.c.b16 %v4436, %v4434
      %v4551 = vpack.c.b16 %v4437, %v4435
      %v4552 = vpack.c.b16 %v4440, %v4438
      %v4553 = vpack.c.b16 %v4441, %v4439
      %v4554 = vpack.c.b16 %v4444, %v4442
      %v4555 = vpack.c.b16 %v4445, %v4443
      %v4556 = vpack.c.b16 %v4448, %v4446
      %v4557 = vpack.c.b16 %v4449, %v4447
      %v4558 = vpack.c.b16 %v4452, %v4450
      %v4559 = vpack.c.b16 %v4453, %v4451
      %v4560 = vpack.c.b16 %v4456, %v4454
      %v4561 = vpack.c.b16 %v4457, %v4455
      %v4562 = vpack.c.b16 %v4460, %v4458
      %v4563 = vpack.c.b16 %v4461, %v4459
      %v4564 = vpack.c.b16 %v4464, %v4462
      %v4565 = vpack.c.b16 %v4465, %v4463
      %v4566 = vpack.c.b16 %v4468, %v4466
      %v4567 = vpack.c.b16 %v4469, %v4467
      %v4568 = vpack.c.b16 %v4472, %v4470
      %v4569 = vpack.c.b16 %v4473, %v4471
      %v4570 = vpack.c.b16 %v4476, %v4474
      %v4571 = vpack.c.b16 %v4477, %v4475
      %v4572 = vpack.c.b16 %v4480, %v4478
      %v4573 = vpack.c.b16 %v4481, %v4479
      %v4574 = vpack.c.b16 %v4484, %v4482
      %v4575 = vpack.c.b16 %v4485, %v4483
      %v4576 = vpack.c.b16 %v4488, %v4486
      %v4577 = vpack.c.b16 %v4489, %v4487
      %v4578 = vpack.c.b16 %v4492, %v4490
      %v4579 = vpack.c.b16 %v4493, %v4491
      %v4580 = vpack.c.b16 %v4496, %v4494
      %v4581 = vpack.c.b16 %v4497, %v4495
      %v4582 = vpack.c.b16 %v4500, %v4498
      %v4583 = vpack.c.b16 %v4501, %v4499
      %v4584 = vpack.c.b16 %v4504, %v4502
      %v4585 = vpack.c.b16 %v4505, %v4503
      %v4586 = vpack.c.b16 %v4508, %v4506
      %v4587 = vpack.c.b16 %v4509, %v4507
      %v4588 = vpack.c.b16 %v4512, %v4510
      %v4589 = vpack.c.b16 %v4513, %v4511
      %v4590 = vpack.c.b16 %v4516, %v4514
      %v4591 = vpack.c.b16 %v4517, %v4515
      %v4592 = vpack.c.b16 %v4520, %v4518
      %v4593 = vpack.c.b16 %v4521, %v4519
      %v4594 = vpack.c.b16 %v4524, %v4522
      %v4595 = vpack.c.b16 %v4525, %v4523
      %v4596 = vpack.c.b16 %v4528, %v4526
      %v4597 = vpack.c.b16 %v4529, %v4527
      %v4598 = vpack.c.b16 %v4532, %v4530
      %v4599 = vpack.c.b16 %v4533, %v4531
      %v4600 = vpack.c.b16 %v4536, %v4534
      %v4601 = vpack.c.b16 %v4537, %v4535
      %4666 = vmatprep.subr.bf16.mxu0 %v4539
      %4667 = vmatpush1.bf16.msra.mxu0 %v4538
      %4668 = vmatprep.subr.bf16.mxu0 %v4541
      %4669 = vmatpush1.bf16.msra.mxu0 %v4540
      %4670 = vmatprep.subr.bf16.mxu0 %v4543
      %4671 = vmatpush1.bf16.msra.mxu0 %v4542
      %4672 = vmatprep.subr.bf16.mxu0 %v4545
      %4673 = vmatpush1.bf16.msra.mxu0 %v4544
      %4674 = vmatprep.subr.bf16.mxu0 %v4547
      %4675 = vmatpush1.bf16.msra.mxu0 %v4546
      %4676 = vmatprep.subr.bf16.mxu0 %v4549
      %4677 = vmatpush1.bf16.msra.mxu0 %v4548
      %4678 = vmatprep.subr.bf16.mxu0 %v4551
      %4679 = vmatpush1.bf16.msra.mxu0 %v4550
      %4680 = vmatprep.subr.bf16.mxu0 %v4553
      %4681 = vmatpush1.bf16.msra.mxu0 %v4552
      %4682 = vmatprep.subr.bf16.mxu0 %v4555
      %4683 = vmatpush1.bf16.msra.mxu0 %v4554
      %4684 = vmatprep.subr.bf16.mxu0 %v4557
      %4685 = vmatpush1.bf16.msra.mxu0 %v4556
      %4686 = vmatprep.subr.bf16.mxu0 %v4559
      %4687 = vmatpush1.bf16.msra.mxu0 %v4558
      %4688 = vmatprep.subr.bf16.mxu0 %v4561
      %4689 = vmatpush1.bf16.msra.mxu0 %v4560
      %4690 = vmatprep.subr.bf16.mxu0 %v4563
      %4691 = vmatpush1.bf16.msra.mxu0 %v4562
      %4692 = vmatprep.subr.bf16.mxu0 %v4565
      %4693 = vmatpush1.bf16.msra.mxu0 %v4564
      %4694 = vmatprep.subr.bf16.mxu0 %v4567
      %4695 = vmatpush1.bf16.msra.mxu0 %v4566
      %4696 = vmatprep.subr.bf16.mxu0 %v4569
      %4697 = vmatpush1.bf16.msra.mxu0 %v4568
      %4698 = vmatprep.mubr.bf16.mxu0 %v4207
      %4699 = vmatmul.mubr.bf16.gmra.mrb[0].mxu0 %v4206
      %v4700 = vpop.f32.mrb[0].mxu0
      %v4701 = vadd.f32 %v4339, %v4700
      %v4702 = vpop.f32.mrb[0].mxu0
      %v4703 = vadd.f32 %v4343, %v4702
      %v4704 = vpop.f32.mrb[0].mxu0
      %v4705 = vadd.f32 %v4339, %v4704
      %v4706 = vpop.f32.mrb[0].mxu0
      %v4707 = vadd.f32 %v4343, %v4706
      %4708 = vmatprep.mubr.bf16.mxu0 %v4211
      %4709 = vmatmul.mubr.bf16.gmra.mrb[0].mxu0 %v4210
      %v4710 = vpop.f32.mrb[0].mxu0
      %v4711 = vadd.f32 %v4339, %v4710
      %v4712 = vpop.f32.mrb[0].mxu0
      %v4713 = vadd.f32 %v4343, %v4712
      %v4714 = vpop.f32.mrb[0].mxu0
      %v4715 = vadd.f32 %v4339, %v4714
      %v4716 = vpop.f32.mrb[0].mxu0
      %v4717 = vadd.f32 %v4343, %v4716
      %4718 = vmatprep.mubr.bf16.mxu0 %v4215
      %4719 = vmatmul.mubr.bf16.gmra.mrb[0].mxu0 %v4214
      %v4720 = vpop.f32.mrb[0].mxu0
      %v4721 = vadd.f32 %v4339, %v4720
      %v4722 = vpop.f32.mrb[0].mxu0
      %v4723 = vadd.f32 %v4343, %v4722
      %v4724 = vpop.f32.mrb[0].mxu0
      %v4725 = vadd.f32 %v4339, %v4724
      %v4726 = vpop.f32.mrb[0].mxu0
      %v4727 = vadd.f32 %v4343, %v4726
      %4728 = vmatprep.mubr.bf16.mxu0 %v4219
      %4729 = vmatmul.mubr.bf16.gmra.mrb[0].mxu0 %v4218
      %v4730 = vpop.f32.mrb[0].mxu0
      %v4731 = vadd.f32 %v4339, %v4730
      %v4732 = vpop.f32.mrb[0].mxu0
      %v4733 = vadd.f32 %v4343, %v4732
      %v4734 = vpop.f32.mrb[0].mxu0
      %v4735 = vadd.f32 %v4339, %v4734
      %v4736 = vpop.f32.mrb[0].mxu0
      %v4737 = vadd.f32 %v4343, %v4736
      %4738 = vmatprep.mubr.bf16.mxu0 %v4223
      %4739 = vmatmul.mubr.bf16.gmra.mrb[0].mxu0 %v4222
      %v4740 = vpop.f32.mrb[0].mxu0
      %v4741 = vadd.f32 %v4339, %v4740
      %v4742 = vpop.f32.mrb[0].mxu0
      %v4743 = vadd.f32 %v4343, %v4742
      %v4744 = vpop.f32.mrb[0].mxu0
      %v4745 = vadd.f32 %v4339, %v4744
      %v4746 = vpop.f32.mrb[0].mxu0
      %v4747 = vadd.f32 %v4343, %v4746
      %4748 = vmatprep.mubr.bf16.mxu0 %v4227
      %4749 = vmatmul.mubr.bf16.gmra.mrb[0].mxu0 %v4226
      %v4750 = vpop.f32.mrb[0].mxu0
      %v4751 = vadd.f32 %v4339, %v4750
      %v4752 = vpop.f32.mrb[0].mxu0
      %v4753 = vadd.f32 %v4343, %v4752
      %v4754 = vpop.f32.mrb[0].mxu0
      %v4755 = vadd.f32 %v4339, %v4754
      %v4756 = vpop.f32.mrb[0].mxu0
      %v4757 = vadd.f32 %v4343, %v4756
      %4758 = vmatprep.mubr.bf16.mxu0 %v4231
      %4759 = vmatmul.mubr.bf16.gmra.mrb[0].mxu0 %v4230
      %v4760 = vpop.f32.mrb[0].mxu0
      %v4761 = vadd.f32 %v4339, %v4760
      %v4762 = vpop.f32.mrb[0].mxu0
      %v4763 = vadd.f32 %v4343, %v4762
      %v4764 = vpop.f32.mrb[0].mxu0
      %v4765 = vadd.f32 %v4339, %v4764
      %v4766 = vpop.f32.mrb[0].mxu0
      %v4767 = vadd.f32 %v4343, %v4766
      %4768 = vmatprep.mubr.bf16.mxu0 %v4235
      %4769 = vmatmul.mubr.bf16.gmra.mrb[0].mxu0 %v4234
      %v4770 = vpop.f32.mrb[0].mxu0
      %v4771 = vadd.f32 %v4339, %v4770
      %v4772 = vpop.f32.mrb[0].mxu0
      %v4773 = vadd.f32 %v4343, %v4772
      %v4774 = vpop.f32.mrb[0].mxu0
      %v4775 = vadd.f32 %v4339, %v4774
      %v4776 = vpop.f32.mrb[0].mxu0
      %v4777 = vadd.f32 %v4343, %v4776
      %4778 = vmatprep.mubr.bf16.mxu0 %v4239
      %4779 = vmatmul.mubr.bf16.gmra.mrb[0].mxu0 %v4238
      %v4780 = vpop.f32.mrb[0].mxu0
      %v4781 = vadd.f32 %v4339, %v4780
      %v4782 = vpop.f32.mrb[0].mxu0
      %v4783 = vadd.f32 %v4343, %v4782
      %v4784 = vpop.f32.mrb[0].mxu0
      %v4785 = vadd.f32 %v4339, %v4784
      %v4786 = vpop.f32.mrb[0].mxu0
      %v4787 = vadd.f32 %v4343, %v4786
      %4788 = vmatprep.mubr.bf16.mxu0 %v4243
      %4789 = vmatmul.mubr.bf16.gmra.mrb[0].mxu0 %v4242
      %v4790 = vpop.f32.mrb[0].mxu0
      %v4791 = vadd.f32 %v4339, %v4790
      %v4792 = vpop.f32.mrb[0].mxu0
      %v4793 = vadd.f32 %v4343, %v4792
      %v4794 = vpop.f32.mrb[0].mxu0
      %v4795 = vadd.f32 %v4339, %v4794
      %v4796 = vpop.f32.mrb[0].mxu0
      %v4797 = vadd.f32 %v4343, %v4796
      %4798 = vmatprep.mubr.bf16.mxu0 %v4247
      %4799 = vmatmul.mubr.bf16.gmra.mrb[0].mxu0 %v4246
      %v4800 = vpop.f32.mrb[0].mxu0
      %v4801 = vadd.f32 %v4339, %v4800
      %v4802 = vpop.f32.mrb[0].mxu0
      %v4803 = vadd.f32 %v4343, %v4802
      %v4804 = vpop.f32.mrb[0].mxu0
      %v4805 = vadd.f32 %v4339, %v4804
      %v4806 = vpop.f32.mrb[0].mxu0
      %v4807 = vadd.f32 %v4343, %v4806
      %4808 = vmatprep.mubr.bf16.mxu0 %v4251
      %4809 = vmatmul.mubr.bf16.gmra.mrb[0].mxu0 %v4250
      %v4810 = vpop.f32.mrb[0].mxu0
      %v4811 = vadd.f32 %v4339, %v4810
      %v4812 = vpop.f32.mrb[0].mxu0
      %v4813 = vadd.f32 %v4343, %v4812
      %v4814 = vpop.f32.mrb[0].mxu0
      %v4815 = vadd.f32 %v4339, %v4814
      %v4816 = vpop.f32.mrb[0].mxu0
      %v4817 = vadd.f32 %v4343, %v4816
      %4818 = vmatprep.mubr.bf16.mxu0 %v4255
      %4819 = vmatmul.mubr.bf16.gmra.mrb[0].mxu0 %v4254
      %v4820 = vpop.f32.mrb[0].mxu0
      %v4821 = vadd.f32 %v4339, %v4820
      %v4822 = vpop.f32.mrb[0].mxu0
      %v4823 = vadd.f32 %v4343, %v4822
      %v4824 = vpop.f32.mrb[0].mxu0
      %v4825 = vadd.f32 %v4339, %v4824
      %v4826 = vpop.f32.mrb[0].mxu0
      %v4827 = vadd.f32 %v4343, %v4826
      %4828 = vmatprep.mubr.bf16.mxu0 %v4259
      %4829 = vmatmul.mubr.bf16.gmra.mrb[0].mxu0 %v4258
      %v4830 = vpop.f32.mrb[0].mxu0
      %v4831 = vadd.f32 %v4339, %v4830
      %v4832 = vpop.f32.mrb[0].mxu0
      %v4833 = vadd.f32 %v4343, %v4832
      %v4834 = vpop.f32.mrb[0].mxu0
      %v4835 = vadd.f32 %v4339, %v4834
      %v4836 = vpop.f32.mrb[0].mxu0
      %v4837 = vadd.f32 %v4343, %v4836
      %4838 = vmatprep.mubr.bf16.mxu0 %v4263
      %4839 = vmatmul.mubr.bf16.gmra.mrb[0].mxu0 %v4262
      %v4840 = vpop.f32.mrb[0].mxu0
      %v4841 = vadd.f32 %v4339, %v4840
      %v4842 = vpop.f32.mrb[0].mxu0
      %v4843 = vadd.f32 %v4343, %v4842
      %v4844 = vpop.f32.mrb[0].mxu0
      %v4845 = vadd.f32 %v4339, %v4844
      %v4846 = vpop.f32.mrb[0].mxu0
      %v4847 = vadd.f32 %v4343, %v4846
      %4848 = vmatprep.mubr.bf16.mxu0 %v4267
      %4849 = vmatmul.mubr.bf16.gmra.mrb[0].mxu0 %v4266
      %v4850 = vpop.f32.mrb[0].mxu0
      %v4851 = vadd.f32 %v4339, %v4850
      %v4852 = vpop.f32.mrb[0].mxu0
      %v4853 = vadd.f32 %v4343, %v4852
      %v4854 = vpop.f32.mrb[0].mxu0
      %v4855 = vadd.f32 %v4339, %v4854
      %v4856 = vpop.f32.mrb[0].mxu0
      %v4857 = vadd.f32 %v4343, %v4856
      %4858 = vdwg.mxu0
      %4859 = vmatprep.subr.bf16.mxu0 %v4571
      %4860 = vmatpush1.bf16.msra.mxu0 %v4570
      %4861 = vmatprep.subr.bf16.mxu0 %v4573
      %4862 = vmatpush1.bf16.msra.mxu0 %v4572
      %4863 = vmatprep.subr.bf16.mxu0 %v4575
      %4864 = vmatpush1.bf16.msra.mxu0 %v4574
      %4865 = vmatprep.subr.bf16.mxu0 %v4577
      %4866 = vmatpush1.bf16.msra.mxu0 %v4576
      %4867 = vmatprep.subr.bf16.mxu0 %v4579
      %4868 = vmatpush1.bf16.msra.mxu0 %v4578
      %4869 = vmatprep.subr.bf16.mxu0 %v4581
      %4870 = vmatpush1.bf16.msra.mxu0 %v4580
      %4871 = vmatprep.subr.bf16.mxu0 %v4583
      %4872 = vmatpush1.bf16.msra.mxu0 %v4582
      %4873 = vmatprep.subr.bf16.mxu0 %v4585
      %4874 = vmatpush1.bf16.msra.mxu0 %v4584
      %4875 = vmatprep.subr.bf16.mxu0 %v4587
      %4876 = vmatpush1.bf16.msra.mxu0 %v4586
      %4877 = vmatprep.subr.bf16.mxu0 %v4589
      %4878 = vmatpush1.bf16.msra.mxu0 %v4588
      %4879 = vmatprep.subr.bf16.mxu0 %v4591
      %4880 = vmatpush1.bf16.msra.mxu0 %v4590
      %4881 = vmatprep.subr.bf16.mxu0 %v4593
      %4882 = vmatpush1.bf16.msra.mxu0 %v4592
      %4883 = vmatprep.subr.bf16.mxu0 %v4595
      %4884 = vmatpush1.bf16.msra.mxu0 %v4594
      %4885 = vmatprep.subr.bf16.mxu0 %v4597
      %4886 = vmatpush1.bf16.msra.mxu0 %v4596
      %4887 = vmatprep.subr.bf16.mxu0 %v4599
      %4888 = vmatpush1.bf16.msra.mxu0 %v4598
      %4889 = vmatprep.subr.bf16.mxu0 %v4601
      %4890 = vmatpush1.bf16.msra.mxu0 %v4600
      %4891 = vmatprep.mubr.bf16.mxu0 %v4209
      %4892 = vmatmul.mubr.bf16.gmra.mrb[0].mxu0 %v4208
      %v4893 = vpop.f32.mrb[0].mxu0
      %v4894 = vadd.f32 %v4701, %v4893
      %v4895 = vpop.f32.mrb[0].mxu0
      %v4896 = vadd.f32 %v4703, %v4895
      %v4897 = vpop.f32.mrb[0].mxu0
      %v4898 = vadd.f32 %v4705, %v4897
      %v4899 = vpop.f32.mrb[0].mxu0
      %v4900 = vadd.f32 %v4707, %v4899
      %4901 = vmatprep.mubr.bf16.mxu0 %v4213
      %4902 = vmatmul.mubr.bf16.gmra.mrb[0].mxu0 %v4212
      %v4903 = vpop.f32.mrb[0].mxu0
      %v4904 = vadd.f32 %v4711, %v4903
      %v4905 = vpop.f32.mrb[0].mxu0
      %v4906 = vadd.f32 %v4713, %v4905
      %v4907 = vpop.f32.mrb[0].mxu0
      %v4908 = vadd.f32 %v4715, %v4907
      %v4909 = vpop.f32.mrb[0].mxu0
      %v4910 = vadd.f32 %v4717, %v4909
      %4911 = vmatprep.mubr.bf16.mxu0 %v4217
      %4912 = vmatmul.mubr.bf16.gmra.mrb[0].mxu0 %v4216
      %v4913 = vpop.f32.mrb[0].mxu0
      %v4914 = vadd.f32 %v4721, %v4913
      %v4915 = vpop.f32.mrb[0].mxu0
      %v4916 = vadd.f32 %v4723, %v4915
      %v4917 = vpop.f32.mrb[0].mxu0
      %v4918 = vadd.f32 %v4725, %v4917
      %v4919 = vpop.f32.mrb[0].mxu0
      %v4920 = vadd.f32 %v4727, %v4919
      %4921 = vmatprep.mubr.bf16.mxu0 %v4221
      %4922 = vmatmul.mubr.bf16.gmra.mrb[0].mxu0 %v4220
      %v4923 = vpop.f32.mrb[0].mxu0
      %v4924 = vadd.f32 %v4731, %v4923
      %v4925 = vpop.f32.mrb[0].mxu0
      %v4926 = vadd.f32 %v4733, %v4925
      %v4927 = vpop.f32.mrb[0].mxu0
      %v4928 = vadd.f32 %v4735, %v4927
      %v4929 = vpop.f32.mrb[0].mxu0
      %v4930 = vadd.f32 %v4737, %v4929
      %4931 = vmatprep.mubr.bf16.mxu0 %v4225
      %4932 = vmatmul.mubr.bf16.gmra.mrb[0].mxu0 %v4224
      %v4933 = vpop.f32.mrb[0].mxu0
      %v4934 = vadd.f32 %v4741, %v4933
      %v4935 = vpop.f32.mrb[0].mxu0
      %v4936 = vadd.f32 %v4743, %v4935
      %v4937 = vpop.f32.mrb[0].mxu0
      %v4938 = vadd.f32 %v4745, %v4937
      %v4939 = vpop.f32.mrb[0].mxu0
      %v4940 = vadd.f32 %v4747, %v4939
      %4941 = vmatprep.mubr.bf16.mxu0 %v4229
      %4942 = vmatmul.mubr.bf16.gmra.mrb[0].mxu0 %v4228
      %v4943 = vpop.f32.mrb[0].mxu0
      %v4944 = vadd.f32 %v4751, %v4943
      %v4945 = vpop.f32.mrb[0].mxu0
      %v4946 = vadd.f32 %v4753, %v4945
      %v4947 = vpop.f32.mrb[0].mxu0
      %v4948 = vadd.f32 %v4755, %v4947
      %v4949 = vpop.f32.mrb[0].mxu0
      %v4950 = vadd.f32 %v4757, %v4949
      %4951 = vmatprep.mubr.bf16.mxu0 %v4233
      %4952 = vmatmul.mubr.bf16.gmra.mrb[0].mxu0 %v4232
      %v4953 = vpop.f32.mrb[0].mxu0
      %v4954 = vadd.f32 %v4761, %v4953
      %v4955 = vpop.f32.mrb[0].mxu0
      %v4956 = vadd.f32 %v4763, %v4955
      %v4957 = vpop.f32.mrb[0].mxu0
      %v4958 = vadd.f32 %v4765, %v4957
      %v4959 = vpop.f32.mrb[0].mxu0
      %v4960 = vadd.f32 %v4767, %v4959
      %4961 = vmatprep.mubr.bf16.mxu0 %v4237
      %4962 = vmatmul.mubr.bf16.gmra.mrb[0].mxu0 %v4236
      %v4963 = vpop.f32.mrb[0].mxu0
      %v4964 = vadd.f32 %v4771, %v4963
      %v4965 = vpop.f32.mrb[0].mxu0
      %v4966 = vadd.f32 %v4773, %v4965
      %v4967 = vpop.f32.mrb[0].mxu0
      %v4968 = vadd.f32 %v4775, %v4967
      %v4969 = vpop.f32.mrb[0].mxu0
      %v4970 = vadd.f32 %v4777, %v4969
      %4971 = vmatprep.mubr.bf16.mxu0 %v4241
      %4972 = vmatmul.mubr.bf16.gmra.mrb[0].mxu0 %v4240
      %v4973 = vpop.f32.mrb[0].mxu0
      %v4974 = vadd.f32 %v4781, %v4973
      %v4975 = vpop.f32.mrb[0].mxu0
      %v4976 = vadd.f32 %v4783, %v4975
      %v4977 = vpop.f32.mrb[0].mxu0
      %v4978 = vadd.f32 %v4785, %v4977
      %v4979 = vpop.f32.mrb[0].mxu0
      %v4980 = vadd.f32 %v4787, %v4979
      %4981 = vmatprep.mubr.bf16.mxu0 %v4245
      %4982 = vmatmul.mubr.bf16.gmra.mrb[0].mxu0 %v4244
      %v4983 = vpop.f32.mrb[0].mxu0
      %v4984 = vadd.f32 %v4791, %v4983
      %v4985 = vpop.f32.mrb[0].mxu0
      %v4986 = vadd.f32 %v4793, %v4985
      %v4987 = vpop.f32.mrb[0].mxu0
      %v4988 = vadd.f32 %v4795, %v4987
      %v4989 = vpop.f32.mrb[0].mxu0
      %v4990 = vadd.f32 %v4797, %v4989
      %4991 = vmatprep.mubr.bf16.mxu0 %v4249
      %4992 = vmatmul.mubr.bf16.gmra.mrb[0].mxu0 %v4248
      %v4993 = vpop.f32.mrb[0].mxu0
      %v4994 = vadd.f32 %v4801, %v4993
      %v4995 = vpop.f32.mrb[0].mxu0
      %v4996 = vadd.f32 %v4803, %v4995
      %v4997 = vpop.f32.mrb[0].mxu0
      %v4998 = vadd.f32 %v4805, %v4997
      %v4999 = vpop.f32.mrb[0].mxu0
      %v5000 = vadd.f32 %v4807, %v4999
      %5001 = vmatprep.mubr.bf16.mxu0 %v4253
      %5002 = vmatmul.mubr.bf16.gmra.mrb[0].mxu0 %v4252
      %v5003 = vpop.f32.mrb[0].mxu0
      %v5004 = vadd.f32 %v4811, %v5003
      %v5005 = vpop.f32.mrb[0].mxu0
      %v5006 = vadd.f32 %v4813, %v5005
      %v5007 = vpop.f32.mrb[0].mxu0
      %v5008 = vadd.f32 %v4815, %v5007
      %v5009 = vpop.f32.mrb[0].mxu0
      %v5010 = vadd.f32 %v4817, %v5009
      %5011 = vmatprep.mubr.bf16.mxu0 %v4257
      %5012 = vmatmul.mubr.bf16.gmra.mrb[0].mxu0 %v4256
      %v5013 = vpop.f32.mrb[0].mxu0
      %v5014 = vadd.f32 %v4821, %v5013
      %v5015 = vpop.f32.mrb[0].mxu0
      %v5016 = vadd.f32 %v4823, %v5015
      %v5017 = vpop.f32.mrb[0].mxu0
      %v5018 = vadd.f32 %v4825, %v5017
      %v5019 = vpop.f32.mrb[0].mxu0
      %v5020 = vadd.f32 %v4827, %v5019
      %5021 = vmatprep.mubr.bf16.mxu0 %v4261
      %5022 = vmatmul.mubr.bf16.gmra.mrb[0].mxu0 %v4260
      %v5023 = vpop.f32.mrb[0].mxu0
      %v5024 = vadd.f32 %v4831, %v5023
      %v5025 = vpop.f32.mrb[0].mxu0
      %v5026 = vadd.f32 %v4833, %v5025
      %v5027 = vpop.f32.mrb[0].mxu0
      %v5028 = vadd.f32 %v4835, %v5027
      %v5029 = vpop.f32.mrb[0].mxu0
      %v5030 = vadd.f32 %v4837, %v5029
      %5031 = vmatprep.mubr.bf16.mxu0 %v4265
      %5032 = vmatmul.mubr.bf16.gmra.mrb[0].mxu0 %v4264
      %v5033 = vpop.f32.mrb[0].mxu0
      %v5034 = vadd.f32 %v4841, %v5033
      %v5035 = vpop.f32.mrb[0].mxu0
      %v5036 = vadd.f32 %v4843, %v5035
      %v5037 = vpop.f32.mrb[0].mxu0
      %v5038 = vadd.f32 %v4845, %v5037
      %v5039 = vpop.f32.mrb[0].mxu0
      %v5040 = vadd.f32 %v4847, %v5039
      %5041 = vmatprep.mubr.bf16.mxu0 %v4269
      %5042 = vmatmul.mubr.bf16.gmra.mrb[0].mxu0 %v4268
      %v5043 = vpop.f32.mrb[0].mxu0
      %v5044 = vadd.f32 %v4851, %v5043
      %v5045 = vpop.f32.mrb[0].mxu0
      %v5046 = vadd.f32 %v4853, %v5045
      %v5047 = vpop.f32.mrb[0].mxu0
      %v5048 = vadd.f32 %v4855, %v5047
      %v5049 = vpop.f32.mrb[0].mxu0
      %v5050 = vadd.f32 %v4857, %v5049
      %5051 = vdwg.mxu0
      %v5052 = vmax.f32 %v4894, 0.0
      %v5053 = vmax.f32 %v4896, 0.0
      %v5054 = vmax.f32 %v4898, 0.0
      %v5055 = vmax.f32 %v4900, 0.0
      %v5056 = vmax.f32 %v4904, 0.0
      %v5057 = vmax.f32 %v4906, 0.0
      %v5058 = vmax.f32 %v4908, 0.0
      %v5059 = vmax.f32 %v4910, 0.0
      %v5060 = vmax.f32 %v4914, 0.0
      %v5061 = vmax.f32 %v4916, 0.0
      %v5062 = vmax.f32 %v4918, 0.0
      %v5063 = vmax.f32 %v4920, 0.0
      %v5064 = vmax.f32 %v4924, 0.0
      %v5065 = vmax.f32 %v4926, 0.0
      %v5066 = vmax.f32 %v4928, 0.0
      %v5067 = vmax.f32 %v4930, 0.0
      %v5068 = vmax.f32 %v4934, 0.0
      %v5069 = vmax.f32 %v4936, 0.0
      %v5070 = vmax.f32 %v4938, 0.0
      %v5071 = vmax.f32 %v4940, 0.0
      %v5072 = vmax.f32 %v4944, 0.0
      %v5073 = vmax.f32 %v4946, 0.0
      %v5074 = vmax.f32 %v4948, 0.0
      %v5075 = vmax.f32 %v4950, 0.0
      %v5076 = vmax.f32 %v4954, 0.0
      %v5077 = vmax.f32 %v4956, 0.0
      %v5078 = vmax.f32 %v4958, 0.0
      %v5079 = vmax.f32 %v4960, 0.0
      %v5080 = vmax.f32 %v4964, 0.0
      %v5081 = vmax.f32 %v4966, 0.0
      %v5082 = vmax.f32 %v4968, 0.0
      %v5083 = vmax.f32 %v4970, 0.0
      %v5084 = vmax.f32 %v4974, 0.0
      %v5085 = vmax.f32 %v4976, 0.0
      %v5086 = vmax.f32 %v4978, 0.0
      %v5087 = vmax.f32 %v4980, 0.0
      %v5088 = vmax.f32 %v4984, 0.0
      %v5089 = vmax.f32 %v4986, 0.0
      %v5090 = vmax.f32 %v4988, 0.0
      %v5091 = vmax.f32 %v4990, 0.0
      %v5092 = vmax.f32 %v4994, 0.0
      %v5093 = vmax.f32 %v4996, 0.0
      %v5094 = vmax.f32 %v4998, 0.0
      %v5095 = vmax.f32 %v5000, 0.0
      %v5096 = vmax.f32 %v5004, 0.0
      %v5097 = vmax.f32 %v5006, 0.0
      %v5098 = vmax.f32 %v5008, 0.0
      %v5099 = vmax.f32 %v5010, 0.0
      %v5100 = vmax.f32 %v5014, 0.0
      %v5101 = vmax.f32 %v5016, 0.0
      %v5102 = vmax.f32 %v5018, 0.0
      %v5103 = vmax.f32 %v5020, 0.0
      %v5104 = vmax.f32 %v5024, 0.0
      %v5105 = vmax.f32 %v5026, 0.0
      %v5106 = vmax.f32 %v5028, 0.0
      %v5107 = vmax.f32 %v5030, 0.0
      %v5108 = vmax.f32 %v5034, 0.0
      %v5109 = vmax.f32 %v5036, 0.0
      %v5110 = vmax.f32 %v5038, 0.0
      %v5111 = vmax.f32 %v5040, 0.0
      %v5112 = vmax.f32 %v5044, 0.0
      %v5113 = vmax.f32 %v5046, 0.0
      %v5114 = vmax.f32 %v5048, 0.0
      %v5115 = vmax.f32 %v5050, 0.0
      %v5116 = vpack.c.bf16 %v5054, %v5052
      %v5117 = vpack.c.bf16 %v5055, %v5053
      %v5118 = vpack.c.bf16 %v5058, %v5056
      %v5119 = vpack.c.bf16 %v5059, %v5057
      %v5120 = vpack.c.bf16 %v5062, %v5060
      %v5121 = vpack.c.bf16 %v5063, %v5061
      %v5122 = vpack.c.bf16 %v5066, %v5064
      %v5123 = vpack.c.bf16 %v5067, %v5065
      %v5124 = vpack.c.bf16 %v5070, %v5068
      %v5125 = vpack.c.bf16 %v5071, %v5069
      %v5126 = vpack.c.bf16 %v5074, %v5072
      %v5127 = vpack.c.bf16 %v5075, %v5073
      %v5128 = vpack.c.bf16 %v5078, %v5076
      %v5129 = vpack.c.bf16 %v5079, %v5077
      %v5130 = vpack.c.bf16 %v5082, %v5080
      %v5131 = vpack.c.bf16 %v5083, %v5081
      %v5132 = vpack.c.bf16 %v5086, %v5084
      %v5133 = vpack.c.bf16 %v5087, %v5085
      %v5134 = vpack.c.bf16 %v5090, %v5088
      %v5135 = vpack.c.bf16 %v5091, %v5089
      %v5136 = vpack.c.bf16 %v5094, %v5092
      %v5137 = vpack.c.bf16 %v5095, %v5093
      %v5138 = vpack.c.bf16 %v5098, %v5096
      %v5139 = vpack.c.bf16 %v5099, %v5097
      %v5140 = vpack.c.bf16 %v5102, %v5100
      %v5141 = vpack.c.bf16 %v5103, %v5101
      %v5142 = vpack.c.bf16 %v5106, %v5104
      %v5143 = vpack.c.bf16 %v5107, %v5105
      %v5144 = vpack.c.bf16 %v5110, %v5108
      %v5145 = vpack.c.bf16 %v5111, %v5109
      %v5146 = vpack.c.bf16 %v5114, %v5112
      %v5147 = vpack.c.bf16 %v5115, %v5113
      %v5148 = vld [vmem:[%s3] sm:$0xf]
      %v5149 = vld [vmem:[%s3 + $0x4] sm:$0xf]
      %v5150 = vld [vmem:[%s3 + $0x8] sm:$0xf]
      %v5151 = vld [vmem:[%s3 + $0xc] sm:$0xf]
      %v5152 = vld [vmem:[%s3 + $0x10] sm:$0xf]
      %v5153 = vld [vmem:[%s3 + $0x14] sm:$0xf]
      %v5154 = vld [vmem:[%s3 + $0x18] sm:$0xf]
      %v5155 = vld [vmem:[%s3 + $0x1c] sm:$0xf]
      %v5156 = vld [vmem:[%s3 + $0x20] sm:$0xf]
      %v5157 = vld [vmem:[%s3 + $0x24] sm:$0xf]
      %v5158 = vld [vmem:[%s3 + $0x28] sm:$0xf]
      %v5159 = vld [vmem:[%s3 + $0x2c] sm:$0xf]
      %v5160 = vld [vmem:[%s3 + $0x30] sm:$0xf]
      %v5161 = vld [vmem:[%s3 + $0x34] sm:$0xf]
      %v5162 = vld [vmem:[%s3 + $0x38] sm:$0xf]
      %v5163 = vld [vmem:[%s3 + $0x3c] sm:$0xf]
      %v5164 = vld [vmem:[%s3 + $0x40] sm:$0xf]
      %v5165 = vld [vmem:[%s3 + $0x44] sm:$0xf]
      %v5166 = vld [vmem:[%s3 + $0x48] sm:$0xf]
      %v5167 = vld [vmem:[%s3 + $0x4c] sm:$0xf]
      %v5168 = vld [vmem:[%s3 + $0x50] sm:$0xf]
      %v5169 = vld [vmem:[%s3 + $0x54] sm:$0xf]
      %v5170 = vld [vmem:[%s3 + $0x58] sm:$0xf]
      %v5171 = vld [vmem:[%s3 + $0x5c] sm:$0xf]
      %v5172 = vld [vmem:[%s3 + $0x60] sm:$0xf]
      %v5173 = vld [vmem:[%s3 + $0x64] sm:$0xf]
      %v5174 = vld [vmem:[%s3 + $0x68] sm:$0xf]
      %v5175 = vld [vmem:[%s3 + $0x6c] sm:$0xf]
      %v5176 = vld [vmem:[%s3 + $0x70] sm:$0xf]
      %v5177 = vld [vmem:[%s3 + $0x74] sm:$0xf]
      %v5178 = vld [vmem:[%s3 + $0x78] sm:$0xf]
      %v5179 = vld [vmem:[%s3 + $0x7c] sm:$0xf]
      %v5180 = vld [vmem:[%s11] sm:$0x1]
      %v5182 = vlaneseq
      %v5183 = vshrl.u32 %v5182, 7
      %v5184 = vsub.s32 0, %v5183
      %v5185 = vrot.slane %v5180, %v5184
      %v5219 = vunpack.c.l.b16 %v5148
      %v5220 = vunpack.c.l.b16 %v5149
      %v5221 = vunpack.c.l.b16 %v5150
      %v5222 = vunpack.c.l.b16 %v5151
      %v5223 = vunpack.c.l.b16 %v5152
      %v5224 = vunpack.c.l.b16 %v5153
      %v5225 = vunpack.c.l.b16 %v5154
      %v5226 = vunpack.c.l.b16 %v5155
      %v5227 = vunpack.c.l.b16 %v5156
      %v5228 = vunpack.c.l.b16 %v5157
      %v5229 = vunpack.c.l.b16 %v5158
      %v5230 = vunpack.c.l.b16 %v5159
      %v5231 = vunpack.c.l.b16 %v5160
      %v5232 = vunpack.c.l.b16 %v5161
      %v5233 = vunpack.c.l.b16 %v5162
      %v5234 = vunpack.c.l.b16 %v5163
      %v5235 = vunpack.c.l.b16 %v5164
      %v5236 = vunpack.c.l.b16 %v5165
      %v5237 = vunpack.c.l.b16 %v5166
      %v5238 = vunpack.c.l.b16 %v5167
      %v5239 = vunpack.c.l.b16 %v5168
      %v5240 = vunpack.c.l.b16 %v5169
      %v5241 = vunpack.c.l.b16 %v5170
      %v5242 = vunpack.c.l.b16 %v5171
      %v5243 = vunpack.c.l.b16 %v5172
      %v5244 = vunpack.c.l.b16 %v5173
      %v5245 = vunpack.c.l.b16 %v5174
      %v5246 = vunpack.c.l.b16 %v5175
      %v5247 = vunpack.c.l.b16 %v5176
      %v5248 = vunpack.c.l.b16 %v5177
      %v5249 = vunpack.c.l.b16 %v5178
      %v5250 = vunpack.c.l.b16 %v5179
      %v5251 = vpack.c.b16 %v5220, %v5219
      %v5252 = vpack.c.b16 %v5222, %v5221
      %v5253 = vpack.c.b16 %v5224, %v5223
      %v5254 = vpack.c.b16 %v5226, %v5225
      %v5255 = vpack.c.b16 %v5228, %v5227
      %v5256 = vpack.c.b16 %v5230, %v5229
      %v5257 = vpack.c.b16 %v5232, %v5231
      %v5258 = vpack.c.b16 %v5234, %v5233
      %v5259 = vpack.c.b16 %v5236, %v5235
      %v5260 = vpack.c.b16 %v5238, %v5237
      %v5261 = vpack.c.b16 %v5240, %v5239
      %v5262 = vpack.c.b16 %v5242, %v5241
      %v5263 = vpack.c.b16 %v5244, %v5243
      %v5264 = vpack.c.b16 %v5246, %v5245
      %v5265 = vpack.c.b16 %v5248, %v5247
      %v5266 = vpack.c.b16 %v5250, %v5249
      %5283 = vmatprep.subr.bf16.mxu0 0
      %5284 = vmatpush1.bf16.msra.mxu0 %v5251
      %5285 = vmatprep.subr.bf16.mxu0 0
      %5286 = vmatpush1.bf16.msra.mxu0 %v5252
      %5287 = vmatprep.subr.bf16.mxu0 0
      %5288 = vmatpush1.bf16.msra.mxu0 %v5253
      %5289 = vmatprep.subr.bf16.mxu0 0
      %5290 = vmatpush1.bf16.msra.mxu0 %v5254
      %5291 = vmatprep.subr.bf16.mxu0 0
      %5292 = vmatpush1.bf16.msra.mxu0 %v5255
      %5293 = vmatprep.subr.bf16.mxu0 0
      %5294 = vmatpush1.bf16.msra.mxu0 %v5256
      %5295 = vmatprep.subr.bf16.mxu0 0
      %5296 = vmatpush1.bf16.msra.mxu0 %v5257
      %5297 = vmatprep.subr.bf16.mxu0 0
      %5298 = vmatpush1.bf16.msra.mxu0 %v5258
      %5299 = vmatprep.subr.bf16.mxu0 0
      %5300 = vmatpush1.bf16.msra.mxu0 %v5259
      %5301 = vmatprep.subr.bf16.mxu0 0
      %5302 = vmatpush1.bf16.msra.mxu0 %v5260
      %5303 = vmatprep.subr.bf16.mxu0 0
      %5304 = vmatpush1.bf16.msra.mxu0 %v5261
      %5305 = vmatprep.subr.bf16.mxu0 0
      %5306 = vmatpush1.bf16.msra.mxu0 %v5262
      %5307 = vmatprep.subr.bf16.mxu0 0
      %5308 = vmatpush1.bf16.msra.mxu0 %v5263
      %5309 = vmatprep.subr.bf16.mxu0 0
      %5310 = vmatpush1.bf16.msra.mxu0 %v5264
      %5311 = vmatprep.subr.bf16.mxu0 0
      %5312 = vmatpush1.bf16.msra.mxu0 %v5265
      %5313 = vmatprep.subr.bf16.mxu0 0
      %5314 = vmatpush1.bf16.msra.mxu0 %v5266
      %5315 = vmatprep.mubr.bf16.mxu0 %v5117
      %5316 = vmatmul.mubr.bf16.gmra.mrb[0].mxu0 %v5116
      %v5317 = vpop.f32.mrb[0].mxu0
      %v5318 = vadd.f32 %v5185, %v5317
      %v5319 = vpop.f32.mrb[0].mxu0
      %v5320 = vpop.f32.mrb[0].mxu0
      %v5321 = vadd.f32 %v5185, %v5320
      %v5322 = vpop.f32.mrb[0].mxu0
      %5323 = vmatprep.mubr.bf16.mxu0 %v5119
      %5324 = vmatmul.mubr.bf16.gmra.mrb[0].mxu0 %v5118
      %v5325 = vpop.f32.mrb[0].mxu0
      %v5326 = vadd.f32 %v5185, %v5325
      %v5327 = vpop.f32.mrb[0].mxu0
      %v5328 = vpop.f32.mrb[0].mxu0
      %v5329 = vadd.f32 %v5185, %v5328
      %v5330 = vpop.f32.mrb[0].mxu0
      %5331 = vmatprep.mubr.bf16.mxu0 %v5121
      %5332 = vmatmul.mubr.bf16.gmra.mrb[0].mxu0 %v5120
      %v5333 = vpop.f32.mrb[0].mxu0
      %v5334 = vadd.f32 %v5185, %v5333
      %v5335 = vpop.f32.mrb[0].mxu0
      %v5336 = vpop.f32.mrb[0].mxu0
      %v5337 = vadd.f32 %v5185, %v5336
      %v5338 = vpop.f32.mrb[0].mxu0
      %5339 = vmatprep.mubr.bf16.mxu0 %v5123
      %5340 = vmatmul.mubr.bf16.gmra.mrb[0].mxu0 %v5122
      %v5341 = vpop.f32.mrb[0].mxu0
      %v5342 = vadd.f32 %v5185, %v5341
      %v5343 = vpop.f32.mrb[0].mxu0
      %v5344 = vpop.f32.mrb[0].mxu0
      %v5345 = vadd.f32 %v5185, %v5344
      %v5346 = vpop.f32.mrb[0].mxu0
      %5347 = vmatprep.mubr.bf16.mxu0 %v5125
      %5348 = vmatmul.mubr.bf16.gmra.mrb[0].mxu0 %v5124
      %v5349 = vpop.f32.mrb[0].mxu0
      %v5350 = vadd.f32 %v5185, %v5349
      %v5351 = vpop.f32.mrb[0].mxu0
      %v5352 = vpop.f32.mrb[0].mxu0
      %v5353 = vadd.f32 %v5185, %v5352
      %v5354 = vpop.f32.mrb[0].mxu0
      %5355 = vmatprep.mubr.bf16.mxu0 %v5127
      %5356 = vmatmul.mubr.bf16.gmra.mrb[0].mxu0 %v5126
      %v5357 = vpop.f32.mrb[0].mxu0
      %v5358 = vadd.f32 %v5185, %v5357
      %v5359 = vpop.f32.mrb[0].mxu0
      %v5360 = vpop.f32.mrb[0].mxu0
      %v5361 = vadd.f32 %v5185, %v5360
      %v5362 = vpop.f32.mrb[0].mxu0
      %5363 = vmatprep.mubr.bf16.mxu0 %v5129
      %5364 = vmatmul.mubr.bf16.gmra.mrb[0].mxu0 %v5128
      %v5365 = vpop.f32.mrb[0].mxu0
      %v5366 = vadd.f32 %v5185, %v5365
      %v5367 = vpop.f32.mrb[0].mxu0
      %v5368 = vpop.f32.mrb[0].mxu0
      %v5369 = vadd.f32 %v5185, %v5368
      %v5370 = vpop.f32.mrb[0].mxu0
      %5371 = vmatprep.mubr.bf16.mxu0 %v5131
      %5372 = vmatmul.mubr.bf16.gmra.mrb[0].mxu0 %v5130
      %v5373 = vpop.f32.mrb[0].mxu0
      %v5374 = vadd.f32 %v5185, %v5373
      %v5375 = vpop.f32.mrb[0].mxu0
      %v5376 = vpop.f32.mrb[0].mxu0
      %v5377 = vadd.f32 %v5185, %v5376
      %v5378 = vpop.f32.mrb[0].mxu0
      %5379 = vmatprep.mubr.bf16.mxu0 %v5133
      %5380 = vmatmul.mubr.bf16.gmra.mrb[0].mxu0 %v5132
      %v5381 = vpop.f32.mrb[0].mxu0
      %v5382 = vadd.f32 %v5185, %v5381
      %v5383 = vpop.f32.mrb[0].mxu0
      %v5384 = vpop.f32.mrb[0].mxu0
      %v5385 = vadd.f32 %v5185, %v5384
      %v5386 = vpop.f32.mrb[0].mxu0
      %5387 = vmatprep.mubr.bf16.mxu0 %v5135
      %5388 = vmatmul.mubr.bf16.gmra.mrb[0].mxu0 %v5134
      %v5389 = vpop.f32.mrb[0].mxu0
      %v5390 = vadd.f32 %v5185, %v5389
      %v5391 = vpop.f32.mrb[0].mxu0
      %v5392 = vpop.f32.mrb[0].mxu0
      %v5393 = vadd.f32 %v5185, %v5392
      %v5394 = vpop.f32.mrb[0].mxu0
      %5395 = vmatprep.mubr.bf16.mxu0 %v5137
      %5396 = vmatmul.mubr.bf16.gmra.mrb[0].mxu0 %v5136
      %v5397 = vpop.f32.mrb[0].mxu0
      %v5398 = vadd.f32 %v5185, %v5397
      %v5399 = vpop.f32.mrb[0].mxu0
      %v5400 = vpop.f32.mrb[0].mxu0
      %v5401 = vadd.f32 %v5185, %v5400
      %v5402 = vpop.f32.mrb[0].mxu0
      %5403 = vmatprep.mubr.bf16.mxu0 %v5139
      %5404 = vmatmul.mubr.bf16.gmra.mrb[0].mxu0 %v5138
      %v5405 = vpop.f32.mrb[0].mxu0
      %v5406 = vadd.f32 %v5185, %v5405
      %v5407 = vpop.f32.mrb[0].mxu0
      %v5408 = vpop.f32.mrb[0].mxu0
      %v5409 = vadd.f32 %v5185, %v5408
      %v5410 = vpop.f32.mrb[0].mxu0
      %5411 = vmatprep.mubr.bf16.mxu0 %v5141
      %5412 = vmatmul.mubr.bf16.gmra.mrb[0].mxu0 %v5140
      %v5413 = vpop.f32.mrb[0].mxu0
      %v5414 = vadd.f32 %v5185, %v5413
      %v5415 = vpop.f32.mrb[0].mxu0
      %v5416 = vpop.f32.mrb[0].mxu0
      %v5417 = vadd.f32 %v5185, %v5416
      %v5418 = vpop.f32.mrb[0].mxu0
      %5419 = vmatprep.mubr.bf16.mxu0 %v5143
      %5420 = vmatmul.mubr.bf16.gmra.mrb[0].mxu0 %v5142
      %v5421 = vpop.f32.mrb[0].mxu0
      %v5422 = vadd.f32 %v5185, %v5421
      %v5423 = vpop.f32.mrb[0].mxu0
      %v5424 = vpop.f32.mrb[0].mxu0
      %v5425 = vadd.f32 %v5185, %v5424
      %v5426 = vpop.f32.mrb[0].mxu0
      %5427 = vmatprep.mubr.bf16.mxu0 %v5145
      %5428 = vmatmul.mubr.bf16.gmra.mrb[0].mxu0 %v5144
      %v5429 = vpop.f32.mrb[0].mxu0
      %v5430 = vadd.f32 %v5185, %v5429
      %v5431 = vpop.f32.mrb[0].mxu0
      %v5432 = vpop.f32.mrb[0].mxu0
      %v5433 = vadd.f32 %v5185, %v5432
      %v5434 = vpop.f32.mrb[0].mxu0
      %5435 = vmatprep.mubr.bf16.mxu0 %v5147
      %5436 = vmatmul.mubr.bf16.gmra.mrb[0].mxu0 %v5146
      %v5437 = vpop.f32.mrb[0].mxu0
      %v5438 = vadd.f32 %v5185, %v5437
      %v5439 = vpop.f32.mrb[0].mxu0
      %v5440 = vpop.f32.mrb[0].mxu0
      %v5441 = vadd.f32 %v5185, %v5440
      %v5442 = vpop.f32.mrb[0].mxu0
      %5443 = vdwg.mxu0
      %v5444 = vmax.f32 %v5318, 0.0
      %v5445 = vmax.f32 %v5321, 0.0
      %v5446 = vmax.f32 %v5326, 0.0
      %v5447 = vmax.f32 %v5329, 0.0
      %v5448 = vmax.f32 %v5334, 0.0
      %v5449 = vmax.f32 %v5337, 0.0
      %v5450 = vmax.f32 %v5342, 0.0
      %v5451 = vmax.f32 %v5345, 0.0
      %v5452 = vmax.f32 %v5350, 0.0
      %v5453 = vmax.f32 %v5353, 0.0
      %v5454 = vmax.f32 %v5358, 0.0
      %v5455 = vmax.f32 %v5361, 0.0
      %v5456 = vmax.f32 %v5366, 0.0
      %v5457 = vmax.f32 %v5369, 0.0
      %v5458 = vmax.f32 %v5374, 0.0
      %v5459 = vmax.f32 %v5377, 0.0
      %v5460 = vmax.f32 %v5382, 0.0
      %v5461 = vmax.f32 %v5385, 0.0
      %v5462 = vmax.f32 %v5390, 0.0
      %v5463 = vmax.f32 %v5393, 0.0
      %v5464 = vmax.f32 %v5398, 0.0
      %v5465 = vmax.f32 %v5401, 0.0
      %v5466 = vmax.f32 %v5406, 0.0
      %v5467 = vmax.f32 %v5409, 0.0
      %v5468 = vmax.f32 %v5414, 0.0
      %v5469 = vmax.f32 %v5417, 0.0
      %v5470 = vmax.f32 %v5422, 0.0
      %v5471 = vmax.f32 %v5425, 0.0
      %v5472 = vmax.f32 %v5430, 0.0
      %v5473 = vmax.f32 %v5433, 0.0
      %v5474 = vmax.f32 %v5438, 0.0
      %v5475 = vmax.f32 %v5441, 0.0
      %v5476 = vpack.c.bf16 %v5445, %v5444
      %v5477 = vpack.c.bf16 %v5447, %v5446
      %v5478 = vpack.c.bf16 %v5449, %v5448
      %v5479 = vpack.c.bf16 %v5451, %v5450
      %v5480 = vpack.c.bf16 %v5453, %v5452
      %v5481 = vpack.c.bf16 %v5455, %v5454
      %v5482 = vpack.c.bf16 %v5457, %v5456
      %v5483 = vpack.c.bf16 %v5459, %v5458
      %v5484 = vpack.c.bf16 %v5461, %v5460
      %v5485 = vpack.c.bf16 %v5463, %v5462
      %v5486 = vpack.c.bf16 %v5465, %v5464
      %v5487 = vpack.c.bf16 %v5467, %v5466
      %v5488 = vpack.c.bf16 %v5469, %v5468
      %v5489 = vpack.c.bf16 %v5471, %v5470
      %v5490 = vpack.c.bf16 %v5473, %v5472
      %v5491 = vpack.c.bf16 %v5475, %v5474
      %v5492 = vld [vmem:[%s4] sm:$0xf]
      %v5493 = vld [vmem:[%s4 + $0x4] sm:$0xf]
      %v5494 = vld [vmem:[%s4 + $0x8] sm:$0xf]
      %v5495 = vld [vmem:[%s4 + $0xc] sm:$0xf]
      %v5496 = vld [vmem:[%s4 + $0x10] sm:$0xf]
      %v5497 = vld [vmem:[%s4 + $0x14] sm:$0xf]
      %v5498 = vld [vmem:[%s4 + $0x18] sm:$0xf]
      %v5499 = vld [vmem:[%s4 + $0x1c] sm:$0xf]
      %v5500 = vld [vmem:[%s4 + $0x20] sm:$0xf]
      %v5501 = vld [vmem:[%s4 + $0x24] sm:$0xf]
      %v5502 = vld [vmem:[%s4 + $0x28] sm:$0xf]
      %v5503 = vld [vmem:[%s4 + $0x2c] sm:$0xf]
      %v5504 = vld [vmem:[%s4 + $0x30] sm:$0xf]
      %v5505 = vld [vmem:[%s4 + $0x34] sm:$0xf]
      %v5506 = vld [vmem:[%s4 + $0x38] sm:$0xf]
      %v5507 = vld [vmem:[%s4 + $0x3c] sm:$0xf]
      %v5508 = vld [vmem:[%s12] sm:$0x1]
      %v5510 = vlaneseq
      %v5511 = vshrl.u32 %v5510, 7
      %v5512 = vsub.s32 0, %v5511
      %v5513 = vrot.slane %v5508, %v5512
      %v5531 = vunpack.c.l.b16 %v5492
      %v5532 = vunpack.c.l.b16 %v5493
      %v5533 = vunpack.c.l.b16 %v5494
      %v5534 = vunpack.c.l.b16 %v5495
      %v5535 = vunpack.c.l.b16 %v5496
      %v5536 = vunpack.c.l.b16 %v5497
      %v5537 = vunpack.c.l.b16 %v5498
      %v5538 = vunpack.c.l.b16 %v5499
      %v5539 = vunpack.c.l.b16 %v5500
      %v5540 = vunpack.c.l.b16 %v5501
      %v5541 = vunpack.c.l.b16 %v5502
      %v5542 = vunpack.c.l.b16 %v5503
      %v5543 = vunpack.c.l.b16 %v5504
      %v5544 = vunpack.c.l.b16 %v5505
      %v5545 = vunpack.c.l.b16 %v5506
      %v5546 = vunpack.c.l.b16 %v5507
      %v5547 = vpack.c.b16 %v5532, %v5531
      %v5548 = vpack.c.b16 %v5534, %v5533
      %v5549 = vpack.c.b16 %v5536, %v5535
      %v5550 = vpack.c.b16 %v5538, %v5537
      %v5551 = vpack.c.b16 %v5540, %v5539
      %v5552 = vpack.c.b16 %v5542, %v5541
      %v5553 = vpack.c.b16 %v5544, %v5543
      %v5554 = vpack.c.b16 %v5546, %v5545
      %5563 = vmatprep.subr.bf16.mxu0 0
      %5564 = vmatpush1.bf16.msra.mxu0 %v5547
      %5565 = vmatprep.subr.bf16.mxu0 0
      %5566 = vmatpush1.bf16.msra.mxu0 %v5548
      %5567 = vmatprep.subr.bf16.mxu0 0
      %5568 = vmatpush1.bf16.msra.mxu0 %v5549
      %5569 = vmatprep.subr.bf16.mxu0 0
      %5570 = vmatpush1.bf16.msra.mxu0 %v5550
      %5571 = vmatprep.subr.bf16.mxu0 0
      %5572 = vmatpush1.bf16.msra.mxu0 %v5551
      %5573 = vmatprep.subr.bf16.mxu0 0
      %5574 = vmatpush1.bf16.msra.mxu0 %v5552
      %5575 = vmatprep.subr.bf16.mxu0 0
      %5576 = vmatpush1.bf16.msra.mxu0 %v5553
      %5577 = vmatprep.subr.bf16.mxu0 0
      %5578 = vmatpush1.bf16.msra.mxu0 %v5554
      %5579 = vmatprep.subr.bf16.mxu0 0
      %5580 = vmatpush1.bf16.msra.mxu0 0
      %5581 = vmatprep.subr.bf16.mxu0 0
      %5582 = vmatpush1.bf16.msra.mxu0 0
      %5583 = vmatprep.subr.bf16.mxu0 0
      %5584 = vmatpush1.bf16.msra.mxu0 0
      %5585 = vmatprep.subr.bf16.mxu0 0
      %5586 = vmatpush1.bf16.msra.mxu0 0
      %5587 = vmatprep.subr.bf16.mxu0 0
      %5588 = vmatpush1.bf16.msra.mxu0 0
      %5589 = vmatprep.subr.bf16.mxu0 0
      %5590 = vmatpush1.bf16.msra.mxu0 0
      %5591 = vmatprep.subr.bf16.mxu0 0
      %5592 = vmatpush1.bf16.msra.mxu0 0
      %5593 = vmatprep.subr.bf16.mxu0 0
      %5594 = vmatpush1.bf16.msra.mxu0 0
      %5595 = vmatprep.mubr.bf16.mxu0 0
      %5596 = vmatmul.mubr.bf16.gmra.mrb[0].mxu0 %v5476
      %v5597 = vpop.f32.mrb[0].mxu0
      %v5598 = vadd.f32 %v5513, %v5597
      %v5599 = vpop.f32.mrb[0].mxu0
      %v5600 = vpop.f32.mrb[0].mxu0
      %v5601 = vadd.f32 %v5513, %v5600
      %v5602 = vpop.f32.mrb[0].mxu0
      %5603 = vmatprep.mubr.bf16.mxu0 0
      %5604 = vmatmul.mubr.bf16.gmra.mrb[0].mxu0 %v5477
      %v5605 = vpop.f32.mrb[0].mxu0
      %v5606 = vadd.f32 %v5513, %v5605
      %v5607 = vpop.f32.mrb[0].mxu0
      %v5608 = vpop.f32.mrb[0].mxu0
      %v5609 = vadd.f32 %v5513, %v5608
      %v5610 = vpop.f32.mrb[0].mxu0
      %5611 = vmatprep.mubr.bf16.mxu0 0
      %5612 = vmatmul.mubr.bf16.gmra.mrb[0].mxu0 %v5478
      %v5613 = vpop.f32.mrb[0].mxu0
      %v5614 = vadd.f32 %v5513, %v5613
      %v5615 = vpop.f32.mrb[0].mxu0
      %v5616 = vpop.f32.mrb[0].mxu0
      %v5617 = vadd.f32 %v5513, %v5616
      %v5618 = vpop.f32.mrb[0].mxu0
      %5619 = vmatprep.mubr.bf16.mxu0 0
      %5620 = vmatmul.mubr.bf16.gmra.mrb[0].mxu0 %v5479
      %v5621 = vpop.f32.mrb[0].mxu0
      %v5622 = vadd.f32 %v5513, %v5621
      %v5623 = vpop.f32.mrb[0].mxu0
      %v5624 = vpop.f32.mrb[0].mxu0
      %v5625 = vadd.f32 %v5513, %v5624
      %v5626 = vpop.f32.mrb[0].mxu0
      %5627 = vmatprep.mubr.bf16.mxu0 0
      %5628 = vmatmul.mubr.bf16.gmra.mrb[0].mxu0 %v5480
      %v5629 = vpop.f32.mrb[0].mxu0
      %v5630 = vadd.f32 %v5513, %v5629
      %v5631 = vpop.f32.mrb[0].mxu0
      %v5632 = vpop.f32.mrb[0].mxu0
      %v5633 = vadd.f32 %v5513, %v5632
      %v5634 = vpop.f32.mrb[0].mxu0
      %5635 = vmatprep.mubr.bf16.mxu0 0
      %5636 = vmatmul.mubr.bf16.gmra.mrb[0].mxu0 %v5481
      %v5637 = vpop.f32.mrb[0].mxu0
      %v5638 = vadd.f32 %v5513, %v5637
      %v5639 = vpop.f32.mrb[0].mxu0
      %v5640 = vpop.f32.mrb[0].mxu0
      %v5641 = vadd.f32 %v5513, %v5640
      %v5642 = vpop.f32.mrb[0].mxu0
      %5643 = vmatprep.mubr.bf16.mxu0 0
      %5644 = vmatmul.mubr.bf16.gmra.mrb[0].mxu0 %v5482
      %v5645 = vpop.f32.mrb[0].mxu0
      %v5646 = vadd.f32 %v5513, %v5645
      %v5647 = vpop.f32.mrb[0].mxu0
      %v5648 = vpop.f32.mrb[0].mxu0
      %v5649 = vadd.f32 %v5513, %v5648
      %v5650 = vpop.f32.mrb[0].mxu0
      %5651 = vmatprep.mubr.bf16.mxu0 0
      %5652 = vmatmul.mubr.bf16.gmra.mrb[0].mxu0 %v5483
      %v5653 = vpop.f32.mrb[0].mxu0
      %v5654 = vadd.f32 %v5513, %v5653
      %v5655 = vpop.f32.mrb[0].mxu0
      %v5656 = vpop.f32.mrb[0].mxu0
      %v5657 = vadd.f32 %v5513, %v5656
      %v5658 = vpop.f32.mrb[0].mxu0
      %5659 = vmatprep.mubr.bf16.mxu0 0
      %5660 = vmatmul.mubr.bf16.gmra.mrb[0].mxu0 %v5484
      %v5661 = vpop.f32.mrb[0].mxu0
      %v5662 = vadd.f32 %v5513, %v5661
      %v5663 = vpop.f32.mrb[0].mxu0
      %v5664 = vpop.f32.mrb[0].mxu0
      %v5665 = vadd.f32 %v5513, %v5664
      %v5666 = vpop.f32.mrb[0].mxu0
      %5667 = vmatprep.mubr.bf16.mxu0 0
      %5668 = vmatmul.mubr.bf16.gmra.mrb[0].mxu0 %v5485
      %v5669 = vpop.f32.mrb[0].mxu0
      %v5670 = vadd.f32 %v5513, %v5669
      %v5671 = vpop.f32.mrb[0].mxu0
      %v5672 = vpop.f32.mrb[0].mxu0
      %v5673 = vadd.f32 %v5513, %v5672
      %v5674 = vpop.f32.mrb[0].mxu0
      %5675 = vmatprep.mubr.bf16.mxu0 0
      %5676 = vmatmul.mubr.bf16.gmra.mrb[0].mxu0 %v5486
      %v5677 = vpop.f32.mrb[0].mxu0
      %v5678 = vadd.f32 %v5513, %v5677
      %v5679 = vpop.f32.mrb[0].mxu0
      %v5680 = vpop.f32.mrb[0].mxu0
      %v5681 = vadd.f32 %v5513, %v5680
      %v5682 = vpop.f32.mrb[0].mxu0
      %5683 = vmatprep.mubr.bf16.mxu0 0
      %5684 = vmatmul.mubr.bf16.gmra.mrb[0].mxu0 %v5487
      %v5685 = vpop.f32.mrb[0].mxu0
      %v5686 = vadd.f32 %v5513, %v5685
      %v5687 = vpop.f32.mrb[0].mxu0
      %v5688 = vpop.f32.mrb[0].mxu0
      %v5689 = vadd.f32 %v5513, %v5688
      %v5690 = vpop.f32.mrb[0].mxu0
      %5691 = vmatprep.mubr.bf16.mxu0 0
      %5692 = vmatmul.mubr.bf16.gmra.mrb[0].mxu0 %v5488
      %v5693 = vpop.f32.mrb[0].mxu0
      %v5694 = vadd.f32 %v5513, %v5693
      %v5695 = vpop.f32.mrb[0].mxu0
      %v5696 = vpop.f32.mrb[0].mxu0
      %v5697 = vadd.f32 %v5513, %v5696
      %v5698 = vpop.f32.mrb[0].mxu0
      %5699 = vmatprep.mubr.bf16.mxu0 0
      %5700 = vmatmul.mubr.bf16.gmra.mrb[0].mxu0 %v5489
      %v5701 = vpop.f32.mrb[0].mxu0
      %v5702 = vadd.f32 %v5513, %v5701
      %v5703 = vpop.f32.mrb[0].mxu0
      %v5704 = vpop.f32.mrb[0].mxu0
      %v5705 = vadd.f32 %v5513, %v5704
      %v5706 = vpop.f32.mrb[0].mxu0
      %5707 = vmatprep.mubr.bf16.mxu0 0
      %5708 = vmatmul.mubr.bf16.gmra.mrb[0].mxu0 %v5490
      %v5709 = vpop.f32.mrb[0].mxu0
      %v5710 = vadd.f32 %v5513, %v5709
      %v5711 = vpop.f32.mrb[0].mxu0
      %v5712 = vpop.f32.mrb[0].mxu0
      %v5713 = vadd.f32 %v5513, %v5712
      %v5714 = vpop.f32.mrb[0].mxu0
      %5715 = vmatprep.mubr.bf16.mxu0 0
      %5716 = vmatmul.mubr.bf16.gmra.mrb[0].mxu0 %v5491
      %v5717 = vpop.f32.mrb[0].mxu0
      %v5718 = vadd.f32 %v5513, %v5717
      %v5719 = vpop.f32.mrb[0].mxu0
      %v5720 = vpop.f32.mrb[0].mxu0
      %v5721 = vadd.f32 %v5513, %v5720
      %v5722 = vpop.f32.mrb[0].mxu0
      %5723 = vdwg.mxu0
      %v5724 = vpack.c.bf16 %v5601, %v5598
      %v5725 = vpack.c.bf16 %v5609, %v5606
      %v5726 = vpack.c.bf16 %v5617, %v5614
      %v5727 = vpack.c.bf16 %v5625, %v5622
      %v5728 = vpack.c.bf16 %v5633, %v5630
      %v5729 = vpack.c.bf16 %v5641, %v5638
      %v5730 = vpack.c.bf16 %v5649, %v5646
      %v5731 = vpack.c.bf16 %v5657, %v5654
      %v5732 = vpack.c.bf16 %v5665, %v5662
      %v5733 = vpack.c.bf16 %v5673, %v5670
      %v5734 = vpack.c.bf16 %v5681, %v5678
      %v5735 = vpack.c.bf16 %v5689, %v5686
      %v5736 = vpack.c.bf16 %v5697, %v5694
      %v5737 = vpack.c.bf16 %v5705, %v5702
      %v5738 = vpack.c.bf16 %v5713, %v5710
      %v5739 = vpack.c.bf16 %v5721, %v5718
      %v5756 = vunpack.c.l.b16 %v5724
      %v5757 = vunpack.c.h.b16 %v5724
      %v5758 = vunpack.c.l.b16 %v5725
      %v5759 = vunpack.c.h.b16 %v5725
      %v5760 = vunpack.c.l.b16 %v5726
      %v5761 = vunpack.c.h.b16 %v5726
      %v5762 = vunpack.c.l.b16 %v5727
      %v5763 = vunpack.c.h.b16 %v5727
      %v5764 = vunpack.c.l.b16 %v5728
      %v5765 = vunpack.c.h.b16 %v5728
      %v5766 = vunpack.c.l.b16 %v5729
      %v5767 = vunpack.c.h.b16 %v5729
      %v5768 = vunpack.c.l.b16 %v5730
      %v5769 = vunpack.c.h.b16 %v5730
      %v5770 = vunpack.c.l.b16 %v5731
      %v5771 = vunpack.c.h.b16 %v5731
      %v5772 = vunpack.c.l.b16 %v5732
      %v5773 = vunpack.c.h.b16 %v5732
      %v5774 = vunpack.c.l.b16 %v5733
      %v5775 = vunpack.c.h.b16 %v5733
      %v5776 = vunpack.c.l.b16 %v5734
      %v5777 = vunpack.c.h.b16 %v5734
      %v5778 = vunpack.c.l.b16 %v5735
      %v5779 = vunpack.c.h.b16 %v5735
      %v5780 = vunpack.c.l.b16 %v5736
      %v5781 = vunpack.c.h.b16 %v5736
      %v5782 = vunpack.c.l.b16 %v5737
      %v5783 = vunpack.c.h.b16 %v5737
      %v5784 = vunpack.c.l.b16 %v5738
      %v5785 = vunpack.c.h.b16 %v5738
      %v5786 = vunpack.c.l.b16 %v5739
      %v5787 = vunpack.c.h.b16 %v5739
      %v5788 = vpack.c.b16 %v5756, %v5756
      %v5789 = vpack.c.b16 %v5757, %v5757
      %v5790 = vpack.c.b16 %v5758, %v5758
      %v5791 = vpack.c.b16 %v5759, %v5759
      %v5792 = vpack.c.b16 %v5760, %v5760
      %v5793 = vpack.c.b16 %v5761, %v5761
      %v5794 = vpack.c.b16 %v5762, %v5762
      %v5795 = vpack.c.b16 %v5763, %v5763
      %v5796 = vpack.c.b16 %v5764, %v5764
      %v5797 = vpack.c.b16 %v5765, %v5765
      %v5798 = vpack.c.b16 %v5766, %v5766
      %v5799 = vpack.c.b16 %v5767, %v5767
      %v5800 = vpack.c.b16 %v5768, %v5768
      %v5801 = vpack.c.b16 %v5769, %v5769
      %v5802 = vpack.c.b16 %v5770, %v5770
      %v5803 = vpack.c.b16 %v5771, %v5771
      %v5804 = vpack.c.b16 %v5772, %v5772
      %v5805 = vpack.c.b16 %v5773, %v5773
      %v5806 = vpack.c.b16 %v5774, %v5774
      %v5807 = vpack.c.b16 %v5775, %v5775
      %v5808 = vpack.c.b16 %v5776, %v5776
      %v5809 = vpack.c.b16 %v5777, %v5777
      %v5810 = vpack.c.b16 %v5778, %v5778
      %v5811 = vpack.c.b16 %v5779, %v5779
      %v5812 = vpack.c.b16 %v5780, %v5780
      %v5813 = vpack.c.b16 %v5781, %v5781
      %v5814 = vpack.c.b16 %v5782, %v5782
      %v5815 = vpack.c.b16 %v5783, %v5783
      %v5816 = vpack.c.b16 %v5784, %v5784
      %v5817 = vpack.c.b16 %v5785, %v5785
      %v5818 = vpack.c.b16 %v5786, %v5786
      %v5819 = vpack.c.b16 %v5787, %v5787
      %vm5852 = vcmask 396288
      %5853 = vst.msk [vmem:[%s589] sm:$0xf] %vm5852, %v5788
      %5854 = vst.msk [vmem:[%s589 + $0x4] sm:$0xf] %vm5852, %v5789
      %5855 = vst.msk [vmem:[%s589 + $0x8] sm:$0xf] %vm5852, %v5790
      %5856 = vst.msk [vmem:[%s589 + $0xc] sm:$0xf] %vm5852, %v5791
      %5857 = vst.msk [vmem:[%s589 + $0x10] sm:$0xf] %vm5852, %v5792
      %5858 = vst.msk [vmem:[%s589 + $0x14] sm:$0xf] %vm5852, %v5793
      %5859 = vst.msk [vmem:[%s589 + $0x18] sm:$0xf] %vm5852, %v5794
      %5860 = vst.msk [vmem:[%s589 + $0x1c] sm:$0xf] %vm5852, %v5795
      %5861 = vst.msk [vmem:[%s589 + $0x20] sm:$0xf] %vm5852, %v5796
      %5862 = vst.msk [vmem:[%s589 + $0x24] sm:$0xf] %vm5852, %v5797
      %5863 = vst.msk [vmem:[%s589 + $0x28] sm:$0xf] %vm5852, %v5798
      %5864 = vst.msk [vmem:[%s589 + $0x2c] sm:$0xf] %vm5852, %v5799
      %5865 = vst.msk [vmem:[%s589 + $0x30] sm:$0xf] %vm5852, %v5800
      %5866 = vst.msk [vmem:[%s589 + $0x34] sm:$0xf] %vm5852, %v5801
      %5867 = vst.msk [vmem:[%s589 + $0x38] sm:$0xf] %vm5852, %v5802
      %5868 = vst.msk [vmem:[%s589 + $0x3c] sm:$0xf] %vm5852, %v5803
      %5869 = vst.msk [vmem:[%s589 + $0x40] sm:$0xf] %vm5852, %v5804
      %5870 = vst.msk [vmem:[%s589 + $0x44] sm:$0xf] %vm5852, %v5805
      %5871 = vst.msk [vmem:[%s589 + $0x48] sm:$0xf] %vm5852, %v5806
      %5872 = vst.msk [vmem:[%s589 + $0x4c] sm:$0xf] %vm5852, %v5807
      %5873 = vst.msk [vmem:[%s589 + $0x50] sm:$0xf] %vm5852, %v5808
      %5874 = vst.msk [vmem:[%s589 + $0x54] sm:$0xf] %vm5852, %v5809
      %5875 = vst.msk [vmem:[%s589 + $0x58] sm:$0xf] %vm5852, %v5810
      %5876 = vst.msk [vmem:[%s589 + $0x5c] sm:$0xf] %vm5852, %v5811
      %5877 = vst.msk [vmem:[%s589 + $0x60] sm:$0xf] %vm5852, %v5812
      %5878 = vst.msk [vmem:[%s589 + $0x64] sm:$0xf] %vm5852, %v5813
      %5879 = vst.msk [vmem:[%s589 + $0x68] sm:$0xf] %vm5852, %v5814
      %5880 = vst.msk [vmem:[%s589 + $0x6c] sm:$0xf] %vm5852, %v5815
      %5881 = vst.msk [vmem:[%s589 + $0x70] sm:$0xf] %vm5852, %v5816
      %5882 = vst.msk [vmem:[%s589 + $0x74] sm:$0xf] %vm5852, %v5817
      %5883 = vst.msk [vmem:[%s589 + $0x78] sm:$0xf] %vm5852, %v5818
      %5884 = vst.msk [vmem:[%s589 + $0x7c] sm:$0xf] %vm5852, %v5819
      %v5885 = vld [vmem:[%s5] sm:$0xf]
      %v5886 = vld [vmem:[%s5 + $0x4] sm:$0xf]
      %v5887 = vld [vmem:[%s5 + $0x8] sm:$0xf]
      %v5888 = vld [vmem:[%s5 + $0xc] sm:$0xf]
      %v5889 = vld [vmem:[%s5 + $0x10] sm:$0xf]
      %v5890 = vld [vmem:[%s5 + $0x14] sm:$0xf]
      %v5891 = vld [vmem:[%s5 + $0x18] sm:$0xf]
      %v5892 = vld [vmem:[%s5 + $0x1c] sm:$0xf]
      %v5893 = vld [vmem:[%s5 + $0x20] sm:$0xf]
      %v5894 = vld [vmem:[%s5 + $0x24] sm:$0xf]
      %v5895 = vld [vmem:[%s5 + $0x28] sm:$0xf]
      %v5896 = vld [vmem:[%s5 + $0x2c] sm:$0xf]
      %v5897 = vld [vmem:[%s5 + $0x30] sm:$0xf]
      %v5898 = vld [vmem:[%s5 + $0x34] sm:$0xf]
      %v5899 = vld [vmem:[%s5 + $0x38] sm:$0xf]
      %v5900 = vld [vmem:[%s5 + $0x3c] sm:$0xf]
      %v5901 = vld [vmem:[%s13] sm:$0x1]
      %v5903 = vlaneseq
      %v5904 = vshrl.u32 %v5903, 7
      %v5905 = vsub.s32 0, %v5904
      %v5906 = vrot.slane %v5901, %v5905
      %v5924 = vunpack.c.l.b16 %v5885
      %v5925 = vunpack.c.l.b16 %v5886
      %v5926 = vunpack.c.l.b16 %v5887
      %v5927 = vunpack.c.l.b16 %v5888
      %v5928 = vunpack.c.l.b16 %v5889
      %v5929 = vunpack.c.l.b16 %v5890
      %v5930 = vunpack.c.l.b16 %v5891
      %v5931 = vunpack.c.l.b16 %v5892
      %v5932 = vunpack.c.l.b16 %v5893
      %v5933 = vunpack.c.l.b16 %v5894
      %v5934 = vunpack.c.l.b16 %v5895
      %v5935 = vunpack.c.l.b16 %v5896
      %v5936 = vunpack.c.l.b16 %v5897
      %v5937 = vunpack.c.l.b16 %v5898
      %v5938 = vunpack.c.l.b16 %v5899
      %v5939 = vunpack.c.l.b16 %v5900
      %v5940 = vpack.c.b16 %v5925, %v5924
      %v5941 = vpack.c.b16 %v5927, %v5926
      %v5942 = vpack.c.b16 %v5929, %v5928
      %v5943 = vpack.c.b16 %v5931, %v5930
      %v5944 = vpack.c.b16 %v5933, %v5932
      %v5945 = vpack.c.b16 %v5935, %v5934
      %v5946 = vpack.c.b16 %v5937, %v5936
      %v5947 = vpack.c.b16 %v5939, %v5938
      %5956 = vmatprep.subr.bf16.mxu0 0
      %5957 = vmatpush1.bf16.msra.mxu0 %v5940
      %5958 = vmatprep.subr.bf16.mxu0 0
      %5959 = vmatpush1.bf16.msra.mxu0 %v5941
      %5960 = vmatprep.subr.bf16.mxu0 0
      %5961 = vmatpush1.bf16.msra.mxu0 %v5942
      %5962 = vmatprep.subr.bf16.mxu0 0
      %5963 = vmatpush1.bf16.msra.mxu0 %v5943
      %5964 = vmatprep.subr.bf16.mxu0 0
      %5965 = vmatpush1.bf16.msra.mxu0 %v5944
      %5966 = vmatprep.subr.bf16.mxu0 0
      %5967 = vmatpush1.bf16.msra.mxu0 %v5945
      %5968 = vmatprep.subr.bf16.mxu0 0
      %5969 = vmatpush1.bf16.msra.mxu0 %v5946
      %5970 = vmatprep.subr.bf16.mxu0 0
      %5971 = vmatpush1.bf16.msra.mxu0 %v5947
      %5972 = vmatprep.subr.bf16.mxu0 0
      %5973 = vmatpush1.bf16.msra.mxu0 0
      %5974 = vmatprep.subr.bf16.mxu0 0
      %5975 = vmatpush1.bf16.msra.mxu0 0
      %5976 = vmatprep.subr.bf16.mxu0 0
      %5977 = vmatpush1.bf16.msra.mxu0 0
      %5978 = vmatprep.subr.bf16.mxu0 0
      %5979 = vmatpush1.bf16.msra.mxu0 0
      %5980 = vmatprep.subr.bf16.mxu0 0
      %5981 = vmatpush1.bf16.msra.mxu0 0
      %5982 = vmatprep.subr.bf16.mxu0 0
      %5983 = vmatpush1.bf16.msra.mxu0 0
      %5984 = vmatprep.subr.bf16.mxu0 0
      %5985 = vmatpush1.bf16.msra.mxu0 0
      %5986 = vmatprep.subr.bf16.mxu0 0
      %5987 = vmatpush1.bf16.msra.mxu0 0
      %5988 = vmatprep.mubr.bf16.mxu0 0
      %5989 = vmatmul.mubr.bf16.gmra.mrb[0].mxu0 %v5724
      %v5990 = vpop.f32.mrb[0].mxu0
      %v5991 = vadd.f32 %v5906, %v5990
      %v5992 = vpop.f32.mrb[0].mxu0
      %v5993 = vpop.f32.mrb[0].mxu0
      %v5994 = vadd.f32 %v5906, %v5993
      %v5995 = vpop.f32.mrb[0].mxu0
      %5996 = vmatprep.mubr.bf16.mxu0 0
      %5997 = vmatmul.mubr.bf16.gmra.mrb[0].mxu0 %v5725
      %v5998 = vpop.f32.mrb[0].mxu0
      %v5999 = vadd.f32 %v5906, %v5998
      %v6000 = vpop.f32.mrb[0].mxu0
      %v6001 = vpop.f32.mrb[0].mxu0
      %v6002 = vadd.f32 %v5906, %v6001
      %v6003 = vpop.f32.mrb[0].mxu0
      %6004 = vmatprep.mubr.bf16.mxu0 0
      %6005 = vmatmul.mubr.bf16.gmra.mrb[0].mxu0 %v5726
      %v6006 = vpop.f32.mrb[0].mxu0
      %v6007 = vadd.f32 %v5906, %v6006
      %v6008 = vpop.f32.mrb[0].mxu0
      %v6009 = vpop.f32.mrb[0].mxu0
      %v6010 = vadd.f32 %v5906, %v6009
      %v6011 = vpop.f32.mrb[0].mxu0
      %6012 = vmatprep.mubr.bf16.mxu0 0
      %6013 = vmatmul.mubr.bf16.gmra.mrb[0].mxu0 %v5727
      %v6014 = vpop.f32.mrb[0].mxu0
      %v6015 = vadd.f32 %v5906, %v6014
      %v6016 = vpop.f32.mrb[0].mxu0
      %v6017 = vpop.f32.mrb[0].mxu0
      %v6018 = vadd.f32 %v5906, %v6017
      %v6019 = vpop.f32.mrb[0].mxu0
      %6020 = vmatprep.mubr.bf16.mxu0 0
      %6021 = vmatmul.mubr.bf16.gmra.mrb[0].mxu0 %v5728
      %v6022 = vpop.f32.mrb[0].mxu0
      %v6023 = vadd.f32 %v5906, %v6022
      %v6024 = vpop.f32.mrb[0].mxu0
      %v6025 = vpop.f32.mrb[0].mxu0
      %v6026 = vadd.f32 %v5906, %v6025
      %v6027 = vpop.f32.mrb[0].mxu0
      %6028 = vmatprep.mubr.bf16.mxu0 0
      %6029 = vmatmul.mubr.bf16.gmra.mrb[0].mxu0 %v5729
      %v6030 = vpop.f32.mrb[0].mxu0
      %v6031 = vadd.f32 %v5906, %v6030
      %v6032 = vpop.f32.mrb[0].mxu0
      %v6033 = vpop.f32.mrb[0].mxu0
      %v6034 = vadd.f32 %v5906, %v6033
      %v6035 = vpop.f32.mrb[0].mxu0
      %6036 = vmatprep.mubr.bf16.mxu0 0
      %6037 = vmatmul.mubr.bf16.gmra.mrb[0].mxu0 %v5730
      %v6038 = vpop.f32.mrb[0].mxu0
      %v6039 = vadd.f32 %v5906, %v6038
      %v6040 = vpop.f32.mrb[0].mxu0
      %v6041 = vpop.f32.mrb[0].mxu0
      %v6042 = vadd.f32 %v5906, %v6041
      %v6043 = vpop.f32.mrb[0].mxu0
      %6044 = vmatprep.mubr.bf16.mxu0 0
      %6045 = vmatmul.mubr.bf16.gmra.mrb[0].mxu0 %v5731
      %v6046 = vpop.f32.mrb[0].mxu0
      %v6047 = vadd.f32 %v5906, %v6046
      %v6048 = vpop.f32.mrb[0].mxu0
      %v6049 = vpop.f32.mrb[0].mxu0
      %v6050 = vadd.f32 %v5906, %v6049
      %v6051 = vpop.f32.mrb[0].mxu0
      %6052 = vmatprep.mubr.bf16.mxu0 0
      %6053 = vmatmul.mubr.bf16.gmra.mrb[0].mxu0 %v5732
      %v6054 = vpop.f32.mrb[0].mxu0
      %v6055 = vadd.f32 %v5906, %v6054
      %v6056 = vpop.f32.mrb[0].mxu0
      %v6057 = vpop.f32.mrb[0].mxu0
      %v6058 = vadd.f32 %v5906, %v6057
      %v6059 = vpop.f32.mrb[0].mxu0
      %6060 = vmatprep.mubr.bf16.mxu0 0
      %6061 = vmatmul.mubr.bf16.gmra.mrb[0].mxu0 %v5733
      %v6062 = vpop.f32.mrb[0].mxu0
      %v6063 = vadd.f32 %v5906, %v6062
      %v6064 = vpop.f32.mrb[0].mxu0
      %v6065 = vpop.f32.mrb[0].mxu0
      %v6066 = vadd.f32 %v5906, %v6065
      %v6067 = vpop.f32.mrb[0].mxu0
      %6068 = vmatprep.mubr.bf16.mxu0 0
      %6069 = vmatmul.mubr.bf16.gmra.mrb[0].mxu0 %v5734
      %v6070 = vpop.f32.mrb[0].mxu0
      %v6071 = vadd.f32 %v5906, %v6070
      %v6072 = vpop.f32.mrb[0].mxu0
      %v6073 = vpop.f32.mrb[0].mxu0
      %v6074 = vadd.f32 %v5906, %v6073
      %v6075 = vpop.f32.mrb[0].mxu0
      %6076 = vmatprep.mubr.bf16.mxu0 0
      %6077 = vmatmul.mubr.bf16.gmra.mrb[0].mxu0 %v5735
      %v6078 = vpop.f32.mrb[0].mxu0
      %v6079 = vadd.f32 %v5906, %v6078
      %v6080 = vpop.f32.mrb[0].mxu0
      %v6081 = vpop.f32.mrb[0].mxu0
      %v6082 = vadd.f32 %v5906, %v6081
      %v6083 = vpop.f32.mrb[0].mxu0
      %6084 = vmatprep.mubr.bf16.mxu0 0
      %6085 = vmatmul.mubr.bf16.gmra.mrb[0].mxu0 %v5736
      %v6086 = vpop.f32.mrb[0].mxu0
      %v6087 = vadd.f32 %v5906, %v6086
      %v6088 = vpop.f32.mrb[0].mxu0
      %v6089 = vpop.f32.mrb[0].mxu0
      %v6090 = vadd.f32 %v5906, %v6089
      %v6091 = vpop.f32.mrb[0].mxu0
      %6092 = vmatprep.mubr.bf16.mxu0 0
      %6093 = vmatmul.mubr.bf16.gmra.mrb[0].mxu0 %v5737
      %v6094 = vpop.f32.mrb[0].mxu0
      %v6095 = vadd.f32 %v5906, %v6094
      %v6096 = vpop.f32.mrb[0].mxu0
      %v6097 = vpop.f32.mrb[0].mxu0
      %v6098 = vadd.f32 %v5906, %v6097
      %v6099 = vpop.f32.mrb[0].mxu0
      %6100 = vmatprep.mubr.bf16.mxu0 0
      %6101 = vmatmul.mubr.bf16.gmra.mrb[0].mxu0 %v5738
      %v6102 = vpop.f32.mrb[0].mxu0
      %v6103 = vadd.f32 %v5906, %v6102
      %v6104 = vpop.f32.mrb[0].mxu0
      %v6105 = vpop.f32.mrb[0].mxu0
      %v6106 = vadd.f32 %v5906, %v6105
      %v6107 = vpop.f32.mrb[0].mxu0
      %6108 = vmatprep.mubr.bf16.mxu0 0
      %6109 = vmatmul.mubr.bf16.gmra.mrb[0].mxu0 %v5739
      %v6110 = vpop.f32.mrb[0].mxu0
      %v6111 = vadd.f32 %v5906, %v6110
      %v6112 = vpop.f32.mrb[0].mxu0
      %v6113 = vpop.f32.mrb[0].mxu0
      %v6114 = vadd.f32 %v5906, %v6113
      %v6115 = vpop.f32.mrb[0].mxu0
      %6116 = vdwg.mxu0
      %v6117 = vmax.f32 %v5991, 0.0
      %v6118 = vmax.f32 %v5994, 0.0
      %v6119 = vmax.f32 %v5999, 0.0
      %v6120 = vmax.f32 %v6002, 0.0
      %v6121 = vmax.f32 %v6007, 0.0
      %v6122 = vmax.f32 %v6010, 0.0
      %v6123 = vmax.f32 %v6015, 0.0
      %v6124 = vmax.f32 %v6018, 0.0
      %v6125 = vmax.f32 %v6023, 0.0
      %v6126 = vmax.f32 %v6026, 0.0
      %v6127 = vmax.f32 %v6031, 0.0
      %v6128 = vmax.f32 %v6034, 0.0
      %v6129 = vmax.f32 %v6039, 0.0
      %v6130 = vmax.f32 %v6042, 0.0
      %v6131 = vmax.f32 %v6047, 0.0
      %v6132 = vmax.f32 %v6050, 0.0
      %v6133 = vmax.f32 %v6055, 0.0
      %v6134 = vmax.f32 %v6058, 0.0
      %v6135 = vmax.f32 %v6063, 0.0
      %v6136 = vmax.f32 %v6066, 0.0
      %v6137 = vmax.f32 %v6071, 0.0
      %v6138 = vmax.f32 %v6074, 0.0
      %v6139 = vmax.f32 %v6079, 0.0
      %v6140 = vmax.f32 %v6082, 0.0
      %v6141 = vmax.f32 %v6087, 0.0
      %v6142 = vmax.f32 %v6090, 0.0
      %v6143 = vmax.f32 %v6095, 0.0
      %v6144 = vmax.f32 %v6098, 0.0
      %v6145 = vmax.f32 %v6103, 0.0
      %v6146 = vmax.f32 %v6106, 0.0
      %v6147 = vmax.f32 %v6111, 0.0
      %v6148 = vmax.f32 %v6114, 0.0
      %v6149 = vpack.c.bf16 %v6118, %v6117
      %v6150 = vpack.c.bf16 %v6120, %v6119
      %v6151 = vpack.c.bf16 %v6122, %v6121
      %v6152 = vpack.c.bf16 %v6124, %v6123
      %v6153 = vpack.c.bf16 %v6126, %v6125
      %v6154 = vpack.c.bf16 %v6128, %v6127
      %v6155 = vpack.c.bf16 %v6130, %v6129
      %v6156 = vpack.c.bf16 %v6132, %v6131
      %v6157 = vpack.c.bf16 %v6134, %v6133
      %v6158 = vpack.c.bf16 %v6136, %v6135
      %v6159 = vpack.c.bf16 %v6138, %v6137
      %v6160 = vpack.c.bf16 %v6140, %v6139
      %v6161 = vpack.c.bf16 %v6142, %v6141
      %v6162 = vpack.c.bf16 %v6144, %v6143
      %v6163 = vpack.c.bf16 %v6146, %v6145
      %v6164 = vpack.c.bf16 %v6148, %v6147
      %v6165 = vld [vmem:[%s6] sm:$0xff]
      %v6166 = vld [vmem:[%s6 + $0x8] sm:$0xff]
      %v6167 = vld [vmem:[%s6 + $0x10] sm:$0xff]
      %v6168 = vld [vmem:[%s6 + $0x18] sm:$0xff]
      %v6169 = vld [vmem:[%s6 + $0x20] sm:$0xff]
      %v6170 = vld [vmem:[%s6 + $0x28] sm:$0xff]
      %v6171 = vld [vmem:[%s6 + $0x30] sm:$0xff]
      %v6172 = vld [vmem:[%s6 + $0x38] sm:$0xff]
      %v6173 = vld [vmem:[%s6 + $0x40] sm:$0xff]
      %v6174 = vld [vmem:[%s6 + $0x48] sm:$0xff]
      %v6175 = vld [vmem:[%s6 + $0x50] sm:$0xff]
      %v6176 = vld [vmem:[%s6 + $0x58] sm:$0xff]
      %v6177 = vld [vmem:[%s6 + $0x60] sm:$0xff]
      %v6178 = vld [vmem:[%s6 + $0x68] sm:$0xff]
      %v6179 = vld [vmem:[%s6 + $0x70] sm:$0xff]
      %v6180 = vld [vmem:[%s6 + $0x78] sm:$0xff]
      %v6181 = vld [vmem:[%s14] sm:$0x3]
      %v6183 = vlaneseq
      %v6184 = vshrl.u32 %v6183, 7
      %v6185 = vsub.s32 0, %v6184
      %v6186 = vrot.slane %v6181, %v6185
      %v6187 = vlaneseq
      %v6188 = vshrl.u32 %v6187, 7
      %v6189 = vsub.s32 1, %v6188
      %v6190 = vrot.slane %v6181, %v6189
      %v6209 = vunpack.c.l.b16 %v6165
      %v6210 = vunpack.c.h.b16 %v6165
      %v6211 = vunpack.c.l.b16 %v6166
      %v6212 = vunpack.c.h.b16 %v6166
      %v6213 = vunpack.c.l.b16 %v6167
      %v6214 = vunpack.c.h.b16 %v6167
      %v6215 = vunpack.c.l.b16 %v6168
      %v6216 = vunpack.c.h.b16 %v6168
      %v6217 = vunpack.c.l.b16 %v6169
      %v6218 = vunpack.c.h.b16 %v6169
      %v6219 = vunpack.c.l.b16 %v6170
      %v6220 = vunpack.c.h.b16 %v6170
      %v6221 = vunpack.c.l.b16 %v6171
      %v6222 = vunpack.c.h.b16 %v6171
      %v6223 = vunpack.c.l.b16 %v6172
      %v6224 = vunpack.c.h.b16 %v6172
      %v6225 = vunpack.c.l.b16 %v6173
      %v6226 = vunpack.c.h.b16 %v6173
      %v6227 = vunpack.c.l.b16 %v6174
      %v6228 = vunpack.c.h.b16 %v6174
      %v6229 = vunpack.c.l.b16 %v6175
      %v6230 = vunpack.c.h.b16 %v6175
      %v6231 = vunpack.c.l.b16 %v6176
      %v6232 = vunpack.c.h.b16 %v6176
      %v6233 = vunpack.c.l.b16 %v6177
      %v6234 = vunpack.c.h.b16 %v6177
      %v6235 = vunpack.c.l.b16 %v6178
      %v6236 = vunpack.c.h.b16 %v6178
      %v6237 = vunpack.c.l.b16 %v6179
      %v6238 = vunpack.c.h.b16 %v6179
      %v6239 = vunpack.c.l.b16 %v6180
      %v6240 = vunpack.c.h.b16 %v6180
      %v6241 = vpack.c.b16 %v6211, %v6209
      %v6242 = vpack.c.b16 %v6212, %v6210
      %v6243 = vpack.c.b16 %v6215, %v6213
      %v6244 = vpack.c.b16 %v6216, %v6214
      %v6245 = vpack.c.b16 %v6219, %v6217
      %v6246 = vpack.c.b16 %v6220, %v6218
      %v6247 = vpack.c.b16 %v6223, %v6221
      %v6248 = vpack.c.b16 %v6224, %v6222
      %v6249 = vpack.c.b16 %v6227, %v6225
      %v6250 = vpack.c.b16 %v6228, %v6226
      %v6251 = vpack.c.b16 %v6231, %v6229
      %v6252 = vpack.c.b16 %v6232, %v6230
      %v6253 = vpack.c.b16 %v6235, %v6233
      %v6254 = vpack.c.b16 %v6236, %v6234
      %v6255 = vpack.c.b16 %v6239, %v6237
      %v6256 = vpack.c.b16 %v6240, %v6238
      %6273 = vmatprep.subr.bf16.mxu0 %v6242
      %6274 = vmatpush1.bf16.msra.mxu0 %v6241
      %6275 = vmatprep.subr.bf16.mxu0 %v6244
      %6276 = vmatpush1.bf16.msra.mxu0 %v6243
      %6277 = vmatprep.subr.bf16.mxu0 %v6246
      %6278 = vmatpush1.bf16.msra.mxu0 %v6245
      %6279 = vmatprep.subr.bf16.mxu0 %v6248
      %6280 = vmatpush1.bf16.msra.mxu0 %v6247
      %6281 = vmatprep.subr.bf16.mxu0 %v6250
      %6282 = vmatpush1.bf16.msra.mxu0 %v6249
      %6283 = vmatprep.subr.bf16.mxu0 %v6252
      %6284 = vmatpush1.bf16.msra.mxu0 %v6251
      %6285 = vmatprep.subr.bf16.mxu0 %v6254
      %6286 = vmatpush1.bf16.msra.mxu0 %v6253
      %6287 = vmatprep.subr.bf16.mxu0 %v6256
      %6288 = vmatpush1.bf16.msra.mxu0 %v6255
      %6289 = vmatprep.subr.bf16.mxu0 0
      %6290 = vmatpush1.bf16.msra.mxu0 0
      %6291 = vmatprep.subr.bf16.mxu0 0
      %6292 = vmatpush1.bf16.msra.mxu0 0
      %6293 = vmatprep.subr.bf16.mxu0 0
      %6294 = vmatpush1.bf16.msra.mxu0 0
      %6295 = vmatprep.subr.bf16.mxu0 0
      %6296 = vmatpush1.bf16.msra.mxu0 0
      %6297 = vmatprep.subr.bf16.mxu0 0
      %6298 = vmatpush1.bf16.msra.mxu0 0
      %6299 = vmatprep.subr.bf16.mxu0 0
      %6300 = vmatpush1.bf16.msra.mxu0 0
      %6301 = vmatprep.subr.bf16.mxu0 0
      %6302 = vmatpush1.bf16.msra.mxu0 0
      %6303 = vmatprep.subr.bf16.mxu0 0
      %6304 = vmatpush1.bf16.msra.mxu0 0
      %6305 = vmatprep.mubr.bf16.mxu0 0
      %6306 = vmatmul.mubr.bf16.gmra.mrb[0].mxu0 %v6149
      %v6307 = vpop.f32.mrb[0].mxu0
      %v6308 = vadd.f32 %v6186, %v6307
      %v6309 = vpop.f32.mrb[0].mxu0
      %v6310 = vadd.f32 %v6190, %v6309
      %v6311 = vpop.f32.mrb[0].mxu0
      %v6312 = vadd.f32 %v6186, %v6311
      %v6313 = vpop.f32.mrb[0].mxu0
      %v6314 = vadd.f32 %v6190, %v6313
      %6315 = vmatprep.mubr.bf16.mxu0 0
      %6316 = vmatmul.mubr.bf16.gmra.mrb[0].mxu0 %v6150
      %v6317 = vpop.f32.mrb[0].mxu0
      %v6318 = vadd.f32 %v6186, %v6317
      %v6319 = vpop.f32.mrb[0].mxu0
      %v6320 = vadd.f32 %v6190, %v6319
      %v6321 = vpop.f32.mrb[0].mxu0
      %v6322 = vadd.f32 %v6186, %v6321
      %v6323 = vpop.f32.mrb[0].mxu0
      %v6324 = vadd.f32 %v6190, %v6323
      %6325 = vmatprep.mubr.bf16.mxu0 0
      %6326 = vmatmul.mubr.bf16.gmra.mrb[0].mxu0 %v6151
      %v6327 = vpop.f32.mrb[0].mxu0
      %v6328 = vadd.f32 %v6186, %v6327
      %v6329 = vpop.f32.mrb[0].mxu0
      %v6330 = vadd.f32 %v6190, %v6329
      %v6331 = vpop.f32.mrb[0].mxu0
      %v6332 = vadd.f32 %v6186, %v6331
      %v6333 = vpop.f32.mrb[0].mxu0
      %v6334 = vadd.f32 %v6190, %v6333
      %6335 = vmatprep.mubr.bf16.mxu0 0
      %6336 = vmatmul.mubr.bf16.gmra.mrb[0].mxu0 %v6152
      %v6337 = vpop.f32.mrb[0].mxu0
      %v6338 = vadd.f32 %v6186, %v6337
      %v6339 = vpop.f32.mrb[0].mxu0
      %v6340 = vadd.f32 %v6190, %v6339
      %v6341 = vpop.f32.mrb[0].mxu0
      %v6342 = vadd.f32 %v6186, %v6341
      %v6343 = vpop.f32.mrb[0].mxu0
      %v6344 = vadd.f32 %v6190, %v6343
      %6345 = vmatprep.mubr.bf16.mxu0 0
      %6346 = vmatmul.mubr.bf16.gmra.mrb[0].mxu0 %v6153
      %v6347 = vpop.f32.mrb[0].mxu0
      %v6348 = vadd.f32 %v6186, %v6347
      %v6349 = vpop.f32.mrb[0].mxu0
      %v6350 = vadd.f32 %v6190, %v6349
      %v6351 = vpop.f32.mrb[0].mxu0
      %v6352 = vadd.f32 %v6186, %v6351
      %v6353 = vpop.f32.mrb[0].mxu0
      %v6354 = vadd.f32 %v6190, %v6353
      %6355 = vmatprep.mubr.bf16.mxu0 0
      %6356 = vmatmul.mubr.bf16.gmra.mrb[0].mxu0 %v6154
      %v6357 = vpop.f32.mrb[0].mxu0
      %v6358 = vadd.f32 %v6186, %v6357
      %v6359 = vpop.f32.mrb[0].mxu0
      %v6360 = vadd.f32 %v6190, %v6359
      %v6361 = vpop.f32.mrb[0].mxu0
      %v6362 = vadd.f32 %v6186, %v6361
      %v6363 = vpop.f32.mrb[0].mxu0
      %v6364 = vadd.f32 %v6190, %v6363
      %6365 = vmatprep.mubr.bf16.mxu0 0
      %6366 = vmatmul.mubr.bf16.gmra.mrb[0].mxu0 %v6155
      %v6367 = vpop.f32.mrb[0].mxu0
      %v6368 = vadd.f32 %v6186, %v6367
      %v6369 = vpop.f32.mrb[0].mxu0
      %v6370 = vadd.f32 %v6190, %v6369
      %v6371 = vpop.f32.mrb[0].mxu0
      %v6372 = vadd.f32 %v6186, %v6371
      %v6373 = vpop.f32.mrb[0].mxu0
      %v6374 = vadd.f32 %v6190, %v6373
      %6375 = vmatprep.mubr.bf16.mxu0 0
      %6376 = vmatmul.mubr.bf16.gmra.mrb[0].mxu0 %v6156
      %v6377 = vpop.f32.mrb[0].mxu0
      %v6378 = vadd.f32 %v6186, %v6377
      %v6379 = vpop.f32.mrb[0].mxu0
      %v6380 = vadd.f32 %v6190, %v6379
      %v6381 = vpop.f32.mrb[0].mxu0
      %v6382 = vadd.f32 %v6186, %v6381
      %v6383 = vpop.f32.mrb[0].mxu0
      %v6384 = vadd.f32 %v6190, %v6383
      %6385 = vmatprep.mubr.bf16.mxu0 0
      %6386 = vmatmul.mubr.bf16.gmra.mrb[0].mxu0 %v6157
      %v6387 = vpop.f32.mrb[0].mxu0
      %v6388 = vadd.f32 %v6186, %v6387
      %v6389 = vpop.f32.mrb[0].mxu0
      %v6390 = vadd.f32 %v6190, %v6389
      %v6391 = vpop.f32.mrb[0].mxu0
      %v6392 = vadd.f32 %v6186, %v6391
      %v6393 = vpop.f32.mrb[0].mxu0
      %v6394 = vadd.f32 %v6190, %v6393
      %6395 = vmatprep.mubr.bf16.mxu0 0
      %6396 = vmatmul.mubr.bf16.gmra.mrb[0].mxu0 %v6158
      %v6397 = vpop.f32.mrb[0].mxu0
      %v6398 = vadd.f32 %v6186, %v6397
      %v6399 = vpop.f32.mrb[0].mxu0
      %v6400 = vadd.f32 %v6190, %v6399
      %v6401 = vpop.f32.mrb[0].mxu0
      %v6402 = vadd.f32 %v6186, %v6401
      %v6403 = vpop.f32.mrb[0].mxu0
      %v6404 = vadd.f32 %v6190, %v6403
      %6405 = vmatprep.mubr.bf16.mxu0 0
      %6406 = vmatmul.mubr.bf16.gmra.mrb[0].mxu0 %v6159
      %v6407 = vpop.f32.mrb[0].mxu0
      %v6408 = vadd.f32 %v6186, %v6407
      %v6409 = vpop.f32.mrb[0].mxu0
      %v6410 = vadd.f32 %v6190, %v6409
      %v6411 = vpop.f32.mrb[0].mxu0
      %v6412 = vadd.f32 %v6186, %v6411
      %v6413 = vpop.f32.mrb[0].mxu0
      %v6414 = vadd.f32 %v6190, %v6413
      %6415 = vmatprep.mubr.bf16.mxu0 0
      %6416 = vmatmul.mubr.bf16.gmra.mrb[0].mxu0 %v6160
      %v6417 = vpop.f32.mrb[0].mxu0
      %v6418 = vadd.f32 %v6186, %v6417
      %v6419 = vpop.f32.mrb[0].mxu0
      %v6420 = vadd.f32 %v6190, %v6419
      %v6421 = vpop.f32.mrb[0].mxu0
      %v6422 = vadd.f32 %v6186, %v6421
      %v6423 = vpop.f32.mrb[0].mxu0
      %v6424 = vadd.f32 %v6190, %v6423
      %6425 = vmatprep.mubr.bf16.mxu0 0
      %6426 = vmatmul.mubr.bf16.gmra.mrb[0].mxu0 %v6161
      %v6427 = vpop.f32.mrb[0].mxu0
      %v6428 = vadd.f32 %v6186, %v6427
      %v6429 = vpop.f32.mrb[0].mxu0
      %v6430 = vadd.f32 %v6190, %v6429
      %v6431 = vpop.f32.mrb[0].mxu0
      %v6432 = vadd.f32 %v6186, %v6431
      %v6433 = vpop.f32.mrb[0].mxu0
      %v6434 = vadd.f32 %v6190, %v6433
      %6435 = vmatprep.mubr.bf16.mxu0 0
      %6436 = vmatmul.mubr.bf16.gmra.mrb[0].mxu0 %v6162
      %v6437 = vpop.f32.mrb[0].mxu0
      %v6438 = vadd.f32 %v6186, %v6437
      %v6439 = vpop.f32.mrb[0].mxu0
      %v6440 = vadd.f32 %v6190, %v6439
      %v6441 = vpop.f32.mrb[0].mxu0
      %v6442 = vadd.f32 %v6186, %v6441
      %v6443 = vpop.f32.mrb[0].mxu0
      %v6444 = vadd.f32 %v6190, %v6443
      %6445 = vmatprep.mubr.bf16.mxu0 0
      %6446 = vmatmul.mubr.bf16.gmra.mrb[0].mxu0 %v6163
      %v6447 = vpop.f32.mrb[0].mxu0
      %v6448 = vadd.f32 %v6186, %v6447
      %v6449 = vpop.f32.mrb[0].mxu0
      %v6450 = vadd.f32 %v6190, %v6449
      %v6451 = vpop.f32.mrb[0].mxu0
      %v6452 = vadd.f32 %v6186, %v6451
      %v6453 = vpop.f32.mrb[0].mxu0
      %v6454 = vadd.f32 %v6190, %v6453
      %6455 = vmatprep.mubr.bf16.mxu0 0
      %6456 = vmatmul.mubr.bf16.gmra.mrb[0].mxu0 %v6164
      %v6457 = vpop.f32.mrb[0].mxu0
      %v6458 = vadd.f32 %v6186, %v6457
      %v6459 = vpop.f32.mrb[0].mxu0
      %v6460 = vadd.f32 %v6190, %v6459
      %v6461 = vpop.f32.mrb[0].mxu0
      %v6462 = vadd.f32 %v6186, %v6461
      %v6463 = vpop.f32.mrb[0].mxu0
      %v6464 = vadd.f32 %v6190, %v6463
      %6465 = vdwg.mxu0
      %v6466 = vmax.f32 %v6308, 0.0
      %v6467 = vmax.f32 %v6310, 0.0
      %v6468 = vmax.f32 %v6312, 0.0
      %v6469 = vmax.f32 %v6314, 0.0
      %v6470 = vmax.f32 %v6318, 0.0
      %v6471 = vmax.f32 %v6320, 0.0
      %v6472 = vmax.f32 %v6322, 0.0
      %v6473 = vmax.f32 %v6324, 0.0
      %v6474 = vmax.f32 %v6328, 0.0
      %v6475 = vmax.f32 %v6330, 0.0
      %v6476 = vmax.f32 %v6332, 0.0
      %v6477 = vmax.f32 %v6334, 0.0
      %v6478 = vmax.f32 %v6338, 0.0
      %v6479 = vmax.f32 %v6340, 0.0
      %v6480 = vmax.f32 %v6342, 0.0
      %v6481 = vmax.f32 %v6344, 0.0
      %v6482 = vmax.f32 %v6348, 0.0
      %v6483 = vmax.f32 %v6350, 0.0
      %v6484 = vmax.f32 %v6352, 0.0
      %v6485 = vmax.f32 %v6354, 0.0
      %v6486 = vmax.f32 %v6358, 0.0
      %v6487 = vmax.f32 %v6360, 0.0
      %v6488 = vmax.f32 %v6362, 0.0
      %v6489 = vmax.f32 %v6364, 0.0
      %v6490 = vmax.f32 %v6368, 0.0
      %v6491 = vmax.f32 %v6370, 0.0
      %v6492 = vmax.f32 %v6372, 0.0
      %v6493 = vmax.f32 %v6374, 0.0
      %v6494 = vmax.f32 %v6378, 0.0
      %v6495 = vmax.f32 %v6380, 0.0
      %v6496 = vmax.f32 %v6382, 0.0
      %v6497 = vmax.f32 %v6384, 0.0
      %v6498 = vmax.f32 %v6388, 0.0
      %v6499 = vmax.f32 %v6390, 0.0
      %v6500 = vmax.f32 %v6392, 0.0
      %v6501 = vmax.f32 %v6394, 0.0
      %v6502 = vmax.f32 %v6398, 0.0
      %v6503 = vmax.f32 %v6400, 0.0
      %v6504 = vmax.f32 %v6402, 0.0
      %v6505 = vmax.f32 %v6404, 0.0
      %v6506 = vmax.f32 %v6408, 0.0
      %v6507 = vmax.f32 %v6410, 0.0
      %v6508 = vmax.f32 %v6412, 0.0
      %v6509 = vmax.f32 %v6414, 0.0
      %v6510 = vmax.f32 %v6418, 0.0
      %v6511 = vmax.f32 %v6420, 0.0
      %v6512 = vmax.f32 %v6422, 0.0
      %v6513 = vmax.f32 %v6424, 0.0
      %v6514 = vmax.f32 %v6428, 0.0
      %v6515 = vmax.f32 %v6430, 0.0
      %v6516 = vmax.f32 %v6432, 0.0
      %v6517 = vmax.f32 %v6434, 0.0
      %v6518 = vmax.f32 %v6438, 0.0
      %v6519 = vmax.f32 %v6440, 0.0
      %v6520 = vmax.f32 %v6442, 0.0
      %v6521 = vmax.f32 %v6444, 0.0
      %v6522 = vmax.f32 %v6448, 0.0
      %v6523 = vmax.f32 %v6450, 0.0
      %v6524 = vmax.f32 %v6452, 0.0
      %v6525 = vmax.f32 %v6454, 0.0
      %v6526 = vmax.f32 %v6458, 0.0
      %v6527 = vmax.f32 %v6460, 0.0
      %v6528 = vmax.f32 %v6462, 0.0
      %v6529 = vmax.f32 %v6464, 0.0
      %v6530 = vpack.c.bf16 %v6468, %v6466
      %v6531 = vpack.c.bf16 %v6469, %v6467
      %v6532 = vpack.c.bf16 %v6472, %v6470
      %v6533 = vpack.c.bf16 %v6473, %v6471
      %v6534 = vpack.c.bf16 %v6476, %v6474
      %v6535 = vpack.c.bf16 %v6477, %v6475
      %v6536 = vpack.c.bf16 %v6480, %v6478
      %v6537 = vpack.c.bf16 %v6481, %v6479
      %v6538 = vpack.c.bf16 %v6484, %v6482
      %v6539 = vpack.c.bf16 %v6485, %v6483
      %v6540 = vpack.c.bf16 %v6488, %v6486
      %v6541 = vpack.c.bf16 %v6489, %v6487
      %v6542 = vpack.c.bf16 %v6492, %v6490
      %v6543 = vpack.c.bf16 %v6493, %v6491
      %v6544 = vpack.c.bf16 %v6496, %v6494
      %v6545 = vpack.c.bf16 %v6497, %v6495
      %v6546 = vpack.c.bf16 %v6500, %v6498
      %v6547 = vpack.c.bf16 %v6501, %v6499
      %v6548 = vpack.c.bf16 %v6504, %v6502
      %v6549 = vpack.c.bf16 %v6505, %v6503
      %v6550 = vpack.c.bf16 %v6508, %v6506
      %v6551 = vpack.c.bf16 %v6509, %v6507
      %v6552 = vpack.c.bf16 %v6512, %v6510
      %v6553 = vpack.c.bf16 %v6513, %v6511
      %v6554 = vpack.c.bf16 %v6516, %v6514
      %v6555 = vpack.c.bf16 %v6517, %v6515
      %v6556 = vpack.c.bf16 %v6520, %v6518
      %v6557 = vpack.c.bf16 %v6521, %v6519
      %v6558 = vpack.c.bf16 %v6524, %v6522
      %v6559 = vpack.c.bf16 %v6525, %v6523
      %v6560 = vpack.c.bf16 %v6528, %v6526
      %v6561 = vpack.c.bf16 %v6529, %v6527
      %v6562 = vld [vmem:[%s7] sm:$0xff]
      %v6563 = vld [vmem:[%s7 + $0x8] sm:$0xff]
      %v6564 = vld [vmem:[%s7 + $0x10] sm:$0xff]
      %v6565 = vld [vmem:[%s7 + $0x18] sm:$0xff]
      %v6566 = vld [vmem:[%s7 + $0x20] sm:$0xff]
      %v6567 = vld [vmem:[%s7 + $0x28] sm:$0xff]
      %v6568 = vld [vmem:[%s7 + $0x30] sm:$0xff]
      %v6569 = vld [vmem:[%s7 + $0x38] sm:$0xff]
      %v6570 = vld [vmem:[%s7 + $0x40] sm:$0xff]
      %v6571 = vld [vmem:[%s7 + $0x48] sm:$0xff]
      %v6572 = vld [vmem:[%s7 + $0x50] sm:$0xff]
      %v6573 = vld [vmem:[%s7 + $0x58] sm:$0xff]
      %v6574 = vld [vmem:[%s7 + $0x60] sm:$0xff]
      %v6575 = vld [vmem:[%s7 + $0x68] sm:$0xff]
      %v6576 = vld [vmem:[%s7 + $0x70] sm:$0xff]
      %v6577 = vld [vmem:[%s7 + $0x78] sm:$0xff]
      %v6578 = vld [vmem:[%s7 + $0x80] sm:$0xff]
      %v6579 = vld [vmem:[%s7 + $0x88] sm:$0xff]
      %v6580 = vld [vmem:[%s7 + $0x90] sm:$0xff]
      %v6581 = vld [vmem:[%s7 + $0x98] sm:$0xff]
      %v6582 = vld [vmem:[%s7 + $0xa0] sm:$0xff]
      %v6583 = vld [vmem:[%s7 + $0xa8] sm:$0xff]
      %v6584 = vld [vmem:[%s7 + $0xb0] sm:$0xff]
      %v6585 = vld [vmem:[%s7 + $0xb8] sm:$0xff]
      %v6586 = vld [vmem:[%s7 + $0xc0] sm:$0xff]
      %v6587 = vld [vmem:[%s7 + $0xc8] sm:$0xff]
      %v6588 = vld [vmem:[%s7 + $0xd0] sm:$0xff]
      %v6589 = vld [vmem:[%s7 + $0xd8] sm:$0xff]
      %v6590 = vld [vmem:[%s7 + $0xe0] sm:$0xff]
      %v6591 = vld [vmem:[%s7 + $0xe8] sm:$0xff]
      %v6592 = vld [vmem:[%s7 + $0xf0] sm:$0xff]
      %v6593 = vld [vmem:[%s7 + $0xf8] sm:$0xff]
      %v6594 = vld [vmem:[%s7 + $0x100] sm:$0xff]
      %v6595 = vld [vmem:[%s7 + $0x108] sm:$0xff]
      %v6596 = vld [vmem:[%s7 + $0x110] sm:$0xff]
      %v6597 = vld [vmem:[%s7 + $0x118] sm:$0xff]
      %v6598 = vld [vmem:[%s7 + $0x120] sm:$0xff]
      %v6599 = vld [vmem:[%s7 + $0x128] sm:$0xff]
      %v6600 = vld [vmem:[%s7 + $0x130] sm:$0xff]
      %v6601 = vld [vmem:[%s7 + $0x138] sm:$0xff]
      %v6602 = vld [vmem:[%s7 + $0x140] sm:$0xff]
      %v6603 = vld [vmem:[%s7 + $0x148] sm:$0xff]
      %v6604 = vld [vmem:[%s7 + $0x150] sm:$0xff]
      %v6605 = vld [vmem:[%s7 + $0x158] sm:$0xff]
      %v6606 = vld [vmem:[%s7 + $0x160] sm:$0xff]
      %v6607 = vld [vmem:[%s7 + $0x168] sm:$0xff]
      %v6608 = vld [vmem:[%s7 + $0x170] sm:$0xff]
      %v6609 = vld [vmem:[%s7 + $0x178] sm:$0xff]
      %v6610 = vld [vmem:[%s7 + $0x180] sm:$0xff]
      %v6611 = vld [vmem:[%s7 + $0x188] sm:$0xff]
      %v6612 = vld [vmem:[%s7 + $0x190] sm:$0xff]
      %v6613 = vld [vmem:[%s7 + $0x198] sm:$0xff]
      %v6614 = vld [vmem:[%s7 + $0x1a0] sm:$0xff]
      %v6615 = vld [vmem:[%s7 + $0x1a8] sm:$0xff]
      %v6616 = vld [vmem:[%s7 + $0x1b0] sm:$0xff]
      %v6617 = vld [vmem:[%s7 + $0x1b8] sm:$0xff]
      %v6618 = vld [vmem:[%s7 + $0x1c0] sm:$0xff]
      %v6619 = vld [vmem:[%s7 + $0x1c8] sm:$0xff]
      %v6620 = vld [vmem:[%s7 + $0x1d0] sm:$0xff]
      %v6621 = vld [vmem:[%s7 + $0x1d8] sm:$0xff]
      %v6622 = vld [vmem:[%s7 + $0x1e0] sm:$0xff]
      %v6623 = vld [vmem:[%s7 + $0x1e8] sm:$0xff]
      %v6624 = vld [vmem:[%s7 + $0x1f0] sm:$0xff]
      %v6625 = vld [vmem:[%s7 + $0x1f8] sm:$0xff]
      %v6626 = vld [vmem:[%s15] sm:$0xf]
      %v6628 = vlaneseq
      %v6629 = vshrl.u32 %v6628, 7
      %v6630 = vsub.s32 0, %v6629
      %v6631 = vrot.slane %v6626, %v6630
      %v6632 = vlaneseq
      %v6633 = vshrl.u32 %v6632, 7
      %v6634 = vsub.s32 1, %v6633
      %v6635 = vrot.slane %v6626, %v6634
      %v6636 = vlaneseq
      %v6637 = vshrl.u32 %v6636, 7
      %v6638 = vsub.s32 2, %v6637
      %v6639 = vrot.slane %v6626, %v6638
      %v6640 = vlaneseq
      %v6641 = vshrl.u32 %v6640, 7
      %v6642 = vsub.s32 3, %v6641
      %v6643 = vrot.slane %v6626, %v6642
      %v6712 = vunpack.c.l.b16 %v6562
      %v6713 = vunpack.c.h.b16 %v6562
      %v6714 = vunpack.c.l.b16 %v6563
      %v6715 = vunpack.c.h.b16 %v6563
      %v6716 = vunpack.c.l.b16 %v6564
      %v6717 = vunpack.c.h.b16 %v6564
      %v6718 = vunpack.c.l.b16 %v6565
      %v6719 = vunpack.c.h.b16 %v6565
      %v6720 = vunpack.c.l.b16 %v6566
      %v6721 = vunpack.c.h.b16 %v6566
      %v6722 = vunpack.c.l.b16 %v6567
      %v6723 = vunpack.c.h.b16 %v6567
      %v6724 = vunpack.c.l.b16 %v6568
      %v6725 = vunpack.c.h.b16 %v6568
      %v6726 = vunpack.c.l.b16 %v6569
      %v6727 = vunpack.c.h.b16 %v6569
      %v6728 = vunpack.c.l.b16 %v6570
      %v6729 = vunpack.c.h.b16 %v6570
      %v6730 = vunpack.c.l.b16 %v6571
      %v6731 = vunpack.c.h.b16 %v6571
      %v6732 = vunpack.c.l.b16 %v6572
      %v6733 = vunpack.c.h.b16 %v6572
      %v6734 = vunpack.c.l.b16 %v6573
      %v6735 = vunpack.c.h.b16 %v6573
      %v6736 = vunpack.c.l.b16 %v6574
      %v6737 = vunpack.c.h.b16 %v6574
      %v6738 = vunpack.c.l.b16 %v6575
      %v6739 = vunpack.c.h.b16 %v6575
      %v6740 = vunpack.c.l.b16 %v6576
      %v6741 = vunpack.c.h.b16 %v6576
      %v6742 = vunpack.c.l.b16 %v6577
      %v6743 = vunpack.c.h.b16 %v6577
      %v6744 = vunpack.c.l.b16 %v6578
      %v6745 = vunpack.c.h.b16 %v6578
      %v6746 = vunpack.c.l.b16 %v6579
      %v6747 = vunpack.c.h.b16 %v6579
      %v6748 = vunpack.c.l.b16 %v6580
      %v6749 = vunpack.c.h.b16 %v6580
      %v6750 = vunpack.c.l.b16 %v6581
      %v6751 = vunpack.c.h.b16 %v6581
      %v6752 = vunpack.c.l.b16 %v6582
      %v6753 = vunpack.c.h.b16 %v6582
      %v6754 = vunpack.c.l.b16 %v6583
      %v6755 = vunpack.c.h.b16 %v6583
      %v6756 = vunpack.c.l.b16 %v6584
      %v6757 = vunpack.c.h.b16 %v6584
      %v6758 = vunpack.c.l.b16 %v6585
      %v6759 = vunpack.c.h.b16 %v6585
      %v6760 = vunpack.c.l.b16 %v6586
      %v6761 = vunpack.c.h.b16 %v6586
      %v6762 = vunpack.c.l.b16 %v6587
      %v6763 = vunpack.c.h.b16 %v6587
      %v6764 = vunpack.c.l.b16 %v6588
      %v6765 = vunpack.c.h.b16 %v6588
      %v6766 = vunpack.c.l.b16 %v6589
      %v6767 = vunpack.c.h.b16 %v6589
      %v6768 = vunpack.c.l.b16 %v6590
      %v6769 = vunpack.c.h.b16 %v6590
      %v6770 = vunpack.c.l.b16 %v6591
      %v6771 = vunpack.c.h.b16 %v6591
      %v6772 = vunpack.c.l.b16 %v6592
      %v6773 = vunpack.c.h.b16 %v6592
      %v6774 = vunpack.c.l.b16 %v6593
      %v6775 = vunpack.c.h.b16 %v6593
      %v6776 = vunpack.c.l.b16 %v6594
      %v6777 = vunpack.c.h.b16 %v6594
      %v6778 = vunpack.c.l.b16 %v6595
      %v6779 = vunpack.c.h.b16 %v6595
      %v6780 = vunpack.c.l.b16 %v6596
      %v6781 = vunpack.c.h.b16 %v6596
      %v6782 = vunpack.c.l.b16 %v6597
      %v6783 = vunpack.c.h.b16 %v6597
      %v6784 = vunpack.c.l.b16 %v6598
      %v6785 = vunpack.c.h.b16 %v6598
      %v6786 = vunpack.c.l.b16 %v6599
      %v6787 = vunpack.c.h.b16 %v6599
      %v6788 = vunpack.c.l.b16 %v6600
      %v6789 = vunpack.c.h.b16 %v6600
      %v6790 = vunpack.c.l.b16 %v6601
      %v6791 = vunpack.c.h.b16 %v6601
      %v6792 = vunpack.c.l.b16 %v6602
      %v6793 = vunpack.c.h.b16 %v6602
      %v6794 = vunpack.c.l.b16 %v6603
      %v6795 = vunpack.c.h.b16 %v6603
      %v6796 = vunpack.c.l.b16 %v6604
      %v6797 = vunpack.c.h.b16 %v6604
      %v6798 = vunpack.c.l.b16 %v6605
      %v6799 = vunpack.c.h.b16 %v6605
      %v6800 = vunpack.c.l.b16 %v6606
      %v6801 = vunpack.c.h.b16 %v6606
      %v6802 = vunpack.c.l.b16 %v6607
      %v6803 = vunpack.c.h.b16 %v6607
      %v6804 = vunpack.c.l.b16 %v6608
      %v6805 = vunpack.c.h.b16 %v6608
      %v6806 = vunpack.c.l.b16 %v6609
      %v6807 = vunpack.c.h.b16 %v6609
      %v6808 = vunpack.c.l.b16 %v6610
      %v6809 = vunpack.c.h.b16 %v6610
      %v6810 = vunpack.c.l.b16 %v6611
      %v6811 = vunpack.c.h.b16 %v6611
      %v6812 = vunpack.c.l.b16 %v6612
      %v6813 = vunpack.c.h.b16 %v6612
      %v6814 = vunpack.c.l.b16 %v6613
      %v6815 = vunpack.c.h.b16 %v6613
      %v6816 = vunpack.c.l.b16 %v6614
      %v6817 = vunpack.c.h.b16 %v6614
      %v6818 = vunpack.c.l.b16 %v6615
      %v6819 = vunpack.c.h.b16 %v6615
      %v6820 = vunpack.c.l.b16 %v6616
      %v6821 = vunpack.c.h.b16 %v6616
      %v6822 = vunpack.c.l.b16 %v6617
      %v6823 = vunpack.c.h.b16 %v6617
      %v6824 = vunpack.c.l.b16 %v6618
      %v6825 = vunpack.c.h.b16 %v6618
      %v6826 = vunpack.c.l.b16 %v6619
      %v6827 = vunpack.c.h.b16 %v6619
      %v6828 = vunpack.c.l.b16 %v6620
      %v6829 = vunpack.c.h.b16 %v6620
      %v6830 = vunpack.c.l.b16 %v6621
      %v6831 = vunpack.c.h.b16 %v6621
      %v6832 = vunpack.c.l.b16 %v6622
      %v6833 = vunpack.c.h.b16 %v6622
      %v6834 = vunpack.c.l.b16 %v6623
      %v6835 = vunpack.c.h.b16 %v6623
      %v6836 = vunpack.c.l.b16 %v6624
      %v6837 = vunpack.c.h.b16 %v6624
      %v6838 = vunpack.c.l.b16 %v6625
      %v6839 = vunpack.c.h.b16 %v6625
      %v6840 = vpack.c.b16 %v6716, %v6712
      %v6841 = vpack.c.b16 %v6717, %v6713
      %v6842 = vpack.c.b16 %v6718, %v6714
      %v6843 = vpack.c.b16 %v6719, %v6715
      %v6844 = vpack.c.b16 %v6724, %v6720
      %v6845 = vpack.c.b16 %v6725, %v6721
      %v6846 = vpack.c.b16 %v6726, %v6722
      %v6847 = vpack.c.b16 %v6727, %v6723
      %v6848 = vpack.c.b16 %v6732, %v6728
      %v6849 = vpack.c.b16 %v6733, %v6729
      %v6850 = vpack.c.b16 %v6734, %v6730
      %v6851 = vpack.c.b16 %v6735, %v6731
      %v6852 = vpack.c.b16 %v6740, %v6736
      %v6853 = vpack.c.b16 %v6741, %v6737
      %v6854 = vpack.c.b16 %v6742, %v6738
      %v6855 = vpack.c.b16 %v6743, %v6739
      %v6856 = vpack.c.b16 %v6748, %v6744
      %v6857 = vpack.c.b16 %v6749, %v6745
      %v6858 = vpack.c.b16 %v6750, %v6746
      %v6859 = vpack.c.b16 %v6751, %v6747
      %v6860 = vpack.c.b16 %v6756, %v6752
      %v6861 = vpack.c.b16 %v6757, %v6753
      %v6862 = vpack.c.b16 %v6758, %v6754
      %v6863 = vpack.c.b16 %v6759, %v6755
      %v6864 = vpack.c.b16 %v6764, %v6760
      %v6865 = vpack.c.b16 %v6765, %v6761
      %v6866 = vpack.c.b16 %v6766, %v6762
      %v6867 = vpack.c.b16 %v6767, %v6763
      %v6868 = vpack.c.b16 %v6772, %v6768
      %v6869 = vpack.c.b16 %v6773, %v6769
      %v6870 = vpack.c.b16 %v6774, %v6770
      %v6871 = vpack.c.b16 %v6775, %v6771
      %v6872 = vpack.c.b16 %v6780, %v6776
      %v6873 = vpack.c.b16 %v6781, %v6777
      %v6874 = vpack.c.b16 %v6782, %v6778
      %v6875 = vpack.c.b16 %v6783, %v6779
      %v6876 = vpack.c.b16 %v6788, %v6784
      %v6877 = vpack.c.b16 %v6789, %v6785
      %v6878 = vpack.c.b16 %v6790, %v6786
      %v6879 = vpack.c.b16 %v6791, %v6787
      %v6880 = vpack.c.b16 %v6796, %v6792
      %v6881 = vpack.c.b16 %v6797, %v6793
      %v6882 = vpack.c.b16 %v6798, %v6794
      %v6883 = vpack.c.b16 %v6799, %v6795
      %v6884 = vpack.c.b16 %v6804, %v6800
      %v6885 = vpack.c.b16 %v6805, %v6801
      %v6886 = vpack.c.b16 %v6806, %v6802
      %v6887 = vpack.c.b16 %v6807, %v6803
      %v6888 = vpack.c.b16 %v6812, %v6808
      %v6889 = vpack.c.b16 %v6813, %v6809
      %v6890 = vpack.c.b16 %v6814, %v6810
      %v6891 = vpack.c.b16 %v6815, %v6811
      %v6892 = vpack.c.b16 %v6820, %v6816
      %v6893 = vpack.c.b16 %v6821, %v6817
      %v6894 = vpack.c.b16 %v6822, %v6818
      %v6895 = vpack.c.b16 %v6823, %v6819
      %v6896 = vpack.c.b16 %v6828, %v6824
      %v6897 = vpack.c.b16 %v6829, %v6825
      %v6898 = vpack.c.b16 %v6830, %v6826
      %v6899 = vpack.c.b16 %v6831, %v6827
      %v6900 = vpack.c.b16 %v6836, %v6832
      %v6901 = vpack.c.b16 %v6837, %v6833
      %v6902 = vpack.c.b16 %v6838, %v6834
      %v6903 = vpack.c.b16 %v6839, %v6835
      %6968 = vmatprep.subr.bf16.mxu0 %v6841
      %6969 = vmatpush1.bf16.msra.mxu0 %v6840
      %6970 = vmatprep.subr.bf16.mxu0 %v6845
      %6971 = vmatpush1.bf16.msra.mxu0 %v6844
      %6972 = vmatprep.subr.bf16.mxu0 %v6849
      %6973 = vmatpush1.bf16.msra.mxu0 %v6848
      %6974 = vmatprep.subr.bf16.mxu0 %v6853
      %6975 = vmatpush1.bf16.msra.mxu0 %v6852
      %6976 = vmatprep.subr.bf16.mxu0 %v6857
      %6977 = vmatpush1.bf16.msra.mxu0 %v6856
      %6978 = vmatprep.subr.bf16.mxu0 %v6861
      %6979 = vmatpush1.bf16.msra.mxu0 %v6860
      %6980 = vmatprep.subr.bf16.mxu0 %v6865
      %6981 = vmatpush1.bf16.msra.mxu0 %v6864
      %6982 = vmatprep.subr.bf16.mxu0 %v6869
      %6983 = vmatpush1.bf16.msra.mxu0 %v6868
      %6984 = vmatprep.subr.bf16.mxu0 %v6873
      %6985 = vmatpush1.bf16.msra.mxu0 %v6872
      %6986 = vmatprep.subr.bf16.mxu0 %v6877
      %6987 = vmatpush1.bf16.msra.mxu0 %v6876
      %6988 = vmatprep.subr.bf16.mxu0 %v6881
      %6989 = vmatpush1.bf16.msra.mxu0 %v6880
      %6990 = vmatprep.subr.bf16.mxu0 %v6885
      %6991 = vmatpush1.bf16.msra.mxu0 %v6884
      %6992 = vmatprep.subr.bf16.mxu0 %v6889
      %6993 = vmatpush1.bf16.msra.mxu0 %v6888
      %6994 = vmatprep.subr.bf16.mxu0 %v6893
      %6995 = vmatpush1.bf16.msra.mxu0 %v6892
      %6996 = vmatprep.subr.bf16.mxu0 %v6897
      %6997 = vmatpush1.bf16.msra.mxu0 %v6896
      %6998 = vmatprep.subr.bf16.mxu0 %v6901
      %6999 = vmatpush1.bf16.msra.mxu0 %v6900
      %7000 = vmatprep.mubr.bf16.mxu0 %v6531
      %7001 = vmatmul.mubr.bf16.gmra.mrb[0].mxu0 %v6530
      %v7002 = vpop.f32.mrb[0].mxu0
      %v7003 = vadd.f32 %v6631, %v7002
      %v7004 = vpop.f32.mrb[0].mxu0
      %v7005 = vadd.f32 %v6635, %v7004
      %v7006 = vpop.f32.mrb[0].mxu0
      %v7007 = vadd.f32 %v6631, %v7006
      %v7008 = vpop.f32.mrb[0].mxu0
      %v7009 = vadd.f32 %v6635, %v7008
      %7010 = vmatprep.mubr.bf16.mxu0 %v6533
      %7011 = vmatmul.mubr.bf16.gmra.mrb[0].mxu0 %v6532
      %v7012 = vpop.f32.mrb[0].mxu0
      %v7013 = vadd.f32 %v6631, %v7012
      %v7014 = vpop.f32.mrb[0].mxu0
      %v7015 = vadd.f32 %v6635, %v7014
      %v7016 = vpop.f32.mrb[0].mxu0
      %v7017 = vadd.f32 %v6631, %v7016
      %v7018 = vpop.f32.mrb[0].mxu0
      %v7019 = vadd.f32 %v6635, %v7018
      %7020 = vmatprep.mubr.bf16.mxu0 %v6535
      %7021 = vmatmul.mubr.bf16.gmra.mrb[0].mxu0 %v6534
      %v7022 = vpop.f32.mrb[0].mxu0
      %v7023 = vadd.f32 %v6631, %v7022
      %v7024 = vpop.f32.mrb[0].mxu0
      %v7025 = vadd.f32 %v6635, %v7024
      %v7026 = vpop.f32.mrb[0].mxu0
      %v7027 = vadd.f32 %v6631, %v7026
      %v7028 = vpop.f32.mrb[0].mxu0
      %v7029 = vadd.f32 %v6635, %v7028
      %7030 = vmatprep.mubr.bf16.mxu0 %v6537
      %7031 = vmatmul.mubr.bf16.gmra.mrb[0].mxu0 %v6536
      %v7032 = vpop.f32.mrb[0].mxu0
      %v7033 = vadd.f32 %v6631, %v7032
      %v7034 = vpop.f32.mrb[0].mxu0
      %v7035 = vadd.f32 %v6635, %v7034
      %v7036 = vpop.f32.mrb[0].mxu0
      %v7037 = vadd.f32 %v6631, %v7036
      %v7038 = vpop.f32.mrb[0].mxu0
      %v7039 = vadd.f32 %v6635, %v7038
      %7040 = vmatprep.mubr.bf16.mxu0 %v6539
      %7041 = vmatmul.mubr.bf16.gmra.mrb[0].mxu0 %v6538
      %v7042 = vpop.f32.mrb[0].mxu0
      %v7043 = vadd.f32 %v6631, %v7042
      %v7044 = vpop.f32.mrb[0].mxu0
      %v7045 = vadd.f32 %v6635, %v7044
      %v7046 = vpop.f32.mrb[0].mxu0
      %v7047 = vadd.f32 %v6631, %v7046
      %v7048 = vpop.f32.mrb[0].mxu0
      %v7049 = vadd.f32 %v6635, %v7048
      %7050 = vmatprep.mubr.bf16.mxu0 %v6541
      %7051 = vmatmul.mubr.bf16.gmra.mrb[0].mxu0 %v6540
      %v7052 = vpop.f32.mrb[0].mxu0
      %v7053 = vadd.f32 %v6631, %v7052
      %v7054 = vpop.f32.mrb[0].mxu0
      %v7055 = vadd.f32 %v6635, %v7054
      %v7056 = vpop.f32.mrb[0].mxu0
      %v7057 = vadd.f32 %v6631, %v7056
      %v7058 = vpop.f32.mrb[0].mxu0
      %v7059 = vadd.f32 %v6635, %v7058
      %7060 = vmatprep.mubr.bf16.mxu0 %v6543
      %7061 = vmatmul.mubr.bf16.gmra.mrb[0].mxu0 %v6542
      %v7062 = vpop.f32.mrb[0].mxu0
      %v7063 = vadd.f32 %v6631, %v7062
      %v7064 = vpop.f32.mrb[0].mxu0
      %v7065 = vadd.f32 %v6635, %v7064
      %v7066 = vpop.f32.mrb[0].mxu0
      %v7067 = vadd.f32 %v6631, %v7066
      %v7068 = vpop.f32.mrb[0].mxu0
      %v7069 = vadd.f32 %v6635, %v7068
      %7070 = vmatprep.mubr.bf16.mxu0 %v6545
      %7071 = vmatmul.mubr.bf16.gmra.mrb[0].mxu0 %v6544
      %v7072 = vpop.f32.mrb[0].mxu0
      %v7073 = vadd.f32 %v6631, %v7072
      %v7074 = vpop.f32.mrb[0].mxu0
      %v7075 = vadd.f32 %v6635, %v7074
      %v7076 = vpop.f32.mrb[0].mxu0
      %v7077 = vadd.f32 %v6631, %v7076
      %v7078 = vpop.f32.mrb[0].mxu0
      %v7079 = vadd.f32 %v6635, %v7078
      %7080 = vmatprep.mubr.bf16.mxu0 %v6547
      %7081 = vmatmul.mubr.bf16.gmra.mrb[0].mxu0 %v6546
      %v7082 = vpop.f32.mrb[0].mxu0
      %v7083 = vadd.f32 %v6631, %v7082
      %v7084 = vpop.f32.mrb[0].mxu0
      %v7085 = vadd.f32 %v6635, %v7084
      %v7086 = vpop.f32.mrb[0].mxu0
      %v7087 = vadd.f32 %v6631, %v7086
      %v7088 = vpop.f32.mrb[0].mxu0
      %v7089 = vadd.f32 %v6635, %v7088
      %7090 = vmatprep.mubr.bf16.mxu0 %v6549
      %7091 = vmatmul.mubr.bf16.gmra.mrb[0].mxu0 %v6548
      %v7092 = vpop.f32.mrb[0].mxu0
      %v7093 = vadd.f32 %v6631, %v7092
      %v7094 = vpop.f32.mrb[0].mxu0
      %v7095 = vadd.f32 %v6635, %v7094
      %v7096 = vpop.f32.mrb[0].mxu0
      %v7097 = vadd.f32 %v6631, %v7096
      %v7098 = vpop.f32.mrb[0].mxu0
      %v7099 = vadd.f32 %v6635, %v7098
      %7100 = vmatprep.mubr.bf16.mxu0 %v6551
      %7101 = vmatmul.mubr.bf16.gmra.mrb[0].mxu0 %v6550
      %v7102 = vpop.f32.mrb[0].mxu0
      %v7103 = vadd.f32 %v6631, %v7102
      %v7104 = vpop.f32.mrb[0].mxu0
      %v7105 = vadd.f32 %v6635, %v7104
      %v7106 = vpop.f32.mrb[0].mxu0
      %v7107 = vadd.f32 %v6631, %v7106
      %v7108 = vpop.f32.mrb[0].mxu0
      %v7109 = vadd.f32 %v6635, %v7108
      %7110 = vmatprep.mubr.bf16.mxu0 %v6553
      %7111 = vmatmul.mubr.bf16.gmra.mrb[0].mxu0 %v6552
      %v7112 = vpop.f32.mrb[0].mxu0
      %v7113 = vadd.f32 %v6631, %v7112
      %v7114 = vpop.f32.mrb[0].mxu0
      %v7115 = vadd.f32 %v6635, %v7114
      %v7116 = vpop.f32.mrb[0].mxu0
      %v7117 = vadd.f32 %v6631, %v7116
      %v7118 = vpop.f32.mrb[0].mxu0
      %v7119 = vadd.f32 %v6635, %v7118
      %7120 = vmatprep.mubr.bf16.mxu0 %v6555
      %7121 = vmatmul.mubr.bf16.gmra.mrb[0].mxu0 %v6554
      %v7122 = vpop.f32.mrb[0].mxu0
      %v7123 = vadd.f32 %v6631, %v7122
      %v7124 = vpop.f32.mrb[0].mxu0
      %v7125 = vadd.f32 %v6635, %v7124
      %v7126 = vpop.f32.mrb[0].mxu0
      %v7127 = vadd.f32 %v6631, %v7126
      %v7128 = vpop.f32.mrb[0].mxu0
      %v7129 = vadd.f32 %v6635, %v7128
      %7130 = vmatprep.mubr.bf16.mxu0 %v6557
      %7131 = vmatmul.mubr.bf16.gmra.mrb[0].mxu0 %v6556
      %v7132 = vpop.f32.mrb[0].mxu0
      %v7133 = vadd.f32 %v6631, %v7132
      %v7134 = vpop.f32.mrb[0].mxu0
      %v7135 = vadd.f32 %v6635, %v7134
      %v7136 = vpop.f32.mrb[0].mxu0
      %v7137 = vadd.f32 %v6631, %v7136
      %v7138 = vpop.f32.mrb[0].mxu0
      %v7139 = vadd.f32 %v6635, %v7138
      %7140 = vmatprep.mubr.bf16.mxu0 %v6559
      %7141 = vmatmul.mubr.bf16.gmra.mrb[0].mxu0 %v6558
      %v7142 = vpop.f32.mrb[0].mxu0
      %v7143 = vadd.f32 %v6631, %v7142
      %v7144 = vpop.f32.mrb[0].mxu0
      %v7145 = vadd.f32 %v6635, %v7144
      %v7146 = vpop.f32.mrb[0].mxu0
      %v7147 = vadd.f32 %v6631, %v7146
      %v7148 = vpop.f32.mrb[0].mxu0
      %v7149 = vadd.f32 %v6635, %v7148
      %7150 = vmatprep.mubr.bf16.mxu0 %v6561
      %7151 = vmatmul.mubr.bf16.gmra.mrb[0].mxu0 %v6560
      %v7152 = vpop.f32.mrb[0].mxu0
      %v7153 = vadd.f32 %v6631, %v7152
      %v7154 = vpop.f32.mrb[0].mxu0
      %v7155 = vadd.f32 %v6635, %v7154
      %v7156 = vpop.f32.mrb[0].mxu0
      %v7157 = vadd.f32 %v6631, %v7156
      %v7158 = vpop.f32.mrb[0].mxu0
      %v7159 = vadd.f32 %v6635, %v7158
      %7160 = vdwg.mxu0
      %7161 = vmatprep.subr.bf16.mxu0 %v6843
      %7162 = vmatpush1.bf16.msra.mxu0 %v6842
      %7163 = vmatprep.subr.bf16.mxu0 %v6847
      %7164 = vmatpush1.bf16.msra.mxu0 %v6846
      %7165 = vmatprep.subr.bf16.mxu0 %v6851
      %7166 = vmatpush1.bf16.msra.mxu0 %v6850
      %7167 = vmatprep.subr.bf16.mxu0 %v6855
      %7168 = vmatpush1.bf16.msra.mxu0 %v6854
      %7169 = vmatprep.subr.bf16.mxu0 %v6859
      %7170 = vmatpush1.bf16.msra.mxu0 %v6858
      %7171 = vmatprep.subr.bf16.mxu0 %v6863
      %7172 = vmatpush1.bf16.msra.mxu0 %v6862
      %7173 = vmatprep.subr.bf16.mxu0 %v6867
      %7174 = vmatpush1.bf16.msra.mxu0 %v6866
      %7175 = vmatprep.subr.bf16.mxu0 %v6871
      %7176 = vmatpush1.bf16.msra.mxu0 %v6870
      %7177 = vmatprep.subr.bf16.mxu0 %v6875
      %7178 = vmatpush1.bf16.msra.mxu0 %v6874
      %7179 = vmatprep.subr.bf16.mxu0 %v6879
      %7180 = vmatpush1.bf16.msra.mxu0 %v6878
      %7181 = vmatprep.subr.bf16.mxu0 %v6883
      %7182 = vmatpush1.bf16.msra.mxu0 %v6882
      %7183 = vmatprep.subr.bf16.mxu0 %v6887
      %7184 = vmatpush1.bf16.msra.mxu0 %v6886
      %7185 = vmatprep.subr.bf16.mxu0 %v6891
      %7186 = vmatpush1.bf16.msra.mxu0 %v6890
      %7187 = vmatprep.subr.bf16.mxu0 %v6895
      %7188 = vmatpush1.bf16.msra.mxu0 %v6894
      %7189 = vmatprep.subr.bf16.mxu0 %v6899
      %7190 = vmatpush1.bf16.msra.mxu0 %v6898
      %7191 = vmatprep.subr.bf16.mxu0 %v6903
      %7192 = vmatpush1.bf16.msra.mxu0 %v6902
      %7193 = vmatprep.mubr.bf16.mxu0 %v6531
      %7194 = vmatmul.mubr.bf16.gmra.mrb[0].mxu0 %v6530
      %v7195 = vpop.f32.mrb[0].mxu0
      %v7196 = vadd.f32 %v6639, %v7195
      %v7197 = vpop.f32.mrb[0].mxu0
      %v7198 = vadd.f32 %v6643, %v7197
      %v7199 = vpop.f32.mrb[0].mxu0
      %v7200 = vadd.f32 %v6639, %v7199
      %v7201 = vpop.f32.mrb[0].mxu0
      %v7202 = vadd.f32 %v6643, %v7201
      %7203 = vmatprep.mubr.bf16.mxu0 %v6533
      %7204 = vmatmul.mubr.bf16.gmra.mrb[0].mxu0 %v6532
      %v7205 = vpop.f32.mrb[0].mxu0
      %v7206 = vadd.f32 %v6639, %v7205
      %v7207 = vpop.f32.mrb[0].mxu0
      %v7208 = vadd.f32 %v6643, %v7207
      %v7209 = vpop.f32.mrb[0].mxu0
      %v7210 = vadd.f32 %v6639, %v7209
      %v7211 = vpop.f32.mrb[0].mxu0
      %v7212 = vadd.f32 %v6643, %v7211
      %7213 = vmatprep.mubr.bf16.mxu0 %v6535
      %7214 = vmatmul.mubr.bf16.gmra.mrb[0].mxu0 %v6534
      %v7215 = vpop.f32.mrb[0].mxu0
      %v7216 = vadd.f32 %v6639, %v7215
      %v7217 = vpop.f32.mrb[0].mxu0
      %v7218 = vadd.f32 %v6643, %v7217
      %v7219 = vpop.f32.mrb[0].mxu0
      %v7220 = vadd.f32 %v6639, %v7219
      %v7221 = vpop.f32.mrb[0].mxu0
      %v7222 = vadd.f32 %v6643, %v7221
      %7223 = vmatprep.mubr.bf16.mxu0 %v6537
      %7224 = vmatmul.mubr.bf16.gmra.mrb[0].mxu0 %v6536
      %v7225 = vpop.f32.mrb[0].mxu0
      %v7226 = vadd.f32 %v6639, %v7225
      %v7227 = vpop.f32.mrb[0].mxu0
      %v7228 = vadd.f32 %v6643, %v7227
      %v7229 = vpop.f32.mrb[0].mxu0
      %v7230 = vadd.f32 %v6639, %v7229
      %v7231 = vpop.f32.mrb[0].mxu0
      %v7232 = vadd.f32 %v6643, %v7231
      %7233 = vmatprep.mubr.bf16.mxu0 %v6539
      %7234 = vmatmul.mubr.bf16.gmra.mrb[0].mxu0 %v6538
      %v7235 = vpop.f32.mrb[0].mxu0
      %v7236 = vadd.f32 %v6639, %v7235
      %v7237 = vpop.f32.mrb[0].mxu0
      %v7238 = vadd.f32 %v6643, %v7237
      %v7239 = vpop.f32.mrb[0].mxu0
      %v7240 = vadd.f32 %v6639, %v7239
      %v7241 = vpop.f32.mrb[0].mxu0
      %v7242 = vadd.f32 %v6643, %v7241
      %7243 = vmatprep.mubr.bf16.mxu0 %v6541
      %7244 = vmatmul.mubr.bf16.gmra.mrb[0].mxu0 %v6540
      %v7245 = vpop.f32.mrb[0].mxu0
      %v7246 = vadd.f32 %v6639, %v7245
      %v7247 = vpop.f32.mrb[0].mxu0
      %v7248 = vadd.f32 %v6643, %v7247
      %v7249 = vpop.f32.mrb[0].mxu0
      %v7250 = vadd.f32 %v6639, %v7249
      %v7251 = vpop.f32.mrb[0].mxu0
      %v7252 = vadd.f32 %v6643, %v7251
      %7253 = vmatprep.mubr.bf16.mxu0 %v6543
      %7254 = vmatmul.mubr.bf16.gmra.mrb[0].mxu0 %v6542
      %v7255 = vpop.f32.mrb[0].mxu0
      %v7256 = vadd.f32 %v6639, %v7255
      %v7257 = vpop.f32.mrb[0].mxu0
      %v7258 = vadd.f32 %v6643, %v7257
      %v7259 = vpop.f32.mrb[0].mxu0
      %v7260 = vadd.f32 %v6639, %v7259
      %v7261 = vpop.f32.mrb[0].mxu0
      %v7262 = vadd.f32 %v6643, %v7261
      %7263 = vmatprep.mubr.bf16.mxu0 %v6545
      %7264 = vmatmul.mubr.bf16.gmra.mrb[0].mxu0 %v6544
      %v7265 = vpop.f32.mrb[0].mxu0
      %v7266 = vadd.f32 %v6639, %v7265
      %v7267 = vpop.f32.mrb[0].mxu0
      %v7268 = vadd.f32 %v6643, %v7267
      %v7269 = vpop.f32.mrb[0].mxu0
      %v7270 = vadd.f32 %v6639, %v7269
      %v7271 = vpop.f32.mrb[0].mxu0
      %v7272 = vadd.f32 %v6643, %v7271
      %7273 = vmatprep.mubr.bf16.mxu0 %v6547
      %7274 = vmatmul.mubr.bf16.gmra.mrb[0].mxu0 %v6546
      %v7275 = vpop.f32.mrb[0].mxu0
      %v7276 = vadd.f32 %v6639, %v7275
      %v7277 = vpop.f32.mrb[0].mxu0
      %v7278 = vadd.f32 %v6643, %v7277
      %v7279 = vpop.f32.mrb[0].mxu0
      %v7280 = vadd.f32 %v6639, %v7279
      %v7281 = vpop.f32.mrb[0].mxu0
      %v7282 = vadd.f32 %v6643, %v7281
      %7283 = vmatprep.mubr.bf16.mxu0 %v6549
      %7284 = vmatmul.mubr.bf16.gmra.mrb[0].mxu0 %v6548
      %v7285 = vpop.f32.mrb[0].mxu0
      %v7286 = vadd.f32 %v6639, %v7285
      %v7287 = vpop.f32.mrb[0].mxu0
      %v7288 = vadd.f32 %v6643, %v7287
      %v7289 = vpop.f32.mrb[0].mxu0
      %v7290 = vadd.f32 %v6639, %v7289
      %v7291 = vpop.f32.mrb[0].mxu0
      %v7292 = vadd.f32 %v6643, %v7291
      %7293 = vmatprep.mubr.bf16.mxu0 %v6551
      %7294 = vmatmul.mubr.bf16.gmra.mrb[0].mxu0 %v6550
      %v7295 = vpop.f32.mrb[0].mxu0
      %v7296 = vadd.f32 %v6639, %v7295
      %v7297 = vpop.f32.mrb[0].mxu0
      %v7298 = vadd.f32 %v6643, %v7297
      %v7299 = vpop.f32.mrb[0].mxu0
      %v7300 = vadd.f32 %v6639, %v7299
      %v7301 = vpop.f32.mrb[0].mxu0
      %v7302 = vadd.f32 %v6643, %v7301
      %7303 = vmatprep.mubr.bf16.mxu0 %v6553
      %7304 = vmatmul.mubr.bf16.gmra.mrb[0].mxu0 %v6552
      %v7305 = vpop.f32.mrb[0].mxu0
      %v7306 = vadd.f32 %v6639, %v7305
      %v7307 = vpop.f32.mrb[0].mxu0
      %v7308 = vadd.f32 %v6643, %v7307
      %v7309 = vpop.f32.mrb[0].mxu0
      %v7310 = vadd.f32 %v6639, %v7309
      %v7311 = vpop.f32.mrb[0].mxu0
      %v7312 = vadd.f32 %v6643, %v7311
      %7313 = vmatprep.mubr.bf16.mxu0 %v6555
      %7314 = vmatmul.mubr.bf16.gmra.mrb[0].mxu0 %v6554
      %v7315 = vpop.f32.mrb[0].mxu0
      %v7316 = vadd.f32 %v6639, %v7315
      %v7317 = vpop.f32.mrb[0].mxu0
      %v7318 = vadd.f32 %v6643, %v7317
      %v7319 = vpop.f32.mrb[0].mxu0
      %v7320 = vadd.f32 %v6639, %v7319
      %v7321 = vpop.f32.mrb[0].mxu0
      %v7322 = vadd.f32 %v6643, %v7321
      %7323 = vmatprep.mubr.bf16.mxu0 %v6557
      %7324 = vmatmul.mubr.bf16.gmra.mrb[0].mxu0 %v6556
      %v7325 = vpop.f32.mrb[0].mxu0
      %v7326 = vadd.f32 %v6639, %v7325
      %v7327 = vpop.f32.mrb[0].mxu0
      %v7328 = vadd.f32 %v6643, %v7327
      %v7329 = vpop.f32.mrb[0].mxu0
      %v7330 = vadd.f32 %v6639, %v7329
      %v7331 = vpop.f32.mrb[0].mxu0
      %v7332 = vadd.f32 %v6643, %v7331
      %7333 = vmatprep.mubr.bf16.mxu0 %v6559
      %7334 = vmatmul.mubr.bf16.gmra.mrb[0].mxu0 %v6558
      %v7335 = vpop.f32.mrb[0].mxu0
      %v7336 = vadd.f32 %v6639, %v7335
      %v7337 = vpop.f32.mrb[0].mxu0
      %v7338 = vadd.f32 %v6643, %v7337
      %v7339 = vpop.f32.mrb[0].mxu0
      %v7340 = vadd.f32 %v6639, %v7339
      %v7341 = vpop.f32.mrb[0].mxu0
      %v7342 = vadd.f32 %v6643, %v7341
      %7343 = vmatprep.mubr.bf16.mxu0 %v6561
      %7344 = vmatmul.mubr.bf16.gmra.mrb[0].mxu0 %v6560
      %v7345 = vpop.f32.mrb[0].mxu0
      %v7346 = vadd.f32 %v6639, %v7345
      %v7347 = vpop.f32.mrb[0].mxu0
      %v7348 = vadd.f32 %v6643, %v7347
      %v7349 = vpop.f32.mrb[0].mxu0
      %v7350 = vadd.f32 %v6639, %v7349
      %v7351 = vpop.f32.mrb[0].mxu0
      %v7352 = vadd.f32 %v6643, %v7351
      %7353 = vdwg.mxu0
      %v7354 = vmax.f32 %v7003, 0.0
      %v7355 = vmax.f32 %v7005, 0.0
      %v7356 = vmax.f32 %v7196, 0.0
      %v7357 = vmax.f32 %v7198, 0.0
      %v7358 = vmax.f32 %v7007, 0.0
      %v7359 = vmax.f32 %v7009, 0.0
      %v7360 = vmax.f32 %v7200, 0.0
      %v7361 = vmax.f32 %v7202, 0.0
      %v7362 = vmax.f32 %v7013, 0.0
      %v7363 = vmax.f32 %v7015, 0.0
      %v7364 = vmax.f32 %v7206, 0.0
      %v7365 = vmax.f32 %v7208, 0.0
      %v7366 = vmax.f32 %v7017, 0.0
      %v7367 = vmax.f32 %v7019, 0.0
      %v7368 = vmax.f32 %v7210, 0.0
      %v7369 = vmax.f32 %v7212, 0.0
      %v7370 = vmax.f32 %v7023, 0.0
      %v7371 = vmax.f32 %v7025, 0.0
      %v7372 = vmax.f32 %v7216, 0.0
      %v7373 = vmax.f32 %v7218, 0.0
      %v7374 = vmax.f32 %v7027, 0.0
      %v7375 = vmax.f32 %v7029, 0.0
      %v7376 = vmax.f32 %v7220, 0.0
      %v7377 = vmax.f32 %v7222, 0.0
      %v7378 = vmax.f32 %v7033, 0.0
      %v7379 = vmax.f32 %v7035, 0.0
      %v7380 = vmax.f32 %v7226, 0.0
      %v7381 = vmax.f32 %v7228, 0.0
      %v7382 = vmax.f32 %v7037, 0.0
      %v7383 = vmax.f32 %v7039, 0.0
      %v7384 = vmax.f32 %v7230, 0.0
      %v7385 = vmax.f32 %v7232, 0.0
      %v7386 = vmax.f32 %v7043, 0.0
      %v7387 = vmax.f32 %v7045, 0.0
      %v7388 = vmax.f32 %v7236, 0.0
      %v7389 = vmax.f32 %v7238, 0.0
      %v7390 = vmax.f32 %v7047, 0.0
      %v7391 = vmax.f32 %v7049, 0.0
      %v7392 = vmax.f32 %v7240, 0.0
      %v7393 = vmax.f32 %v7242, 0.0
      %v7394 = vmax.f32 %v7053, 0.0
      %v7395 = vmax.f32 %v7055, 0.0
      %v7396 = vmax.f32 %v7246, 0.0
      %v7397 = vmax.f32 %v7248, 0.0
      %v7398 = vmax.f32 %v7057, 0.0
      %v7399 = vmax.f32 %v7059, 0.0
      %v7400 = vmax.f32 %v7250, 0.0
      %v7401 = vmax.f32 %v7252, 0.0
      %v7402 = vmax.f32 %v7063, 0.0
      %v7403 = vmax.f32 %v7065, 0.0
      %v7404 = vmax.f32 %v7256, 0.0
      %v7405 = vmax.f32 %v7258, 0.0
      %v7406 = vmax.f32 %v7067, 0.0
      %v7407 = vmax.f32 %v7069, 0.0
      %v7408 = vmax.f32 %v7260, 0.0
      %v7409 = vmax.f32 %v7262, 0.0
      %v7410 = vmax.f32 %v7073, 0.0
      %v7411 = vmax.f32 %v7075, 0.0
      %v7412 = vmax.f32 %v7266, 0.0
      %v7413 = vmax.f32 %v7268, 0.0
      %v7414 = vmax.f32 %v7077, 0.0
      %v7415 = vmax.f32 %v7079, 0.0
      %v7416 = vmax.f32 %v7270, 0.0
      %v7417 = vmax.f32 %v7272, 0.0
      %v7418 = vmax.f32 %v7083, 0.0
      %v7419 = vmax.f32 %v7085, 0.0
      %v7420 = vmax.f32 %v7276, 0.0
      %v7421 = vmax.f32 %v7278, 0.0
      %v7422 = vmax.f32 %v7087, 0.0
      %v7423 = vmax.f32 %v7089, 0.0
      %v7424 = vmax.f32 %v7280, 0.0
      %v7425 = vmax.f32 %v7282, 0.0
      %v7426 = vmax.f32 %v7093, 0.0
      %v7427 = vmax.f32 %v7095, 0.0
      %v7428 = vmax.f32 %v7286, 0.0
      %v7429 = vmax.f32 %v7288, 0.0
      %v7430 = vmax.f32 %v7097, 0.0
      %v7431 = vmax.f32 %v7099, 0.0
      %v7432 = vmax.f32 %v7290, 0.0
      %v7433 = vmax.f32 %v7292, 0.0
      %v7434 = vmax.f32 %v7103, 0.0
      %v7435 = vmax.f32 %v7105, 0.0
      %v7436 = vmax.f32 %v7296, 0.0
      %v7437 = vmax.f32 %v7298, 0.0
      %v7438 = vmax.f32 %v7107, 0.0
      %v7439 = vmax.f32 %v7109, 0.0
      %v7440 = vmax.f32 %v7300, 0.0
      %v7441 = vmax.f32 %v7302, 0.0
      %v7442 = vmax.f32 %v7113, 0.0
      %v7443 = vmax.f32 %v7115, 0.0
      %v7444 = vmax.f32 %v7306, 0.0
      %v7445 = vmax.f32 %v7308, 0.0
      %v7446 = vmax.f32 %v7117, 0.0
      %v7447 = vmax.f32 %v7119, 0.0
      %v7448 = vmax.f32 %v7310, 0.0
      %v7449 = vmax.f32 %v7312, 0.0
      %v7450 = vmax.f32 %v7123, 0.0
      %v7451 = vmax.f32 %v7125, 0.0
      %v7452 = vmax.f32 %v7316, 0.0
      %v7453 = vmax.f32 %v7318, 0.0
      %v7454 = vmax.f32 %v7127, 0.0
      %v7455 = vmax.f32 %v7129, 0.0
      %v7456 = vmax.f32 %v7320, 0.0
      %v7457 = vmax.f32 %v7322, 0.0
      %v7458 = vmax.f32 %v7133, 0.0
      %v7459 = vmax.f32 %v7135, 0.0
      %v7460 = vmax.f32 %v7326, 0.0
      %v7461 = vmax.f32 %v7328, 0.0
      %v7462 = vmax.f32 %v7137, 0.0
      %v7463 = vmax.f32 %v7139, 0.0
      %v7464 = vmax.f32 %v7330, 0.0
      %v7465 = vmax.f32 %v7332, 0.0
      %v7466 = vmax.f32 %v7143, 0.0
      %v7467 = vmax.f32 %v7145, 0.0
      %v7468 = vmax.f32 %v7336, 0.0
      %v7469 = vmax.f32 %v7338, 0.0
      %v7470 = vmax.f32 %v7147, 0.0
      %v7471 = vmax.f32 %v7149, 0.0
      %v7472 = vmax.f32 %v7340, 0.0
      %v7473 = vmax.f32 %v7342, 0.0
      %v7474 = vmax.f32 %v7153, 0.0
      %v7475 = vmax.f32 %v7155, 0.0
      %v7476 = vmax.f32 %v7346, 0.0
      %v7477 = vmax.f32 %v7348, 0.0
      %v7478 = vmax.f32 %v7157, 0.0
      %v7479 = vmax.f32 %v7159, 0.0
      %v7480 = vmax.f32 %v7350, 0.0
      %v7481 = vmax.f32 %v7352, 0.0
      %v7482 = vpack.c.bf16 %v7358, %v7354
      %v7483 = vpack.c.bf16 %v7359, %v7355
      %v7484 = vpack.c.bf16 %v7360, %v7356
      %v7485 = vpack.c.bf16 %v7361, %v7357
      %v7486 = vpack.c.bf16 %v7366, %v7362
      %v7487 = vpack.c.bf16 %v7367, %v7363
      %v7488 = vpack.c.bf16 %v7368, %v7364
      %v7489 = vpack.c.bf16 %v7369, %v7365
      %v7490 = vpack.c.bf16 %v7374, %v7370
      %v7491 = vpack.c.bf16 %v7375, %v7371
      %v7492 = vpack.c.bf16 %v7376, %v7372
      %v7493 = vpack.c.bf16 %v7377, %v7373
      %v7494 = vpack.c.bf16 %v7382, %v7378
      %v7495 = vpack.c.bf16 %v7383, %v7379
      %v7496 = vpack.c.bf16 %v7384, %v7380
      %v7497 = vpack.c.bf16 %v7385, %v7381
      %v7498 = vpack.c.bf16 %v7390, %v7386
      %v7499 = vpack.c.bf16 %v7391, %v7387
      %v7500 = vpack.c.bf16 %v7392, %v7388
      %v7501 = vpack.c.bf16 %v7393, %v7389
      %v7502 = vpack.c.bf16 %v7398, %v7394
      %v7503 = vpack.c.bf16 %v7399, %v7395
      %v7504 = vpack.c.bf16 %v7400, %v7396
      %v7505 = vpack.c.bf16 %v7401, %v7397
      %v7506 = vpack.c.bf16 %v7406, %v7402
      %v7507 = vpack.c.bf16 %v7407, %v7403
      %v7508 = vpack.c.bf16 %v7408, %v7404
      %v7509 = vpack.c.bf16 %v7409, %v7405
      %v7510 = vpack.c.bf16 %v7414, %v7410
      %v7511 = vpack.c.bf16 %v7415, %v7411
      %v7512 = vpack.c.bf16 %v7416, %v7412
      %v7513 = vpack.c.bf16 %v7417, %v7413
      %v7514 = vpack.c.bf16 %v7422, %v7418
      %v7515 = vpack.c.bf16 %v7423, %v7419
      %v7516 = vpack.c.bf16 %v7424, %v7420
      %v7517 = vpack.c.bf16 %v7425, %v7421
      %v7518 = vpack.c.bf16 %v7430, %v7426
      %v7519 = vpack.c.bf16 %v7431, %v7427
      %v7520 = vpack.c.bf16 %v7432, %v7428
      %v7521 = vpack.c.bf16 %v7433, %v7429
      %v7522 = vpack.c.bf16 %v7438, %v7434
      %v7523 = vpack.c.bf16 %v7439, %v7435
      %v7524 = vpack.c.bf16 %v7440, %v7436
      %v7525 = vpack.c.bf16 %v7441, %v7437
      %v7526 = vpack.c.bf16 %v7446, %v7442
      %v7527 = vpack.c.bf16 %v7447, %v7443
      %v7528 = vpack.c.bf16 %v7448, %v7444
      %v7529 = vpack.c.bf16 %v7449, %v7445
      %v7530 = vpack.c.bf16 %v7454, %v7450
      %v7531 = vpack.c.bf16 %v7455, %v7451
      %v7532 = vpack.c.bf16 %v7456, %v7452
      %v7533 = vpack.c.bf16 %v7457, %v7453
      %v7534 = vpack.c.bf16 %v7462, %v7458
      %v7535 = vpack.c.bf16 %v7463, %v7459
      %v7536 = vpack.c.bf16 %v7464, %v7460
      %v7537 = vpack.c.bf16 %v7465, %v7461
      %v7538 = vpack.c.bf16 %v7470, %v7466
      %v7539 = vpack.c.bf16 %v7471, %v7467
      %v7540 = vpack.c.bf16 %v7472, %v7468
      %v7541 = vpack.c.bf16 %v7473, %v7469
      %v7542 = vpack.c.bf16 %v7478, %v7474
      %v7543 = vpack.c.bf16 %v7479, %v7475
      %v7544 = vpack.c.bf16 %v7480, %v7476
      %v7545 = vpack.c.bf16 %v7481, %v7477
      %v7546 = vld [vmem:[%s8] sm:$0xff]
      %v7547 = vld [vmem:[%s8 + $0x8] sm:$0xff]
      %v7548 = vld [vmem:[%s8 + $0x10] sm:$0xff]
      %v7549 = vld [vmem:[%s8 + $0x18] sm:$0xf]
      %v7550 = vld [vmem:[%s8 + $0x1c] sm:$0xff]
      %v7551 = vld [vmem:[%s8 + $0x24] sm:$0xff]
      %v7552 = vld [vmem:[%s8 + $0x2c] sm:$0xff]
      %v7553 = vld [vmem:[%s8 + $0x34] sm:$0xf]
      %v7554 = vld [vmem:[%s8 + $0x38] sm:$0xff]
      %v7555 = vld [vmem:[%s8 + $0x40] sm:$0xff]
      %v7556 = vld [vmem:[%s8 + $0x48] sm:$0xff]
      %v7557 = vld [vmem:[%s8 + $0x50] sm:$0xf]
      %v7558 = vld [vmem:[%s8 + $0x54] sm:$0xff]
      %v7559 = vld [vmem:[%s8 + $0x5c] sm:$0xff]
      %v7560 = vld [vmem:[%s8 + $0x64] sm:$0xff]
      %v7561 = vld [vmem:[%s8 + $0x6c] sm:$0xf]
      %v7562 = vld [vmem:[%s8 + $0x70] sm:$0xff]
      %v7563 = vld [vmem:[%s8 + $0x78] sm:$0xff]
      %v7564 = vld [vmem:[%s8 + $0x80] sm:$0xff]
      %v7565 = vld [vmem:[%s8 + $0x88] sm:$0xf]
      %v7566 = vld [vmem:[%s8 + $0x8c] sm:$0xff]
      %v7567 = vld [vmem:[%s8 + $0x94] sm:$0xff]
      %v7568 = vld [vmem:[%s8 + $0x9c] sm:$0xff]
      %v7569 = vld [vmem:[%s8 + $0xa4] sm:$0xf]
      %v7570 = vld [vmem:[%s8 + $0xa8] sm:$0xff]
      %v7571 = vld [vmem:[%s8 + $0xb0] sm:$0xff]
      %v7572 = vld [vmem:[%s8 + $0xb8] sm:$0xff]
      %v7573 = vld [vmem:[%s8 + $0xc0] sm:$0xf]
      %v7574 = vld [vmem:[%s8 + $0xc4] sm:$0xff]
      %v7575 = vld [vmem:[%s8 + $0xcc] sm:$0xff]
      %v7576 = vld [vmem:[%s8 + $0xd4] sm:$0xff]
      %v7577 = vld [vmem:[%s8 + $0xdc] sm:$0xf]
      %v7578 = vld [vmem:[%s8 + $0xe0] sm:$0xff]
      %v7579 = vld [vmem:[%s8 + $0xe8] sm:$0xff]
      %v7580 = vld [vmem:[%s8 + $0xf0] sm:$0xff]
      %v7581 = vld [vmem:[%s8 + $0xf8] sm:$0xf]
      %v7582 = vld [vmem:[%s8 + $0xfc] sm:$0xff]
      %v7583 = vld [vmem:[%s8 + $0x104] sm:$0xff]
      %v7584 = vld [vmem:[%s8 + $0x10c] sm:$0xff]
      %v7585 = vld [vmem:[%s8 + $0x114] sm:$0xf]
      %v7586 = vld [vmem:[%s8 + $0x118] sm:$0xff]
      %v7587 = vld [vmem:[%s8 + $0x120] sm:$0xff]
      %v7588 = vld [vmem:[%s8 + $0x128] sm:$0xff]
      %v7589 = vld [vmem:[%s8 + $0x130] sm:$0xf]
      %v7590 = vld [vmem:[%s8 + $0x134] sm:$0xff]
      %v7591 = vld [vmem:[%s8 + $0x13c] sm:$0xff]
      %v7592 = vld [vmem:[%s8 + $0x144] sm:$0xff]
      %v7593 = vld [vmem:[%s8 + $0x14c] sm:$0xf]
      %v7594 = vld [vmem:[%s8 + $0x150] sm:$0xff]
      %v7595 = vld [vmem:[%s8 + $0x158] sm:$0xff]
      %v7596 = vld [vmem:[%s8 + $0x160] sm:$0xff]
      %v7597 = vld [vmem:[%s8 + $0x168] sm:$0xf]
      %v7598 = vld [vmem:[%s8 + $0x16c] sm:$0xff]
      %v7599 = vld [vmem:[%s8 + $0x174] sm:$0xff]
      %v7600 = vld [vmem:[%s8 + $0x17c] sm:$0xff]
      %v7601 = vld [vmem:[%s8 + $0x184] sm:$0xf]
      %v7602 = vld [vmem:[%s8 + $0x188] sm:$0xff]
      %v7603 = vld [vmem:[%s8 + $0x190] sm:$0xff]
      %v7604 = vld [vmem:[%s8 + $0x198] sm:$0xff]
      %v7605 = vld [vmem:[%s8 + $0x1a0] sm:$0xf]
      %v7606 = vld [vmem:[%s8 + $0x1a4] sm:$0xff]
      %v7607 = vld [vmem:[%s8 + $0x1ac] sm:$0xff]
      %v7608 = vld [vmem:[%s8 + $0x1b4] sm:$0xff]
      %v7609 = vld [vmem:[%s8 + $0x1bc] sm:$0xf]
      %v7610 = vld [vmem:[%s8 + $0x1c0] sm:$0xff]
      %v7611 = vld [vmem:[%s8 + $0x1c8] sm:$0xff]
      %v7612 = vld [vmem:[%s8 + $0x1d0] sm:$0xff]
      %v7613 = vld [vmem:[%s8 + $0x1d8] sm:$0xf]
      %v7614 = vld [vmem:[%s8 + $0x1dc] sm:$0xff]
      %v7615 = vld [vmem:[%s8 + $0x1e4] sm:$0xff]
      %v7616 = vld [vmem:[%s8 + $0x1ec] sm:$0xff]
      %v7617 = vld [vmem:[%s8 + $0x1f4] sm:$0xf]
      %v7618 = vld [vmem:[%s8 + $0x1f8] sm:$0xff]
      %v7619 = vld [vmem:[%s8 + $0x200] sm:$0xff]
      %v7620 = vld [vmem:[%s8 + $0x208] sm:$0xff]
      %v7621 = vld [vmem:[%s8 + $0x210] sm:$0xf]
      %v7622 = vld [vmem:[%s8 + $0x214] sm:$0xff]
      %v7623 = vld [vmem:[%s8 + $0x21c] sm:$0xff]
      %v7624 = vld [vmem:[%s8 + $0x224] sm:$0xff]
      %v7625 = vld [vmem:[%s8 + $0x22c] sm:$0xf]
      %v7626 = vld [vmem:[%s8 + $0x230] sm:$0xff]
      %v7627 = vld [vmem:[%s8 + $0x238] sm:$0xff]
      %v7628 = vld [vmem:[%s8 + $0x240] sm:$0xff]
      %v7629 = vld [vmem:[%s8 + $0x248] sm:$0xf]
      %v7630 = vld [vmem:[%s8 + $0x24c] sm:$0xff]
      %v7631 = vld [vmem:[%s8 + $0x254] sm:$0xff]
      %v7632 = vld [vmem:[%s8 + $0x25c] sm:$0xff]
      %v7633 = vld [vmem:[%s8 + $0x264] sm:$0xf]
      %v7634 = vld [vmem:[%s8 + $0x268] sm:$0xff]
      %v7635 = vld [vmem:[%s8 + $0x270] sm:$0xff]
      %v7636 = vld [vmem:[%s8 + $0x278] sm:$0xff]
      %v7637 = vld [vmem:[%s8 + $0x280] sm:$0xf]
      %v7638 = vld [vmem:[%s8 + $0x284] sm:$0xff]
      %v7639 = vld [vmem:[%s8 + $0x28c] sm:$0xff]
      %v7640 = vld [vmem:[%s8 + $0x294] sm:$0xff]
      %v7641 = vld [vmem:[%s8 + $0x29c] sm:$0xf]
      %v7642 = vld [vmem:[%s8 + $0x2a0] sm:$0xff]
      %v7643 = vld [vmem:[%s8 + $0x2a8] sm:$0xff]
      %v7644 = vld [vmem:[%s8 + $0x2b0] sm:$0xff]
      %v7645 = vld [vmem:[%s8 + $0x2b8] sm:$0xf]
      %v7646 = vld [vmem:[%s8 + $0x2bc] sm:$0xff]
      %v7647 = vld [vmem:[%s8 + $0x2c4] sm:$0xff]
      %v7648 = vld [vmem:[%s8 + $0x2cc] sm:$0xff]
      %v7649 = vld [vmem:[%s8 + $0x2d4] sm:$0xf]
      %v7650 = vld [vmem:[%s8 + $0x2d8] sm:$0xff]
      %v7651 = vld [vmem:[%s8 + $0x2e0] sm:$0xff]
      %v7652 = vld [vmem:[%s8 + $0x2e8] sm:$0xff]
      %v7653 = vld [vmem:[%s8 + $0x2f0] sm:$0xf]
      %v7654 = vld [vmem:[%s8 + $0x2f4] sm:$0xff]
      %v7655 = vld [vmem:[%s8 + $0x2fc] sm:$0xff]
      %v7656 = vld [vmem:[%s8 + $0x304] sm:$0xff]
      %v7657 = vld [vmem:[%s8 + $0x30c] sm:$0xf]
      %v7658 = vld [vmem:[%s8 + $0x310] sm:$0xff]
      %v7659 = vld [vmem:[%s8 + $0x318] sm:$0xff]
      %v7660 = vld [vmem:[%s8 + $0x320] sm:$0xff]
      %v7661 = vld [vmem:[%s8 + $0x328] sm:$0xf]
      %v7662 = vld [vmem:[%s8 + $0x32c] sm:$0xff]
      %v7663 = vld [vmem:[%s8 + $0x334] sm:$0xff]
      %v7664 = vld [vmem:[%s8 + $0x33c] sm:$0xff]
      %v7665 = vld [vmem:[%s8 + $0x344] sm:$0xf]
      %v7666 = vld [vmem:[%s8 + $0x348] sm:$0xff]
      %v7667 = vld [vmem:[%s8 + $0x350] sm:$0xff]
      %v7668 = vld [vmem:[%s8 + $0x358] sm:$0xff]
      %v7669 = vld [vmem:[%s8 + $0x360] sm:$0xf]
      %v7670 = vld [vmem:[%s8 + $0x364] sm:$0xff]
      %v7671 = vld [vmem:[%s8 + $0x36c] sm:$0xff]
      %v7672 = vld [vmem:[%s8 + $0x374] sm:$0xff]
      %v7673 = vld [vmem:[%s8 + $0x37c] sm:$0xf]
      %v7674 = vld [vmem:[%s8 + $0x380] sm:$0xff]
      %v7675 = vld [vmem:[%s8 + $0x388] sm:$0xff]
      %v7676 = vld [vmem:[%s8 + $0x390] sm:$0xff]
      %v7677 = vld [vmem:[%s8 + $0x398] sm:$0xf]
      %v7678 = vld [vmem:[%s8 + $0x39c] sm:$0xff]
      %v7679 = vld [vmem:[%s8 + $0x3a4] sm:$0xff]
      %v7680 = vld [vmem:[%s8 + $0x3ac] sm:$0xff]
      %v7681 = vld [vmem:[%s8 + $0x3b4] sm:$0xf]
      %v7682 = vld [vmem:[%s8 + $0x3b8] sm:$0xff]
      %v7683 = vld [vmem:[%s8 + $0x3c0] sm:$0xff]
      %v7684 = vld [vmem:[%s8 + $0x3c8] sm:$0xff]
      %v7685 = vld [vmem:[%s8 + $0x3d0] sm:$0xf]
      %v7686 = vld [vmem:[%s8 + $0x3d4] sm:$0xff]
      %v7687 = vld [vmem:[%s8 + $0x3dc] sm:$0xff]
      %v7688 = vld [vmem:[%s8 + $0x3e4] sm:$0xff]
      %v7689 = vld [vmem:[%s8 + $0x3ec] sm:$0xf]
      %v7690 = vld [vmem:[%s8 + $0x3f0] sm:$0xff]
      %v7691 = vld [vmem:[%s8 + $0x3f8] sm:$0xff]
      %v7692 = vld [vmem:[%s8 + $0x400] sm:$0xff]
      %v7693 = vld [vmem:[%s8 + $0x408] sm:$0xf]
      %v7694 = vld [vmem:[%s8 + $0x40c] sm:$0xff]
      %v7695 = vld [vmem:[%s8 + $0x414] sm:$0xff]
      %v7696 = vld [vmem:[%s8 + $0x41c] sm:$0xff]
      %v7697 = vld [vmem:[%s8 + $0x424] sm:$0xf]
      %v7698 = vld [vmem:[%s8 + $0x428] sm:$0xff]
      %v7699 = vld [vmem:[%s8 + $0x430] sm:$0xff]
      %v7700 = vld [vmem:[%s8 + $0x438] sm:$0xff]
      %v7701 = vld [vmem:[%s8 + $0x440] sm:$0xf]
      %v7702 = vld [vmem:[%s8 + $0x444] sm:$0xff]
      %v7703 = vld [vmem:[%s8 + $0x44c] sm:$0xff]
      %v7704 = vld [vmem:[%s8 + $0x454] sm:$0xff]
      %v7705 = vld [vmem:[%s8 + $0x45c] sm:$0xf]
      %v7706 = vld [vmem:[%s8 + $0x460] sm:$0xff]
      %v7707 = vld [vmem:[%s8 + $0x468] sm:$0xff]
      %v7708 = vld [vmem:[%s8 + $0x470] sm:$0xff]
      %v7709 = vld [vmem:[%s8 + $0x478] sm:$0xf]
      %v7710 = vld [vmem:[%s8 + $0x47c] sm:$0xff]
      %v7711 = vld [vmem:[%s8 + $0x484] sm:$0xff]
      %v7712 = vld [vmem:[%s8 + $0x48c] sm:$0xff]
      %v7713 = vld [vmem:[%s8 + $0x494] sm:$0xf]
      %v7714 = vld [vmem:[%s8 + $0x498] sm:$0xff]
      %v7715 = vld [vmem:[%s8 + $0x4a0] sm:$0xff]
      %v7716 = vld [vmem:[%s8 + $0x4a8] sm:$0xff]
      %v7717 = vld [vmem:[%s8 + $0x4b0] sm:$0xf]
      %v7718 = vld [vmem:[%s8 + $0x4b4] sm:$0xff]
      %v7719 = vld [vmem:[%s8 + $0x4bc] sm:$0xff]
      %v7720 = vld [vmem:[%s8 + $0x4c4] sm:$0xff]
      %v7721 = vld [vmem:[%s8 + $0x4cc] sm:$0xf]
      %v7722 = vld [vmem:[%s8 + $0x4d0] sm:$0xff]
      %v7723 = vld [vmem:[%s8 + $0x4d8] sm:$0xff]
      %v7724 = vld [vmem:[%s8 + $0x4e0] sm:$0xff]
      %v7725 = vld [vmem:[%s8 + $0x4e8] sm:$0xf]
      %v7726 = vld [vmem:[%s8 + $0x4ec] sm:$0xff]
      %v7727 = vld [vmem:[%s8 + $0x4f4] sm:$0xff]
      %v7728 = vld [vmem:[%s8 + $0x4fc] sm:$0xff]
      %v7729 = vld [vmem:[%s8 + $0x504] sm:$0xf]
      %v7730 = vld [vmem:[%s8 + $0x508] sm:$0xff]
      %v7731 = vld [vmem:[%s8 + $0x510] sm:$0xff]
      %v7732 = vld [vmem:[%s8 + $0x518] sm:$0xff]
      %v7733 = vld [vmem:[%s8 + $0x520] sm:$0xf]
      %v7734 = vld [vmem:[%s8 + $0x524] sm:$0xff]
      %v7735 = vld [vmem:[%s8 + $0x52c] sm:$0xff]
      %v7736 = vld [vmem:[%s8 + $0x534] sm:$0xff]
      %v7737 = vld [vmem:[%s8 + $0x53c] sm:$0xf]
      %v7738 = vld [vmem:[%s8 + $0x540] sm:$0xff]
      %v7739 = vld [vmem:[%s8 + $0x548] sm:$0xff]
      %v7740 = vld [vmem:[%s8 + $0x550] sm:$0xff]
      %v7741 = vld [vmem:[%s8 + $0x558] sm:$0xf]
      %v7742 = vld [vmem:[%s8 + $0x55c] sm:$0xff]
      %v7743 = vld [vmem:[%s8 + $0x564] sm:$0xff]
      %v7744 = vld [vmem:[%s8 + $0x56c] sm:$0xff]
      %v7745 = vld [vmem:[%s8 + $0x574] sm:$0xf]
      %v7746 = vld [vmem:[%s8 + $0x578] sm:$0xff]
      %v7747 = vld [vmem:[%s8 + $0x580] sm:$0xff]
      %v7748 = vld [vmem:[%s8 + $0x588] sm:$0xff]
      %v7749 = vld [vmem:[%s8 + $0x590] sm:$0xf]
      %v7750 = vld [vmem:[%s8 + $0x594] sm:$0xff]
      %v7751 = vld [vmem:[%s8 + $0x59c] sm:$0xff]
      %v7752 = vld [vmem:[%s8 + $0x5a4] sm:$0xff]
      %v7753 = vld [vmem:[%s8 + $0x5ac] sm:$0xf]
      %v7754 = vld [vmem:[%s8 + $0x5b0] sm:$0xff]
      %v7755 = vld [vmem:[%s8 + $0x5b8] sm:$0xff]
      %v7756 = vld [vmem:[%s8 + $0x5c0] sm:$0xff]
      %v7757 = vld [vmem:[%s8 + $0x5c8] sm:$0xf]
      %v7758 = vld [vmem:[%s8 + $0x5cc] sm:$0xff]
      %v7759 = vld [vmem:[%s8 + $0x5d4] sm:$0xff]
      %v7760 = vld [vmem:[%s8 + $0x5dc] sm:$0xff]
      %v7761 = vld [vmem:[%s8 + $0x5e4] sm:$0xf]
      %v7762 = vld [vmem:[%s8 + $0x5e8] sm:$0xff]
      %v7763 = vld [vmem:[%s8 + $0x5f0] sm:$0xff]
      %v7764 = vld [vmem:[%s8 + $0x5f8] sm:$0xff]
      %v7765 = vld [vmem:[%s8 + $0x600] sm:$0xf]
      %v7766 = vld [vmem:[%s8 + $0x604] sm:$0xff]
      %v7767 = vld [vmem:[%s8 + $0x60c] sm:$0xff]
      %v7768 = vld [vmem:[%s8 + $0x614] sm:$0xff]
      %v7769 = vld [vmem:[%s8 + $0x61c] sm:$0xf]
      %v7770 = vld [vmem:[%s8 + $0x620] sm:$0xff]
      %v7771 = vld [vmem:[%s8 + $0x628] sm:$0xff]
      %v7772 = vld [vmem:[%s8 + $0x630] sm:$0xff]
      %v7773 = vld [vmem:[%s8 + $0x638] sm:$0xf]
      %v7774 = vld [vmem:[%s8 + $0x63c] sm:$0xff]
      %v7775 = vld [vmem:[%s8 + $0x644] sm:$0xff]
      %v7776 = vld [vmem:[%s8 + $0x64c] sm:$0xff]
      %v7777 = vld [vmem:[%s8 + $0x654] sm:$0xf]
      %v7778 = vld [vmem:[%s8 + $0x658] sm:$0xff]
      %v7779 = vld [vmem:[%s8 + $0x660] sm:$0xff]
      %v7780 = vld [vmem:[%s8 + $0x668] sm:$0xff]
      %v7781 = vld [vmem:[%s8 + $0x670] sm:$0xf]
      %v7782 = vld [vmem:[%s8 + $0x674] sm:$0xff]
      %v7783 = vld [vmem:[%s8 + $0x67c] sm:$0xff]
      %v7784 = vld [vmem:[%s8 + $0x684] sm:$0xff]
      %v7785 = vld [vmem:[%s8 + $0x68c] sm:$0xf]
      %v7786 = vld [vmem:[%s8 + $0x690] sm:$0xff]
      %v7787 = vld [vmem:[%s8 + $0x698] sm:$0xff]
      %v7788 = vld [vmem:[%s8 + $0x6a0] sm:$0xff]
      %v7789 = vld [vmem:[%s8 + $0x6a8] sm:$0xf]
      %v7790 = vld [vmem:[%s8 + $0x6ac] sm:$0xff]
      %v7791 = vld [vmem:[%s8 + $0x6b4] sm:$0xff]
      %v7792 = vld [vmem:[%s8 + $0x6bc] sm:$0xff]
      %v7793 = vld [vmem:[%s8 + $0x6c4] sm:$0xf]
      %v7794 = vld [vmem:[%s8 + $0x6c8] sm:$0xff]
      %v7795 = vld [vmem:[%s8 + $0x6d0] sm:$0xff]
      %v7796 = vld [vmem:[%s8 + $0x6d8] sm:$0xff]
      %v7797 = vld [vmem:[%s8 + $0x6e0] sm:$0xf]
      %v7798 = vld [vmem:[%s8 + $0x6e4] sm:$0xff]
      %v7799 = vld [vmem:[%s8 + $0x6ec] sm:$0xff]
      %v7800 = vld [vmem:[%s8 + $0x6f4] sm:$0xff]
      %v7801 = vld [vmem:[%s8 + $0x6fc] sm:$0xf]
      %v7802 = vld [vmem:[%s16] sm:$0x7f]
      %v7804 = vlaneseq
      %v7805 = vshrl.u32 %v7804, 7
      %v7806 = vsub.s32 0, %v7805
      %v7807 = vrot.slane %v7802, %v7806
      %v7808 = vlaneseq
      %v7809 = vshrl.u32 %v7808, 7
      %v7810 = vsub.s32 1, %v7809
      %v7811 = vrot.slane %v7802, %v7810
      %v7812 = vlaneseq
      %v7813 = vshrl.u32 %v7812, 7
      %v7814 = vsub.s32 2, %v7813
      %v7815 = vrot.slane %v7802, %v7814
      %v7816 = vlaneseq
      %v7817 = vshrl.u32 %v7816, 7
      %v7818 = vsub.s32 3, %v7817
      %v7819 = vrot.slane %v7802, %v7818
      %v7820 = vlaneseq
      %v7821 = vshrl.u32 %v7820, 7
      %v7822 = vsub.s32 4, %v7821
      %v7823 = vrot.slane %v7802, %v7822
      %v7824 = vlaneseq
      %v7825 = vshrl.u32 %v7824, 7
      %v7826 = vsub.s32 5, %v7825
      %v7827 = vrot.slane %v7802, %v7826
      %v7828 = vlaneseq
      %v7829 = vshrl.u32 %v7828, 7
      %v7830 = vsub.s32 6, %v7829
      %v7831 = vrot.slane %v7802, %v7830
      %v8095 = vunpack.c.l.b16 %v7546
      %v8096 = vunpack.c.h.b16 %v7546
      %v8097 = vunpack.c.l.b16 %v7547
      %v8098 = vunpack.c.h.b16 %v7547
      %v8099 = vunpack.c.l.b16 %v7548
      %v8100 = vunpack.c.h.b16 %v7548
      %v8101 = vunpack.c.l.b16 %v7549
      %v8102 = vunpack.c.l.b16 %v7550
      %v8103 = vunpack.c.h.b16 %v7550
      %v8104 = vunpack.c.l.b16 %v7551
      %v8105 = vunpack.c.h.b16 %v7551
      %v8106 = vunpack.c.l.b16 %v7552
      %v8107 = vunpack.c.h.b16 %v7552
      %v8108 = vunpack.c.l.b16 %v7553
      %v8109 = vunpack.c.l.b16 %v7554
      %v8110 = vunpack.c.h.b16 %v7554
      %v8111 = vunpack.c.l.b16 %v7555
      %v8112 = vunpack.c.h.b16 %v7555
      %v8113 = vunpack.c.l.b16 %v7556
      %v8114 = vunpack.c.h.b16 %v7556
      %v8115 = vunpack.c.l.b16 %v7557
      %v8116 = vunpack.c.l.b16 %v7558
      %v8117 = vunpack.c.h.b16 %v7558
      %v8118 = vunpack.c.l.b16 %v7559
      %v8119 = vunpack.c.h.b16 %v7559
      %v8120 = vunpack.c.l.b16 %v7560
      %v8121 = vunpack.c.h.b16 %v7560
      %v8122 = vunpack.c.l.b16 %v7561
      %v8123 = vunpack.c.l.b16 %v7562
      %v8124 = vunpack.c.h.b16 %v7562
      %v8125 = vunpack.c.l.b16 %v7563
      %v8126 = vunpack.c.h.b16 %v7563
      %v8127 = vunpack.c.l.b16 %v7564
      %v8128 = vunpack.c.h.b16 %v7564
      %v8129 = vunpack.c.l.b16 %v7565
      %v8130 = vunpack.c.l.b16 %v7566
      %v8131 = vunpack.c.h.b16 %v7566
      %v8132 = vunpack.c.l.b16 %v7567
      %v8133 = vunpack.c.h.b16 %v7567
      %v8134 = vunpack.c.l.b16 %v7568
      %v8135 = vunpack.c.h.b16 %v7568
      %v8136 = vunpack.c.l.b16 %v7569
      %v8137 = vunpack.c.l.b16 %v7570
      %v8138 = vunpack.c.h.b16 %v7570
      %v8139 = vunpack.c.l.b16 %v7571
      %v8140 = vunpack.c.h.b16 %v7571
      %v8141 = vunpack.c.l.b16 %v7572
      %v8142 = vunpack.c.h.b16 %v7572
      %v8143 = vunpack.c.l.b16 %v7573
      %v8144 = vunpack.c.l.b16 %v7574
      %v8145 = vunpack.c.h.b16 %v7574
      %v8146 = vunpack.c.l.b16 %v7575
      %v8147 = vunpack.c.h.b16 %v7575
      %v8148 = vunpack.c.l.b16 %v7576
      %v8149 = vunpack.c.h.b16 %v7576
      %v8150 = vunpack.c.l.b16 %v7577
      %v8151 = vunpack.c.l.b16 %v7578
      %v8152 = vunpack.c.h.b16 %v7578
      %v8153 = vunpack.c.l.b16 %v7579
      %v8154 = vunpack.c.h.b16 %v7579
      %v8155 = vunpack.c.l.b16 %v7580
      %v8156 = vunpack.c.h.b16 %v7580
      %v8157 = vunpack.c.l.b16 %v7581
      %v8158 = vunpack.c.l.b16 %v7582
      %v8159 = vunpack.c.h.b16 %v7582
      %v8160 = vunpack.c.l.b16 %v7583
      %v8161 = vunpack.c.h.b16 %v7583
      %v8162 = vunpack.c.l.b16 %v7584
      %v8163 = vunpack.c.h.b16 %v7584
      %v8164 = vunpack.c.l.b16 %v7585
      %v8165 = vunpack.c.l.b16 %v7586
      %v8166 = vunpack.c.h.b16 %v7586
      %v8167 = vunpack.c.l.b16 %v7587
      %v8168 = vunpack.c.h.b16 %v7587
      %v8169 = vunpack.c.l.b16 %v7588
      %v8170 = vunpack.c.h.b16 %v7588
      %v8171 = vunpack.c.l.b16 %v7589
      %v8172 = vunpack.c.l.b16 %v7590
      %v8173 = vunpack.c.h.b16 %v7590
      %v8174 = vunpack.c.l.b16 %v7591
      %v8175 = vunpack.c.h.b16 %v7591
      %v8176 = vunpack.c.l.b16 %v7592
      %v8177 = vunpack.c.h.b16 %v7592
      %v8178 = vunpack.c.l.b16 %v7593
      %v8179 = vunpack.c.l.b16 %v7594
      %v8180 = vunpack.c.h.b16 %v7594
      %v8181 = vunpack.c.l.b16 %v7595
      %v8182 = vunpack.c.h.b16 %v7595
      %v8183 = vunpack.c.l.b16 %v7596
      %v8184 = vunpack.c.h.b16 %v7596
      %v8185 = vunpack.c.l.b16 %v7597
      %v8186 = vunpack.c.l.b16 %v7598
      %v8187 = vunpack.c.h.b16 %v7598
      %v8188 = vunpack.c.l.b16 %v7599
      %v8189 = vunpack.c.h.b16 %v7599
      %v8190 = vunpack.c.l.b16 %v7600
      %v8191 = vunpack.c.h.b16 %v7600
      %v8192 = vunpack.c.l.b16 %v7601
      %v8193 = vunpack.c.l.b16 %v7602
      %v8194 = vunpack.c.h.b16 %v7602
      %v8195 = vunpack.c.l.b16 %v7603
      %v8196 = vunpack.c.h.b16 %v7603
      %v8197 = vunpack.c.l.b16 %v7604
      %v8198 = vunpack.c.h.b16 %v7604
      %v8199 = vunpack.c.l.b16 %v7605
      %v8200 = vunpack.c.l.b16 %v7606
      %v8201 = vunpack.c.h.b16 %v7606
      %v8202 = vunpack.c.l.b16 %v7607
      %v8203 = vunpack.c.h.b16 %v7607
      %v8204 = vunpack.c.l.b16 %v7608
      %v8205 = vunpack.c.h.b16 %v7608
      %v8206 = vunpack.c.l.b16 %v7609
      %v8207 = vunpack.c.l.b16 %v7610
      %v8208 = vunpack.c.h.b16 %v7610
      %v8209 = vunpack.c.l.b16 %v7611
      %v8210 = vunpack.c.h.b16 %v7611
      %v8211 = vunpack.c.l.b16 %v7612
      %v8212 = vunpack.c.h.b16 %v7612
      %v8213 = vunpack.c.l.b16 %v7613
      %v8214 = vunpack.c.l.b16 %v7614
      %v8215 = vunpack.c.h.b16 %v7614
      %v8216 = vunpack.c.l.b16 %v7615
      %v8217 = vunpack.c.h.b16 %v7615
      %v8218 = vunpack.c.l.b16 %v7616
      %v8219 = vunpack.c.h.b16 %v7616
      %v8220 = vunpack.c.l.b16 %v7617
      %v8221 = vunpack.c.l.b16 %v7618
      %v8222 = vunpack.c.h.b16 %v7618
      %v8223 = vunpack.c.l.b16 %v7619
      %v8224 = vunpack.c.h.b16 %v7619
      %v8225 = vunpack.c.l.b16 %v7620
      %v8226 = vunpack.c.h.b16 %v7620
      %v8227 = vunpack.c.l.b16 %v7621
      %v8228 = vunpack.c.l.b16 %v7622
      %v8229 = vunpack.c.h.b16 %v7622
      %v8230 = vunpack.c.l.b16 %v7623
      %v8231 = vunpack.c.h.b16 %v7623
      %v8232 = vunpack.c.l.b16 %v7624
      %v8233 = vunpack.c.h.b16 %v7624
      %v8234 = vunpack.c.l.b16 %v7625
      %v8235 = vunpack.c.l.b16 %v7626
      %v8236 = vunpack.c.h.b16 %v7626
      %v8237 = vunpack.c.l.b16 %v7627
      %v8238 = vunpack.c.h.b16 %v7627
      %v8239 = vunpack.c.l.b16 %v7628
      %v8240 = vunpack.c.h.b16 %v7628
      %v8241 = vunpack.c.l.b16 %v7629
      %v8242 = vunpack.c.l.b16 %v7630
      %v8243 = vunpack.c.h.b16 %v7630
      %v8244 = vunpack.c.l.b16 %v7631
      %v8245 = vunpack.c.h.b16 %v7631
      %v8246 = vunpack.c.l.b16 %v7632
      %v8247 = vunpack.c.h.b16 %v7632
      %v8248 = vunpack.c.l.b16 %v7633
      %v8249 = vunpack.c.l.b16 %v7634
      %v8250 = vunpack.c.h.b16 %v7634
      %v8251 = vunpack.c.l.b16 %v7635
      %v8252 = vunpack.c.h.b16 %v7635
      %v8253 = vunpack.c.l.b16 %v7636
      %v8254 = vunpack.c.h.b16 %v7636
      %v8255 = vunpack.c.l.b16 %v7637
      %v8256 = vunpack.c.l.b16 %v7638
      %v8257 = vunpack.c.h.b16 %v7638
      %v8258 = vunpack.c.l.b16 %v7639
      %v8259 = vunpack.c.h.b16 %v7639
      %v8260 = vunpack.c.l.b16 %v7640
      %v8261 = vunpack.c.h.b16 %v7640
      %v8262 = vunpack.c.l.b16 %v7641
      %v8263 = vunpack.c.l.b16 %v7642
      %v8264 = vunpack.c.h.b16 %v7642
      %v8265 = vunpack.c.l.b16 %v7643
      %v8266 = vunpack.c.h.b16 %v7643
      %v8267 = vunpack.c.l.b16 %v7644
      %v8268 = vunpack.c.h.b16 %v7644
      %v8269 = vunpack.c.l.b16 %v7645
      %v8270 = vunpack.c.l.b16 %v7646
      %v8271 = vunpack.c.h.b16 %v7646
      %v8272 = vunpack.c.l.b16 %v7647
      %v8273 = vunpack.c.h.b16 %v7647
      %v8274 = vunpack.c.l.b16 %v7648
      %v8275 = vunpack.c.h.b16 %v7648
      %v8276 = vunpack.c.l.b16 %v7649
      %v8277 = vunpack.c.l.b16 %v7650
      %v8278 = vunpack.c.h.b16 %v7650
      %v8279 = vunpack.c.l.b16 %v7651
      %v8280 = vunpack.c.h.b16 %v7651
      %v8281 = vunpack.c.l.b16 %v7652
      %v8282 = vunpack.c.h.b16 %v7652
      %v8283 = vunpack.c.l.b16 %v7653
      %v8284 = vunpack.c.l.b16 %v7654
      %v8285 = vunpack.c.h.b16 %v7654
      %v8286 = vunpack.c.l.b16 %v7655
      %v8287 = vunpack.c.h.b16 %v7655
      %v8288 = vunpack.c.l.b16 %v7656
      %v8289 = vunpack.c.h.b16 %v7656
      %v8290 = vunpack.c.l.b16 %v7657
      %v8291 = vunpack.c.l.b16 %v7658
      %v8292 = vunpack.c.h.b16 %v7658
      %v8293 = vunpack.c.l.b16 %v7659
      %v8294 = vunpack.c.h.b16 %v7659
      %v8295 = vunpack.c.l.b16 %v7660
      %v8296 = vunpack.c.h.b16 %v7660
      %v8297 = vunpack.c.l.b16 %v7661
      %v8298 = vunpack.c.l.b16 %v7662
      %v8299 = vunpack.c.h.b16 %v7662
      %v8300 = vunpack.c.l.b16 %v7663
      %v8301 = vunpack.c.h.b16 %v7663
      %v8302 = vunpack.c.l.b16 %v7664
      %v8303 = vunpack.c.h.b16 %v7664
      %v8304 = vunpack.c.l.b16 %v7665
      %v8305 = vunpack.c.l.b16 %v7666
      %v8306 = vunpack.c.h.b16 %v7666
      %v8307 = vunpack.c.l.b16 %v7667
      %v8308 = vunpack.c.h.b16 %v7667
      %v8309 = vunpack.c.l.b16 %v7668
      %v8310 = vunpack.c.h.b16 %v7668
      %v8311 = vunpack.c.l.b16 %v7669
      %v8312 = vunpack.c.l.b16 %v7670
      %v8313 = vunpack.c.h.b16 %v7670
      %v8314 = vunpack.c.l.b16 %v7671
      %v8315 = vunpack.c.h.b16 %v7671
      %v8316 = vunpack.c.l.b16 %v7672
      %v8317 = vunpack.c.h.b16 %v7672
      %v8318 = vunpack.c.l.b16 %v7673
      %v8319 = vunpack.c.l.b16 %v7674
      %v8320 = vunpack.c.h.b16 %v7674
      %v8321 = vunpack.c.l.b16 %v7675
      %v8322 = vunpack.c.h.b16 %v7675
      %v8323 = vunpack.c.l.b16 %v7676
      %v8324 = vunpack.c.h.b16 %v7676
      %v8325 = vunpack.c.l.b16 %v7677
      %v8326 = vunpack.c.l.b16 %v7678
      %v8327 = vunpack.c.h.b16 %v7678
      %v8328 = vunpack.c.l.b16 %v7679
      %v8329 = vunpack.c.h.b16 %v7679
      %v8330 = vunpack.c.l.b16 %v7680
      %v8331 = vunpack.c.h.b16 %v7680
      %v8332 = vunpack.c.l.b16 %v7681
      %v8333 = vunpack.c.l.b16 %v7682
      %v8334 = vunpack.c.h.b16 %v7682
      %v8335 = vunpack.c.l.b16 %v7683
      %v8336 = vunpack.c.h.b16 %v7683
      %v8337 = vunpack.c.l.b16 %v7684
      %v8338 = vunpack.c.h.b16 %v7684
      %v8339 = vunpack.c.l.b16 %v7685
      %v8340 = vunpack.c.l.b16 %v7686
      %v8341 = vunpack.c.h.b16 %v7686
      %v8342 = vunpack.c.l.b16 %v7687
      %v8343 = vunpack.c.h.b16 %v7687
      %v8344 = vunpack.c.l.b16 %v7688
      %v8345 = vunpack.c.h.b16 %v7688
      %v8346 = vunpack.c.l.b16 %v7689
      %v8347 = vunpack.c.l.b16 %v7690
      %v8348 = vunpack.c.h.b16 %v7690
      %v8349 = vunpack.c.l.b16 %v7691
      %v8350 = vunpack.c.h.b16 %v7691
      %v8351 = vunpack.c.l.b16 %v7692
      %v8352 = vunpack.c.h.b16 %v7692
      %v8353 = vunpack.c.l.b16 %v7693
      %v8354 = vunpack.c.l.b16 %v7694
      %v8355 = vunpack.c.h.b16 %v7694
      %v8356 = vunpack.c.l.b16 %v7695
      %v8357 = vunpack.c.h.b16 %v7695
      %v8358 = vunpack.c.l.b16 %v7696
      %v8359 = vunpack.c.h.b16 %v7696
      %v8360 = vunpack.c.l.b16 %v7697
      %v8361 = vunpack.c.l.b16 %v7698
      %v8362 = vunpack.c.h.b16 %v7698
      %v8363 = vunpack.c.l.b16 %v7699
      %v8364 = vunpack.c.h.b16 %v7699
      %v8365 = vunpack.c.l.b16 %v7700
      %v8366 = vunpack.c.h.b16 %v7700
      %v8367 = vunpack.c.l.b16 %v7701
      %v8368 = vunpack.c.l.b16 %v7702
      %v8369 = vunpack.c.h.b16 %v7702
      %v8370 = vunpack.c.l.b16 %v7703
      %v8371 = vunpack.c.h.b16 %v7703
      %v8372 = vunpack.c.l.b16 %v7704
      %v8373 = vunpack.c.h.b16 %v7704
      %v8374 = vunpack.c.l.b16 %v7705
      %v8375 = vunpack.c.l.b16 %v7706
      %v8376 = vunpack.c.h.b16 %v7706
      %v8377 = vunpack.c.l.b16 %v7707
      %v8378 = vunpack.c.h.b16 %v7707
      %v8379 = vunpack.c.l.b16 %v7708
      %v8380 = vunpack.c.h.b16 %v7708
      %v8381 = vunpack.c.l.b16 %v7709
      %v8382 = vunpack.c.l.b16 %v7710
      %v8383 = vunpack.c.h.b16 %v7710
      %v8384 = vunpack.c.l.b16 %v7711
      %v8385 = vunpack.c.h.b16 %v7711
      %v8386 = vunpack.c.l.b16 %v7712
      %v8387 = vunpack.c.h.b16 %v7712
      %v8388 = vunpack.c.l.b16 %v7713
      %v8389 = vunpack.c.l.b16 %v7714
      %v8390 = vunpack.c.h.b16 %v7714
      %v8391 = vunpack.c.l.b16 %v7715
      %v8392 = vunpack.c.h.b16 %v7715
      %v8393 = vunpack.c.l.b16 %v7716
      %v8394 = vunpack.c.h.b16 %v7716
      %v8395 = vunpack.c.l.b16 %v7717
      %v8396 = vunpack.c.l.b16 %v7718
      %v8397 = vunpack.c.h.b16 %v7718
      %v8398 = vunpack.c.l.b16 %v7719
      %v8399 = vunpack.c.h.b16 %v7719
      %v8400 = vunpack.c.l.b16 %v7720
      %v8401 = vunpack.c.h.b16 %v7720
      %v8402 = vunpack.c.l.b16 %v7721
      %v8403 = vunpack.c.l.b16 %v7722
      %v8404 = vunpack.c.h.b16 %v7722
      %v8405 = vunpack.c.l.b16 %v7723
      %v8406 = vunpack.c.h.b16 %v7723
      %v8407 = vunpack.c.l.b16 %v7724
      %v8408 = vunpack.c.h.b16 %v7724
      %v8409 = vunpack.c.l.b16 %v7725
      %v8410 = vunpack.c.l.b16 %v7726
      %v8411 = vunpack.c.h.b16 %v7726
      %v8412 = vunpack.c.l.b16 %v7727
      %v8413 = vunpack.c.h.b16 %v7727
      %v8414 = vunpack.c.l.b16 %v7728
      %v8415 = vunpack.c.h.b16 %v7728
      %v8416 = vunpack.c.l.b16 %v7729
      %v8417 = vunpack.c.l.b16 %v7730
      %v8418 = vunpack.c.h.b16 %v7730
      %v8419 = vunpack.c.l.b16 %v7731
      %v8420 = vunpack.c.h.b16 %v7731
      %v8421 = vunpack.c.l.b16 %v7732
      %v8422 = vunpack.c.h.b16 %v7732
      %v8423 = vunpack.c.l.b16 %v7733
      %v8424 = vunpack.c.l.b16 %v7734
      %v8425 = vunpack.c.h.b16 %v7734
      %v8426 = vunpack.c.l.b16 %v7735
      %v8427 = vunpack.c.h.b16 %v7735
      %v8428 = vunpack.c.l.b16 %v7736
      %v8429 = vunpack.c.h.b16 %v7736
      %v8430 = vunpack.c.l.b16 %v7737
      %v8431 = vunpack.c.l.b16 %v7738
      %v8432 = vunpack.c.h.b16 %v7738
      %v8433 = vunpack.c.l.b16 %v7739
      %v8434 = vunpack.c.h.b16 %v7739
      %v8435 = vunpack.c.l.b16 %v7740
      %v8436 = vunpack.c.h.b16 %v7740
      %v8437 = vunpack.c.l.b16 %v7741
      %v8438 = vunpack.c.l.b16 %v7742
      %v8439 = vunpack.c.h.b16 %v7742
      %v8440 = vunpack.c.l.b16 %v7743
      %v8441 = vunpack.c.h.b16 %v7743
      %v8442 = vunpack.c.l.b16 %v7744
      %v8443 = vunpack.c.h.b16 %v7744
      %v8444 = vunpack.c.l.b16 %v7745
      %v8445 = vunpack.c.l.b16 %v7746
      %v8446 = vunpack.c.h.b16 %v7746
      %v8447 = vunpack.c.l.b16 %v7747
      %v8448 = vunpack.c.h.b16 %v7747
      %v8449 = vunpack.c.l.b16 %v7748
      %v8450 = vunpack.c.h.b16 %v7748
      %v8451 = vunpack.c.l.b16 %v7749
      %v8452 = vunpack.c.l.b16 %v7750
      %v8453 = vunpack.c.h.b16 %v7750
      %v8454 = vunpack.c.l.b16 %v7751
      %v8455 = vunpack.c.h.b16 %v7751
      %v8456 = vunpack.c.l.b16 %v7752
      %v8457 = vunpack.c.h.b16 %v7752
      %v8458 = vunpack.c.l.b16 %v7753
      %v8459 = vunpack.c.l.b16 %v7754
      %v8460 = vunpack.c.h.b16 %v7754
      %v8461 = vunpack.c.l.b16 %v7755
      %v8462 = vunpack.c.h.b16 %v7755
      %v8463 = vunpack.c.l.b16 %v7756
      %v8464 = vunpack.c.h.b16 %v7756
      %v8465 = vunpack.c.l.b16 %v7757
      %v8466 = vunpack.c.l.b16 %v7758
      %v8467 = vunpack.c.h.b16 %v7758
      %v8468 = vunpack.c.l.b16 %v7759
      %v8469 = vunpack.c.h.b16 %v7759
      %v8470 = vunpack.c.l.b16 %v7760
      %v8471 = vunpack.c.h.b16 %v7760
      %v8472 = vunpack.c.l.b16 %v7761
      %v8473 = vunpack.c.l.b16 %v7762
      %v8474 = vunpack.c.h.b16 %v7762
      %v8475 = vunpack.c.l.b16 %v7763
      %v8476 = vunpack.c.h.b16 %v7763
      %v8477 = vunpack.c.l.b16 %v7764
      %v8478 = vunpack.c.h.b16 %v7764
      %v8479 = vunpack.c.l.b16 %v7765
      %v8480 = vunpack.c.l.b16 %v7766
      %v8481 = vunpack.c.h.b16 %v7766
      %v8482 = vunpack.c.l.b16 %v7767
      %v8483 = vunpack.c.h.b16 %v7767
      %v8484 = vunpack.c.l.b16 %v7768
      %v8485 = vunpack.c.h.b16 %v7768
      %v8486 = vunpack.c.l.b16 %v7769
      %v8487 = vunpack.c.l.b16 %v7770
      %v8488 = vunpack.c.h.b16 %v7770
      %v8489 = vunpack.c.l.b16 %v7771
      %v8490 = vunpack.c.h.b16 %v7771
      %v8491 = vunpack.c.l.b16 %v7772
      %v8492 = vunpack.c.h.b16 %v7772
      %v8493 = vunpack.c.l.b16 %v7773
      %v8494 = vunpack.c.l.b16 %v7774
      %v8495 = vunpack.c.h.b16 %v7774
      %v8496 = vunpack.c.l.b16 %v7775
      %v8497 = vunpack.c.h.b16 %v7775
      %v8498 = vunpack.c.l.b16 %v7776
      %v8499 = vunpack.c.h.b16 %v7776
      %v8500 = vunpack.c.l.b16 %v7777
      %v8501 = vunpack.c.l.b16 %v7778
      %v8502 = vunpack.c.h.b16 %v7778
      %v8503 = vunpack.c.l.b16 %v7779
      %v8504 = vunpack.c.h.b16 %v7779
      %v8505 = vunpack.c.l.b16 %v7780
      %v8506 = vunpack.c.h.b16 %v7780
      %v8507 = vunpack.c.l.b16 %v7781
      %v8508 = vunpack.c.l.b16 %v7782
      %v8509 = vunpack.c.h.b16 %v7782
      %v8510 = vunpack.c.l.b16 %v7783
      %v8511 = vunpack.c.h.b16 %v7783
      %v8512 = vunpack.c.l.b16 %v7784
      %v8513 = vunpack.c.h.b16 %v7784
      %v8514 = vunpack.c.l.b16 %v7785
      %v8515 = vunpack.c.l.b16 %v7786
      %v8516 = vunpack.c.h.b16 %v7786
      %v8517 = vunpack.c.l.b16 %v7787
      %v8518 = vunpack.c.h.b16 %v7787
      %v8519 = vunpack.c.l.b16 %v7788
      %v8520 = vunpack.c.h.b16 %v7788
      %v8521 = vunpack.c.l.b16 %v7789
      %v8522 = vunpack.c.l.b16 %v7790
      %v8523 = vunpack.c.h.b16 %v7790
      %v8524 = vunpack.c.l.b16 %v7791
      %v8525 = vunpack.c.h.b16 %v7791
      %v8526 = vunpack.c.l.b16 %v7792
      %v8527 = vunpack.c.h.b16 %v7792
      %v8528 = vunpack.c.l.b16 %v7793
      %v8529 = vunpack.c.l.b16 %v7794
      %v8530 = vunpack.c.h.b16 %v7794
      %v8531 = vunpack.c.l.b16 %v7795
      %v8532 = vunpack.c.h.b16 %v7795
      %v8533 = vunpack.c.l.b16 %v7796
      %v8534 = vunpack.c.h.b16 %v7796
      %v8535 = vunpack.c.l.b16 %v7797
      %v8536 = vunpack.c.l.b16 %v7798
      %v8537 = vunpack.c.h.b16 %v7798
      %v8538 = vunpack.c.l.b16 %v7799
      %v8539 = vunpack.c.h.b16 %v7799
      %v8540 = vunpack.c.l.b16 %v7800
      %v8541 = vunpack.c.h.b16 %v7800
      %v8542 = vunpack.c.l.b16 %v7801
      %v8543 = vpack.c.b16 %v8102, %v8095
      %v8544 = vpack.c.b16 %v8103, %v8096
      %v8545 = vpack.c.b16 %v8104, %v8097
      %v8546 = vpack.c.b16 %v8105, %v8098
      %v8547 = vpack.c.b16 %v8106, %v8099
      %v8548 = vpack.c.b16 %v8107, %v8100
      %v8549 = vpack.c.b16 %v8108, %v8101
      %v8550 = vpack.c.b16 %v8116, %v8109
      %v8551 = vpack.c.b16 %v8117, %v8110
      %v8552 = vpack.c.b16 %v8118, %v8111
      %v8553 = vpack.c.b16 %v8119, %v8112
      %v8554 = vpack.c.b16 %v8120, %v8113
      %v8555 = vpack.c.b16 %v8121, %v8114
      %v8556 = vpack.c.b16 %v8122, %v8115
      %v8557 = vpack.c.b16 %v8130, %v8123
      %v8558 = vpack.c.b16 %v8131, %v8124
      %v8559 = vpack.c.b16 %v8132, %v8125
      %v8560 = vpack.c.b16 %v8133, %v8126
      %v8561 = vpack.c.b16 %v8134, %v8127
      %v8562 = vpack.c.b16 %v8135, %v8128
      %v8563 = vpack.c.b16 %v8136, %v8129
      %v8564 = vpack.c.b16 %v8144, %v8137
      %v8565 = vpack.c.b16 %v8145, %v8138
      %v8566 = vpack.c.b16 %v8146, %v8139
      %v8567 = vpack.c.b16 %v8147, %v8140
      %v8568 = vpack.c.b16 %v8148, %v8141
      %v8569 = vpack.c.b16 %v8149, %v8142
      %v8570 = vpack.c.b16 %v8150, %v8143
      %v8571 = vpack.c.b16 %v8158, %v8151
      %v8572 = vpack.c.b16 %v8159, %v8152
      %v8573 = vpack.c.b16 %v8160, %v8153
      %v8574 = vpack.c.b16 %v8161, %v8154
      %v8575 = vpack.c.b16 %v8162, %v8155
      %v8576 = vpack.c.b16 %v8163, %v8156
      %v8577 = vpack.c.b16 %v8164, %v8157
      %v8578 = vpack.c.b16 %v8172, %v8165
      %v8579 = vpack.c.b16 %v8173, %v8166
      %v8580 = vpack.c.b16 %v8174, %v8167
      %v8581 = vpack.c.b16 %v8175, %v8168
      %v8582 = vpack.c.b16 %v8176, %v8169
      %v8583 = vpack.c.b16 %v8177, %v8170
      %v8584 = vpack.c.b16 %v8178, %v8171
      %v8585 = vpack.c.b16 %v8186, %v8179
      %v8586 = vpack.c.b16 %v8187, %v8180
      %v8587 = vpack.c.b16 %v8188, %v8181
      %v8588 = vpack.c.b16 %v8189, %v8182
      %v8589 = vpack.c.b16 %v8190, %v8183
      %v8590 = vpack.c.b16 %v8191, %v8184
      %v8591 = vpack.c.b16 %v8192, %v8185
      %v8592 = vpack.c.b16 %v8200, %v8193
      %v8593 = vpack.c.b16 %v8201, %v8194
      %v8594 = vpack.c.b16 %v8202, %v8195
      %v8595 = vpack.c.b16 %v8203, %v8196
      %v8596 = vpack.c.b16 %v8204, %v8197
      %v8597 = vpack.c.b16 %v8205, %v8198
      %v8598 = vpack.c.b16 %v8206, %v8199
      %v8599 = vpack.c.b16 %v8214, %v8207
      %v8600 = vpack.c.b16 %v8215, %v8208
      %v8601 = vpack.c.b16 %v8216, %v8209
      %v8602 = vpack.c.b16 %v8217, %v8210
      %v8603 = vpack.c.b16 %v8218, %v8211
      %v8604 = vpack.c.b16 %v8219, %v8212
      %v8605 = vpack.c.b16 %v8220, %v8213
      %v8606 = vpack.c.b16 %v8228, %v8221
      %v8607 = vpack.c.b16 %v8229, %v8222
      %v8608 = vpack.c.b16 %v8230, %v8223
      %v8609 = vpack.c.b16 %v8231, %v8224
      %v8610 = vpack.c.b16 %v8232, %v8225
      %v8611 = vpack.c.b16 %v8233, %v8226
      %v8612 = vpack.c.b16 %v8234, %v8227
      %v8613 = vpack.c.b16 %v8242, %v8235
      %v8614 = vpack.c.b16 %v8243, %v8236
      %v8615 = vpack.c.b16 %v8244, %v8237
      %v8616 = vpack.c.b16 %v8245, %v8238
      %v8617 = vpack.c.b16 %v8246, %v8239
      %v8618 = vpack.c.b16 %v8247, %v8240
      %v8619 = vpack.c.b16 %v8248, %v8241
      %v8620 = vpack.c.b16 %v8256, %v8249
      %v8621 = vpack.c.b16 %v8257, %v8250
      %v8622 = vpack.c.b16 %v8258, %v8251
      %v8623 = vpack.c.b16 %v8259, %v8252
      %v8624 = vpack.c.b16 %v8260, %v8253
      %v8625 = vpack.c.b16 %v8261, %v8254
      %v8626 = vpack.c.b16 %v8262, %v8255
      %v8627 = vpack.c.b16 %v8270, %v8263
      %v8628 = vpack.c.b16 %v8271, %v8264
      %v8629 = vpack.c.b16 %v8272, %v8265
      %v8630 = vpack.c.b16 %v8273, %v8266
      %v8631 = vpack.c.b16 %v8274, %v8267
      %v8632 = vpack.c.b16 %v8275, %v8268
      %v8633 = vpack.c.b16 %v8276, %v8269
      %v8634 = vpack.c.b16 %v8284, %v8277
      %v8635 = vpack.c.b16 %v8285, %v8278
      %v8636 = vpack.c.b16 %v8286, %v8279
      %v8637 = vpack.c.b16 %v8287, %v8280
      %v8638 = vpack.c.b16 %v8288, %v8281
      %v8639 = vpack.c.b16 %v8289, %v8282
      %v8640 = vpack.c.b16 %v8290, %v8283
      %v8641 = vpack.c.b16 %v8298, %v8291
      %v8642 = vpack.c.b16 %v8299, %v8292
      %v8643 = vpack.c.b16 %v8300, %v8293
      %v8644 = vpack.c.b16 %v8301, %v8294
      %v8645 = vpack.c.b16 %v8302, %v8295
      %v8646 = vpack.c.b16 %v8303, %v8296
      %v8647 = vpack.c.b16 %v8304, %v8297
      %v8648 = vpack.c.b16 %v8312, %v8305
      %v8649 = vpack.c.b16 %v8313, %v8306
      %v8650 = vpack.c.b16 %v8314, %v8307
      %v8651 = vpack.c.b16 %v8315, %v8308
      %v8652 = vpack.c.b16 %v8316, %v8309
      %v8653 = vpack.c.b16 %v8317, %v8310
      %v8654 = vpack.c.b16 %v8318, %v8311
      %v8655 = vpack.c.b16 %v8326, %v8319
      %v8656 = vpack.c.b16 %v8327, %v8320
      %v8657 = vpack.c.b16 %v8328, %v8321
      %v8658 = vpack.c.b16 %v8329, %v8322
      %v8659 = vpack.c.b16 %v8330, %v8323
      %v8660 = vpack.c.b16 %v8331, %v8324
      %v8661 = vpack.c.b16 %v8332, %v8325
      %v8662 = vpack.c.b16 %v8340, %v8333
      %v8663 = vpack.c.b16 %v8341, %v8334
      %v8664 = vpack.c.b16 %v8342, %v8335
      %v8665 = vpack.c.b16 %v8343, %v8336
      %v8666 = vpack.c.b16 %v8344, %v8337
      %v8667 = vpack.c.b16 %v8345, %v8338
      %v8668 = vpack.c.b16 %v8346, %v8339
      %v8669 = vpack.c.b16 %v8354, %v8347
      %v8670 = vpack.c.b16 %v8355, %v8348
      %v8671 = vpack.c.b16 %v8356, %v8349
      %v8672 = vpack.c.b16 %v8357, %v8350
      %v8673 = vpack.c.b16 %v8358, %v8351
      %v8674 = vpack.c.b16 %v8359, %v8352
      %v8675 = vpack.c.b16 %v8360, %v8353
      %v8676 = vpack.c.b16 %v8368, %v8361
      %v8677 = vpack.c.b16 %v8369, %v8362
      %v8678 = vpack.c.b16 %v8370, %v8363
      %v8679 = vpack.c.b16 %v8371, %v8364
      %v8680 = vpack.c.b16 %v8372, %v8365
      %v8681 = vpack.c.b16 %v8373, %v8366
      %v8682 = vpack.c.b16 %v8374, %v8367
      %v8683 = vpack.c.b16 %v8382, %v8375
      %v8684 = vpack.c.b16 %v8383, %v8376
      %v8685 = vpack.c.b16 %v8384, %v8377
      %v8686 = vpack.c.b16 %v8385, %v8378
      %v8687 = vpack.c.b16 %v8386, %v8379
      %v8688 = vpack.c.b16 %v8387, %v8380
      %v8689 = vpack.c.b16 %v8388, %v8381
      %v8690 = vpack.c.b16 %v8396, %v8389
      %v8691 = vpack.c.b16 %v8397, %v8390
      %v8692 = vpack.c.b16 %v8398, %v8391
      %v8693 = vpack.c.b16 %v8399, %v8392
      %v8694 = vpack.c.b16 %v8400, %v8393
      %v8695 = vpack.c.b16 %v8401, %v8394
      %v8696 = vpack.c.b16 %v8402, %v8395
      %v8697 = vpack.c.b16 %v8410, %v8403
      %v8698 = vpack.c.b16 %v8411, %v8404
      %v8699 = vpack.c.b16 %v8412, %v8405
      %v8700 = vpack.c.b16 %v8413, %v8406
      %v8701 = vpack.c.b16 %v8414, %v8407
      %v8702 = vpack.c.b16 %v8415, %v8408
      %v8703 = vpack.c.b16 %v8416, %v8409
      %v8704 = vpack.c.b16 %v8424, %v8417
      %v8705 = vpack.c.b16 %v8425, %v8418
      %v8706 = vpack.c.b16 %v8426, %v8419
      %v8707 = vpack.c.b16 %v8427, %v8420
      %v8708 = vpack.c.b16 %v8428, %v8421
      %v8709 = vpack.c.b16 %v8429, %v8422
      %v8710 = vpack.c.b16 %v8430, %v8423
      %v8711 = vpack.c.b16 %v8438, %v8431
      %v8712 = vpack.c.b16 %v8439, %v8432
      %v8713 = vpack.c.b16 %v8440, %v8433
      %v8714 = vpack.c.b16 %v8441, %v8434
      %v8715 = vpack.c.b16 %v8442, %v8435
      %v8716 = vpack.c.b16 %v8443, %v8436
      %v8717 = vpack.c.b16 %v8444, %v8437
      %v8718 = vpack.c.b16 %v8452, %v8445
      %v8719 = vpack.c.b16 %v8453, %v8446
      %v8720 = vpack.c.b16 %v8454, %v8447
      %v8721 = vpack.c.b16 %v8455, %v8448
      %v8722 = vpack.c.b16 %v8456, %v8449
      %v8723 = vpack.c.b16 %v8457, %v8450
      %v8724 = vpack.c.b16 %v8458, %v8451
      %v8725 = vpack.c.b16 %v8466, %v8459
      %v8726 = vpack.c.b16 %v8467, %v8460
      %v8727 = vpack.c.b16 %v8468, %v8461
      %v8728 = vpack.c.b16 %v8469, %v8462
      %v8729 = vpack.c.b16 %v8470, %v8463
      %v8730 = vpack.c.b16 %v8471, %v8464
      %v8731 = vpack.c.b16 %v8472, %v8465
      %v8732 = vpack.c.b16 %v8480, %v8473
      %v8733 = vpack.c.b16 %v8481, %v8474
      %v8734 = vpack.c.b16 %v8482, %v8475
      %v8735 = vpack.c.b16 %v8483, %v8476
      %v8736 = vpack.c.b16 %v8484, %v8477
      %v8737 = vpack.c.b16 %v8485, %v8478
      %v8738 = vpack.c.b16 %v8486, %v8479
      %v8739 = vpack.c.b16 %v8494, %v8487
      %v8740 = vpack.c.b16 %v8495, %v8488
      %v8741 = vpack.c.b16 %v8496, %v8489
      %v8742 = vpack.c.b16 %v8497, %v8490
      %v8743 = vpack.c.b16 %v8498, %v8491
      %v8744 = vpack.c.b16 %v8499, %v8492
      %v8745 = vpack.c.b16 %v8500, %v8493
      %v8746 = vpack.c.b16 %v8508, %v8501
      %v8747 = vpack.c.b16 %v8509, %v8502
      %v8748 = vpack.c.b16 %v8510, %v8503
      %v8749 = vpack.c.b16 %v8511, %v8504
      %v8750 = vpack.c.b16 %v8512, %v8505
      %v8751 = vpack.c.b16 %v8513, %v8506
      %v8752 = vpack.c.b16 %v8514, %v8507
      %v8753 = vpack.c.b16 %v8522, %v8515
      %v8754 = vpack.c.b16 %v8523, %v8516
      %v8755 = vpack.c.b16 %v8524, %v8517
      %v8756 = vpack.c.b16 %v8525, %v8518
      %v8757 = vpack.c.b16 %v8526, %v8519
      %v8758 = vpack.c.b16 %v8527, %v8520
      %v8759 = vpack.c.b16 %v8528, %v8521
      %v8760 = vpack.c.b16 %v8536, %v8529
      %v8761 = vpack.c.b16 %v8537, %v8530
      %v8762 = vpack.c.b16 %v8538, %v8531
      %v8763 = vpack.c.b16 %v8539, %v8532
      %v8764 = vpack.c.b16 %v8540, %v8533
      %v8765 = vpack.c.b16 %v8541, %v8534
      %v8766 = vpack.c.b16 %v8542, %v8535
      %8991 = vmatprep.subr.bf16.mxu0 %v8544
      %8992 = vmatpush1.bf16.msra.mxu0 %v8543
      %8993 = vmatprep.subr.bf16.mxu0 %v8551
      %8994 = vmatpush1.bf16.msra.mxu0 %v8550
      %8995 = vmatprep.subr.bf16.mxu0 %v8558
      %8996 = vmatpush1.bf16.msra.mxu0 %v8557
      %8997 = vmatprep.subr.bf16.mxu0 %v8565
      %8998 = vmatpush1.bf16.msra.mxu0 %v8564
      %8999 = vmatprep.subr.bf16.mxu0 %v8572
      %9000 = vmatpush1.bf16.msra.mxu0 %v8571
      %9001 = vmatprep.subr.bf16.mxu0 %v8579
      %9002 = vmatpush1.bf16.msra.mxu0 %v8578
      %9003 = vmatprep.subr.bf16.mxu0 %v8586
      %9004 = vmatpush1.bf16.msra.mxu0 %v8585
      %9005 = vmatprep.subr.bf16.mxu0 %v8593
      %9006 = vmatpush1.bf16.msra.mxu0 %v8592
      %9007 = vmatprep.subr.bf16.mxu0 %v8600
      %9008 = vmatpush1.bf16.msra.mxu0 %v8599
      %9009 = vmatprep.subr.bf16.mxu0 %v8607
      %9010 = vmatpush1.bf16.msra.mxu0 %v8606
      %9011 = vmatprep.subr.bf16.mxu0 %v8614
      %9012 = vmatpush1.bf16.msra.mxu0 %v8613
      %9013 = vmatprep.subr.bf16.mxu0 %v8621
      %9014 = vmatpush1.bf16.msra.mxu0 %v8620
      %9015 = vmatprep.subr.bf16.mxu0 %v8628
      %9016 = vmatpush1.bf16.msra.mxu0 %v8627
      %9017 = vmatprep.subr.bf16.mxu0 %v8635
      %9018 = vmatpush1.bf16.msra.mxu0 %v8634
      %9019 = vmatprep.subr.bf16.mxu0 %v8642
      %9020 = vmatpush1.bf16.msra.mxu0 %v8641
      %9021 = vmatprep.subr.bf16.mxu0 %v8649
      %9022 = vmatpush1.bf16.msra.mxu0 %v8648
      %9023 = vmatprep.mubr.bf16.mxu0 %v7483
      %9024 = vmatmul.mubr.bf16.gmra.mrb[0].mxu0 %v7482
      %v9025 = vpop.f32.mrb[0].mxu0
      %v9026 = vadd.f32 %v7807, %v9025
      %v9027 = vpop.f32.mrb[0].mxu0
      %v9028 = vadd.f32 %v7811, %v9027
      %v9029 = vpop.f32.mrb[0].mxu0
      %v9030 = vadd.f32 %v7807, %v9029
      %v9031 = vpop.f32.mrb[0].mxu0
      %v9032 = vadd.f32 %v7811, %v9031
      %9033 = vmatprep.mubr.bf16.mxu0 %v7487
      %9034 = vmatmul.mubr.bf16.gmra.mrb[0].mxu0 %v7486
      %v9035 = vpop.f32.mrb[0].mxu0
      %v9036 = vadd.f32 %v7807, %v9035
      %v9037 = vpop.f32.mrb[0].mxu0
      %v9038 = vadd.f32 %v7811, %v9037
      %v9039 = vpop.f32.mrb[0].mxu0
      %v9040 = vadd.f32 %v7807, %v9039
      %v9041 = vpop.f32.mrb[0].mxu0
      %v9042 = vadd.f32 %v7811, %v9041
      %9043 = vmatprep.mubr.bf16.mxu0 %v7491
      %9044 = vmatmul.mubr.bf16.gmra.mrb[0].mxu0 %v7490
      %v9045 = vpop.f32.mrb[0].mxu0
      %v9046 = vadd.f32 %v7807, %v9045
      %v9047 = vpop.f32.mrb[0].mxu0
      %v9048 = vadd.f32 %v7811, %v9047
      %v9049 = vpop.f32.mrb[0].mxu0
      %v9050 = vadd.f32 %v7807, %v9049
      %v9051 = vpop.f32.mrb[0].mxu0
      %v9052 = vadd.f32 %v7811, %v9051
      %9053 = vmatprep.mubr.bf16.mxu0 %v7495
      %9054 = vmatmul.mubr.bf16.gmra.mrb[0].mxu0 %v7494
      %v9055 = vpop.f32.mrb[0].mxu0
      %v9056 = vadd.f32 %v7807, %v9055
      %v9057 = vpop.f32.mrb[0].mxu0
      %v9058 = vadd.f32 %v7811, %v9057
      %v9059 = vpop.f32.mrb[0].mxu0
      %v9060 = vadd.f32 %v7807, %v9059
      %v9061 = vpop.f32.mrb[0].mxu0
      %v9062 = vadd.f32 %v7811, %v9061
      %9063 = vmatprep.mubr.bf16.mxu0 %v7499
      %9064 = vmatmul.mubr.bf16.gmra.mrb[0].mxu0 %v7498
      %v9065 = vpop.f32.mrb[0].mxu0
      %v9066 = vadd.f32 %v7807, %v9065
      %v9067 = vpop.f32.mrb[0].mxu0
      %v9068 = vadd.f32 %v7811, %v9067
      %v9069 = vpop.f32.mrb[0].mxu0
      %v9070 = vadd.f32 %v7807, %v9069
      %v9071 = vpop.f32.mrb[0].mxu0
      %v9072 = vadd.f32 %v7811, %v9071
      %9073 = vmatprep.mubr.bf16.mxu0 %v7503
      %9074 = vmatmul.mubr.bf16.gmra.mrb[0].mxu0 %v7502
      %v9075 = vpop.f32.mrb[0].mxu0
      %v9076 = vadd.f32 %v7807, %v9075
      %v9077 = vpop.f32.mrb[0].mxu0
      %v9078 = vadd.f32 %v7811, %v9077
      %v9079 = vpop.f32.mrb[0].mxu0
      %v9080 = vadd.f32 %v7807, %v9079
      %v9081 = vpop.f32.mrb[0].mxu0
      %v9082 = vadd.f32 %v7811, %v9081
      %9083 = vmatprep.mubr.bf16.mxu0 %v7507
      %9084 = vmatmul.mubr.bf16.gmra.mrb[0].mxu0 %v7506
      %v9085 = vpop.f32.mrb[0].mxu0
      %v9086 = vadd.f32 %v7807, %v9085
      %v9087 = vpop.f32.mrb[0].mxu0
      %v9088 = vadd.f32 %v7811, %v9087
      %v9089 = vpop.f32.mrb[0].mxu0
      %v9090 = vadd.f32 %v7807, %v9089
      %v9091 = vpop.f32.mrb[0].mxu0
      %v9092 = vadd.f32 %v7811, %v9091
      %9093 = vmatprep.mubr.bf16.mxu0 %v7511
      %9094 = vmatmul.mubr.bf16.gmra.mrb[0].mxu0 %v7510
      %v9095 = vpop.f32.mrb[0].mxu0
      %v9096 = vadd.f32 %v7807, %v9095
      %v9097 = vpop.f32.mrb[0].mxu0
      %v9098 = vadd.f32 %v7811, %v9097
      %v9099 = vpop.f32.mrb[0].mxu0
      %v9100 = vadd.f32 %v7807, %v9099
      %v9101 = vpop.f32.mrb[0].mxu0
      %v9102 = vadd.f32 %v7811, %v9101
      %9103 = vmatprep.mubr.bf16.mxu0 %v7515
      %9104 = vmatmul.mubr.bf16.gmra.mrb[0].mxu0 %v7514
      %v9105 = vpop.f32.mrb[0].mxu0
      %v9106 = vadd.f32 %v7807, %v9105
      %v9107 = vpop.f32.mrb[0].mxu0
      %v9108 = vadd.f32 %v7811, %v9107
      %v9109 = vpop.f32.mrb[0].mxu0
      %v9110 = vadd.f32 %v7807, %v9109
      %v9111 = vpop.f32.mrb[0].mxu0
      %v9112 = vadd.f32 %v7811, %v9111
      %9113 = vmatprep.mubr.bf16.mxu0 %v7519
      %9114 = vmatmul.mubr.bf16.gmra.mrb[0].mxu0 %v7518
      %v9115 = vpop.f32.mrb[0].mxu0
      %v9116 = vadd.f32 %v7807, %v9115
      %v9117 = vpop.f32.mrb[0].mxu0
      %v9118 = vadd.f32 %v7811, %v9117
      %v9119 = vpop.f32.mrb[0].mxu0
      %v9120 = vadd.f32 %v7807, %v9119
      %v9121 = vpop.f32.mrb[0].mxu0
      %v9122 = vadd.f32 %v7811, %v9121
      %9123 = vmatprep.mubr.bf16.mxu0 %v7523
      %9124 = vmatmul.mubr.bf16.gmra.mrb[0].mxu0 %v7522
      %v9125 = vpop.f32.mrb[0].mxu0
      %v9126 = vadd.f32 %v7807, %v9125
      %v9127 = vpop.f32.mrb[0].mxu0
      %v9128 = vadd.f32 %v7811, %v9127
      %v9129 = vpop.f32.mrb[0].mxu0
      %v9130 = vadd.f32 %v7807, %v9129
      %v9131 = vpop.f32.mrb[0].mxu0
      %v9132 = vadd.f32 %v7811, %v9131
      %9133 = vmatprep.mubr.bf16.mxu0 %v7527
      %9134 = vmatmul.mubr.bf16.gmra.mrb[0].mxu0 %v7526
      %v9135 = vpop.f32.mrb[0].mxu0
      %v9136 = vadd.f32 %v7807, %v9135
      %v9137 = vpop.f32.mrb[0].mxu0
      %v9138 = vadd.f32 %v7811, %v9137
      %v9139 = vpop.f32.mrb[0].mxu0
      %v9140 = vadd.f32 %v7807, %v9139
      %v9141 = vpop.f32.mrb[0].mxu0
      %v9142 = vadd.f32 %v7811, %v9141
      %9143 = vmatprep.mubr.bf16.mxu0 %v7531
      %9144 = vmatmul.mubr.bf16.gmra.mrb[0].mxu0 %v7530
      %v9145 = vpop.f32.mrb[0].mxu0
      %v9146 = vadd.f32 %v7807, %v9145
      %v9147 = vpop.f32.mrb[0].mxu0
      %v9148 = vadd.f32 %v7811, %v9147
      %v9149 = vpop.f32.mrb[0].mxu0
      %v9150 = vadd.f32 %v7807, %v9149
      %v9151 = vpop.f32.mrb[0].mxu0
      %v9152 = vadd.f32 %v7811, %v9151
      %9153 = vmatprep.mubr.bf16.mxu0 %v7535
      %9154 = vmatmul.mubr.bf16.gmra.mrb[0].mxu0 %v7534
      %v9155 = vpop.f32.mrb[0].mxu0
      %v9156 = vadd.f32 %v7807, %v9155
      %v9157 = vpop.f32.mrb[0].mxu0
      %v9158 = vadd.f32 %v7811, %v9157
      %v9159 = vpop.f32.mrb[0].mxu0
      %v9160 = vadd.f32 %v7807, %v9159
      %v9161 = vpop.f32.mrb[0].mxu0
      %v9162 = vadd.f32 %v7811, %v9161
      %9163 = vmatprep.mubr.bf16.mxu0 %v7539
      %9164 = vmatmul.mubr.bf16.gmra.mrb[0].mxu0 %v7538
      %v9165 = vpop.f32.mrb[0].mxu0
      %v9166 = vadd.f32 %v7807, %v9165
      %v9167 = vpop.f32.mrb[0].mxu0
      %v9168 = vadd.f32 %v7811, %v9167
      %v9169 = vpop.f32.mrb[0].mxu0
      %v9170 = vadd.f32 %v7807, %v9169
      %v9171 = vpop.f32.mrb[0].mxu0
      %v9172 = vadd.f32 %v7811, %v9171
      %9173 = vmatprep.mubr.bf16.mxu0 %v7543
      %9174 = vmatmul.mubr.bf16.gmra.mrb[0].mxu0 %v7542
      %v9175 = vpop.f32.mrb[0].mxu0
      %v9176 = vadd.f32 %v7807, %v9175
      %v9177 = vpop.f32.mrb[0].mxu0
      %v9178 = vadd.f32 %v7811, %v9177
      %v9179 = vpop.f32.mrb[0].mxu0
      %v9180 = vadd.f32 %v7807, %v9179
      %v9181 = vpop.f32.mrb[0].mxu0
      %v9182 = vadd.f32 %v7811, %v9181
      %9183 = vdwg.mxu0
      %9184 = vmatprep.subr.bf16.mxu0 %v8656
      %9185 = vmatpush1.bf16.msra.mxu0 %v8655
      %9186 = vmatprep.subr.bf16.mxu0 %v8663
      %9187 = vmatpush1.bf16.msra.mxu0 %v8662
      %9188 = vmatprep.subr.bf16.mxu0 %v8670
      %9189 = vmatpush1.bf16.msra.mxu0 %v8669
      %9190 = vmatprep.subr.bf16.mxu0 %v8677
      %9191 = vmatpush1.bf16.msra.mxu0 %v8676
      %9192 = vmatprep.subr.bf16.mxu0 %v8684
      %9193 = vmatpush1.bf16.msra.mxu0 %v8683
      %9194 = vmatprep.subr.bf16.mxu0 %v8691
      %9195 = vmatpush1.bf16.msra.mxu0 %v8690
      %9196 = vmatprep.subr.bf16.mxu0 %v8698
      %9197 = vmatpush1.bf16.msra.mxu0 %v8697
      %9198 = vmatprep.subr.bf16.mxu0 %v8705
      %9199 = vmatpush1.bf16.msra.mxu0 %v8704
      %9200 = vmatprep.subr.bf16.mxu0 %v8712
      %9201 = vmatpush1.bf16.msra.mxu0 %v8711
      %9202 = vmatprep.subr.bf16.mxu0 %v8719
      %9203 = vmatpush1.bf16.msra.mxu0 %v8718
      %9204 = vmatprep.subr.bf16.mxu0 %v8726
      %9205 = vmatpush1.bf16.msra.mxu0 %v8725
      %9206 = vmatprep.subr.bf16.mxu0 %v8733
      %9207 = vmatpush1.bf16.msra.mxu0 %v8732
      %9208 = vmatprep.subr.bf16.mxu0 %v8740
      %9209 = vmatpush1.bf16.msra.mxu0 %v8739
      %9210 = vmatprep.subr.bf16.mxu0 %v8747
      %9211 = vmatpush1.bf16.msra.mxu0 %v8746
      %9212 = vmatprep.subr.bf16.mxu0 %v8754
      %9213 = vmatpush1.bf16.msra.mxu0 %v8753
      %9214 = vmatprep.subr.bf16.mxu0 %v8761
      %9215 = vmatpush1.bf16.msra.mxu0 %v8760
      %9216 = vmatprep.mubr.bf16.mxu0 %v7485
      %9217 = vmatmul.mubr.bf16.gmra.mrb[0].mxu0 %v7484
      %v9218 = vpop.f32.mrb[0].mxu0
      %v9219 = vadd.f32 %v9026, %v9218
      %v9220 = vpop.f32.mrb[0].mxu0
      %v9221 = vadd.f32 %v9028, %v9220
      %v9222 = vpop.f32.mrb[0].mxu0
      %v9223 = vadd.f32 %v9030, %v9222
      %v9224 = vpop.f32.mrb[0].mxu0
      %v9225 = vadd.f32 %v9032, %v9224
      %9226 = vmatprep.mubr.bf16.mxu0 %v7489
      %9227 = vmatmul.mubr.bf16.gmra.mrb[0].mxu0 %v7488
      %v9228 = vpop.f32.mrb[0].mxu0
      %v9229 = vadd.f32 %v9036, %v9228
      %v9230 = vpop.f32.mrb[0].mxu0
      %v9231 = vadd.f32 %v9038, %v9230
      %v9232 = vpop.f32.mrb[0].mxu0
      %v9233 = vadd.f32 %v9040, %v9232
      %v9234 = vpop.f32.mrb[0].mxu0
      %v9235 = vadd.f32 %v9042, %v9234
      %9236 = vmatprep.mubr.bf16.mxu0 %v7493
      %9237 = vmatmul.mubr.bf16.gmra.mrb[0].mxu0 %v7492
      %v9238 = vpop.f32.mrb[0].mxu0
      %v9239 = vadd.f32 %v9046, %v9238
      %v9240 = vpop.f32.mrb[0].mxu0
      %v9241 = vadd.f32 %v9048, %v9240
      %v9242 = vpop.f32.mrb[0].mxu0
      %v9243 = vadd.f32 %v9050, %v9242
      %v9244 = vpop.f32.mrb[0].mxu0
      %v9245 = vadd.f32 %v9052, %v9244
      %9246 = vmatprep.mubr.bf16.mxu0 %v7497
      %9247 = vmatmul.mubr.bf16.gmra.mrb[0].mxu0 %v7496
      %v9248 = vpop.f32.mrb[0].mxu0
      %v9249 = vadd.f32 %v9056, %v9248
      %v9250 = vpop.f32.mrb[0].mxu0
      %v9251 = vadd.f32 %v9058, %v9250
      %v9252 = vpop.f32.mrb[0].mxu0
      %v9253 = vadd.f32 %v9060, %v9252
      %v9254 = vpop.f32.mrb[0].mxu0
      %v9255 = vadd.f32 %v9062, %v9254
      %9256 = vmatprep.mubr.bf16.mxu0 %v7501
      %9257 = vmatmul.mubr.bf16.gmra.mrb[0].mxu0 %v7500
      %v9258 = vpop.f32.mrb[0].mxu0
      %v9259 = vadd.f32 %v9066, %v9258
      %v9260 = vpop.f32.mrb[0].mxu0
      %v9261 = vadd.f32 %v9068, %v9260
      %v9262 = vpop.f32.mrb[0].mxu0
      %v9263 = vadd.f32 %v9070, %v9262
      %v9264 = vpop.f32.mrb[0].mxu0
      %v9265 = vadd.f32 %v9072, %v9264
      %9266 = vmatprep.mubr.bf16.mxu0 %v7505
      %9267 = vmatmul.mubr.bf16.gmra.mrb[0].mxu0 %v7504
      %v9268 = vpop.f32.mrb[0].mxu0
      %v9269 = vadd.f32 %v9076, %v9268
      %v9270 = vpop.f32.mrb[0].mxu0
      %v9271 = vadd.f32 %v9078, %v9270
      %v9272 = vpop.f32.mrb[0].mxu0
      %v9273 = vadd.f32 %v9080, %v9272
      %v9274 = vpop.f32.mrb[0].mxu0
      %v9275 = vadd.f32 %v9082, %v9274
      %9276 = vmatprep.mubr.bf16.mxu0 %v7509
      %9277 = vmatmul.mubr.bf16.gmra.mrb[0].mxu0 %v7508
      %v9278 = vpop.f32.mrb[0].mxu0
      %v9279 = vadd.f32 %v9086, %v9278
      %v9280 = vpop.f32.mrb[0].mxu0
      %v9281 = vadd.f32 %v9088, %v9280
      %v9282 = vpop.f32.mrb[0].mxu0
      %v9283 = vadd.f32 %v9090, %v9282
      %v9284 = vpop.f32.mrb[0].mxu0
      %v9285 = vadd.f32 %v9092, %v9284
      %9286 = vmatprep.mubr.bf16.mxu0 %v7513
      %9287 = vmatmul.mubr.bf16.gmra.mrb[0].mxu0 %v7512
      %v9288 = vpop.f32.mrb[0].mxu0
      %v9289 = vadd.f32 %v9096, %v9288
      %v9290 = vpop.f32.mrb[0].mxu0
      %v9291 = vadd.f32 %v9098, %v9290
      %v9292 = vpop.f32.mrb[0].mxu0
      %v9293 = vadd.f32 %v9100, %v9292
      %v9294 = vpop.f32.mrb[0].mxu0
      %v9295 = vadd.f32 %v9102, %v9294
      %9296 = vmatprep.mubr.bf16.mxu0 %v7517
      %9297 = vmatmul.mubr.bf16.gmra.mrb[0].mxu0 %v7516
      %v9298 = vpop.f32.mrb[0].mxu0
      %v9299 = vadd.f32 %v9106, %v9298
      %v9300 = vpop.f32.mrb[0].mxu0
      %v9301 = vadd.f32 %v9108, %v9300
      %v9302 = vpop.f32.mrb[0].mxu0
      %v9303 = vadd.f32 %v9110, %v9302
      %v9304 = vpop.f32.mrb[0].mxu0
      %v9305 = vadd.f32 %v9112, %v9304
      %9306 = vmatprep.mubr.bf16.mxu0 %v7521
      %9307 = vmatmul.mubr.bf16.gmra.mrb[0].mxu0 %v7520
      %v9308 = vpop.f32.mrb[0].mxu0
      %v9309 = vadd.f32 %v9116, %v9308
      %v9310 = vpop.f32.mrb[0].mxu0
      %v9311 = vadd.f32 %v9118, %v9310
      %v9312 = vpop.f32.mrb[0].mxu0
      %v9313 = vadd.f32 %v9120, %v9312
      %v9314 = vpop.f32.mrb[0].mxu0
      %v9315 = vadd.f32 %v9122, %v9314
      %9316 = vmatprep.mubr.bf16.mxu0 %v7525
      %9317 = vmatmul.mubr.bf16.gmra.mrb[0].mxu0 %v7524
      %v9318 = vpop.f32.mrb[0].mxu0
      %v9319 = vadd.f32 %v9126, %v9318
      %v9320 = vpop.f32.mrb[0].mxu0
      %v9321 = vadd.f32 %v9128, %v9320
      %v9322 = vpop.f32.mrb[0].mxu0
      %v9323 = vadd.f32 %v9130, %v9322
      %v9324 = vpop.f32.mrb[0].mxu0
      %v9325 = vadd.f32 %v9132, %v9324
      %9326 = vmatprep.mubr.bf16.mxu0 %v7529
      %9327 = vmatmul.mubr.bf16.gmra.mrb[0].mxu0 %v7528
      %v9328 = vpop.f32.mrb[0].mxu0
      %v9329 = vadd.f32 %v9136, %v9328
      %v9330 = vpop.f32.mrb[0].mxu0
      %v9331 = vadd.f32 %v9138, %v9330
      %v9332 = vpop.f32.mrb[0].mxu0
      %v9333 = vadd.f32 %v9140, %v9332
      %v9334 = vpop.f32.mrb[0].mxu0
      %v9335 = vadd.f32 %v9142, %v9334
      %9336 = vmatprep.mubr.bf16.mxu0 %v7533
      %9337 = vmatmul.mubr.bf16.gmra.mrb[0].mxu0 %v7532
      %v9338 = vpop.f32.mrb[0].mxu0
      %v9339 = vadd.f32 %v9146, %v9338
      %v9340 = vpop.f32.mrb[0].mxu0
      %v9341 = vadd.f32 %v9148, %v9340
      %v9342 = vpop.f32.mrb[0].mxu0
      %v9343 = vadd.f32 %v9150, %v9342
      %v9344 = vpop.f32.mrb[0].mxu0
      %v9345 = vadd.f32 %v9152, %v9344
      %9346 = vmatprep.mubr.bf16.mxu0 %v7537
      %9347 = vmatmul.mubr.bf16.gmra.mrb[0].mxu0 %v7536
      %v9348 = vpop.f32.mrb[0].mxu0
      %v9349 = vadd.f32 %v9156, %v9348
      %v9350 = vpop.f32.mrb[0].mxu0
      %v9351 = vadd.f32 %v9158, %v9350
      %v9352 = vpop.f32.mrb[0].mxu0
      %v9353 = vadd.f32 %v9160, %v9352
      %v9354 = vpop.f32.mrb[0].mxu0
      %v9355 = vadd.f32 %v9162, %v9354
      %9356 = vmatprep.mubr.bf16.mxu0 %v7541
      %9357 = vmatmul.mubr.bf16.gmra.mrb[0].mxu0 %v7540
      %v9358 = vpop.f32.mrb[0].mxu0
      %v9359 = vadd.f32 %v9166, %v9358
      %v9360 = vpop.f32.mrb[0].mxu0
      %v9361 = vadd.f32 %v9168, %v9360
      %v9362 = vpop.f32.mrb[0].mxu0
      %v9363 = vadd.f32 %v9170, %v9362
      %v9364 = vpop.f32.mrb[0].mxu0
      %v9365 = vadd.f32 %v9172, %v9364
      %9366 = vmatprep.mubr.bf16.mxu0 %v7545
      %9367 = vmatmul.mubr.bf16.gmra.mrb[0].mxu0 %v7544
      %v9368 = vpop.f32.mrb[0].mxu0
      %v9369 = vadd.f32 %v9176, %v9368
      %v9370 = vpop.f32.mrb[0].mxu0
      %v9371 = vadd.f32 %v9178, %v9370
      %v9372 = vpop.f32.mrb[0].mxu0
      %v9373 = vadd.f32 %v9180, %v9372
      %v9374 = vpop.f32.mrb[0].mxu0
      %v9375 = vadd.f32 %v9182, %v9374
      %9376 = vdwg.mxu0
      %9377 = vmatprep.subr.bf16.mxu0 %v8546
      %9378 = vmatpush1.bf16.msra.mxu0 %v8545
      %9379 = vmatprep.subr.bf16.mxu0 %v8553
      %9380 = vmatpush1.bf16.msra.mxu0 %v8552
      %9381 = vmatprep.subr.bf16.mxu0 %v8560
      %9382 = vmatpush1.bf16.msra.mxu0 %v8559
      %9383 = vmatprep.subr.bf16.mxu0 %v8567
      %9384 = vmatpush1.bf16.msra.mxu0 %v8566
      %9385 = vmatprep.subr.bf16.mxu0 %v8574
      %9386 = vmatpush1.bf16.msra.mxu0 %v8573
      %9387 = vmatprep.subr.bf16.mxu0 %v8581
      %9388 = vmatpush1.bf16.msra.mxu0 %v8580
      %9389 = vmatprep.subr.bf16.mxu0 %v8588
      %9390 = vmatpush1.bf16.msra.mxu0 %v8587
      %9391 = vmatprep.subr.bf16.mxu0 %v8595
      %9392 = vmatpush1.bf16.msra.mxu0 %v8594
      %9393 = vmatprep.subr.bf16.mxu0 %v8602
      %9394 = vmatpush1.bf16.msra.mxu0 %v8601
      %9395 = vmatprep.subr.bf16.mxu0 %v8609
      %9396 = vmatpush1.bf16.msra.mxu0 %v8608
      %9397 = vmatprep.subr.bf16.mxu0 %v8616
      %9398 = vmatpush1.bf16.msra.mxu0 %v8615
      %9399 = vmatprep.subr.bf16.mxu0 %v8623
      %9400 = vmatpush1.bf16.msra.mxu0 %v8622
      %9401 = vmatprep.subr.bf16.mxu0 %v8630
      %9402 = vmatpush1.bf16.msra.mxu0 %v8629
      %9403 = vmatprep.subr.bf16.mxu0 %v8637
      %9404 = vmatpush1.bf16.msra.mxu0 %v8636
      %9405 = vmatprep.subr.bf16.mxu0 %v8644
      %9406 = vmatpush1.bf16.msra.mxu0 %v8643
      %9407 = vmatprep.subr.bf16.mxu0 %v8651
      %9408 = vmatpush1.bf16.msra.mxu0 %v8650
      %9409 = vmatprep.mubr.bf16.mxu0 %v7483
      %9410 = vmatmul.mubr.bf16.gmra.mrb[0].mxu0 %v7482
      %v9411 = vpop.f32.mrb[0].mxu0
      %v9412 = vadd.f32 %v7815, %v9411
      %v9413 = vpop.f32.mrb[0].mxu0
      %v9414 = vadd.f32 %v7819, %v9413
      %v9415 = vpop.f32.mrb[0].mxu0
      %v9416 = vadd.f32 %v7815, %v9415
      %v9417 = vpop.f32.mrb[0].mxu0
      %v9418 = vadd.f32 %v7819, %v9417
      %9419 = vmatprep.mubr.bf16.mxu0 %v7487
      %9420 = vmatmul.mubr.bf16.gmra.mrb[0].mxu0 %v7486
      %v9421 = vpop.f32.mrb[0].mxu0
      %v9422 = vadd.f32 %v7815, %v9421
      %v9423 = vpop.f32.mrb[0].mxu0
      %v9424 = vadd.f32 %v7819, %v9423
      %v9425 = vpop.f32.mrb[0].mxu0
      %v9426 = vadd.f32 %v7815, %v9425
      %v9427 = vpop.f32.mrb[0].mxu0
      %v9428 = vadd.f32 %v7819, %v9427
      %9429 = vmatprep.mubr.bf16.mxu0 %v7491
      %9430 = vmatmul.mubr.bf16.gmra.mrb[0].mxu0 %v7490
      %v9431 = vpop.f32.mrb[0].mxu0
      %v9432 = vadd.f32 %v7815, %v9431
      %v9433 = vpop.f32.mrb[0].mxu0
      %v9434 = vadd.f32 %v7819, %v9433
      %v9435 = vpop.f32.mrb[0].mxu0
      %v9436 = vadd.f32 %v7815, %v9435
      %v9437 = vpop.f32.mrb[0].mxu0
      %v9438 = vadd.f32 %v7819, %v9437
      %9439 = vmatprep.mubr.bf16.mxu0 %v7495
      %9440 = vmatmul.mubr.bf16.gmra.mrb[0].mxu0 %v7494
      %v9441 = vpop.f32.mrb[0].mxu0
      %v9442 = vadd.f32 %v7815, %v9441
      %v9443 = vpop.f32.mrb[0].mxu0
      %v9444 = vadd.f32 %v7819, %v9443
      %v9445 = vpop.f32.mrb[0].mxu0
      %v9446 = vadd.f32 %v7815, %v9445
      %v9447 = vpop.f32.mrb[0].mxu0
      %v9448 = vadd.f32 %v7819, %v9447
      %9449 = vmatprep.mubr.bf16.mxu0 %v7499
      %9450 = vmatmul.mubr.bf16.gmra.mrb[0].mxu0 %v7498
      %v9451 = vpop.f32.mrb[0].mxu0
      %v9452 = vadd.f32 %v7815, %v9451
      %v9453 = vpop.f32.mrb[0].mxu0
      %v9454 = vadd.f32 %v7819, %v9453
      %v9455 = vpop.f32.mrb[0].mxu0
      %v9456 = vadd.f32 %v7815, %v9455
      %v9457 = vpop.f32.mrb[0].mxu0
      %v9458 = vadd.f32 %v7819, %v9457
      %9459 = vmatprep.mubr.bf16.mxu0 %v7503
      %9460 = vmatmul.mubr.bf16.gmra.mrb[0].mxu0 %v7502
      %v9461 = vpop.f32.mrb[0].mxu0
      %v9462 = vadd.f32 %v7815, %v9461
      %v9463 = vpop.f32.mrb[0].mxu0
      %v9464 = vadd.f32 %v7819, %v9463
      %v9465 = vpop.f32.mrb[0].mxu0
      %v9466 = vadd.f32 %v7815, %v9465
      %v9467 = vpop.f32.mrb[0].mxu0
      %v9468 = vadd.f32 %v7819, %v9467
      %9469 = vmatprep.mubr.bf16.mxu0 %v7507
      %9470 = vmatmul.mubr.bf16.gmra.mrb[0].mxu0 %v7506
      %v9471 = vpop.f32.mrb[0].mxu0
      %v9472 = vadd.f32 %v7815, %v9471
      %v9473 = vpop.f32.mrb[0].mxu0
      %v9474 = vadd.f32 %v7819, %v9473
      %v9475 = vpop.f32.mrb[0].mxu0
      %v9476 = vadd.f32 %v7815, %v9475
      %v9477 = vpop.f32.mrb[0].mxu0
      %v9478 = vadd.f32 %v7819, %v9477
      %9479 = vmatprep.mubr.bf16.mxu0 %v7511
      %9480 = vmatmul.mubr.bf16.gmra.mrb[0].mxu0 %v7510
      %v9481 = vpop.f32.mrb[0].mxu0
      %v9482 = vadd.f32 %v7815, %v9481
      %v9483 = vpop.f32.mrb[0].mxu0
      %v9484 = vadd.f32 %v7819, %v9483
      %v9485 = vpop.f32.mrb[0].mxu0
      %v9486 = vadd.f32 %v7815, %v9485
      %v9487 = vpop.f32.mrb[0].mxu0
      %v9488 = vadd.f32 %v7819, %v9487
      %9489 = vmatprep.mubr.bf16.mxu0 %v7515
      %9490 = vmatmul.mubr.bf16.gmra.mrb[0].mxu0 %v7514
      %v9491 = vpop.f32.mrb[0].mxu0
      %v9492 = vadd.f32 %v7815, %v9491
      %v9493 = vpop.f32.mrb[0].mxu0
      %v9494 = vadd.f32 %v7819, %v9493
      %v9495 = vpop.f32.mrb[0].mxu0
      %v9496 = vadd.f32 %v7815, %v9495
      %v9497 = vpop.f32.mrb[0].mxu0
      %v9498 = vadd.f32 %v7819, %v9497
      %9499 = vmatprep.mubr.bf16.mxu0 %v7519
      %9500 = vmatmul.mubr.bf16.gmra.mrb[0].mxu0 %v7518
      %v9501 = vpop.f32.mrb[0].mxu0
      %v9502 = vadd.f32 %v7815, %v9501
      %v9503 = vpop.f32.mrb[0].mxu0
      %v9504 = vadd.f32 %v7819, %v9503
      %v9505 = vpop.f32.mrb[0].mxu0
      %v9506 = vadd.f32 %v7815, %v9505
      %v9507 = vpop.f32.mrb[0].mxu0
      %v9508 = vadd.f32 %v7819, %v9507
      %9509 = vmatprep.mubr.bf16.mxu0 %v7523
      %9510 = vmatmul.mubr.bf16.gmra.mrb[0].mxu0 %v7522
      %v9511 = vpop.f32.mrb[0].mxu0
      %v9512 = vadd.f32 %v7815, %v9511
      %v9513 = vpop.f32.mrb[0].mxu0
      %v9514 = vadd.f32 %v7819, %v9513
      %v9515 = vpop.f32.mrb[0].mxu0
      %v9516 = vadd.f32 %v7815, %v9515
      %v9517 = vpop.f32.mrb[0].mxu0
      %v9518 = vadd.f32 %v7819, %v9517
      %9519 = vmatprep.mubr.bf16.mxu0 %v7527
      %9520 = vmatmul.mubr.bf16.gmra.mrb[0].mxu0 %v7526
      %v9521 = vpop.f32.mrb[0].mxu0
      %v9522 = vadd.f32 %v7815, %v9521
      %v9523 = vpop.f32.mrb[0].mxu0
      %v9524 = vadd.f32 %v7819, %v9523
      %v9525 = vpop.f32.mrb[0].mxu0
      %v9526 = vadd.f32 %v7815, %v9525
      %v9527 = vpop.f32.mrb[0].mxu0
      %v9528 = vadd.f32 %v7819, %v9527
      %9529 = vmatprep.mubr.bf16.mxu0 %v7531
      %9530 = vmatmul.mubr.bf16.gmra.mrb[0].mxu0 %v7530
      %v9531 = vpop.f32.mrb[0].mxu0
      %v9532 = vadd.f32 %v7815, %v9531
      %v9533 = vpop.f32.mrb[0].mxu0
      %v9534 = vadd.f32 %v7819, %v9533
      %v9535 = vpop.f32.mrb[0].mxu0
      %v9536 = vadd.f32 %v7815, %v9535
      %v9537 = vpop.f32.mrb[0].mxu0
      %v9538 = vadd.f32 %v7819, %v9537
      %9539 = vmatprep.mubr.bf16.mxu0 %v7535
      %9540 = vmatmul.mubr.bf16.gmra.mrb[0].mxu0 %v7534
      %v9541 = vpop.f32.mrb[0].mxu0
      %v9542 = vadd.f32 %v7815, %v9541
      %v9543 = vpop.f32.mrb[0].mxu0
      %v9544 = vadd.f32 %v7819, %v9543
      %v9545 = vpop.f32.mrb[0].mxu0
      %v9546 = vadd.f32 %v7815, %v9545
      %v9547 = vpop.f32.mrb[0].mxu0
      %v9548 = vadd.f32 %v7819, %v9547
      %9549 = vmatprep.mubr.bf16.mxu0 %v7539
      %9550 = vmatmul.mubr.bf16.gmra.mrb[0].mxu0 %v7538
      %v9551 = vpop.f32.mrb[0].mxu0
      %v9552 = vadd.f32 %v7815, %v9551
      %v9553 = vpop.f32.mrb[0].mxu0
      %v9554 = vadd.f32 %v7819, %v9553
      %v9555 = vpop.f32.mrb[0].mxu0
      %v9556 = vadd.f32 %v7815, %v9555
      %v9557 = vpop.f32.mrb[0].mxu0
      %v9558 = vadd.f32 %v7819, %v9557
      %9559 = vmatprep.mubr.bf16.mxu0 %v7543
      %9560 = vmatmul.mubr.bf16.gmra.mrb[0].mxu0 %v7542
      %v9561 = vpop.f32.mrb[0].mxu0
      %v9562 = vadd.f32 %v7815, %v9561
      %v9563 = vpop.f32.mrb[0].mxu0
      %v9564 = vadd.f32 %v7819, %v9563
      %v9565 = vpop.f32.mrb[0].mxu0
      %v9566 = vadd.f32 %v7815, %v9565
      %v9567 = vpop.f32.mrb[0].mxu0
      %v9568 = vadd.f32 %v7819, %v9567
      %9569 = vdwg.mxu0
      %9570 = vmatprep.subr.bf16.mxu0 %v8658
      %9571 = vmatpush1.bf16.msra.mxu0 %v8657
      %9572 = vmatprep.subr.bf16.mxu0 %v8665
      %9573 = vmatpush1.bf16.msra.mxu0 %v8664
      %9574 = vmatprep.subr.bf16.mxu0 %v8672
      %9575 = vmatpush1.bf16.msra.mxu0 %v8671
      %9576 = vmatprep.subr.bf16.mxu0 %v8679
      %9577 = vmatpush1.bf16.msra.mxu0 %v8678
      %9578 = vmatprep.subr.bf16.mxu0 %v8686
      %9579 = vmatpush1.bf16.msra.mxu0 %v8685
      %9580 = vmatprep.subr.bf16.mxu0 %v8693
      %9581 = vmatpush1.bf16.msra.mxu0 %v8692
      %9582 = vmatprep.subr.bf16.mxu0 %v8700
      %9583 = vmatpush1.bf16.msra.mxu0 %v8699
      %9584 = vmatprep.subr.bf16.mxu0 %v8707
      %9585 = vmatpush1.bf16.msra.mxu0 %v8706
      %9586 = vmatprep.subr.bf16.mxu0 %v8714
      %9587 = vmatpush1.bf16.msra.mxu0 %v8713
      %9588 = vmatprep.subr.bf16.mxu0 %v8721
      %9589 = vmatpush1.bf16.msra.mxu0 %v8720
      %9590 = vmatprep.subr.bf16.mxu0 %v8728
      %9591 = vmatpush1.bf16.msra.mxu0 %v8727
      %9592 = vmatprep.subr.bf16.mxu0 %v8735
      %9593 = vmatpush1.bf16.msra.mxu0 %v8734
      %9594 = vmatprep.subr.bf16.mxu0 %v8742
      %9595 = vmatpush1.bf16.msra.mxu0 %v8741
      %9596 = vmatprep.subr.bf16.mxu0 %v8749
      %9597 = vmatpush1.bf16.msra.mxu0 %v8748
      %9598 = vmatprep.subr.bf16.mxu0 %v8756
      %9599 = vmatpush1.bf16.msra.mxu0 %v8755
      %9600 = vmatprep.subr.bf16.mxu0 %v8763
      %9601 = vmatpush1.bf16.msra.mxu0 %v8762
      %9602 = vmatprep.mubr.bf16.mxu0 %v7485
      %9603 = vmatmul.mubr.bf16.gmra.mrb[0].mxu0 %v7484
      %v9604 = vpop.f32.mrb[0].mxu0
      %v9605 = vadd.f32 %v9412, %v9604
      %v9606 = vpop.f32.mrb[0].mxu0
      %v9607 = vadd.f32 %v9414, %v9606
      %v9608 = vpop.f32.mrb[0].mxu0
      %v9609 = vadd.f32 %v9416, %v9608
      %v9610 = vpop.f32.mrb[0].mxu0
      %v9611 = vadd.f32 %v9418, %v9610
      %9612 = vmatprep.mubr.bf16.mxu0 %v7489
      %9613 = vmatmul.mubr.bf16.gmra.mrb[0].mxu0 %v7488
      %v9614 = vpop.f32.mrb[0].mxu0
      %v9615 = vadd.f32 %v9422, %v9614
      %v9616 = vpop.f32.mrb[0].mxu0
      %v9617 = vadd.f32 %v9424, %v9616
      %v9618 = vpop.f32.mrb[0].mxu0
      %v9619 = vadd.f32 %v9426, %v9618
      %v9620 = vpop.f32.mrb[0].mxu0
      %v9621 = vadd.f32 %v9428, %v9620
      %9622 = vmatprep.mubr.bf16.mxu0 %v7493
      %9623 = vmatmul.mubr.bf16.gmra.mrb[0].mxu0 %v7492
      %v9624 = vpop.f32.mrb[0].mxu0
      %v9625 = vadd.f32 %v9432, %v9624
      %v9626 = vpop.f32.mrb[0].mxu0
      %v9627 = vadd.f32 %v9434, %v9626
      %v9628 = vpop.f32.mrb[0].mxu0
      %v9629 = vadd.f32 %v9436, %v9628
      %v9630 = vpop.f32.mrb[0].mxu0
      %v9631 = vadd.f32 %v9438, %v9630
      %9632 = vmatprep.mubr.bf16.mxu0 %v7497
      %9633 = vmatmul.mubr.bf16.gmra.mrb[0].mxu0 %v7496
      %v9634 = vpop.f32.mrb[0].mxu0
      %v9635 = vadd.f32 %v9442, %v9634
      %v9636 = vpop.f32.mrb[0].mxu0
      %v9637 = vadd.f32 %v9444, %v9636
      %v9638 = vpop.f32.mrb[0].mxu0
      %v9639 = vadd.f32 %v9446, %v9638
      %v9640 = vpop.f32.mrb[0].mxu0
      %v9641 = vadd.f32 %v9448, %v9640
      %9642 = vmatprep.mubr.bf16.mxu0 %v7501
      %9643 = vmatmul.mubr.bf16.gmra.mrb[0].mxu0 %v7500
      %v9644 = vpop.f32.mrb[0].mxu0
      %v9645 = vadd.f32 %v9452, %v9644
      %v9646 = vpop.f32.mrb[0].mxu0
      %v9647 = vadd.f32 %v9454, %v9646
      %v9648 = vpop.f32.mrb[0].mxu0
      %v9649 = vadd.f32 %v9456, %v9648
      %v9650 = vpop.f32.mrb[0].mxu0
      %v9651 = vadd.f32 %v9458, %v9650
      %9652 = vmatprep.mubr.bf16.mxu0 %v7505
      %9653 = vmatmul.mubr.bf16.gmra.mrb[0].mxu0 %v7504
      %v9654 = vpop.f32.mrb[0].mxu0
      %v9655 = vadd.f32 %v9462, %v9654
      %v9656 = vpop.f32.mrb[0].mxu0
      %v9657 = vadd.f32 %v9464, %v9656
      %v9658 = vpop.f32.mrb[0].mxu0
      %v9659 = vadd.f32 %v9466, %v9658
      %v9660 = vpop.f32.mrb[0].mxu0
      %v9661 = vadd.f32 %v9468, %v9660
      %9662 = vmatprep.mubr.bf16.mxu0 %v7509
      %9663 = vmatmul.mubr.bf16.gmra.mrb[0].mxu0 %v7508
      %v9664 = vpop.f32.mrb[0].mxu0
      %v9665 = vadd.f32 %v9472, %v9664
      %v9666 = vpop.f32.mrb[0].mxu0
      %v9667 = vadd.f32 %v9474, %v9666
      %v9668 = vpop.f32.mrb[0].mxu0
      %v9669 = vadd.f32 %v9476, %v9668
      %v9670 = vpop.f32.mrb[0].mxu0
      %v9671 = vadd.f32 %v9478, %v9670
      %9672 = vmatprep.mubr.bf16.mxu0 %v7513
      %9673 = vmatmul.mubr.bf16.gmra.mrb[0].mxu0 %v7512
      %v9674 = vpop.f32.mrb[0].mxu0
      %v9675 = vadd.f32 %v9482, %v9674
      %v9676 = vpop.f32.mrb[0].mxu0
      %v9677 = vadd.f32 %v9484, %v9676
      %v9678 = vpop.f32.mrb[0].mxu0
      %v9679 = vadd.f32 %v9486, %v9678
      %v9680 = vpop.f32.mrb[0].mxu0
      %v9681 = vadd.f32 %v9488, %v9680
      %9682 = vmatprep.mubr.bf16.mxu0 %v7517
      %9683 = vmatmul.mubr.bf16.gmra.mrb[0].mxu0 %v7516
      %v9684 = vpop.f32.mrb[0].mxu0
      %v9685 = vadd.f32 %v9492, %v9684
      %v9686 = vpop.f32.mrb[0].mxu0
      %v9687 = vadd.f32 %v9494, %v9686
      %v9688 = vpop.f32.mrb[0].mxu0
      %v9689 = vadd.f32 %v9496, %v9688
      %v9690 = vpop.f32.mrb[0].mxu0
      %v9691 = vadd.f32 %v9498, %v9690
      %9692 = vmatprep.mubr.bf16.mxu0 %v7521
      %9693 = vmatmul.mubr.bf16.gmra.mrb[0].mxu0 %v7520
      %v9694 = vpop.f32.mrb[0].mxu0
      %v9695 = vadd.f32 %v9502, %v9694
      %v9696 = vpop.f32.mrb[0].mxu0
      %v9697 = vadd.f32 %v9504, %v9696
      %v9698 = vpop.f32.mrb[0].mxu0
      %v9699 = vadd.f32 %v9506, %v9698
      %v9700 = vpop.f32.mrb[0].mxu0
      %v9701 = vadd.f32 %v9508, %v9700
      %9702 = vmatprep.mubr.bf16.mxu0 %v7525
      %9703 = vmatmul.mubr.bf16.gmra.mrb[0].mxu0 %v7524
      %v9704 = vpop.f32.mrb[0].mxu0
      %v9705 = vadd.f32 %v9512, %v9704
      %v9706 = vpop.f32.mrb[0].mxu0
      %v9707 = vadd.f32 %v9514, %v9706
      %v9708 = vpop.f32.mrb[0].mxu0
      %v9709 = vadd.f32 %v9516, %v9708
      %v9710 = vpop.f32.mrb[0].mxu0
      %v9711 = vadd.f32 %v9518, %v9710
      %9712 = vmatprep.mubr.bf16.mxu0 %v7529
      %9713 = vmatmul.mubr.bf16.gmra.mrb[0].mxu0 %v7528
      %v9714 = vpop.f32.mrb[0].mxu0
      %v9715 = vadd.f32 %v9522, %v9714
      %v9716 = vpop.f32.mrb[0].mxu0
      %v9717 = vadd.f32 %v9524, %v9716
      %v9718 = vpop.f32.mrb[0].mxu0
      %v9719 = vadd.f32 %v9526, %v9718
      %v9720 = vpop.f32.mrb[0].mxu0
      %v9721 = vadd.f32 %v9528, %v9720
      %9722 = vmatprep.mubr.bf16.mxu0 %v7533
      %9723 = vmatmul.mubr.bf16.gmra.mrb[0].mxu0 %v7532
      %v9724 = vpop.f32.mrb[0].mxu0
      %v9725 = vadd.f32 %v9532, %v9724
      %v9726 = vpop.f32.mrb[0].mxu0
      %v9727 = vadd.f32 %v9534, %v9726
      %v9728 = vpop.f32.mrb[0].mxu0
      %v9729 = vadd.f32 %v9536, %v9728
      %v9730 = vpop.f32.mrb[0].mxu0
      %v9731 = vadd.f32 %v9538, %v9730
      %9732 = vmatprep.mubr.bf16.mxu0 %v7537
      %9733 = vmatmul.mubr.bf16.gmra.mrb[0].mxu0 %v7536
      %v9734 = vpop.f32.mrb[0].mxu0
      %v9735 = vadd.f32 %v9542, %v9734
      %v9736 = vpop.f32.mrb[0].mxu0
      %v9737 = vadd.f32 %v9544, %v9736
      %v9738 = vpop.f32.mrb[0].mxu0
      %v9739 = vadd.f32 %v9546, %v9738
      %v9740 = vpop.f32.mrb[0].mxu0
      %v9741 = vadd.f32 %v9548, %v9740
      %9742 = vmatprep.mubr.bf16.mxu0 %v7541
      %9743 = vmatmul.mubr.bf16.gmra.mrb[0].mxu0 %v7540
      %v9744 = vpop.f32.mrb[0].mxu0
      %v9745 = vadd.f32 %v9552, %v9744
      %v9746 = vpop.f32.mrb[0].mxu0
      %v9747 = vadd.f32 %v9554, %v9746
      %v9748 = vpop.f32.mrb[0].mxu0
      %v9749 = vadd.f32 %v9556, %v9748
      %v9750 = vpop.f32.mrb[0].mxu0
      %v9751 = vadd.f32 %v9558, %v9750
      %9752 = vmatprep.mubr.bf16.mxu0 %v7545
      %9753 = vmatmul.mubr.bf16.gmra.mrb[0].mxu0 %v7544
      %v9754 = vpop.f32.mrb[0].mxu0
      %v9755 = vadd.f32 %v9562, %v9754
      %v9756 = vpop.f32.mrb[0].mxu0
      %v9757 = vadd.f32 %v9564, %v9756
      %v9758 = vpop.f32.mrb[0].mxu0
      %v9759 = vadd.f32 %v9566, %v9758
      %v9760 = vpop.f32.mrb[0].mxu0
      %v9761 = vadd.f32 %v9568, %v9760
      %9762 = vdwg.mxu0
      %9763 = vmatprep.subr.bf16.mxu0 %v8548
      %9764 = vmatpush1.bf16.msra.mxu0 %v8547
      %9765 = vmatprep.subr.bf16.mxu0 %v8555
      %9766 = vmatpush1.bf16.msra.mxu0 %v8554
      %9767 = vmatprep.subr.bf16.mxu0 %v8562
      %9768 = vmatpush1.bf16.msra.mxu0 %v8561
      %9769 = vmatprep.subr.bf16.mxu0 %v8569
      %9770 = vmatpush1.bf16.msra.mxu0 %v8568
      %9771 = vmatprep.subr.bf16.mxu0 %v8576
      %9772 = vmatpush1.bf16.msra.mxu0 %v8575
      %9773 = vmatprep.subr.bf16.mxu0 %v8583
      %9774 = vmatpush1.bf16.msra.mxu0 %v8582
      %9775 = vmatprep.subr.bf16.mxu0 %v8590
      %9776 = vmatpush1.bf16.msra.mxu0 %v8589
      %9777 = vmatprep.subr.bf16.mxu0 %v8597
      %9778 = vmatpush1.bf16.msra.mxu0 %v8596
      %9779 = vmatprep.subr.bf16.mxu0 %v8604
      %9780 = vmatpush1.bf16.msra.mxu0 %v8603
      %9781 = vmatprep.subr.bf16.mxu0 %v8611
      %9782 = vmatpush1.bf16.msra.mxu0 %v8610
      %9783 = vmatprep.subr.bf16.mxu0 %v8618
      %9784 = vmatpush1.bf16.msra.mxu0 %v8617
      %9785 = vmatprep.subr.bf16.mxu0 %v8625
      %9786 = vmatpush1.bf16.msra.mxu0 %v8624
      %9787 = vmatprep.subr.bf16.mxu0 %v8632
      %9788 = vmatpush1.bf16.msra.mxu0 %v8631
      %9789 = vmatprep.subr.bf16.mxu0 %v8639
      %9790 = vmatpush1.bf16.msra.mxu0 %v8638
      %9791 = vmatprep.subr.bf16.mxu0 %v8646
      %9792 = vmatpush1.bf16.msra.mxu0 %v8645
      %9793 = vmatprep.subr.bf16.mxu0 %v8653
      %9794 = vmatpush1.bf16.msra.mxu0 %v8652
      %9795 = vmatprep.mubr.bf16.mxu0 %v7483
      %9796 = vmatmul.mubr.bf16.gmra.mrb[0].mxu0 %v7482
      %v9797 = vpop.f32.mrb[0].mxu0
      %v9798 = vadd.f32 %v7823, %v9797
      %v9799 = vpop.f32.mrb[0].mxu0
      %v9800 = vadd.f32 %v7827, %v9799
      %v9801 = vpop.f32.mrb[0].mxu0
      %v9802 = vadd.f32 %v7823, %v9801
      %v9803 = vpop.f32.mrb[0].mxu0
      %v9804 = vadd.f32 %v7827, %v9803
      %9805 = vmatprep.mubr.bf16.mxu0 %v7487
      %9806 = vmatmul.mubr.bf16.gmra.mrb[0].mxu0 %v7486
      %v9807 = vpop.f32.mrb[0].mxu0
      %v9808 = vadd.f32 %v7823, %v9807
      %v9809 = vpop.f32.mrb[0].mxu0
      %v9810 = vadd.f32 %v7827, %v9809
      %v9811 = vpop.f32.mrb[0].mxu0
      %v9812 = vadd.f32 %v7823, %v9811
      %v9813 = vpop.f32.mrb[0].mxu0
      %v9814 = vadd.f32 %v7827, %v9813
      %9815 = vmatprep.mubr.bf16.mxu0 %v7491
      %9816 = vmatmul.mubr.bf16.gmra.mrb[0].mxu0 %v7490
      %v9817 = vpop.f32.mrb[0].mxu0
      %v9818 = vadd.f32 %v7823, %v9817
      %v9819 = vpop.f32.mrb[0].mxu0
      %v9820 = vadd.f32 %v7827, %v9819
      %v9821 = vpop.f32.mrb[0].mxu0
      %v9822 = vadd.f32 %v7823, %v9821
      %v9823 = vpop.f32.mrb[0].mxu0
      %v9824 = vadd.f32 %v7827, %v9823
      %9825 = vmatprep.mubr.bf16.mxu0 %v7495
      %9826 = vmatmul.mubr.bf16.gmra.mrb[0].mxu0 %v7494
      %v9827 = vpop.f32.mrb[0].mxu0
      %v9828 = vadd.f32 %v7823, %v9827
      %v9829 = vpop.f32.mrb[0].mxu0
      %v9830 = vadd.f32 %v7827, %v9829
      %v9831 = vpop.f32.mrb[0].mxu0
      %v9832 = vadd.f32 %v7823, %v9831
      %v9833 = vpop.f32.mrb[0].mxu0
      %v9834 = vadd.f32 %v7827, %v9833
      %9835 = vmatprep.mubr.bf16.mxu0 %v7499
      %9836 = vmatmul.mubr.bf16.gmra.mrb[0].mxu0 %v7498
      %v9837 = vpop.f32.mrb[0].mxu0
      %v9838 = vadd.f32 %v7823, %v9837
      %v9839 = vpop.f32.mrb[0].mxu0
      %v9840 = vadd.f32 %v7827, %v9839
      %v9841 = vpop.f32.mrb[0].mxu0
      %v9842 = vadd.f32 %v7823, %v9841
      %v9843 = vpop.f32.mrb[0].mxu0
      %v9844 = vadd.f32 %v7827, %v9843
      %9845 = vmatprep.mubr.bf16.mxu0 %v7503
      %9846 = vmatmul.mubr.bf16.gmra.mrb[0].mxu0 %v7502
      %v9847 = vpop.f32.mrb[0].mxu0
      %v9848 = vadd.f32 %v7823, %v9847
      %v9849 = vpop.f32.mrb[0].mxu0
      %v9850 = vadd.f32 %v7827, %v9849
      %v9851 = vpop.f32.mrb[0].mxu0
      %v9852 = vadd.f32 %v7823, %v9851
      %v9853 = vpop.f32.mrb[0].mxu0
      %v9854 = vadd.f32 %v7827, %v9853
      %9855 = vmatprep.mubr.bf16.mxu0 %v7507
      %9856 = vmatmul.mubr.bf16.gmra.mrb[0].mxu0 %v7506
      %v9857 = vpop.f32.mrb[0].mxu0
      %v9858 = vadd.f32 %v7823, %v9857
      %v9859 = vpop.f32.mrb[0].mxu0
      %v9860 = vadd.f32 %v7827, %v9859
      %v9861 = vpop.f32.mrb[0].mxu0
      %v9862 = vadd.f32 %v7823, %v9861
      %v9863 = vpop.f32.mrb[0].mxu0
      %v9864 = vadd.f32 %v7827, %v9863
      %9865 = vmatprep.mubr.bf16.mxu0 %v7511
      %9866 = vmatmul.mubr.bf16.gmra.mrb[0].mxu0 %v7510
      %v9867 = vpop.f32.mrb[0].mxu0
      %v9868 = vadd.f32 %v7823, %v9867
      %v9869 = vpop.f32.mrb[0].mxu0
      %v9870 = vadd.f32 %v7827, %v9869
      %v9871 = vpop.f32.mrb[0].mxu0
      %v9872 = vadd.f32 %v7823, %v9871
      %v9873 = vpop.f32.mrb[0].mxu0
      %v9874 = vadd.f32 %v7827, %v9873
      %9875 = vmatprep.mubr.bf16.mxu0 %v7515
      %9876 = vmatmul.mubr.bf16.gmra.mrb[0].mxu0 %v7514
      %v9877 = vpop.f32.mrb[0].mxu0
      %v9878 = vadd.f32 %v7823, %v9877
      %v9879 = vpop.f32.mrb[0].mxu0
      %v9880 = vadd.f32 %v7827, %v9879
      %v9881 = vpop.f32.mrb[0].mxu0
      %v9882 = vadd.f32 %v7823, %v9881
      %v9883 = vpop.f32.mrb[0].mxu0
      %v9884 = vadd.f32 %v7827, %v9883
      %9885 = vmatprep.mubr.bf16.mxu0 %v7519
      %9886 = vmatmul.mubr.bf16.gmra.mrb[0].mxu0 %v7518
      %v9887 = vpop.f32.mrb[0].mxu0
      %v9888 = vadd.f32 %v7823, %v9887
      %v9889 = vpop.f32.mrb[0].mxu0
      %v9890 = vadd.f32 %v7827, %v9889
      %v9891 = vpop.f32.mrb[0].mxu0
      %v9892 = vadd.f32 %v7823, %v9891
      %v9893 = vpop.f32.mrb[0].mxu0
      %v9894 = vadd.f32 %v7827, %v9893
      %9895 = vmatprep.mubr.bf16.mxu0 %v7523
      %9896 = vmatmul.mubr.bf16.gmra.mrb[0].mxu0 %v7522
      %v9897 = vpop.f32.mrb[0].mxu0
      %v9898 = vadd.f32 %v7823, %v9897
      %v9899 = vpop.f32.mrb[0].mxu0
      %v9900 = vadd.f32 %v7827, %v9899
      %v9901 = vpop.f32.mrb[0].mxu0
      %v9902 = vadd.f32 %v7823, %v9901
      %v9903 = vpop.f32.mrb[0].mxu0
      %v9904 = vadd.f32 %v7827, %v9903
      %9905 = vmatprep.mubr.bf16.mxu0 %v7527
      %9906 = vmatmul.mubr.bf16.gmra.mrb[0].mxu0 %v7526
      %v9907 = vpop.f32.mrb[0].mxu0
      %v9908 = vadd.f32 %v7823, %v9907
      %v9909 = vpop.f32.mrb[0].mxu0
      %v9910 = vadd.f32 %v7827, %v9909
      %v9911 = vpop.f32.mrb[0].mxu0
      %v9912 = vadd.f32 %v7823, %v9911
      %v9913 = vpop.f32.mrb[0].mxu0
      %v9914 = vadd.f32 %v7827, %v9913
      %9915 = vmatprep.mubr.bf16.mxu0 %v7531
      %9916 = vmatmul.mubr.bf16.gmra.mrb[0].mxu0 %v7530
      %v9917 = vpop.f32.mrb[0].mxu0
      %v9918 = vadd.f32 %v7823, %v9917
      %v9919 = vpop.f32.mrb[0].mxu0
      %v9920 = vadd.f32 %v7827, %v9919
      %v9921 = vpop.f32.mrb[0].mxu0
      %v9922 = vadd.f32 %v7823, %v9921
      %v9923 = vpop.f32.mrb[0].mxu0
      %v9924 = vadd.f32 %v7827, %v9923
      %9925 = vmatprep.mubr.bf16.mxu0 %v7535
      %9926 = vmatmul.mubr.bf16.gmra.mrb[0].mxu0 %v7534
      %v9927 = vpop.f32.mrb[0].mxu0
      %v9928 = vadd.f32 %v7823, %v9927
      %v9929 = vpop.f32.mrb[0].mxu0
      %v9930 = vadd.f32 %v7827, %v9929
      %v9931 = vpop.f32.mrb[0].mxu0
      %v9932 = vadd.f32 %v7823, %v9931
      %v9933 = vpop.f32.mrb[0].mxu0
      %v9934 = vadd.f32 %v7827, %v9933
      %9935 = vmatprep.mubr.bf16.mxu0 %v7539
      %9936 = vmatmul.mubr.bf16.gmra.mrb[0].mxu0 %v7538
      %v9937 = vpop.f32.mrb[0].mxu0
      %v9938 = vadd.f32 %v7823, %v9937
      %v9939 = vpop.f32.mrb[0].mxu0
      %v9940 = vadd.f32 %v7827, %v9939
      %v9941 = vpop.f32.mrb[0].mxu0
      %v9942 = vadd.f32 %v7823, %v9941
      %v9943 = vpop.f32.mrb[0].mxu0
      %v9944 = vadd.f32 %v7827, %v9943
      %9945 = vmatprep.mubr.bf16.mxu0 %v7543
      %9946 = vmatmul.mubr.bf16.gmra.mrb[0].mxu0 %v7542
      %v9947 = vpop.f32.mrb[0].mxu0
      %v9948 = vadd.f32 %v7823, %v9947
      %v9949 = vpop.f32.mrb[0].mxu0
      %v9950 = vadd.f32 %v7827, %v9949
      %v9951 = vpop.f32.mrb[0].mxu0
      %v9952 = vadd.f32 %v7823, %v9951
      %v9953 = vpop.f32.mrb[0].mxu0
      %v9954 = vadd.f32 %v7827, %v9953
      %9955 = vdwg.mxu0
      %9956 = vmatprep.subr.bf16.mxu0 %v8660
      %9957 = vmatpush1.bf16.msra.mxu0 %v8659
      %9958 = vmatprep.subr.bf16.mxu0 %v8667
      %9959 = vmatpush1.bf16.msra.mxu0 %v8666
      %9960 = vmatprep.subr.bf16.mxu0 %v8674
      %9961 = vmatpush1.bf16.msra.mxu0 %v8673
      %9962 = vmatprep.subr.bf16.mxu0 %v8681
      %9963 = vmatpush1.bf16.msra.mxu0 %v8680
      %9964 = vmatprep.subr.bf16.mxu0 %v8688
      %9965 = vmatpush1.bf16.msra.mxu0 %v8687
      %9966 = vmatprep.subr.bf16.mxu0 %v8695
      %9967 = vmatpush1.bf16.msra.mxu0 %v8694
      %9968 = vmatprep.subr.bf16.mxu0 %v8702
      %9969 = vmatpush1.bf16.msra.mxu0 %v8701
      %9970 = vmatprep.subr.bf16.mxu0 %v8709
      %9971 = vmatpush1.bf16.msra.mxu0 %v8708
      %9972 = vmatprep.subr.bf16.mxu0 %v8716
      %9973 = vmatpush1.bf16.msra.mxu0 %v8715
      %9974 = vmatprep.subr.bf16.mxu0 %v8723
      %9975 = vmatpush1.bf16.msra.mxu0 %v8722
      %9976 = vmatprep.subr.bf16.mxu0 %v8730
      %9977 = vmatpush1.bf16.msra.mxu0 %v8729
      %9978 = vmatprep.subr.bf16.mxu0 %v8737
      %9979 = vmatpush1.bf16.msra.mxu0 %v8736
      %9980 = vmatprep.subr.bf16.mxu0 %v8744
      %9981 = vmatpush1.bf16.msra.mxu0 %v8743
      %9982 = vmatprep.subr.bf16.mxu0 %v8751
      %9983 = vmatpush1.bf16.msra.mxu0 %v8750
      %9984 = vmatprep.subr.bf16.mxu0 %v8758
      %9985 = vmatpush1.bf16.msra.mxu0 %v8757
      %9986 = vmatprep.subr.bf16.mxu0 %v8765
      %9987 = vmatpush1.bf16.msra.mxu0 %v8764
      %9988 = vmatprep.mubr.bf16.mxu0 %v7485
      %9989 = vmatmul.mubr.bf16.gmra.mrb[0].mxu0 %v7484
      %v9990 = vpop.f32.mrb[0].mxu0
      %v9991 = vadd.f32 %v9798, %v9990
      %v9992 = vpop.f32.mrb[0].mxu0
      %v9993 = vadd.f32 %v9800, %v9992
      %v9994 = vpop.f32.mrb[0].mxu0
      %v9995 = vadd.f32 %v9802, %v9994
      %v9996 = vpop.f32.mrb[0].mxu0
      %v9997 = vadd.f32 %v9804, %v9996
      %9998 = vmatprep.mubr.bf16.mxu0 %v7489
      %9999 = vmatmul.mubr.bf16.gmra.mrb[0].mxu0 %v7488
      %v10000 = vpop.f32.mrb[0].mxu0
      %v10001 = vadd.f32 %v9808, %v10000
      %v10002 = vpop.f32.mrb[0].mxu0
      %v10003 = vadd.f32 %v9810, %v10002
      %v10004 = vpop.f32.mrb[0].mxu0
      %v10005 = vadd.f32 %v9812, %v10004
      %v10006 = vpop.f32.mrb[0].mxu0
      %v10007 = vadd.f32 %v9814, %v10006
      %10008 = vmatprep.mubr.bf16.mxu0 %v7493
      %10009 = vmatmul.mubr.bf16.gmra.mrb[0].mxu0 %v7492
      %v10010 = vpop.f32.mrb[0].mxu0
      %v10011 = vadd.f32 %v9818, %v10010
      %v10012 = vpop.f32.mrb[0].mxu0
      %v10013 = vadd.f32 %v9820, %v10012
      %v10014 = vpop.f32.mrb[0].mxu0
      %v10015 = vadd.f32 %v9822, %v10014
      %v10016 = vpop.f32.mrb[0].mxu0
      %v10017 = vadd.f32 %v9824, %v10016
      %10018 = vmatprep.mubr.bf16.mxu0 %v7497
      %10019 = vmatmul.mubr.bf16.gmra.mrb[0].mxu0 %v7496
      %v10020 = vpop.f32.mrb[0].mxu0
      %v10021 = vadd.f32 %v9828, %v10020
      %v10022 = vpop.f32.mrb[0].mxu0
      %v10023 = vadd.f32 %v9830, %v10022
      %v10024 = vpop.f32.mrb[0].mxu0
      %v10025 = vadd.f32 %v9832, %v10024
      %v10026 = vpop.f32.mrb[0].mxu0
      %v10027 = vadd.f32 %v9834, %v10026
      %10028 = vmatprep.mubr.bf16.mxu0 %v7501
      %10029 = vmatmul.mubr.bf16.gmra.mrb[0].mxu0 %v7500
      %v10030 = vpop.f32.mrb[0].mxu0
      %v10031 = vadd.f32 %v9838, %v10030
      %v10032 = vpop.f32.mrb[0].mxu0
      %v10033 = vadd.f32 %v9840, %v10032
      %v10034 = vpop.f32.mrb[0].mxu0
      %v10035 = vadd.f32 %v9842, %v10034
      %v10036 = vpop.f32.mrb[0].mxu0
      %v10037 = vadd.f32 %v9844, %v10036
      %10038 = vmatprep.mubr.bf16.mxu0 %v7505
      %10039 = vmatmul.mubr.bf16.gmra.mrb[0].mxu0 %v7504
      %v10040 = vpop.f32.mrb[0].mxu0
      %v10041 = vadd.f32 %v9848, %v10040
      %v10042 = vpop.f32.mrb[0].mxu0
      %v10043 = vadd.f32 %v9850, %v10042
      %v10044 = vpop.f32.mrb[0].mxu0
      %v10045 = vadd.f32 %v9852, %v10044
      %v10046 = vpop.f32.mrb[0].mxu0
      %v10047 = vadd.f32 %v9854, %v10046
      %10048 = vmatprep.mubr.bf16.mxu0 %v7509
      %10049 = vmatmul.mubr.bf16.gmra.mrb[0].mxu0 %v7508
      %v10050 = vpop.f32.mrb[0].mxu0
      %v10051 = vadd.f32 %v9858, %v10050
      %v10052 = vpop.f32.mrb[0].mxu0
      %v10053 = vadd.f32 %v9860, %v10052
      %v10054 = vpop.f32.mrb[0].mxu0
      %v10055 = vadd.f32 %v9862, %v10054
      %v10056 = vpop.f32.mrb[0].mxu0
      %v10057 = vadd.f32 %v9864, %v10056
      %10058 = vmatprep.mubr.bf16.mxu0 %v7513
      %10059 = vmatmul.mubr.bf16.gmra.mrb[0].mxu0 %v7512
      %v10060 = vpop.f32.mrb[0].mxu0
      %v10061 = vadd.f32 %v9868, %v10060
      %v10062 = vpop.f32.mrb[0].mxu0
      %v10063 = vadd.f32 %v9870, %v10062
      %v10064 = vpop.f32.mrb[0].mxu0
      %v10065 = vadd.f32 %v9872, %v10064
      %v10066 = vpop.f32.mrb[0].mxu0
      %v10067 = vadd.f32 %v9874, %v10066
      %10068 = vmatprep.mubr.bf16.mxu0 %v7517
      %10069 = vmatmul.mubr.bf16.gmra.mrb[0].mxu0 %v7516
      %v10070 = vpop.f32.mrb[0].mxu0
      %v10071 = vadd.f32 %v9878, %v10070
      %v10072 = vpop.f32.mrb[0].mxu0
      %v10073 = vadd.f32 %v9880, %v10072
      %v10074 = vpop.f32.mrb[0].mxu0
      %v10075 = vadd.f32 %v9882, %v10074
      %v10076 = vpop.f32.mrb[0].mxu0
      %v10077 = vadd.f32 %v9884, %v10076
      %10078 = vmatprep.mubr.bf16.mxu0 %v7521
      %10079 = vmatmul.mubr.bf16.gmra.mrb[0].mxu0 %v7520
      %v10080 = vpop.f32.mrb[0].mxu0
      %v10081 = vadd.f32 %v9888, %v10080
      %v10082 = vpop.f32.mrb[0].mxu0
      %v10083 = vadd.f32 %v9890, %v10082
      %v10084 = vpop.f32.mrb[0].mxu0
      %v10085 = vadd.f32 %v9892, %v10084
      %v10086 = vpop.f32.mrb[0].mxu0
      %v10087 = vadd.f32 %v9894, %v10086
      %10088 = vmatprep.mubr.bf16.mxu0 %v7525
      %10089 = vmatmul.mubr.bf16.gmra.mrb[0].mxu0 %v7524
      %v10090 = vpop.f32.mrb[0].mxu0
      %v10091 = vadd.f32 %v9898, %v10090
      %v10092 = vpop.f32.mrb[0].mxu0
      %v10093 = vadd.f32 %v9900, %v10092
      %v10094 = vpop.f32.mrb[0].mxu0
      %v10095 = vadd.f32 %v9902, %v10094
      %v10096 = vpop.f32.mrb[0].mxu0
      %v10097 = vadd.f32 %v9904, %v10096
      %10098 = vmatprep.mubr.bf16.mxu0 %v7529
      %10099 = vmatmul.mubr.bf16.gmra.mrb[0].mxu0 %v7528
      %v10100 = vpop.f32.mrb[0].mxu0
      %v10101 = vadd.f32 %v9908, %v10100
      %v10102 = vpop.f32.mrb[0].mxu0
      %v10103 = vadd.f32 %v9910, %v10102
      %v10104 = vpop.f32.mrb[0].mxu0
      %v10105 = vadd.f32 %v9912, %v10104
      %v10106 = vpop.f32.mrb[0].mxu0
      %v10107 = vadd.f32 %v9914, %v10106
      %10108 = vmatprep.mubr.bf16.mxu0 %v7533
      %10109 = vmatmul.mubr.bf16.gmra.mrb[0].mxu0 %v7532
      %v10110 = vpop.f32.mrb[0].mxu0
      %v10111 = vadd.f32 %v9918, %v10110
      %v10112 = vpop.f32.mrb[0].mxu0
      %v10113 = vadd.f32 %v9920, %v10112
      %v10114 = vpop.f32.mrb[0].mxu0
      %v10115 = vadd.f32 %v9922, %v10114
      %v10116 = vpop.f32.mrb[0].mxu0
      %v10117 = vadd.f32 %v9924, %v10116
      %10118 = vmatprep.mubr.bf16.mxu0 %v7537
      %10119 = vmatmul.mubr.bf16.gmra.mrb[0].mxu0 %v7536
      %v10120 = vpop.f32.mrb[0].mxu0
      %v10121 = vadd.f32 %v9928, %v10120
      %v10122 = vpop.f32.mrb[0].mxu0
      %v10123 = vadd.f32 %v9930, %v10122
      %v10124 = vpop.f32.mrb[0].mxu0
      %v10125 = vadd.f32 %v9932, %v10124
      %v10126 = vpop.f32.mrb[0].mxu0
      %v10127 = vadd.f32 %v9934, %v10126
      %10128 = vmatprep.mubr.bf16.mxu0 %v7541
      %10129 = vmatmul.mubr.bf16.gmra.mrb[0].mxu0 %v7540
      %v10130 = vpop.f32.mrb[0].mxu0
      %v10131 = vadd.f32 %v9938, %v10130
      %v10132 = vpop.f32.mrb[0].mxu0
      %v10133 = vadd.f32 %v9940, %v10132
      %v10134 = vpop.f32.mrb[0].mxu0
      %v10135 = vadd.f32 %v9942, %v10134
      %v10136 = vpop.f32.mrb[0].mxu0
      %v10137 = vadd.f32 %v9944, %v10136
      %10138 = vmatprep.mubr.bf16.mxu0 %v7545
      %10139 = vmatmul.mubr.bf16.gmra.mrb[0].mxu0 %v7544
      %v10140 = vpop.f32.mrb[0].mxu0
      %v10141 = vadd.f32 %v9948, %v10140
      %v10142 = vpop.f32.mrb[0].mxu0
      %v10143 = vadd.f32 %v9950, %v10142
      %v10144 = vpop.f32.mrb[0].mxu0
      %v10145 = vadd.f32 %v9952, %v10144
      %v10146 = vpop.f32.mrb[0].mxu0
      %v10147 = vadd.f32 %v9954, %v10146
      %10148 = vdwg.mxu0
      %10149 = vmatprep.subr.bf16.mxu0 0
      %10150 = vmatpush1.bf16.msra.mxu0 %v8549
      %10151 = vmatprep.subr.bf16.mxu0 0
      %10152 = vmatpush1.bf16.msra.mxu0 %v8556
      %10153 = vmatprep.subr.bf16.mxu0 0
      %10154 = vmatpush1.bf16.msra.mxu0 %v8563
      %10155 = vmatprep.subr.bf16.mxu0 0
      %10156 = vmatpush1.bf16.msra.mxu0 %v8570
      %10157 = vmatprep.subr.bf16.mxu0 0
      %10158 = vmatpush1.bf16.msra.mxu0 %v8577
      %10159 = vmatprep.subr.bf16.mxu0 0
      %10160 = vmatpush1.bf16.msra.mxu0 %v8584
      %10161 = vmatprep.subr.bf16.mxu0 0
      %10162 = vmatpush1.bf16.msra.mxu0 %v8591
      %10163 = vmatprep.subr.bf16.mxu0 0
      %10164 = vmatpush1.bf16.msra.mxu0 %v8598
      %10165 = vmatprep.subr.bf16.mxu0 0
      %10166 = vmatpush1.bf16.msra.mxu0 %v8605
      %10167 = vmatprep.subr.bf16.mxu0 0
      %10168 = vmatpush1.bf16.msra.mxu0 %v8612
      %10169 = vmatprep.subr.bf16.mxu0 0
      %10170 = vmatpush1.bf16.msra.mxu0 %v8619
      %10171 = vmatprep.subr.bf16.mxu0 0
      %10172 = vmatpush1.bf16.msra.mxu0 %v8626
      %10173 = vmatprep.subr.bf16.mxu0 0
      %10174 = vmatpush1.bf16.msra.mxu0 %v8633
      %10175 = vmatprep.subr.bf16.mxu0 0
      %10176 = vmatpush1.bf16.msra.mxu0 %v8640
      %10177 = vmatprep.subr.bf16.mxu0 0
      %10178 = vmatpush1.bf16.msra.mxu0 %v8647
      %10179 = vmatprep.subr.bf16.mxu0 0
      %10180 = vmatpush1.bf16.msra.mxu0 %v8654
      %10181 = vmatprep.mubr.bf16.mxu0 %v7483
      %10182 = vmatmul.mubr.bf16.gmra.mrb[0].mxu0 %v7482
      %v10183 = vpop.f32.mrb[0].mxu0
      %v10184 = vadd.f32 %v7831, %v10183
      %v10185 = vpop.f32.mrb[0].mxu0
      %v10186 = vpop.f32.mrb[0].mxu0
      %v10187 = vadd.f32 %v7831, %v10186
      %v10188 = vpop.f32.mrb[0].mxu0
      %10189 = vmatprep.mubr.bf16.mxu0 %v7487
      %10190 = vmatmul.mubr.bf16.gmra.mrb[0].mxu0 %v7486
      %v10191 = vpop.f32.mrb[0].mxu0
      %v10192 = vadd.f32 %v7831, %v10191
      %v10193 = vpop.f32.mrb[0].mxu0
      %v10194 = vpop.f32.mrb[0].mxu0
      %v10195 = vadd.f32 %v7831, %v10194
      %v10196 = vpop.f32.mrb[0].mxu0
      %10197 = vmatprep.mubr.bf16.mxu0 %v7491
      %10198 = vmatmul.mubr.bf16.gmra.mrb[0].mxu0 %v7490
      %v10199 = vpop.f32.mrb[0].mxu0
      %v10200 = vadd.f32 %v7831, %v10199
      %v10201 = vpop.f32.mrb[0].mxu0
      %v10202 = vpop.f32.mrb[0].mxu0
      %v10203 = vadd.f32 %v7831, %v10202
      %v10204 = vpop.f32.mrb[0].mxu0
      %10205 = vmatprep.mubr.bf16.mxu0 %v7495
      %10206 = vmatmul.mubr.bf16.gmra.mrb[0].mxu0 %v7494
      %v10207 = vpop.f32.mrb[0].mxu0
      %v10208 = vadd.f32 %v7831, %v10207
      %v10209 = vpop.f32.mrb[0].mxu0
      %v10210 = vpop.f32.mrb[0].mxu0
      %v10211 = vadd.f32 %v7831, %v10210
      %v10212 = vpop.f32.mrb[0].mxu0
      %10213 = vmatprep.mubr.bf16.mxu0 %v7499
      %10214 = vmatmul.mubr.bf16.gmra.mrb[0].mxu0 %v7498
      %v10215 = vpop.f32.mrb[0].mxu0
      %v10216 = vadd.f32 %v7831, %v10215
      %v10217 = vpop.f32.mrb[0].mxu0
      %v10218 = vpop.f32.mrb[0].mxu0
      %v10219 = vadd.f32 %v7831, %v10218
      %v10220 = vpop.f32.mrb[0].mxu0
      %10221 = vmatprep.mubr.bf16.mxu0 %v7503
      %10222 = vmatmul.mubr.bf16.gmra.mrb[0].mxu0 %v7502
      %v10223 = vpop.f32.mrb[0].mxu0
      %v10224 = vadd.f32 %v7831, %v10223
      %v10225 = vpop.f32.mrb[0].mxu0
      %v10226 = vpop.f32.mrb[0].mxu0
      %v10227 = vadd.f32 %v7831, %v10226
      %v10228 = vpop.f32.mrb[0].mxu0
      %10229 = vmatprep.mubr.bf16.mxu0 %v7507
      %10230 = vmatmul.mubr.bf16.gmra.mrb[0].mxu0 %v7506
      %v10231 = vpop.f32.mrb[0].mxu0
      %v10232 = vadd.f32 %v7831, %v10231
      %v10233 = vpop.f32.mrb[0].mxu0
      %v10234 = vpop.f32.mrb[0].mxu0
      %v10235 = vadd.f32 %v7831, %v10234
      %v10236 = vpop.f32.mrb[0].mxu0
      %10237 = vmatprep.mubr.bf16.mxu0 %v7511
      %10238 = vmatmul.mubr.bf16.gmra.mrb[0].mxu0 %v7510
      %v10239 = vpop.f32.mrb[0].mxu0
      %v10240 = vadd.f32 %v7831, %v10239
      %v10241 = vpop.f32.mrb[0].mxu0
      %v10242 = vpop.f32.mrb[0].mxu0
      %v10243 = vadd.f32 %v7831, %v10242
      %v10244 = vpop.f32.mrb[0].mxu0
      %10245 = vmatprep.mubr.bf16.mxu0 %v7515
      %10246 = vmatmul.mubr.bf16.gmra.mrb[0].mxu0 %v7514
      %v10247 = vpop.f32.mrb[0].mxu0
      %v10248 = vadd.f32 %v7831, %v10247
      %v10249 = vpop.f32.mrb[0].mxu0
      %v10250 = vpop.f32.mrb[0].mxu0
      %v10251 = vadd.f32 %v7831, %v10250
      %v10252 = vpop.f32.mrb[0].mxu0
      %10253 = vmatprep.mubr.bf16.mxu0 %v7519
      %10254 = vmatmul.mubr.bf16.gmra.mrb[0].mxu0 %v7518
      %v10255 = vpop.f32.mrb[0].mxu0
      %v10256 = vadd.f32 %v7831, %v10255
      %v10257 = vpop.f32.mrb[0].mxu0
      %v10258 = vpop.f32.mrb[0].mxu0
      %v10259 = vadd.f32 %v7831, %v10258
      %v10260 = vpop.f32.mrb[0].mxu0
      %10261 = vmatprep.mubr.bf16.mxu0 %v7523
      %10262 = vmatmul.mubr.bf16.gmra.mrb[0].mxu0 %v7522
      %v10263 = vpop.f32.mrb[0].mxu0
      %v10264 = vadd.f32 %v7831, %v10263
      %v10265 = vpop.f32.mrb[0].mxu0
      %v10266 = vpop.f32.mrb[0].mxu0
      %v10267 = vadd.f32 %v7831, %v10266
      %v10268 = vpop.f32.mrb[0].mxu0
      %10269 = vmatprep.mubr.bf16.mxu0 %v7527
      %10270 = vmatmul.mubr.bf16.gmra.mrb[0].mxu0 %v7526
      %v10271 = vpop.f32.mrb[0].mxu0
      %v10272 = vadd.f32 %v7831, %v10271
      %v10273 = vpop.f32.mrb[0].mxu0
      %v10274 = vpop.f32.mrb[0].mxu0
      %v10275 = vadd.f32 %v7831, %v10274
      %v10276 = vpop.f32.mrb[0].mxu0
      %10277 = vmatprep.mubr.bf16.mxu0 %v7531
      %10278 = vmatmul.mubr.bf16.gmra.mrb[0].mxu0 %v7530
      %v10279 = vpop.f32.mrb[0].mxu0
      %v10280 = vadd.f32 %v7831, %v10279
      %v10281 = vpop.f32.mrb[0].mxu0
      %v10282 = vpop.f32.mrb[0].mxu0
      %v10283 = vadd.f32 %v7831, %v10282
      %v10284 = vpop.f32.mrb[0].mxu0
      %10285 = vmatprep.mubr.bf16.mxu0 %v7535
      %10286 = vmatmul.mubr.bf16.gmra.mrb[0].mxu0 %v7534
      %v10287 = vpop.f32.mrb[0].mxu0
      %v10288 = vadd.f32 %v7831, %v10287
      %v10289 = vpop.f32.mrb[0].mxu0
      %v10290 = vpop.f32.mrb[0].mxu0
      %v10291 = vadd.f32 %v7831, %v10290
      %v10292 = vpop.f32.mrb[0].mxu0
      %10293 = vmatprep.mubr.bf16.mxu0 %v7539
      %10294 = vmatmul.mubr.bf16.gmra.mrb[0].mxu0 %v7538
      %v10295 = vpop.f32.mrb[0].mxu0
      %v10296 = vadd.f32 %v7831, %v10295
      %v10297 = vpop.f32.mrb[0].mxu0
      %v10298 = vpop.f32.mrb[0].mxu0
      %v10299 = vadd.f32 %v7831, %v10298
      %v10300 = vpop.f32.mrb[0].mxu0
      %10301 = vmatprep.mubr.bf16.mxu0 %v7543
      %10302 = vmatmul.mubr.bf16.gmra.mrb[0].mxu0 %v7542
      %v10303 = vpop.f32.mrb[0].mxu0
      %v10304 = vadd.f32 %v7831, %v10303
      %v10305 = vpop.f32.mrb[0].mxu0
      %v10306 = vpop.f32.mrb[0].mxu0
      %v10307 = vadd.f32 %v7831, %v10306
      %v10308 = vpop.f32.mrb[0].mxu0
      %10309 = vdwg.mxu0
      %10310 = vmatprep.subr.bf16.mxu0 0
      %10311 = vmatpush1.bf16.msra.mxu0 %v8661
      %10312 = vmatprep.subr.bf16.mxu0 0
      %10313 = vmatpush1.bf16.msra.mxu0 %v8668
      %10314 = vmatprep.subr.bf16.mxu0 0
      %10315 = vmatpush1.bf16.msra.mxu0 %v8675
      %10316 = vmatprep.subr.bf16.mxu0 0
      %10317 = vmatpush1.bf16.msra.mxu0 %v8682
      %10318 = vmatprep.subr.bf16.mxu0 0
      %10319 = vmatpush1.bf16.msra.mxu0 %v8689
      %10320 = vmatprep.subr.bf16.mxu0 0
      %10321 = vmatpush1.bf16.msra.mxu0 %v8696
      %10322 = vmatprep.subr.bf16.mxu0 0
      %10323 = vmatpush1.bf16.msra.mxu0 %v8703
      %10324 = vmatprep.subr.bf16.mxu0 0
      %10325 = vmatpush1.bf16.msra.mxu0 %v8710
      %10326 = vmatprep.subr.bf16.mxu0 0
      %10327 = vmatpush1.bf16.msra.mxu0 %v8717
      %10328 = vmatprep.subr.bf16.mxu0 0
      %10329 = vmatpush1.bf16.msra.mxu0 %v8724
      %10330 = vmatprep.subr.bf16.mxu0 0
      %10331 = vmatpush1.bf16.msra.mxu0 %v8731
      %10332 = vmatprep.subr.bf16.mxu0 0
      %10333 = vmatpush1.bf16.msra.mxu0 %v8738
      %10334 = vmatprep.subr.bf16.mxu0 0
      %10335 = vmatpush1.bf16.msra.mxu0 %v8745
      %10336 = vmatprep.subr.bf16.mxu0 0
      %10337 = vmatpush1.bf16.msra.mxu0 %v8752
      %10338 = vmatprep.subr.bf16.mxu0 0
      %10339 = vmatpush1.bf16.msra.mxu0 %v8759
      %10340 = vmatprep.subr.bf16.mxu0 0
      %10341 = vmatpush1.bf16.msra.mxu0 %v8766
      %10342 = vmatprep.mubr.bf16.mxu0 %v7485
      %10343 = vmatmul.mubr.bf16.gmra.mrb[0].mxu0 %v7484
      %v10344 = vpop.f32.mrb[0].mxu0
      %v10345 = vadd.f32 %v10184, %v10344
      %v10346 = vpop.f32.mrb[0].mxu0
      %v10347 = vpop.f32.mrb[0].mxu0
      %v10348 = vadd.f32 %v10187, %v10347
      %v10349 = vpop.f32.mrb[0].mxu0
      %10350 = vmatprep.mubr.bf16.mxu0 %v7489
      %10351 = vmatmul.mubr.bf16.gmra.mrb[0].mxu0 %v7488
      %v10352 = vpop.f32.mrb[0].mxu0
      %v10353 = vadd.f32 %v10192, %v10352
      %v10354 = vpop.f32.mrb[0].mxu0
      %v10355 = vpop.f32.mrb[0].mxu0
      %v10356 = vadd.f32 %v10195, %v10355
      %v10357 = vpop.f32.mrb[0].mxu0
      %10358 = vmatprep.mubr.bf16.mxu0 %v7493
      %10359 = vmatmul.mubr.bf16.gmra.mrb[0].mxu0 %v7492
      %v10360 = vpop.f32.mrb[0].mxu0
      %v10361 = vadd.f32 %v10200, %v10360
      %v10362 = vpop.f32.mrb[0].mxu0
      %v10363 = vpop.f32.mrb[0].mxu0
      %v10364 = vadd.f32 %v10203, %v10363
      %v10365 = vpop.f32.mrb[0].mxu0
      %10366 = vmatprep.mubr.bf16.mxu0 %v7497
      %10367 = vmatmul.mubr.bf16.gmra.mrb[0].mxu0 %v7496
      %v10368 = vpop.f32.mrb[0].mxu0
      %v10369 = vadd.f32 %v10208, %v10368
      %v10370 = vpop.f32.mrb[0].mxu0
      %v10371 = vpop.f32.mrb[0].mxu0
      %v10372 = vadd.f32 %v10211, %v10371
      %v10373 = vpop.f32.mrb[0].mxu0
      %10374 = vmatprep.mubr.bf16.mxu0 %v7501
      %10375 = vmatmul.mubr.bf16.gmra.mrb[0].mxu0 %v7500
      %v10376 = vpop.f32.mrb[0].mxu0
      %v10377 = vadd.f32 %v10216, %v10376
      %v10378 = vpop.f32.mrb[0].mxu0
      %v10379 = vpop.f32.mrb[0].mxu0
      %v10380 = vadd.f32 %v10219, %v10379
      %v10381 = vpop.f32.mrb[0].mxu0
      %10382 = vmatprep.mubr.bf16.mxu0 %v7505
      %10383 = vmatmul.mubr.bf16.gmra.mrb[0].mxu0 %v7504
      %v10384 = vpop.f32.mrb[0].mxu0
      %v10385 = vadd.f32 %v10224, %v10384
      %v10386 = vpop.f32.mrb[0].mxu0
      %v10387 = vpop.f32.mrb[0].mxu0
      %v10388 = vadd.f32 %v10227, %v10387
      %v10389 = vpop.f32.mrb[0].mxu0
      %10390 = vmatprep.mubr.bf16.mxu0 %v7509
      %10391 = vmatmul.mubr.bf16.gmra.mrb[0].mxu0 %v7508
      %v10392 = vpop.f32.mrb[0].mxu0
      %v10393 = vadd.f32 %v10232, %v10392
      %v10394 = vpop.f32.mrb[0].mxu0
      %v10395 = vpop.f32.mrb[0].mxu0
      %v10396 = vadd.f32 %v10235, %v10395
      %v10397 = vpop.f32.mrb[0].mxu0
      %10398 = vmatprep.mubr.bf16.mxu0 %v7513
      %10399 = vmatmul.mubr.bf16.gmra.mrb[0].mxu0 %v7512
      %v10400 = vpop.f32.mrb[0].mxu0
      %v10401 = vadd.f32 %v10240, %v10400
      %v10402 = vpop.f32.mrb[0].mxu0
      %v10403 = vpop.f32.mrb[0].mxu0
      %v10404 = vadd.f32 %v10243, %v10403
      %v10405 = vpop.f32.mrb[0].mxu0
      %10406 = vmatprep.mubr.bf16.mxu0 %v7517
      %10407 = vmatmul.mubr.bf16.gmra.mrb[0].mxu0 %v7516
      %v10408 = vpop.f32.mrb[0].mxu0
      %v10409 = vadd.f32 %v10248, %v10408
      %v10410 = vpop.f32.mrb[0].mxu0
      %v10411 = vpop.f32.mrb[0].mxu0
      %v10412 = vadd.f32 %v10251, %v10411
      %v10413 = vpop.f32.mrb[0].mxu0
      %10414 = vmatprep.mubr.bf16.mxu0 %v7521
      %10415 = vmatmul.mubr.bf16.gmra.mrb[0].mxu0 %v7520
      %v10416 = vpop.f32.mrb[0].mxu0
      %v10417 = vadd.f32 %v10256, %v10416
      %v10418 = vpop.f32.mrb[0].mxu0
      %v10419 = vpop.f32.mrb[0].mxu0
      %v10420 = vadd.f32 %v10259, %v10419
      %v10421 = vpop.f32.mrb[0].mxu0
      %10422 = vmatprep.mubr.bf16.mxu0 %v7525
      %10423 = vmatmul.mubr.bf16.gmra.mrb[0].mxu0 %v7524
      %v10424 = vpop.f32.mrb[0].mxu0
      %v10425 = vadd.f32 %v10264, %v10424
      %v10426 = vpop.f32.mrb[0].mxu0
      %v10427 = vpop.f32.mrb[0].mxu0
      %v10428 = vadd.f32 %v10267, %v10427
      %v10429 = vpop.f32.mrb[0].mxu0
      %10430 = vmatprep.mubr.bf16.mxu0 %v7529
      %10431 = vmatmul.mubr.bf16.gmra.mrb[0].mxu0 %v7528
      %v10432 = vpop.f32.mrb[0].mxu0
      %v10433 = vadd.f32 %v10272, %v10432
      %v10434 = vpop.f32.mrb[0].mxu0
      %v10435 = vpop.f32.mrb[0].mxu0
      %v10436 = vadd.f32 %v10275, %v10435
      %v10437 = vpop.f32.mrb[0].mxu0
      %10438 = vmatprep.mubr.bf16.mxu0 %v7533
      %10439 = vmatmul.mubr.bf16.gmra.mrb[0].mxu0 %v7532
      %v10440 = vpop.f32.mrb[0].mxu0
      %v10441 = vadd.f32 %v10280, %v10440
      %v10442 = vpop.f32.mrb[0].mxu0
      %v10443 = vpop.f32.mrb[0].mxu0
      %v10444 = vadd.f32 %v10283, %v10443
      %v10445 = vpop.f32.mrb[0].mxu0
      %10446 = vmatprep.mubr.bf16.mxu0 %v7537
      %10447 = vmatmul.mubr.bf16.gmra.mrb[0].mxu0 %v7536
      %v10448 = vpop.f32.mrb[0].mxu0
      %v10449 = vadd.f32 %v10288, %v10448
      %v10450 = vpop.f32.mrb[0].mxu0
      %v10451 = vpop.f32.mrb[0].mxu0
      %v10452 = vadd.f32 %v10291, %v10451
      %v10453 = vpop.f32.mrb[0].mxu0
      %10454 = vmatprep.mubr.bf16.mxu0 %v7541
      %10455 = vmatmul.mubr.bf16.gmra.mrb[0].mxu0 %v7540
      %v10456 = vpop.f32.mrb[0].mxu0
      %v10457 = vadd.f32 %v10296, %v10456
      %v10458 = vpop.f32.mrb[0].mxu0
      %v10459 = vpop.f32.mrb[0].mxu0
      %v10460 = vadd.f32 %v10299, %v10459
      %v10461 = vpop.f32.mrb[0].mxu0
      %10462 = vmatprep.mubr.bf16.mxu0 %v7545
      %10463 = vmatmul.mubr.bf16.gmra.mrb[0].mxu0 %v7544
      %v10464 = vpop.f32.mrb[0].mxu0
      %v10465 = vadd.f32 %v10304, %v10464
      %v10466 = vpop.f32.mrb[0].mxu0
      %v10467 = vpop.f32.mrb[0].mxu0
      %v10468 = vadd.f32 %v10307, %v10467
      %v10469 = vpop.f32.mrb[0].mxu0
      %10470 = vdwg.mxu0
      %v10471 = vxor.u32 %v9219, 2147483648
      %v10472 = vxor.u32 %v9221, 2147483648
      %v10473 = vxor.u32 %v9605, 2147483648
      %v10474 = vxor.u32 %v9607, 2147483648
      %v10475 = vxor.u32 %v9991, 2147483648
      %v10476 = vxor.u32 %v9993, 2147483648
      %v10477 = vxor.u32 %v10345, 2147483648
      %v10478 = vxor.u32 %v9223, 2147483648
      %v10479 = vxor.u32 %v9225, 2147483648
      %v10480 = vxor.u32 %v9609, 2147483648
      %v10481 = vxor.u32 %v9611, 2147483648
      %v10482 = vxor.u32 %v9995, 2147483648
      %v10483 = vxor.u32 %v9997, 2147483648
      %v10484 = vxor.u32 %v10348, 2147483648
      %v10485 = vxor.u32 %v9229, 2147483648
      %v10486 = vxor.u32 %v9231, 2147483648
      %v10487 = vxor.u32 %v9615, 2147483648
      %v10488 = vxor.u32 %v9617, 2147483648
      %v10489 = vxor.u32 %v10001, 2147483648
      %v10490 = vxor.u32 %v10003, 2147483648
      %v10491 = vxor.u32 %v10353, 2147483648
      %v10492 = vxor.u32 %v9233, 2147483648
      %v10493 = vxor.u32 %v9235, 2147483648
      %v10494 = vxor.u32 %v9619, 2147483648
      %v10495 = vxor.u32 %v9621, 2147483648
      %v10496 = vxor.u32 %v10005, 2147483648
      %v10497 = vxor.u32 %v10007, 2147483648
      %v10498 = vxor.u32 %v10356, 2147483648
      %v10499 = vxor.u32 %v9239, 2147483648
      %v10500 = vxor.u32 %v9241, 2147483648
      %v10501 = vxor.u32 %v9625, 2147483648
      %v10502 = vxor.u32 %v9627, 2147483648
      %v10503 = vxor.u32 %v10011, 2147483648
      %v10504 = vxor.u32 %v10013, 2147483648
      %v10505 = vxor.u32 %v10361, 2147483648
      %v10506 = vxor.u32 %v9243, 2147483648
      %v10507 = vxor.u32 %v9245, 2147483648
      %v10508 = vxor.u32 %v9629, 2147483648
      %v10509 = vxor.u32 %v9631, 2147483648
      %v10510 = vxor.u32 %v10015, 2147483648
      %v10511 = vxor.u32 %v10017, 2147483648
      %v10512 = vxor.u32 %v10364, 2147483648
      %v10513 = vxor.u32 %v9249, 2147483648
      %v10514 = vxor.u32 %v9251, 2147483648
      %v10515 = vxor.u32 %v9635, 2147483648
      %v10516 = vxor.u32 %v9637, 2147483648
      %v10517 = vxor.u32 %v10021, 2147483648
      %v10518 = vxor.u32 %v10023, 2147483648
      %v10519 = vxor.u32 %v10369, 2147483648
      %v10520 = vxor.u32 %v9253, 2147483648
      %v10521 = vxor.u32 %v9255, 2147483648
      %v10522 = vxor.u32 %v9639, 2147483648
      %v10523 = vxor.u32 %v9641, 2147483648
      %v10524 = vxor.u32 %v10025, 2147483648
      %v10525 = vxor.u32 %v10027, 2147483648
      %v10526 = vxor.u32 %v10372, 2147483648
      %v10527 = vxor.u32 %v9259, 2147483648
      %v10528 = vxor.u32 %v9261, 2147483648
      %v10529 = vxor.u32 %v9645, 2147483648
      %v10530 = vxor.u32 %v9647, 2147483648
      %v10531 = vxor.u32 %v10031, 2147483648
      %v10532 = vxor.u32 %v10033, 2147483648
      %v10533 = vxor.u32 %v10377, 2147483648
      %v10534 = vxor.u32 %v9263, 2147483648
      %v10535 = vxor.u32 %v9265, 2147483648
      %v10536 = vxor.u32 %v9649, 2147483648
      %v10537 = vxor.u32 %v9651, 2147483648
      %v10538 = vxor.u32 %v10035, 2147483648
      %v10539 = vxor.u32 %v10037, 2147483648
      %v10540 = vxor.u32 %v10380, 2147483648
      %v10541 = vxor.u32 %v9269, 2147483648
      %v10542 = vxor.u32 %v9271, 2147483648
      %v10543 = vxor.u32 %v9655, 2147483648
      %v10544 = vxor.u32 %v9657, 2147483648
      %v10545 = vxor.u32 %v10041, 2147483648
      %v10546 = vxor.u32 %v10043, 2147483648
      %v10547 = vxor.u32 %v10385, 2147483648
      %v10548 = vxor.u32 %v9273, 2147483648
      %v10549 = vxor.u32 %v9275, 2147483648
      %v10550 = vxor.u32 %v9659, 2147483648
      %v10551 = vxor.u32 %v9661, 2147483648
      %v10552 = vxor.u32 %v10045, 2147483648
      %v10553 = vxor.u32 %v10047, 2147483648
      %v10554 = vxor.u32 %v10388, 2147483648
      %v10555 = vxor.u32 %v9279, 2147483648
      %v10556 = vxor.u32 %v9281, 2147483648
      %v10557 = vxor.u32 %v9665, 2147483648
      %v10558 = vxor.u32 %v9667, 2147483648
      %v10559 = vxor.u32 %v10051, 2147483648
      %v10560 = vxor.u32 %v10053, 2147483648
      %v10561 = vxor.u32 %v10393, 2147483648
      %v10562 = vxor.u32 %v9283, 2147483648
      %v10563 = vxor.u32 %v9285, 2147483648
      %v10564 = vxor.u32 %v9669, 2147483648
      %v10565 = vxor.u32 %v9671, 2147483648
      %v10566 = vxor.u32 %v10055, 2147483648
      %v10567 = vxor.u32 %v10057, 2147483648
      %v10568 = vxor.u32 %v10396, 2147483648
      %v10569 = vxor.u32 %v9289, 2147483648
      %v10570 = vxor.u32 %v9291, 2147483648
      %v10571 = vxor.u32 %v9675, 2147483648
      %v10572 = vxor.u32 %v9677, 2147483648
      %v10573 = vxor.u32 %v10061, 2147483648
      %v10574 = vxor.u32 %v10063, 2147483648
      %v10575 = vxor.u32 %v10401, 2147483648
      %v10576 = vxor.u32 %v9293, 2147483648
      %v10577 = vxor.u32 %v9295, 2147483648
      %v10578 = vxor.u32 %v9679, 2147483648
      %v10579 = vxor.u32 %v9681, 2147483648
      %v10580 = vxor.u32 %v10065, 2147483648
      %v10581 = vxor.u32 %v10067, 2147483648
      %v10582 = vxor.u32 %v10404, 2147483648
      %v10583 = vxor.u32 %v9299, 2147483648
      %v10584 = vxor.u32 %v9301, 2147483648
      %v10585 = vxor.u32 %v9685, 2147483648
      %v10586 = vxor.u32 %v9687, 2147483648
      %v10587 = vxor.u32 %v10071, 2147483648
      %v10588 = vxor.u32 %v10073, 2147483648
      %v10589 = vxor.u32 %v10409, 2147483648
      %v10590 = vxor.u32 %v9303, 2147483648
      %v10591 = vxor.u32 %v9305, 2147483648
      %v10592 = vxor.u32 %v9689, 2147483648
      %v10593 = vxor.u32 %v9691, 2147483648
      %v10594 = vxor.u32 %v10075, 2147483648
      %v10595 = vxor.u32 %v10077, 2147483648
      %v10596 = vxor.u32 %v10412, 2147483648
      %v10597 = vxor.u32 %v9309, 2147483648
      %v10598 = vxor.u32 %v9311, 2147483648
      %v10599 = vxor.u32 %v9695, 2147483648
      %v10600 = vxor.u32 %v9697, 2147483648
      %v10601 = vxor.u32 %v10081, 2147483648
      %v10602 = vxor.u32 %v10083, 2147483648
      %v10603 = vxor.u32 %v10417, 2147483648
      %v10604 = vxor.u32 %v9313, 2147483648
      %v10605 = vxor.u32 %v9315, 2147483648
      %v10606 = vxor.u32 %v9699, 2147483648
      %v10607 = vxor.u32 %v9701, 2147483648
      %v10608 = vxor.u32 %v10085, 2147483648
      %v10609 = vxor.u32 %v10087, 2147483648
      %v10610 = vxor.u32 %v10420, 2147483648
      %v10611 = vxor.u32 %v9319, 2147483648
      %v10612 = vxor.u32 %v9321, 2147483648
      %v10613 = vxor.u32 %v9705, 2147483648
      %v10614 = vxor.u32 %v9707, 2147483648
      %v10615 = vxor.u32 %v10091, 2147483648
      %v10616 = vxor.u32 %v10093, 2147483648
      %v10617 = vxor.u32 %v10425, 2147483648
      %v10618 = vxor.u32 %v9323, 2147483648
      %v10619 = vxor.u32 %v9325, 2147483648
      %v10620 = vxor.u32 %v9709, 2147483648
      %v10621 = vxor.u32 %v9711, 2147483648
      %v10622 = vxor.u32 %v10095, 2147483648
      %v10623 = vxor.u32 %v10097, 2147483648
      %v10624 = vxor.u32 %v10428, 2147483648
      %v10625 = vxor.u32 %v9329, 2147483648
      %v10626 = vxor.u32 %v9331, 2147483648
      %v10627 = vxor.u32 %v9715, 2147483648
      %v10628 = vxor.u32 %v9717, 2147483648
      %v10629 = vxor.u32 %v10101, 2147483648
      %v10630 = vxor.u32 %v10103, 2147483648
      %v10631 = vxor.u32 %v10433, 2147483648
      %v10632 = vxor.u32 %v9333, 2147483648
      %v10633 = vxor.u32 %v9335, 2147483648
      %v10634 = vxor.u32 %v9719, 2147483648
      %v10635 = vxor.u32 %v9721, 2147483648
      %v10636 = vxor.u32 %v10105, 2147483648
      %v10637 = vxor.u32 %v10107, 2147483648
      %v10638 = vxor.u32 %v10436, 2147483648
      %v10639 = vxor.u32 %v9339, 2147483648
      %v10640 = vxor.u32 %v9341, 2147483648
      %v10641 = vxor.u32 %v9725, 2147483648
      %v10642 = vxor.u32 %v9727, 2147483648
      %v10643 = vxor.u32 %v10111, 2147483648
      %v10644 = vxor.u32 %v10113, 2147483648
      %v10645 = vxor.u32 %v10441, 2147483648
      %v10646 = vxor.u32 %v9343, 2147483648
      %v10647 = vxor.u32 %v9345, 2147483648
      %v10648 = vxor.u32 %v9729, 2147483648
      %v10649 = vxor.u32 %v9731, 2147483648
      %v10650 = vxor.u32 %v10115, 2147483648
      %v10651 = vxor.u32 %v10117, 2147483648
      %v10652 = vxor.u32 %v10444, 2147483648
      %v10653 = vxor.u32 %v9349, 2147483648
      %v10654 = vxor.u32 %v9351, 2147483648
      %v10655 = vxor.u32 %v9735, 2147483648
      %v10656 = vxor.u32 %v9737, 2147483648
      %v10657 = vxor.u32 %v10121, 2147483648
      %v10658 = vxor.u32 %v10123, 2147483648
      %v10659 = vxor.u32 %v10449, 2147483648
      %v10660 = vxor.u32 %v9353, 2147483648
      %v10661 = vxor.u32 %v9355, 2147483648
      %v10662 = vxor.u32 %v9739, 2147483648
      %v10663 = vxor.u32 %v9741, 2147483648
      %v10664 = vxor.u32 %v10125, 2147483648
      %v10665 = vxor.u32 %v10127, 2147483648
      %v10666 = vxor.u32 %v10452, 2147483648
      %v10667 = vxor.u32 %v9359, 2147483648
      %v10668 = vxor.u32 %v9361, 2147483648
      %v10669 = vxor.u32 %v9745, 2147483648
      %v10670 = vxor.u32 %v9747, 2147483648
      %v10671 = vxor.u32 %v10131, 2147483648
      %v10672 = vxor.u32 %v10133, 2147483648
      %v10673 = vxor.u32 %v10457, 2147483648
      %v10674 = vxor.u32 %v9363, 2147483648
      %v10675 = vxor.u32 %v9365, 2147483648
      %v10676 = vxor.u32 %v9749, 2147483648
      %v10677 = vxor.u32 %v9751, 2147483648
      %v10678 = vxor.u32 %v10135, 2147483648
      %v10679 = vxor.u32 %v10137, 2147483648
      %v10680 = vxor.u32 %v10460, 2147483648
      %v10681 = vxor.u32 %v9369, 2147483648
      %v10682 = vxor.u32 %v9371, 2147483648
      %v10683 = vxor.u32 %v9755, 2147483648
      %v10684 = vxor.u32 %v9757, 2147483648
      %v10685 = vxor.u32 %v10141, 2147483648
      %v10686 = vxor.u32 %v10143, 2147483648
      %v10687 = vxor.u32 %v10465, 2147483648
      %v10688 = vxor.u32 %v9373, 2147483648
      %v10689 = vxor.u32 %v9375, 2147483648
      %v10690 = vxor.u32 %v9759, 2147483648
      %v10691 = vxor.u32 %v9761, 2147483648
      %v10692 = vxor.u32 %v10145, 2147483648
      %v10693 = vxor.u32 %v10147, 2147483648
      %v10694 = vxor.u32 %v10468, 2147483648
      %v10695 = vmul.f32 %v10471, 1.442695
      %v10696 = vpow.pop %v10695
      %v10697 = vmul.f32 %v10472, 1.442695
      %v10698 = vpow.pop %v10697
      %v10699 = vmul.f32 %v10473, 1.442695
      %v10700 = vpow.pop %v10699
      %v10701 = vmul.f32 %v10474, 1.442695
      %v10702 = vpow.pop %v10701
      %v10703 = vmul.f32 %v10475, 1.442695
      %v10704 = vpow.pop %v10703
      %v10705 = vmul.f32 %v10476, 1.442695
      %v10706 = vpow.pop %v10705
      %v10707 = vmul.f32 %v10477, 1.442695
      %v10708 = vpow.pop %v10707
      %v10709 = vmul.f32 %v10478, 1.442695
      %v10710 = vpow.pop %v10709
      %v10711 = vmul.f32 %v10479, 1.442695
      %v10712 = vpow.pop %v10711
      %v10713 = vmul.f32 %v10480, 1.442695
      %v10714 = vpow.pop %v10713
      %v10715 = vmul.f32 %v10481, 1.442695
      %v10716 = vpow.pop %v10715
      %v10717 = vmul.f32 %v10482, 1.442695
      %v10718 = vpow.pop %v10717
      %v10719 = vmul.f32 %v10483, 1.442695
      %v10720 = vpow.pop %v10719
      %v10721 = vmul.f32 %v10484, 1.442695
      %v10722 = vpow.pop %v10721
      %v10723 = vmul.f32 %v10485, 1.442695
      %v10724 = vpow.pop %v10723
      %v10725 = vmul.f32 %v10486, 1.442695
      %v10726 = vpow.pop %v10725
      %v10727 = vmul.f32 %v10487, 1.442695
      %v10728 = vpow.pop %v10727
      %v10729 = vmul.f32 %v10488, 1.442695
      %v10730 = vpow.pop %v10729
      %v10731 = vmul.f32 %v10489, 1.442695
      %v10732 = vpow.pop %v10731
      %v10733 = vmul.f32 %v10490, 1.442695
      %v10734 = vpow.pop %v10733
      %v10735 = vmul.f32 %v10491, 1.442695
      %v10736 = vpow.pop %v10735
      %v10737 = vmul.f32 %v10492, 1.442695
      %v10738 = vpow.pop %v10737
      %v10739 = vmul.f32 %v10493, 1.442695
      %v10740 = vpow.pop %v10739
      %v10741 = vmul.f32 %v10494, 1.442695
      %v10742 = vpow.pop %v10741
      %v10743 = vmul.f32 %v10495, 1.442695
      %v10744 = vpow.pop %v10743
      %v10745 = vmul.f32 %v10496, 1.442695
      %v10746 = vpow.pop %v10745
      %v10747 = vmul.f32 %v10497, 1.442695
      %v10748 = vpow.pop %v10747
      %v10749 = vmul.f32 %v10498, 1.442695
      %v10750 = vpow.pop %v10749
      %v10751 = vmul.f32 %v10499, 1.442695
      %v10752 = vpow.pop %v10751
      %v10753 = vmul.f32 %v10500, 1.442695
      %v10754 = vpow.pop %v10753
      %v10755 = vmul.f32 %v10501, 1.442695
      %v10756 = vpow.pop %v10755
      %v10757 = vmul.f32 %v10502, 1.442695
      %v10758 = vpow.pop %v10757
      %v10759 = vmul.f32 %v10503, 1.442695
      %v10760 = vpow.pop %v10759
      %v10761 = vmul.f32 %v10504, 1.442695
      %v10762 = vpow.pop %v10761
      %v10763 = vmul.f32 %v10505, 1.442695
      %v10764 = vpow.pop %v10763
      %v10765 = vmul.f32 %v10506, 1.442695
      %v10766 = vpow.pop %v10765
      %v10767 = vmul.f32 %v10507, 1.442695
      %v10768 = vpow.pop %v10767
      %v10769 = vmul.f32 %v10508, 1.442695
      %v10770 = vpow.pop %v10769
      %v10771 = vmul.f32 %v10509, 1.442695
      %v10772 = vpow.pop %v10771
      %v10773 = vmul.f32 %v10510, 1.442695
      %v10774 = vpow.pop %v10773
      %v10775 = vmul.f32 %v10511, 1.442695
      %v10776 = vpow.pop %v10775
      %v10777 = vmul.f32 %v10512, 1.442695
      %v10778 = vpow.pop %v10777
      %v10779 = vmul.f32 %v10513, 1.442695
      %v10780 = vpow.pop %v10779
      %v10781 = vmul.f32 %v10514, 1.442695
      %v10782 = vpow.pop %v10781
      %v10783 = vmul.f32 %v10515, 1.442695
      %v10784 = vpow.pop %v10783
      %v10785 = vmul.f32 %v10516, 1.442695
      %v10786 = vpow.pop %v10785
      %v10787 = vmul.f32 %v10517, 1.442695
      %v10788 = vpow.pop %v10787
      %v10789 = vmul.f32 %v10518, 1.442695
      %v10790 = vpow.pop %v10789
      %v10791 = vmul.f32 %v10519, 1.442695
      %v10792 = vpow.pop %v10791
      %v10793 = vmul.f32 %v10520, 1.442695
      %v10794 = vpow.pop %v10793
      %v10795 = vmul.f32 %v10521, 1.442695
      %v10796 = vpow.pop %v10795
      %v10797 = vmul.f32 %v10522, 1.442695
      %v10798 = vpow.pop %v10797
      %v10799 = vmul.f32 %v10523, 1.442695
      %v10800 = vpow.pop %v10799
      %v10801 = vmul.f32 %v10524, 1.442695
      %v10802 = vpow.pop %v10801
      %v10803 = vmul.f32 %v10525, 1.442695
      %v10804 = vpow.pop %v10803
      %v10805 = vmul.f32 %v10526, 1.442695
      %v10806 = vpow.pop %v10805
      %v10807 = vmul.f32 %v10527, 1.442695
      %v10808 = vpow.pop %v10807
      %v10809 = vmul.f32 %v10528, 1.442695
      %v10810 = vpow.pop %v10809
      %v10811 = vmul.f32 %v10529, 1.442695
      %v10812 = vpow.pop %v10811
      %v10813 = vmul.f32 %v10530, 1.442695
      %v10814 = vpow.pop %v10813
      %v10815 = vmul.f32 %v10531, 1.442695
      %v10816 = vpow.pop %v10815
      %v10817 = vmul.f32 %v10532, 1.442695
      %v10818 = vpow.pop %v10817
      %v10819 = vmul.f32 %v10533, 1.442695
      %v10820 = vpow.pop %v10819
      %v10821 = vmul.f32 %v10534, 1.442695
      %v10822 = vpow.pop %v10821
      %v10823 = vmul.f32 %v10535, 1.442695
      %v10824 = vpow.pop %v10823
      %v10825 = vmul.f32 %v10536, 1.442695
      %v10826 = vpow.pop %v10825
      %v10827 = vmul.f32 %v10537, 1.442695
      %v10828 = vpow.pop %v10827
      %v10829 = vmul.f32 %v10538, 1.442695
      %v10830 = vpow.pop %v10829
      %v10831 = vmul.f32 %v10539, 1.442695
      %v10832 = vpow.pop %v10831
      %v10833 = vmul.f32 %v10540, 1.442695
      %v10834 = vpow.pop %v10833
      %v10835 = vmul.f32 %v10541, 1.442695
      %v10836 = vpow.pop %v10835
      %v10837 = vmul.f32 %v10542, 1.442695
      %v10838 = vpow.pop %v10837
      %v10839 = vmul.f32 %v10543, 1.442695
      %v10840 = vpow.pop %v10839
      %v10841 = vmul.f32 %v10544, 1.442695
      %v10842 = vpow.pop %v10841
      %v10843 = vmul.f32 %v10545, 1.442695
      %v10844 = vpow.pop %v10843
      %v10845 = vmul.f32 %v10546, 1.442695
      %v10846 = vpow.pop %v10845
      %v10847 = vmul.f32 %v10547, 1.442695
      %v10848 = vpow.pop %v10847
      %v10849 = vmul.f32 %v10548, 1.442695
      %v10850 = vpow.pop %v10849
      %v10851 = vmul.f32 %v10549, 1.442695
      %v10852 = vpow.pop %v10851
      %v10853 = vmul.f32 %v10550, 1.442695
      %v10854 = vpow.pop %v10853
      %v10855 = vmul.f32 %v10551, 1.442695
      %v10856 = vpow.pop %v10855
      %v10857 = vmul.f32 %v10552, 1.442695
      %v10858 = vpow.pop %v10857
      %v10859 = vmul.f32 %v10553, 1.442695
      %v10860 = vpow.pop %v10859
      %v10861 = vmul.f32 %v10554, 1.442695
      %v10862 = vpow.pop %v10861
      %v10863 = vmul.f32 %v10555, 1.442695
      %v10864 = vpow.pop %v10863
      %v10865 = vmul.f32 %v10556, 1.442695
      %v10866 = vpow.pop %v10865
      %v10867 = vmul.f32 %v10557, 1.442695
      %v10868 = vpow.pop %v10867
      %v10869 = vmul.f32 %v10558, 1.442695
      %v10870 = vpow.pop %v10869
      %v10871 = vmul.f32 %v10559, 1.442695
      %v10872 = vpow.pop %v10871
      %v10873 = vmul.f32 %v10560, 1.442695
      %v10874 = vpow.pop %v10873
      %v10875 = vmul.f32 %v10561, 1.442695
      %v10876 = vpow.pop %v10875
      %v10877 = vmul.f32 %v10562, 1.442695
      %v10878 = vpow.pop %v10877
      %v10879 = vmul.f32 %v10563, 1.442695
      %v10880 = vpow.pop %v10879
      %v10881 = vmul.f32 %v10564, 1.442695
      %v10882 = vpow.pop %v10881
      %v10883 = vmul.f32 %v10565, 1.442695
      %v10884 = vpow.pop %v10883
      %v10885 = vmul.f32 %v10566, 1.442695
      %v10886 = vpow.pop %v10885
      %v10887 = vmul.f32 %v10567, 1.442695
      %v10888 = vpow.pop %v10887
      %v10889 = vmul.f32 %v10568, 1.442695
      %v10890 = vpow.pop %v10889
      %v10891 = vmul.f32 %v10569, 1.442695
      %v10892 = vpow.pop %v10891
      %v10893 = vmul.f32 %v10570, 1.442695
      %v10894 = vpow.pop %v10893
      %v10895 = vmul.f32 %v10571, 1.442695
      %v10896 = vpow.pop %v10895
      %v10897 = vmul.f32 %v10572, 1.442695
      %v10898 = vpow.pop %v10897
      %v10899 = vmul.f32 %v10573, 1.442695
      %v10900 = vpow.pop %v10899
      %v10901 = vmul.f32 %v10574, 1.442695
      %v10902 = vpow.pop %v10901
      %v10903 = vmul.f32 %v10575, 1.442695
      %v10904 = vpow.pop %v10903
      %v10905 = vmul.f32 %v10576, 1.442695
      %v10906 = vpow.pop %v10905
      %v10907 = vmul.f32 %v10577, 1.442695
      %v10908 = vpow.pop %v10907
      %v10909 = vmul.f32 %v10578, 1.442695
      %v10910 = vpow.pop %v10909
      %v10911 = vmul.f32 %v10579, 1.442695
      %v10912 = vpow.pop %v10911
      %v10913 = vmul.f32 %v10580, 1.442695
      %v10914 = vpow.pop %v10913
      %v10915 = vmul.f32 %v10581, 1.442695
      %v10916 = vpow.pop %v10915
      %v10917 = vmul.f32 %v10582, 1.442695
      %v10918 = vpow.pop %v10917
      %v10919 = vmul.f32 %v10583, 1.442695
      %v10920 = vpow.pop %v10919
      %v10921 = vmul.f32 %v10584, 1.442695
      %v10922 = vpow.pop %v10921
      %v10923 = vmul.f32 %v10585, 1.442695
      %v10924 = vpow.pop %v10923
      %v10925 = vmul.f32 %v10586, 1.442695
      %v10926 = vpow.pop %v10925
      %v10927 = vmul.f32 %v10587, 1.442695
      %v10928 = vpow.pop %v10927
      %v10929 = vmul.f32 %v10588, 1.442695
      %v10930 = vpow.pop %v10929
      %v10931 = vmul.f32 %v10589, 1.442695
      %v10932 = vpow.pop %v10931
      %v10933 = vmul.f32 %v10590, 1.442695
      %v10934 = vpow.pop %v10933
      %v10935 = vmul.f32 %v10591, 1.442695
      %v10936 = vpow.pop %v10935
      %v10937 = vmul.f32 %v10592, 1.442695
      %v10938 = vpow.pop %v10937
      %v10939 = vmul.f32 %v10593, 1.442695
      %v10940 = vpow.pop %v10939
      %v10941 = vmul.f32 %v10594, 1.442695
      %v10942 = vpow.pop %v10941
      %v10943 = vmul.f32 %v10595, 1.442695
      %v10944 = vpow.pop %v10943
      %v10945 = vmul.f32 %v10596, 1.442695
      %v10946 = vpow.pop %v10945
      %v10947 = vmul.f32 %v10597, 1.442695
      %v10948 = vpow.pop %v10947
      %v10949 = vmul.f32 %v10598, 1.442695
      %v10950 = vpow.pop %v10949
      %v10951 = vmul.f32 %v10599, 1.442695
      %v10952 = vpow.pop %v10951
      %v10953 = vmul.f32 %v10600, 1.442695
      %v10954 = vpow.pop %v10953
      %v10955 = vmul.f32 %v10601, 1.442695
      %v10956 = vpow.pop %v10955
      %v10957 = vmul.f32 %v10602, 1.442695
      %v10958 = vpow.pop %v10957
      %v10959 = vmul.f32 %v10603, 1.442695
      %v10960 = vpow.pop %v10959
      %v10961 = vmul.f32 %v10604, 1.442695
      %v10962 = vpow.pop %v10961
      %v10963 = vmul.f32 %v10605, 1.442695
      %v10964 = vpow.pop %v10963
      %v10965 = vmul.f32 %v10606, 1.442695
      %v10966 = vpow.pop %v10965
      %v10967 = vmul.f32 %v10607, 1.442695
      %v10968 = vpow.pop %v10967
      %v10969 = vmul.f32 %v10608, 1.442695
      %v10970 = vpow.pop %v10969
      %v10971 = vmul.f32 %v10609, 1.442695
      %v10972 = vpow.pop %v10971
      %v10973 = vmul.f32 %v10610, 1.442695
      %v10974 = vpow.pop %v10973
      %v10975 = vmul.f32 %v10611, 1.442695
      %v10976 = vpow.pop %v10975
      %v10977 = vmul.f32 %v10612, 1.442695
      %v10978 = vpow.pop %v10977
      %v10979 = vmul.f32 %v10613, 1.442695
      %v10980 = vpow.pop %v10979
      %v10981 = vmul.f32 %v10614, 1.442695
      %v10982 = vpow.pop %v10981
      %v10983 = vmul.f32 %v10615, 1.442695
      %v10984 = vpow.pop %v10983
      %v10985 = vmul.f32 %v10616, 1.442695
      %v10986 = vpow.pop %v10985
      %v10987 = vmul.f32 %v10617, 1.442695
      %v10988 = vpow.pop %v10987
      %v10989 = vmul.f32 %v10618, 1.442695
      %v10990 = vpow.pop %v10989
      %v10991 = vmul.f32 %v10619, 1.442695
      %v10992 = vpow.pop %v10991
      %v10993 = vmul.f32 %v10620, 1.442695
      %v10994 = vpow.pop %v10993
      %v10995 = vmul.f32 %v10621, 1.442695
      %v10996 = vpow.pop %v10995
      %v10997 = vmul.f32 %v10622, 1.442695
      %v10998 = vpow.pop %v10997
      %v10999 = vmul.f32 %v10623, 1.442695
      %v11000 = vpow.pop %v10999
      %v11001 = vmul.f32 %v10624, 1.442695
      %v11002 = vpow.pop %v11001
      %v11003 = vmul.f32 %v10625, 1.442695
      %v11004 = vpow.pop %v11003
      %v11005 = vmul.f32 %v10626, 1.442695
      %v11006 = vpow.pop %v11005
      %v11007 = vmul.f32 %v10627, 1.442695
      %v11008 = vpow.pop %v11007
      %v11009 = vmul.f32 %v10628, 1.442695
      %v11010 = vpow.pop %v11009
      %v11011 = vmul.f32 %v10629, 1.442695
      %v11012 = vpow.pop %v11011
      %v11013 = vmul.f32 %v10630, 1.442695
      %v11014 = vpow.pop %v11013
      %v11015 = vmul.f32 %v10631, 1.442695
      %v11016 = vpow.pop %v11015
      %v11017 = vmul.f32 %v10632, 1.442695
      %v11018 = vpow.pop %v11017
      %v11019 = vmul.f32 %v10633, 1.442695
      %v11020 = vpow.pop %v11019
      %v11021 = vmul.f32 %v10634, 1.442695
      %v11022 = vpow.pop %v11021
      %v11023 = vmul.f32 %v10635, 1.442695
      %v11024 = vpow.pop %v11023
      %v11025 = vmul.f32 %v10636, 1.442695
      %v11026 = vpow.pop %v11025
      %v11027 = vmul.f32 %v10637, 1.442695
      %v11028 = vpow.pop %v11027
      %v11029 = vmul.f32 %v10638, 1.442695
      %v11030 = vpow.pop %v11029
      %v11031 = vmul.f32 %v10639, 1.442695
      %v11032 = vpow.pop %v11031
      %v11033 = vmul.f32 %v10640, 1.442695
      %v11034 = vpow.pop %v11033
      %v11035 = vmul.f32 %v10641, 1.442695
      %v11036 = vpow.pop %v11035
      %v11037 = vmul.f32 %v10642, 1.442695
      %v11038 = vpow.pop %v11037
      %v11039 = vmul.f32 %v10643, 1.442695
      %v11040 = vpow.pop %v11039
      %v11041 = vmul.f32 %v10644, 1.442695
      %v11042 = vpow.pop %v11041
      %v11043 = vmul.f32 %v10645, 1.442695
      %v11044 = vpow.pop %v11043
      %v11045 = vmul.f32 %v10646, 1.442695
      %v11046 = vpow.pop %v11045
      %v11047 = vmul.f32 %v10647, 1.442695
      %v11048 = vpow.pop %v11047
      %v11049 = vmul.f32 %v10648, 1.442695
      %v11050 = vpow.pop %v11049
      %v11051 = vmul.f32 %v10649, 1.442695
      %v11052 = vpow.pop %v11051
      %v11053 = vmul.f32 %v10650, 1.442695
      %v11054 = vpow.pop %v11053
      %v11055 = vmul.f32 %v10651, 1.442695
      %v11056 = vpow.pop %v11055
      %v11057 = vmul.f32 %v10652, 1.442695
      %v11058 = vpow.pop %v11057
      %v11059 = vmul.f32 %v10653, 1.442695
      %v11060 = vpow.pop %v11059
      %v11061 = vmul.f32 %v10654, 1.442695
      %v11062 = vpow.pop %v11061
      %v11063 = vmul.f32 %v10655, 1.442695
      %v11064 = vpow.pop %v11063
      %v11065 = vmul.f32 %v10656, 1.442695
      %v11066 = vpow.pop %v11065
      %v11067 = vmul.f32 %v10657, 1.442695
      %v11068 = vpow.pop %v11067
      %v11069 = vmul.f32 %v10658, 1.442695
      %v11070 = vpow.pop %v11069
      %v11071 = vmul.f32 %v10659, 1.442695
      %v11072 = vpow.pop %v11071
      %v11073 = vmul.f32 %v10660, 1.442695
      %v11074 = vpow.pop %v11073
      %v11075 = vmul.f32 %v10661, 1.442695
      %v11076 = vpow.pop %v11075
      %v11077 = vmul.f32 %v10662, 1.442695
      %v11078 = vpow.pop %v11077
      %v11079 = vmul.f32 %v10663, 1.442695
      %v11080 = vpow.pop %v11079
      %v11081 = vmul.f32 %v10664, 1.442695
      %v11082 = vpow.pop %v11081
      %v11083 = vmul.f32 %v10665, 1.442695
      %v11084 = vpow.pop %v11083
      %v11085 = vmul.f32 %v10666, 1.442695
      %v11086 = vpow.pop %v11085
      %v11087 = vmul.f32 %v10667, 1.442695
      %v11088 = vpow.pop %v11087
      %v11089 = vmul.f32 %v10668, 1.442695
      %v11090 = vpow.pop %v11089
      %v11091 = vmul.f32 %v10669, 1.442695
      %v11092 = vpow.pop %v11091
      %v11093 = vmul.f32 %v10670, 1.442695
      %v11094 = vpow.pop %v11093
      %v11095 = vmul.f32 %v10671, 1.442695
      %v11096 = vpow.pop %v11095
      %v11097 = vmul.f32 %v10672, 1.442695
      %v11098 = vpow.pop %v11097
      %v11099 = vmul.f32 %v10673, 1.442695
      %v11100 = vpow.pop %v11099
      %v11101 = vmul.f32 %v10674, 1.442695
      %v11102 = vpow.pop %v11101
      %v11103 = vmul.f32 %v10675, 1.442695
      %v11104 = vpow.pop %v11103
      %v11105 = vmul.f32 %v10676, 1.442695
      %v11106 = vpow.pop %v11105
      %v11107 = vmul.f32 %v10677, 1.442695
      %v11108 = vpow.pop %v11107
      %v11109 = vmul.f32 %v10678, 1.442695
      %v11110 = vpow.pop %v11109
      %v11111 = vmul.f32 %v10679, 1.442695
      %v11112 = vpow.pop %v11111
      %v11113 = vmul.f32 %v10680, 1.442695
      %v11114 = vpow.pop %v11113
      %v11115 = vmul.f32 %v10681, 1.442695
      %v11116 = vpow.pop %v11115
      %v11117 = vmul.f32 %v10682, 1.442695
      %v11118 = vpow.pop %v11117
      %v11119 = vmul.f32 %v10683, 1.442695
      %v11120 = vpow.pop %v11119
      %v11121 = vmul.f32 %v10684, 1.442695
      %v11122 = vpow.pop %v11121
      %v11123 = vmul.f32 %v10685, 1.442695
      %v11124 = vpow.pop %v11123
      %v11125 = vmul.f32 %v10686, 1.442695
      %v11126 = vpow.pop %v11125
      %v11127 = vmul.f32 %v10687, 1.442695
      %v11128 = vpow.pop %v11127
      %v11129 = vmul.f32 %v10688, 1.442695
      %v11130 = vpow.pop %v11129
      %v11131 = vmul.f32 %v10689, 1.442695
      %v11132 = vpow.pop %v11131
      %v11133 = vmul.f32 %v10690, 1.442695
      %v11134 = vpow.pop %v11133
      %v11135 = vmul.f32 %v10691, 1.442695
      %v11136 = vpow.pop %v11135
      %v11137 = vmul.f32 %v10692, 1.442695
      %v11138 = vpow.pop %v11137
      %v11139 = vmul.f32 %v10693, 1.442695
      %v11140 = vpow.pop %v11139
      %v11141 = vmul.f32 %v10694, 1.442695
      %v11142 = vpow.pop %v11141
      %v11143 = vadd.f32 %v10696, 1.0
      %v11144 = vadd.f32 %v10698, 1.0
      %v11145 = vadd.f32 %v10700, 1.0
      %v11146 = vadd.f32 %v10702, 1.0
      %v11147 = vadd.f32 %v10704, 1.0
      %v11148 = vadd.f32 %v10706, 1.0
      %v11149 = vadd.f32 %v10708, 1.0
      %v11150 = vadd.f32 %v10710, 1.0
      %v11151 = vadd.f32 %v10712, 1.0
      %v11152 = vadd.f32 %v10714, 1.0
      %v11153 = vadd.f32 %v10716, 1.0
      %v11154 = vadd.f32 %v10718, 1.0
      %v11155 = vadd.f32 %v10720, 1.0
      %v11156 = vadd.f32 %v10722, 1.0
      %v11157 = vadd.f32 %v10724, 1.0
      %v11158 = vadd.f32 %v10726, 1.0
      %v11159 = vadd.f32 %v10728, 1.0
      %v11160 = vadd.f32 %v10730, 1.0
      %v11161 = vadd.f32 %v10732, 1.0
      %v11162 = vadd.f32 %v10734, 1.0
      %v11163 = vadd.f32 %v10736, 1.0
      %v11164 = vadd.f32 %v10738, 1.0
      %v11165 = vadd.f32 %v10740, 1.0
      %v11166 = vadd.f32 %v10742, 1.0
      %v11167 = vadd.f32 %v10744, 1.0
      %v11168 = vadd.f32 %v10746, 1.0
      %v11169 = vadd.f32 %v10748, 1.0
      %v11170 = vadd.f32 %v10750, 1.0
      %v11171 = vadd.f32 %v10752, 1.0
      %v11172 = vadd.f32 %v10754, 1.0
      %v11173 = vadd.f32 %v10756, 1.0
      %v11174 = vadd.f32 %v10758, 1.0
      %v11175 = vadd.f32 %v10760, 1.0
      %v11176 = vadd.f32 %v10762, 1.0
      %v11177 = vadd.f32 %v10764, 1.0
      %v11178 = vadd.f32 %v10766, 1.0
      %v11179 = vadd.f32 %v10768, 1.0
      %v11180 = vadd.f32 %v10770, 1.0
      %v11181 = vadd.f32 %v10772, 1.0
      %v11182 = vadd.f32 %v10774, 1.0
      %v11183 = vadd.f32 %v10776, 1.0
      %v11184 = vadd.f32 %v10778, 1.0
      %v11185 = vadd.f32 %v10780, 1.0
      %v11186 = vadd.f32 %v10782, 1.0
      %v11187 = vadd.f32 %v10784, 1.0
      %v11188 = vadd.f32 %v10786, 1.0
      %v11189 = vadd.f32 %v10788, 1.0
      %v11190 = vadd.f32 %v10790, 1.0
      %v11191 = vadd.f32 %v10792, 1.0
      %v11192 = vadd.f32 %v10794, 1.0
      %v11193 = vadd.f32 %v10796, 1.0
      %v11194 = vadd.f32 %v10798, 1.0
      %v11195 = vadd.f32 %v10800, 1.0
      %v11196 = vadd.f32 %v10802, 1.0
      %v11197 = vadd.f32 %v10804, 1.0
      %v11198 = vadd.f32 %v10806, 1.0
      %v11199 = vadd.f32 %v10808, 1.0
      %v11200 = vadd.f32 %v10810, 1.0
      %v11201 = vadd.f32 %v10812, 1.0
      %v11202 = vadd.f32 %v10814, 1.0
      %v11203 = vadd.f32 %v10816, 1.0
      %v11204 = vadd.f32 %v10818, 1.0
      %v11205 = vadd.f32 %v10820, 1.0
      %v11206 = vadd.f32 %v10822, 1.0
      %v11207 = vadd.f32 %v10824, 1.0
      %v11208 = vadd.f32 %v10826, 1.0
      %v11209 = vadd.f32 %v10828, 1.0
      %v11210 = vadd.f32 %v10830, 1.0
      %v11211 = vadd.f32 %v10832, 1.0
      %v11212 = vadd.f32 %v10834, 1.0
      %v11213 = vadd.f32 %v10836, 1.0
      %v11214 = vadd.f32 %v10838, 1.0
      %v11215 = vadd.f32 %v10840, 1.0
      %v11216 = vadd.f32 %v10842, 1.0
      %v11217 = vadd.f32 %v10844, 1.0
      %v11218 = vadd.f32 %v10846, 1.0
      %v11219 = vadd.f32 %v10848, 1.0
      %v11220 = vadd.f32 %v10850, 1.0
      %v11221 = vadd.f32 %v10852, 1.0
      %v11222 = vadd.f32 %v10854, 1.0
      %v11223 = vadd.f32 %v10856, 1.0
      %v11224 = vadd.f32 %v10858, 1.0
      %v11225 = vadd.f32 %v10860, 1.0
      %v11226 = vadd.f32 %v10862, 1.0
      %v11227 = vadd.f32 %v10864, 1.0
      %v11228 = vadd.f32 %v10866, 1.0
      %v11229 = vadd.f32 %v10868, 1.0
      %v11230 = vadd.f32 %v10870, 1.0
      %v11231 = vadd.f32 %v10872, 1.0
      %v11232 = vadd.f32 %v10874, 1.0
      %v11233 = vadd.f32 %v10876, 1.0
      %v11234 = vadd.f32 %v10878, 1.0
      %v11235 = vadd.f32 %v10880, 1.0
      %v11236 = vadd.f32 %v10882, 1.0
      %v11237 = vadd.f32 %v10884, 1.0
      %v11238 = vadd.f32 %v10886, 1.0
      %v11239 = vadd.f32 %v10888, 1.0
      %v11240 = vadd.f32 %v10890, 1.0
      %v11241 = vadd.f32 %v10892, 1.0
      %v11242 = vadd.f32 %v10894, 1.0
      %v11243 = vadd.f32 %v10896, 1.0
      %v11244 = vadd.f32 %v10898, 1.0
      %v11245 = vadd.f32 %v10900, 1.0
      %v11246 = vadd.f32 %v10902, 1.0
      %v11247 = vadd.f32 %v10904, 1.0
      %v11248 = vadd.f32 %v10906, 1.0
      %v11249 = vadd.f32 %v10908, 1.0
      %v11250 = vadd.f32 %v10910, 1.0
      %v11251 = vadd.f32 %v10912, 1.0
      %v11252 = vadd.f32 %v10914, 1.0
      %v11253 = vadd.f32 %v10916, 1.0
      %v11254 = vadd.f32 %v10918, 1.0
      %v11255 = vadd.f32 %v10920, 1.0
      %v11256 = vadd.f32 %v10922, 1.0
      %v11257 = vadd.f32 %v10924, 1.0
      %v11258 = vadd.f32 %v10926, 1.0
      %v11259 = vadd.f32 %v10928, 1.0
      %v11260 = vadd.f32 %v10930, 1.0
      %v11261 = vadd.f32 %v10932, 1.0
      %v11262 = vadd.f32 %v10934, 1.0
      %v11263 = vadd.f32 %v10936, 1.0
      %v11264 = vadd.f32 %v10938, 1.0
      %v11265 = vadd.f32 %v10940, 1.0
      %v11266 = vadd.f32 %v10942, 1.0
      %v11267 = vadd.f32 %v10944, 1.0
      %v11268 = vadd.f32 %v10946, 1.0
      %v11269 = vadd.f32 %v10948, 1.0
      %v11270 = vadd.f32 %v10950, 1.0
      %v11271 = vadd.f32 %v10952, 1.0
      %v11272 = vadd.f32 %v10954, 1.0
      %v11273 = vadd.f32 %v10956, 1.0
      %v11274 = vadd.f32 %v10958, 1.0
      %v11275 = vadd.f32 %v10960, 1.0
      %v11276 = vadd.f32 %v10962, 1.0
      %v11277 = vadd.f32 %v10964, 1.0
      %v11278 = vadd.f32 %v10966, 1.0
      %v11279 = vadd.f32 %v10968, 1.0
      %v11280 = vadd.f32 %v10970, 1.0
      %v11281 = vadd.f32 %v10972, 1.0
      %v11282 = vadd.f32 %v10974, 1.0
      %v11283 = vadd.f32 %v10976, 1.0
      %v11284 = vadd.f32 %v10978, 1.0
      %v11285 = vadd.f32 %v10980, 1.0
      %v11286 = vadd.f32 %v10982, 1.0
      %v11287 = vadd.f32 %v10984, 1.0
      %v11288 = vadd.f32 %v10986, 1.0
      %v11289 = vadd.f32 %v10988, 1.0
      %v11290 = vadd.f32 %v10990, 1.0
      %v11291 = vadd.f32 %v10992, 1.0
      %v11292 = vadd.f32 %v10994, 1.0
      %v11293 = vadd.f32 %v10996, 1.0
      %v11294 = vadd.f32 %v10998, 1.0
      %v11295 = vadd.f32 %v11000, 1.0
      %v11296 = vadd.f32 %v11002, 1.0
      %v11297 = vadd.f32 %v11004, 1.0
      %v11298 = vadd.f32 %v11006, 1.0
      %v11299 = vadd.f32 %v11008, 1.0
      %v11300 = vadd.f32 %v11010, 1.0
      %v11301 = vadd.f32 %v11012, 1.0
      %v11302 = vadd.f32 %v11014, 1.0
      %v11303 = vadd.f32 %v11016, 1.0
      %v11304 = vadd.f32 %v11018, 1.0
      %v11305 = vadd.f32 %v11020, 1.0
      %v11306 = vadd.f32 %v11022, 1.0
      %v11307 = vadd.f32 %v11024, 1.0
      %v11308 = vadd.f32 %v11026, 1.0
      %v11309 = vadd.f32 %v11028, 1.0
      %v11310 = vadd.f32 %v11030, 1.0
      %v11311 = vadd.f32 %v11032, 1.0
      %v11312 = vadd.f32 %v11034, 1.0
      %v11313 = vadd.f32 %v11036, 1.0
      %v11314 = vadd.f32 %v11038, 1.0
      %v11315 = vadd.f32 %v11040, 1.0
      %v11316 = vadd.f32 %v11042, 1.0
      %v11317 = vadd.f32 %v11044, 1.0
      %v11318 = vadd.f32 %v11046, 1.0
      %v11319 = vadd.f32 %v11048, 1.0
      %v11320 = vadd.f32 %v11050, 1.0
      %v11321 = vadd.f32 %v11052, 1.0
      %v11322 = vadd.f32 %v11054, 1.0
      %v11323 = vadd.f32 %v11056, 1.0
      %v11324 = vadd.f32 %v11058, 1.0
      %v11325 = vadd.f32 %v11060, 1.0
      %v11326 = vadd.f32 %v11062, 1.0
      %v11327 = vadd.f32 %v11064, 1.0
      %v11328 = vadd.f32 %v11066, 1.0
      %v11329 = vadd.f32 %v11068, 1.0
      %v11330 = vadd.f32 %v11070, 1.0
      %v11331 = vadd.f32 %v11072, 1.0
      %v11332 = vadd.f32 %v11074, 1.0
      %v11333 = vadd.f32 %v11076, 1.0
      %v11334 = vadd.f32 %v11078, 1.0
      %v11335 = vadd.f32 %v11080, 1.0
      %v11336 = vadd.f32 %v11082, 1.0
      %v11337 = vadd.f32 %v11084, 1.0
      %v11338 = vadd.f32 %v11086, 1.0
      %v11339 = vadd.f32 %v11088, 1.0
      %v11340 = vadd.f32 %v11090, 1.0
      %v11341 = vadd.f32 %v11092, 1.0
      %v11342 = vadd.f32 %v11094, 1.0
      %v11343 = vadd.f32 %v11096, 1.0
      %v11344 = vadd.f32 %v11098, 1.0
      %v11345 = vadd.f32 %v11100, 1.0
      %v11346 = vadd.f32 %v11102, 1.0
      %v11347 = vadd.f32 %v11104, 1.0
      %v11348 = vadd.f32 %v11106, 1.0
      %v11349 = vadd.f32 %v11108, 1.0
      %v11350 = vadd.f32 %v11110, 1.0
      %v11351 = vadd.f32 %v11112, 1.0
      %v11352 = vadd.f32 %v11114, 1.0
      %v11353 = vadd.f32 %v11116, 1.0
      %v11354 = vadd.f32 %v11118, 1.0
      %v11355 = vadd.f32 %v11120, 1.0
      %v11356 = vadd.f32 %v11122, 1.0
      %v11357 = vadd.f32 %v11124, 1.0
      %v11358 = vadd.f32 %v11126, 1.0
      %v11359 = vadd.f32 %v11128, 1.0
      %v11360 = vadd.f32 %v11130, 1.0
      %v11361 = vadd.f32 %v11132, 1.0
      %v11362 = vadd.f32 %v11134, 1.0
      %v11363 = vadd.f32 %v11136, 1.0
      %v11364 = vadd.f32 %v11138, 1.0
      %v11365 = vadd.f32 %v11140, 1.0
      %v11366 = vadd.f32 %v11142, 1.0
      %v11367 = vrcp.pop %v11143
      %v11368 = vmul.f32 1.0, %v11367
      %v11369 = vrcp.pop %v11144
      %v11370 = vmul.f32 1.0, %v11369
      %v11371 = vrcp.pop %v11145
      %v11372 = vmul.f32 1.0, %v11371
      %v11373 = vrcp.pop %v11146
      %v11374 = vmul.f32 1.0, %v11373
      %v11375 = vrcp.pop %v11147
      %v11376 = vmul.f32 1.0, %v11375
      %v11377 = vrcp.pop %v11148
      %v11378 = vmul.f32 1.0, %v11377
      %v11379 = vrcp.pop %v11149
      %v11380 = vmul.f32 1.0, %v11379
      %v11381 = vrcp.pop %v11150
      %v11382 = vmul.f32 1.0, %v11381
      %v11383 = vrcp.pop %v11151
      %v11384 = vmul.f32 1.0, %v11383
      %v11385 = vrcp.pop %v11152
      %v11386 = vmul.f32 1.0, %v11385
      %v11387 = vrcp.pop %v11153
      %v11388 = vmul.f32 1.0, %v11387
      %v11389 = vrcp.pop %v11154
      %v11390 = vmul.f32 1.0, %v11389
      %v11391 = vrcp.pop %v11155
      %v11392 = vmul.f32 1.0, %v11391
      %v11393 = vrcp.pop %v11156
      %v11394 = vmul.f32 1.0, %v11393
      %v11395 = vrcp.pop %v11157
      %v11396 = vmul.f32 1.0, %v11395
      %v11397 = vrcp.pop %v11158
      %v11398 = vmul.f32 1.0, %v11397
      %v11399 = vrcp.pop %v11159
      %v11400 = vmul.f32 1.0, %v11399
      %v11401 = vrcp.pop %v11160
      %v11402 = vmul.f32 1.0, %v11401
      %v11403 = vrcp.pop %v11161
      %v11404 = vmul.f32 1.0, %v11403
      %v11405 = vrcp.pop %v11162
      %v11406 = vmul.f32 1.0, %v11405
      %v11407 = vrcp.pop %v11163
      %v11408 = vmul.f32 1.0, %v11407
      %v11409 = vrcp.pop %v11164
      %v11410 = vmul.f32 1.0, %v11409
      %v11411 = vrcp.pop %v11165
      %v11412 = vmul.f32 1.0, %v11411
      %v11413 = vrcp.pop %v11166
      %v11414 = vmul.f32 1.0, %v11413
      %v11415 = vrcp.pop %v11167
      %v11416 = vmul.f32 1.0, %v11415
      %v11417 = vrcp.pop %v11168
      %v11418 = vmul.f32 1.0, %v11417
      %v11419 = vrcp.pop %v11169
      %v11420 = vmul.f32 1.0, %v11419
      %v11421 = vrcp.pop %v11170
      %v11422 = vmul.f32 1.0, %v11421
      %v11423 = vrcp.pop %v11171
      %v11424 = vmul.f32 1.0, %v11423
      %v11425 = vrcp.pop %v11172
      %v11426 = vmul.f32 1.0, %v11425
      %v11427 = vrcp.pop %v11173
      %v11428 = vmul.f32 1.0, %v11427
      %v11429 = vrcp.pop %v11174
      %v11430 = vmul.f32 1.0, %v11429
      %v11431 = vrcp.pop %v11175
      %v11432 = vmul.f32 1.0, %v11431
      %v11433 = vrcp.pop %v11176
      %v11434 = vmul.f32 1.0, %v11433
      %v11435 = vrcp.pop %v11177
      %v11436 = vmul.f32 1.0, %v11435
      %v11437 = vrcp.pop %v11178
      %v11438 = vmul.f32 1.0, %v11437
      %v11439 = vrcp.pop %v11179
      %v11440 = vmul.f32 1.0, %v11439
      %v11441 = vrcp.pop %v11180
      %v11442 = vmul.f32 1.0, %v11441
      %v11443 = vrcp.pop %v11181
      %v11444 = vmul.f32 1.0, %v11443
      %v11445 = vrcp.pop %v11182
      %v11446 = vmul.f32 1.0, %v11445
      %v11447 = vrcp.pop %v11183
      %v11448 = vmul.f32 1.0, %v11447
      %v11449 = vrcp.pop %v11184
      %v11450 = vmul.f32 1.0, %v11449
      %v11451 = vrcp.pop %v11185
      %v11452 = vmul.f32 1.0, %v11451
      %v11453 = vrcp.pop %v11186
      %v11454 = vmul.f32 1.0, %v11453
      %v11455 = vrcp.pop %v11187
      %v11456 = vmul.f32 1.0, %v11455
      %v11457 = vrcp.pop %v11188
      %v11458 = vmul.f32 1.0, %v11457
      %v11459 = vrcp.pop %v11189
      %v11460 = vmul.f32 1.0, %v11459
      %v11461 = vrcp.pop %v11190
      %v11462 = vmul.f32 1.0, %v11461
      %v11463 = vrcp.pop %v11191
      %v11464 = vmul.f32 1.0, %v11463
      %v11465 = vrcp.pop %v11192
      %v11466 = vmul.f32 1.0, %v11465
      %v11467 = vrcp.pop %v11193
      %v11468 = vmul.f32 1.0, %v11467
      %v11469 = vrcp.pop %v11194
      %v11470 = vmul.f32 1.0, %v11469
      %v11471 = vrcp.pop %v11195
      %v11472 = vmul.f32 1.0, %v11471
      %v11473 = vrcp.pop %v11196
      %v11474 = vmul.f32 1.0, %v11473
      %v11475 = vrcp.pop %v11197
      %v11476 = vmul.f32 1.0, %v11475
      %v11477 = vrcp.pop %v11198
      %v11478 = vmul.f32 1.0, %v11477
      %v11479 = vrcp.pop %v11199
      %v11480 = vmul.f32 1.0, %v11479
      %v11481 = vrcp.pop %v11200
      %v11482 = vmul.f32 1.0, %v11481
      %v11483 = vrcp.pop %v11201
      %v11484 = vmul.f32 1.0, %v11483
      %v11485 = vrcp.pop %v11202
      %v11486 = vmul.f32 1.0, %v11485
      %v11487 = vrcp.pop %v11203
      %v11488 = vmul.f32 1.0, %v11487
      %v11489 = vrcp.pop %v11204
      %v11490 = vmul.f32 1.0, %v11489
      %v11491 = vrcp.pop %v11205
      %v11492 = vmul.f32 1.0, %v11491
      %v11493 = vrcp.pop %v11206
      %v11494 = vmul.f32 1.0, %v11493
      %v11495 = vrcp.pop %v11207
      %v11496 = vmul.f32 1.0, %v11495
      %v11497 = vrcp.pop %v11208
      %v11498 = vmul.f32 1.0, %v11497
      %v11499 = vrcp.pop %v11209
      %v11500 = vmul.f32 1.0, %v11499
      %v11501 = vrcp.pop %v11210
      %v11502 = vmul.f32 1.0, %v11501
      %v11503 = vrcp.pop %v11211
      %v11504 = vmul.f32 1.0, %v11503
      %v11505 = vrcp.pop %v11212
      %v11506 = vmul.f32 1.0, %v11505
      %v11507 = vrcp.pop %v11213
      %v11508 = vmul.f32 1.0, %v11507
      %v11509 = vrcp.pop %v11214
      %v11510 = vmul.f32 1.0, %v11509
      %v11511 = vrcp.pop %v11215
      %v11512 = vmul.f32 1.0, %v11511
      %v11513 = vrcp.pop %v11216
      %v11514 = vmul.f32 1.0, %v11513
      %v11515 = vrcp.pop %v11217
      %v11516 = vmul.f32 1.0, %v11515
      %v11517 = vrcp.pop %v11218
      %v11518 = vmul.f32 1.0, %v11517
      %v11519 = vrcp.pop %v11219
      %v11520 = vmul.f32 1.0, %v11519
      %v11521 = vrcp.pop %v11220
      %v11522 = vmul.f32 1.0, %v11521
      %v11523 = vrcp.pop %v11221
      %v11524 = vmul.f32 1.0, %v11523
      %v11525 = vrcp.pop %v11222
      %v11526 = vmul.f32 1.0, %v11525
      %v11527 = vrcp.pop %v11223
      %v11528 = vmul.f32 1.0, %v11527
      %v11529 = vrcp.pop %v11224
      %v11530 = vmul.f32 1.0, %v11529
      %v11531 = vrcp.pop %v11225
      %v11532 = vmul.f32 1.0, %v11531
      %v11533 = vrcp.pop %v11226
      %v11534 = vmul.f32 1.0, %v11533
      %v11535 = vrcp.pop %v11227
      %v11536 = vmul.f32 1.0, %v11535
      %v11537 = vrcp.pop %v11228
      %v11538 = vmul.f32 1.0, %v11537
      %v11539 = vrcp.pop %v11229
      %v11540 = vmul.f32 1.0, %v11539
      %v11541 = vrcp.pop %v11230
      %v11542 = vmul.f32 1.0, %v11541
      %v11543 = vrcp.pop %v11231
      %v11544 = vmul.f32 1.0, %v11543
      %v11545 = vrcp.pop %v11232
      %v11546 = vmul.f32 1.0, %v11545
      %v11547 = vrcp.pop %v11233
      %v11548 = vmul.f32 1.0, %v11547
      %v11549 = vrcp.pop %v11234
      %v11550 = vmul.f32 1.0, %v11549
      %v11551 = vrcp.pop %v11235
      %v11552 = vmul.f32 1.0, %v11551
      %v11553 = vrcp.pop %v11236
      %v11554 = vmul.f32 1.0, %v11553
      %v11555 = vrcp.pop %v11237
      %v11556 = vmul.f32 1.0, %v11555
      %v11557 = vrcp.pop %v11238
      %v11558 = vmul.f32 1.0, %v11557
      %v11559 = vrcp.pop %v11239
      %v11560 = vmul.f32 1.0, %v11559
      %v11561 = vrcp.pop %v11240
      %v11562 = vmul.f32 1.0, %v11561
      %v11563 = vrcp.pop %v11241
      %v11564 = vmul.f32 1.0, %v11563
      %v11565 = vrcp.pop %v11242
      %v11566 = vmul.f32 1.0, %v11565
      %v11567 = vrcp.pop %v11243
      %v11568 = vmul.f32 1.0, %v11567
      %v11569 = vrcp.pop %v11244
      %v11570 = vmul.f32 1.0, %v11569
      %v11571 = vrcp.pop %v11245
      %v11572 = vmul.f32 1.0, %v11571
      %v11573 = vrcp.pop %v11246
      %v11574 = vmul.f32 1.0, %v11573
      %v11575 = vrcp.pop %v11247
      %v11576 = vmul.f32 1.0, %v11575
      %v11577 = vrcp.pop %v11248
      %v11578 = vmul.f32 1.0, %v11577
      %v11579 = vrcp.pop %v11249
      %v11580 = vmul.f32 1.0, %v11579
      %v11581 = vrcp.pop %v11250
      %v11582 = vmul.f32 1.0, %v11581
      %v11583 = vrcp.pop %v11251
      %v11584 = vmul.f32 1.0, %v11583
      %v11585 = vrcp.pop %v11252
      %v11586 = vmul.f32 1.0, %v11585
      %v11587 = vrcp.pop %v11253
      %v11588 = vmul.f32 1.0, %v11587
      %v11589 = vrcp.pop %v11254
      %v11590 = vmul.f32 1.0, %v11589
      %v11591 = vrcp.pop %v11255
      %v11592 = vmul.f32 1.0, %v11591
      %v11593 = vrcp.pop %v11256
      %v11594 = vmul.f32 1.0, %v11593
      %v11595 = vrcp.pop %v11257
      %v11596 = vmul.f32 1.0, %v11595
      %v11597 = vrcp.pop %v11258
      %v11598 = vmul.f32 1.0, %v11597
      %v11599 = vrcp.pop %v11259
      %v11600 = vmul.f32 1.0, %v11599
      %v11601 = vrcp.pop %v11260
      %v11602 = vmul.f32 1.0, %v11601
      %v11603 = vrcp.pop %v11261
      %v11604 = vmul.f32 1.0, %v11603
      %v11605 = vrcp.pop %v11262
      %v11606 = vmul.f32 1.0, %v11605
      %v11607 = vrcp.pop %v11263
      %v11608 = vmul.f32 1.0, %v11607
      %v11609 = vrcp.pop %v11264
      %v11610 = vmul.f32 1.0, %v11609
      %v11611 = vrcp.pop %v11265
      %v11612 = vmul.f32 1.0, %v11611
      %v11613 = vrcp.pop %v11266
      %v11614 = vmul.f32 1.0, %v11613
      %v11615 = vrcp.pop %v11267
      %v11616 = vmul.f32 1.0, %v11615
      %v11617 = vrcp.pop %v11268
      %v11618 = vmul.f32 1.0, %v11617
      %v11619 = vrcp.pop %v11269
      %v11620 = vmul.f32 1.0, %v11619
      %v11621 = vrcp.pop %v11270
      %v11622 = vmul.f32 1.0, %v11621
      %v11623 = vrcp.pop %v11271
      %v11624 = vmul.f32 1.0, %v11623
      %v11625 = vrcp.pop %v11272
      %v11626 = vmul.f32 1.0, %v11625
      %v11627 = vrcp.pop %v11273
      %v11628 = vmul.f32 1.0, %v11627
      %v11629 = vrcp.pop %v11274
      %v11630 = vmul.f32 1.0, %v11629
      %v11631 = vrcp.pop %v11275
      %v11632 = vmul.f32 1.0, %v11631
      %v11633 = vrcp.pop %v11276
      %v11634 = vmul.f32 1.0, %v11633
      %v11635 = vrcp.pop %v11277
      %v11636 = vmul.f32 1.0, %v11635
      %v11637 = vrcp.pop %v11278
      %v11638 = vmul.f32 1.0, %v11637
      %v11639 = vrcp.pop %v11279
      %v11640 = vmul.f32 1.0, %v11639
      %v11641 = vrcp.pop %v11280
      %v11642 = vmul.f32 1.0, %v11641
      %v11643 = vrcp.pop %v11281
      %v11644 = vmul.f32 1.0, %v11643
      %v11645 = vrcp.pop %v11282
      %v11646 = vmul.f32 1.0, %v11645
      %v11647 = vrcp.pop %v11283
      %v11648 = vmul.f32 1.0, %v11647
      %v11649 = vrcp.pop %v11284
      %v11650 = vmul.f32 1.0, %v11649
      %v11651 = vrcp.pop %v11285
      %v11652 = vmul.f32 1.0, %v11651
      %v11653 = vrcp.pop %v11286
      %v11654 = vmul.f32 1.0, %v11653
      %v11655 = vrcp.pop %v11287
      %v11656 = vmul.f32 1.0, %v11655
      %v11657 = vrcp.pop %v11288
      %v11658 = vmul.f32 1.0, %v11657
      %v11659 = vrcp.pop %v11289
      %v11660 = vmul.f32 1.0, %v11659
      %v11661 = vrcp.pop %v11290
      %v11662 = vmul.f32 1.0, %v11661
      %v11663 = vrcp.pop %v11291
      %v11664 = vmul.f32 1.0, %v11663
      %v11665 = vrcp.pop %v11292
      %v11666 = vmul.f32 1.0, %v11665
      %v11667 = vrcp.pop %v11293
      %v11668 = vmul.f32 1.0, %v11667
      %v11669 = vrcp.pop %v11294
      %v11670 = vmul.f32 1.0, %v11669
      %v11671 = vrcp.pop %v11295
      %v11672 = vmul.f32 1.0, %v11671
      %v11673 = vrcp.pop %v11296
      %v11674 = vmul.f32 1.0, %v11673
      %v11675 = vrcp.pop %v11297
      %v11676 = vmul.f32 1.0, %v11675
      %v11677 = vrcp.pop %v11298
      %v11678 = vmul.f32 1.0, %v11677
      %v11679 = vrcp.pop %v11299
      %v11680 = vmul.f32 1.0, %v11679
      %v11681 = vrcp.pop %v11300
      %v11682 = vmul.f32 1.0, %v11681
      %v11683 = vrcp.pop %v11301
      %v11684 = vmul.f32 1.0, %v11683
      %v11685 = vrcp.pop %v11302
      %v11686 = vmul.f32 1.0, %v11685
      %v11687 = vrcp.pop %v11303
      %v11688 = vmul.f32 1.0, %v11687
      %v11689 = vrcp.pop %v11304
      %v11690 = vmul.f32 1.0, %v11689
      %v11691 = vrcp.pop %v11305
      %v11692 = vmul.f32 1.0, %v11691
      %v11693 = vrcp.pop %v11306
      %v11694 = vmul.f32 1.0, %v11693
      %v11695 = vrcp.pop %v11307
      %v11696 = vmul.f32 1.0, %v11695
      %v11697 = vrcp.pop %v11308
      %v11698 = vmul.f32 1.0, %v11697
      %v11699 = vrcp.pop %v11309
      %v11700 = vmul.f32 1.0, %v11699
      %v11701 = vrcp.pop %v11310
      %v11702 = vmul.f32 1.0, %v11701
      %v11703 = vrcp.pop %v11311
      %v11704 = vmul.f32 1.0, %v11703
      %v11705 = vrcp.pop %v11312
      %v11706 = vmul.f32 1.0, %v11705
      %v11707 = vrcp.pop %v11313
      %v11708 = vmul.f32 1.0, %v11707
      %v11709 = vrcp.pop %v11314
      %v11710 = vmul.f32 1.0, %v11709
      %v11711 = vrcp.pop %v11315
      %v11712 = vmul.f32 1.0, %v11711
      %v11713 = vrcp.pop %v11316
      %v11714 = vmul.f32 1.0, %v11713
      %v11715 = vrcp.pop %v11317
      %v11716 = vmul.f32 1.0, %v11715
      %v11717 = vrcp.pop %v11318
      %v11718 = vmul.f32 1.0, %v11717
      %v11719 = vrcp.pop %v11319
      %v11720 = vmul.f32 1.0, %v11719
      %v11721 = vrcp.pop %v11320
      %v11722 = vmul.f32 1.0, %v11721
      %v11723 = vrcp.pop %v11321
      %v11724 = vmul.f32 1.0, %v11723
      %v11725 = vrcp.pop %v11322
      %v11726 = vmul.f32 1.0, %v11725
      %v11727 = vrcp.pop %v11323
      %v11728 = vmul.f32 1.0, %v11727
      %v11729 = vrcp.pop %v11324
      %v11730 = vmul.f32 1.0, %v11729
      %v11731 = vrcp.pop %v11325
      %v11732 = vmul.f32 1.0, %v11731
      %v11733 = vrcp.pop %v11326
      %v11734 = vmul.f32 1.0, %v11733
      %v11735 = vrcp.pop %v11327
      %v11736 = vmul.f32 1.0, %v11735
      %v11737 = vrcp.pop %v11328
      %v11738 = vmul.f32 1.0, %v11737
      %v11739 = vrcp.pop %v11329
      %v11740 = vmul.f32 1.0, %v11739
      %v11741 = vrcp.pop %v11330
      %v11742 = vmul.f32 1.0, %v11741
      %v11743 = vrcp.pop %v11331
      %v11744 = vmul.f32 1.0, %v11743
      %v11745 = vrcp.pop %v11332
      %v11746 = vmul.f32 1.0, %v11745
      %v11747 = vrcp.pop %v11333
      %v11748 = vmul.f32 1.0, %v11747
      %v11749 = vrcp.pop %v11334
      %v11750 = vmul.f32 1.0, %v11749
      %v11751 = vrcp.pop %v11335
      %v11752 = vmul.f32 1.0, %v11751
      %v11753 = vrcp.pop %v11336
      %v11754 = vmul.f32 1.0, %v11753
      %v11755 = vrcp.pop %v11337
      %v11756 = vmul.f32 1.0, %v11755
      %v11757 = vrcp.pop %v11338
      %v11758 = vmul.f32 1.0, %v11757
      %v11759 = vrcp.pop %v11339
      %v11760 = vmul.f32 1.0, %v11759
      %v11761 = vrcp.pop %v11340
      %v11762 = vmul.f32 1.0, %v11761
      %v11763 = vrcp.pop %v11341
      %v11764 = vmul.f32 1.0, %v11763
      %v11765 = vrcp.pop %v11342
      %v11766 = vmul.f32 1.0, %v11765
      %v11767 = vrcp.pop %v11343
      %v11768 = vmul.f32 1.0, %v11767
      %v11769 = vrcp.pop %v11344
      %v11770 = vmul.f32 1.0, %v11769
      %v11771 = vrcp.pop %v11345
      %v11772 = vmul.f32 1.0, %v11771
      %v11773 = vrcp.pop %v11346
      %v11774 = vmul.f32 1.0, %v11773
      %v11775 = vrcp.pop %v11347
      %v11776 = vmul.f32 1.0, %v11775
      %v11777 = vrcp.pop %v11348
      %v11778 = vmul.f32 1.0, %v11777
      %v11779 = vrcp.pop %v11349
      %v11780 = vmul.f32 1.0, %v11779
      %v11781 = vrcp.pop %v11350
      %v11782 = vmul.f32 1.0, %v11781
      %v11783 = vrcp.pop %v11351
      %v11784 = vmul.f32 1.0, %v11783
      %v11785 = vrcp.pop %v11352
      %v11786 = vmul.f32 1.0, %v11785
      %v11787 = vrcp.pop %v11353
      %v11788 = vmul.f32 1.0, %v11787
      %v11789 = vrcp.pop %v11354
      %v11790 = vmul.f32 1.0, %v11789
      %v11791 = vrcp.pop %v11355
      %v11792 = vmul.f32 1.0, %v11791
      %v11793 = vrcp.pop %v11356
      %v11794 = vmul.f32 1.0, %v11793
      %v11795 = vrcp.pop %v11357
      %v11796 = vmul.f32 1.0, %v11795
      %v11797 = vrcp.pop %v11358
      %v11798 = vmul.f32 1.0, %v11797
      %v11799 = vrcp.pop %v11359
      %v11800 = vmul.f32 1.0, %v11799
      %v11801 = vrcp.pop %v11360
      %v11802 = vmul.f32 1.0, %v11801
      %v11803 = vrcp.pop %v11361
      %v11804 = vmul.f32 1.0, %v11803
      %v11805 = vrcp.pop %v11362
      %v11806 = vmul.f32 1.0, %v11805
      %v11807 = vrcp.pop %v11363
      %v11808 = vmul.f32 1.0, %v11807
      %v11809 = vrcp.pop %v11364
      %v11810 = vmul.f32 1.0, %v11809
      %v11811 = vrcp.pop %v11365
      %v11812 = vmul.f32 1.0, %v11811
      %v11813 = vrcp.pop %v11366
      %v11814 = vmul.f32 1.0, %v11813
      %v11815 = vpack.c.bf16 %v11382, %v11368
      %v11816 = vpack.c.bf16 %v11384, %v11370
      %v11817 = vpack.c.bf16 %v11386, %v11372
      %v11818 = vpack.c.bf16 %v11388, %v11374
      %v11819 = vpack.c.bf16 %v11390, %v11376
      %v11820 = vpack.c.bf16 %v11392, %v11378
      %v11821 = vpack.c.bf16 %v11394, %v11380
      %v11822 = vpack.c.bf16 %v11410, %v11396
      %v11823 = vpack.c.bf16 %v11412, %v11398
      %v11824 = vpack.c.bf16 %v11414, %v11400
      %v11825 = vpack.c.bf16 %v11416, %v11402
      %v11826 = vpack.c.bf16 %v11418, %v11404
      %v11827 = vpack.c.bf16 %v11420, %v11406
      %v11828 = vpack.c.bf16 %v11422, %v11408
      %v11829 = vpack.c.bf16 %v11438, %v11424
      %v11830 = vpack.c.bf16 %v11440, %v11426
      %v11831 = vpack.c.bf16 %v11442, %v11428
      %v11832 = vpack.c.bf16 %v11444, %v11430
      %v11833 = vpack.c.bf16 %v11446, %v11432
      %v11834 = vpack.c.bf16 %v11448, %v11434
      %v11835 = vpack.c.bf16 %v11450, %v11436
      %v11836 = vpack.c.bf16 %v11466, %v11452
      %v11837 = vpack.c.bf16 %v11468, %v11454
      %v11838 = vpack.c.bf16 %v11470, %v11456
      %v11839 = vpack.c.bf16 %v11472, %v11458
      %v11840 = vpack.c.bf16 %v11474, %v11460
      %v11841 = vpack.c.bf16 %v11476, %v11462
      %v11842 = vpack.c.bf16 %v11478, %v11464
      %v11843 = vpack.c.bf16 %v11494, %v11480
      %v11844 = vpack.c.bf16 %v11496, %v11482
      %v11845 = vpack.c.bf16 %v11498, %v11484
      %v11846 = vpack.c.bf16 %v11500, %v11486
      %v11847 = vpack.c.bf16 %v11502, %v11488
      %v11848 = vpack.c.bf16 %v11504, %v11490
      %v11849 = vpack.c.bf16 %v11506, %v11492
      %v11850 = vpack.c.bf16 %v11522, %v11508
      %v11851 = vpack.c.bf16 %v11524, %v11510
      %v11852 = vpack.c.bf16 %v11526, %v11512
      %v11853 = vpack.c.bf16 %v11528, %v11514
      %v11854 = vpack.c.bf16 %v11530, %v11516
      %v11855 = vpack.c.bf16 %v11532, %v11518
      %v11856 = vpack.c.bf16 %v11534, %v11520
      %v11857 = vpack.c.bf16 %v11550, %v11536
      %v11858 = vpack.c.bf16 %v11552, %v11538
      %v11859 = vpack.c.bf16 %v11554, %v11540
      %v11860 = vpack.c.bf16 %v11556, %v11542
      %v11861 = vpack.c.bf16 %v11558, %v11544
      %v11862 = vpack.c.bf16 %v11560, %v11546
      %v11863 = vpack.c.bf16 %v11562, %v11548
      %v11864 = vpack.c.bf16 %v11578, %v11564
      %v11865 = vpack.c.bf16 %v11580, %v11566
      %v11866 = vpack.c.bf16 %v11582, %v11568
      %v11867 = vpack.c.bf16 %v11584, %v11570
      %v11868 = vpack.c.bf16 %v11586, %v11572
      %v11869 = vpack.c.bf16 %v11588, %v11574
      %v11870 = vpack.c.bf16 %v11590, %v11576
      %v11871 = vpack.c.bf16 %v11606, %v11592
      %v11872 = vpack.c.bf16 %v11608, %v11594
      %v11873 = vpack.c.bf16 %v11610, %v11596
      %v11874 = vpack.c.bf16 %v11612, %v11598
      %v11875 = vpack.c.bf16 %v11614, %v11600
      %v11876 = vpack.c.bf16 %v11616, %v11602
      %v11877 = vpack.c.bf16 %v11618, %v11604
      %v11878 = vpack.c.bf16 %v11634, %v11620
      %v11879 = vpack.c.bf16 %v11636, %v11622
      %v11880 = vpack.c.bf16 %v11638, %v11624
      %v11881 = vpack.c.bf16 %v11640, %v11626
      %v11882 = vpack.c.bf16 %v11642, %v11628
      %v11883 = vpack.c.bf16 %v11644, %v11630
      %v11884 = vpack.c.bf16 %v11646, %v11632
      %v11885 = vpack.c.bf16 %v11662, %v11648
      %v11886 = vpack.c.bf16 %v11664, %v11650
      %v11887 = vpack.c.bf16 %v11666, %v11652
      %v11888 = vpack.c.bf16 %v11668, %v11654
      %v11889 = vpack.c.bf16 %v11670, %v11656
      %v11890 = vpack.c.bf16 %v11672, %v11658
      %v11891 = vpack.c.bf16 %v11674, %v11660
      %v11892 = vpack.c.bf16 %v11690, %v11676
      %v11893 = vpack.c.bf16 %v11692, %v11678
      %v11894 = vpack.c.bf16 %v11694, %v11680
      %v11895 = vpack.c.bf16 %v11696, %v11682
      %v11896 = vpack.c.bf16 %v11698, %v11684
      %v11897 = vpack.c.bf16 %v11700, %v11686
      %v11898 = vpack.c.bf16 %v11702, %v11688
      %v11899 = vpack.c.bf16 %v11718, %v11704
      %v11900 = vpack.c.bf16 %v11720, %v11706
      %v11901 = vpack.c.bf16 %v11722, %v11708
      %v11902 = vpack.c.bf16 %v11724, %v11710
      %v11903 = vpack.c.bf16 %v11726, %v11712
      %v11904 = vpack.c.bf16 %v11728, %v11714
      %v11905 = vpack.c.bf16 %v11730, %v11716
      %v11906 = vpack.c.bf16 %v11746, %v11732
      %v11907 = vpack.c.bf16 %v11748, %v11734
      %v11908 = vpack.c.bf16 %v11750, %v11736
      %v11909 = vpack.c.bf16 %v11752, %v11738
      %v11910 = vpack.c.bf16 %v11754, %v11740
      %v11911 = vpack.c.bf16 %v11756, %v11742
      %v11912 = vpack.c.bf16 %v11758, %v11744
      %v11913 = vpack.c.bf16 %v11774, %v11760
      %v11914 = vpack.c.bf16 %v11776, %v11762
      %v11915 = vpack.c.bf16 %v11778, %v11764
      %v11916 = vpack.c.bf16 %v11780, %v11766
      %v11917 = vpack.c.bf16 %v11782, %v11768
      %v11918 = vpack.c.bf16 %v11784, %v11770
      %v11919 = vpack.c.bf16 %v11786, %v11772
      %v11920 = vpack.c.bf16 %v11802, %v11788
      %v11921 = vpack.c.bf16 %v11804, %v11790
      %v11922 = vpack.c.bf16 %v11806, %v11792
      %v11923 = vpack.c.bf16 %v11808, %v11794
      %v11924 = vpack.c.bf16 %v11810, %v11796
      %v11925 = vpack.c.bf16 %v11812, %v11798
      %v11926 = vpack.c.bf16 %v11814, %v11800
      %v12039 = vunpack.c.l.b16 %v11815
      %v12040 = vunpack.c.l.b16 %v11816
      %v12041 = vunpack.c.l.b16 %v11817
      %v12042 = vunpack.c.l.b16 %v11818
      %v12043 = vunpack.c.l.b16 %v11819
      %v12044 = vunpack.c.l.b16 %v11820
      %v12045 = vunpack.c.l.b16 %v11821
      %v12046 = vunpack.c.h.b16 %v11815
      %v12047 = vunpack.c.h.b16 %v11816
      %v12048 = vunpack.c.h.b16 %v11817
      %v12049 = vunpack.c.h.b16 %v11818
      %v12050 = vunpack.c.h.b16 %v11819
      %v12051 = vunpack.c.h.b16 %v11820
      %v12052 = vunpack.c.h.b16 %v11821
      %v12053 = vunpack.c.l.b16 %v11822
      %v12054 = vunpack.c.l.b16 %v11823
      %v12055 = vunpack.c.l.b16 %v11824
      %v12056 = vunpack.c.l.b16 %v11825
      %v12057 = vunpack.c.l.b16 %v11826
      %v12058 = vunpack.c.l.b16 %v11827
      %v12059 = vunpack.c.l.b16 %v11828
      %v12060 = vunpack.c.h.b16 %v11822
      %v12061 = vunpack.c.h.b16 %v11823
      %v12062 = vunpack.c.h.b16 %v11824
      %v12063 = vunpack.c.h.b16 %v11825
      %v12064 = vunpack.c.h.b16 %v11826
      %v12065 = vunpack.c.h.b16 %v11827
      %v12066 = vunpack.c.h.b16 %v11828
      %v12067 = vunpack.c.l.b16 %v11829
      %v12068 = vunpack.c.l.b16 %v11830
      %v12069 = vunpack.c.l.b16 %v11831
      %v12070 = vunpack.c.l.b16 %v11832
      %v12071 = vunpack.c.l.b16 %v11833
      %v12072 = vunpack.c.l.b16 %v11834
      %v12073 = vunpack.c.l.b16 %v11835
      %v12074 = vunpack.c.h.b16 %v11829
      %v12075 = vunpack.c.h.b16 %v11830
      %v12076 = vunpack.c.h.b16 %v11831
      %v12077 = vunpack.c.h.b16 %v11832
      %v12078 = vunpack.c.h.b16 %v11833
      %v12079 = vunpack.c.h.b16 %v11834
      %v12080 = vunpack.c.h.b16 %v11835
      %v12081 = vunpack.c.l.b16 %v11836
      %v12082 = vunpack.c.l.b16 %v11837
      %v12083 = vunpack.c.l.b16 %v11838
      %v12084 = vunpack.c.l.b16 %v11839
      %v12085 = vunpack.c.l.b16 %v11840
      %v12086 = vunpack.c.l.b16 %v11841
      %v12087 = vunpack.c.l.b16 %v11842
      %v12088 = vunpack.c.h.b16 %v11836
      %v12089 = vunpack.c.h.b16 %v11837
      %v12090 = vunpack.c.h.b16 %v11838
      %v12091 = vunpack.c.h.b16 %v11839
      %v12092 = vunpack.c.h.b16 %v11840
      %v12093 = vunpack.c.h.b16 %v11841
      %v12094 = vunpack.c.h.b16 %v11842
      %v12095 = vunpack.c.l.b16 %v11843
      %v12096 = vunpack.c.l.b16 %v11844
      %v12097 = vunpack.c.l.b16 %v11845
      %v12098 = vunpack.c.l.b16 %v11846
      %v12099 = vunpack.c.l.b16 %v11847
      %v12100 = vunpack.c.l.b16 %v11848
      %v12101 = vunpack.c.l.b16 %v11849
      %v12102 = vunpack.c.h.b16 %v11843
      %v12103 = vunpack.c.h.b16 %v11844
      %v12104 = vunpack.c.h.b16 %v11845
      %v12105 = vunpack.c.h.b16 %v11846
      %v12106 = vunpack.c.h.b16 %v11847
      %v12107 = vunpack.c.h.b16 %v11848
      %v12108 = vunpack.c.h.b16 %v11849
      %v12109 = vunpack.c.l.b16 %v11850
      %v12110 = vunpack.c.l.b16 %v11851
      %v12111 = vunpack.c.l.b16 %v11852
      %v12112 = vunpack.c.l.b16 %v11853
      %v12113 = vunpack.c.l.b16 %v11854
      %v12114 = vunpack.c.l.b16 %v11855
      %v12115 = vunpack.c.l.b16 %v11856
      %v12116 = vunpack.c.h.b16 %v11850
      %v12117 = vunpack.c.h.b16 %v11851
      %v12118 = vunpack.c.h.b16 %v11852
      %v12119 = vunpack.c.h.b16 %v11853
      %v12120 = vunpack.c.h.b16 %v11854
      %v12121 = vunpack.c.h.b16 %v11855
      %v12122 = vunpack.c.h.b16 %v11856
      %v12123 = vunpack.c.l.b16 %v11857
      %v12124 = vunpack.c.l.b16 %v11858
      %v12125 = vunpack.c.l.b16 %v11859
      %v12126 = vunpack.c.l.b16 %v11860
      %v12127 = vunpack.c.l.b16 %v11861
      %v12128 = vunpack.c.l.b16 %v11862
      %v12129 = vunpack.c.l.b16 %v11863
      %v12130 = vunpack.c.h.b16 %v11857
      %v12131 = vunpack.c.h.b16 %v11858
      %v12132 = vunpack.c.h.b16 %v11859
      %v12133 = vunpack.c.h.b16 %v11860
      %v12134 = vunpack.c.h.b16 %v11861
      %v12135 = vunpack.c.h.b16 %v11862
      %v12136 = vunpack.c.h.b16 %v11863
      %v12137 = vunpack.c.l.b16 %v11864
      %v12138 = vunpack.c.l.b16 %v11865
      %v12139 = vunpack.c.l.b16 %v11866
      %v12140 = vunpack.c.l.b16 %v11867
      %v12141 = vunpack.c.l.b16 %v11868
      %v12142 = vunpack.c.l.b16 %v11869
      %v12143 = vunpack.c.l.b16 %v11870
      %v12144 = vunpack.c.h.b16 %v11864
      %v12145 = vunpack.c.h.b16 %v11865
      %v12146 = vunpack.c.h.b16 %v11866
      %v12147 = vunpack.c.h.b16 %v11867
      %v12148 = vunpack.c.h.b16 %v11868
      %v12149 = vunpack.c.h.b16 %v11869
      %v12150 = vunpack.c.h.b16 %v11870
      %v12151 = vunpack.c.l.b16 %v11871
      %v12152 = vunpack.c.l.b16 %v11872
      %v12153 = vunpack.c.l.b16 %v11873
      %v12154 = vunpack.c.l.b16 %v11874
      %v12155 = vunpack.c.l.b16 %v11875
      %v12156 = vunpack.c.l.b16 %v11876
      %v12157 = vunpack.c.l.b16 %v11877
      %v12158 = vunpack.c.h.b16 %v11871
      %v12159 = vunpack.c.h.b16 %v11872
      %v12160 = vunpack.c.h.b16 %v11873
      %v12161 = vunpack.c.h.b16 %v11874
      %v12162 = vunpack.c.h.b16 %v11875
      %v12163 = vunpack.c.h.b16 %v11876
      %v12164 = vunpack.c.h.b16 %v11877
      %v12165 = vunpack.c.l.b16 %v11878
      %v12166 = vunpack.c.l.b16 %v11879
      %v12167 = vunpack.c.l.b16 %v11880
      %v12168 = vunpack.c.l.b16 %v11881
      %v12169 = vunpack.c.l.b16 %v11882
      %v12170 = vunpack.c.l.b16 %v11883
      %v12171 = vunpack.c.l.b16 %v11884
      %v12172 = vunpack.c.h.b16 %v11878
      %v12173 = vunpack.c.h.b16 %v11879
      %v12174 = vunpack.c.h.b16 %v11880
      %v12175 = vunpack.c.h.b16 %v11881
      %v12176 = vunpack.c.h.b16 %v11882
      %v12177 = vunpack.c.h.b16 %v11883
      %v12178 = vunpack.c.h.b16 %v11884
      %v12179 = vunpack.c.l.b16 %v11885
      %v12180 = vunpack.c.l.b16 %v11886
      %v12181 = vunpack.c.l.b16 %v11887
      %v12182 = vunpack.c.l.b16 %v11888
      %v12183 = vunpack.c.l.b16 %v11889
      %v12184 = vunpack.c.l.b16 %v11890
      %v12185 = vunpack.c.l.b16 %v11891
      %v12186 = vunpack.c.h.b16 %v11885
      %v12187 = vunpack.c.h.b16 %v11886
      %v12188 = vunpack.c.h.b16 %v11887
      %v12189 = vunpack.c.h.b16 %v11888
      %v12190 = vunpack.c.h.b16 %v11889
      %v12191 = vunpack.c.h.b16 %v11890
      %v12192 = vunpack.c.h.b16 %v11891
      %v12193 = vunpack.c.l.b16 %v11892
      %v12194 = vunpack.c.l.b16 %v11893
      %v12195 = vunpack.c.l.b16 %v11894
      %v12196 = vunpack.c.l.b16 %v11895
      %v12197 = vunpack.c.l.b16 %v11896
      %v12198 = vunpack.c.l.b16 %v11897
      %v12199 = vunpack.c.l.b16 %v11898
      %v12200 = vunpack.c.h.b16 %v11892
      %v12201 = vunpack.c.h.b16 %v11893
      %v12202 = vunpack.c.h.b16 %v11894
      %v12203 = vunpack.c.h.b16 %v11895
      %v12204 = vunpack.c.h.b16 %v11896
      %v12205 = vunpack.c.h.b16 %v11897
      %v12206 = vunpack.c.h.b16 %v11898
      %v12207 = vunpack.c.l.b16 %v11899
      %v12208 = vunpack.c.l.b16 %v11900
      %v12209 = vunpack.c.l.b16 %v11901
      %v12210 = vunpack.c.l.b16 %v11902
      %v12211 = vunpack.c.l.b16 %v11903
      %v12212 = vunpack.c.l.b16 %v11904
      %v12213 = vunpack.c.l.b16 %v11905
      %v12214 = vunpack.c.h.b16 %v11899
      %v12215 = vunpack.c.h.b16 %v11900
      %v12216 = vunpack.c.h.b16 %v11901
      %v12217 = vunpack.c.h.b16 %v11902
      %v12218 = vunpack.c.h.b16 %v11903
      %v12219 = vunpack.c.h.b16 %v11904
      %v12220 = vunpack.c.h.b16 %v11905
      %v12221 = vunpack.c.l.b16 %v11906
      %v12222 = vunpack.c.l.b16 %v11907
      %v12223 = vunpack.c.l.b16 %v11908
      %v12224 = vunpack.c.l.b16 %v11909
      %v12225 = vunpack.c.l.b16 %v11910
      %v12226 = vunpack.c.l.b16 %v11911
      %v12227 = vunpack.c.l.b16 %v11912
      %v12228 = vunpack.c.h.b16 %v11906
      %v12229 = vunpack.c.h.b16 %v11907
      %v12230 = vunpack.c.h.b16 %v11908
      %v12231 = vunpack.c.h.b16 %v11909
      %v12232 = vunpack.c.h.b16 %v11910
      %v12233 = vunpack.c.h.b16 %v11911
      %v12234 = vunpack.c.h.b16 %v11912
      %v12235 = vunpack.c.l.b16 %v11913
      %v12236 = vunpack.c.l.b16 %v11914
      %v12237 = vunpack.c.l.b16 %v11915
      %v12238 = vunpack.c.l.b16 %v11916
      %v12239 = vunpack.c.l.b16 %v11917
      %v12240 = vunpack.c.l.b16 %v11918
      %v12241 = vunpack.c.l.b16 %v11919
      %v12242 = vunpack.c.h.b16 %v11913
      %v12243 = vunpack.c.h.b16 %v11914
      %v12244 = vunpack.c.h.b16 %v11915
      %v12245 = vunpack.c.h.b16 %v11916
      %v12246 = vunpack.c.h.b16 %v11917
      %v12247 = vunpack.c.h.b16 %v11918
      %v12248 = vunpack.c.h.b16 %v11919
      %v12249 = vunpack.c.l.b16 %v11920
      %v12250 = vunpack.c.l.b16 %v11921
      %v12251 = vunpack.c.l.b16 %v11922
      %v12252 = vunpack.c.l.b16 %v11923
      %v12253 = vunpack.c.l.b16 %v11924
      %v12254 = vunpack.c.l.b16 %v11925
      %v12255 = vunpack.c.l.b16 %v11926
      %v12256 = vunpack.c.h.b16 %v11920
      %v12257 = vunpack.c.h.b16 %v11921
      %v12258 = vunpack.c.h.b16 %v11922
      %v12259 = vunpack.c.h.b16 %v11923
      %v12260 = vunpack.c.h.b16 %v11924
      %v12261 = vunpack.c.h.b16 %v11925
      %v12262 = vunpack.c.h.b16 %v11926
      %v12263 = vpack.c.b16 %v12040, %v12039
      %v12264 = vpack.c.b16 %v12042, %v12041
      %v12265 = vpack.c.b16 %v12044, %v12043
      %v12266 = vpack.c.b16 %v12045, %v12045
      %v12267 = vpack.c.b16 %v12047, %v12046
      %v12268 = vpack.c.b16 %v12049, %v12048
      %v12269 = vpack.c.b16 %v12051, %v12050
      %v12270 = vpack.c.b16 %v12052, %v12052
      %v12271 = vpack.c.b16 %v12054, %v12053
      %v12272 = vpack.c.b16 %v12056, %v12055
      %v12273 = vpack.c.b16 %v12058, %v12057
      %v12274 = vpack.c.b16 %v12059, %v12059
      %v12275 = vpack.c.b16 %v12061, %v12060
      %v12276 = vpack.c.b16 %v12063, %v12062
      %v12277 = vpack.c.b16 %v12065, %v12064
      %v12278 = vpack.c.b16 %v12066, %v12066
      %v12279 = vpack.c.b16 %v12068, %v12067
      %v12280 = vpack.c.b16 %v12070, %v12069
      %v12281 = vpack.c.b16 %v12072, %v12071
      %v12282 = vpack.c.b16 %v12073, %v12073
      %v12283 = vpack.c.b16 %v12075, %v12074
      %v12284 = vpack.c.b16 %v12077, %v12076
      %v12285 = vpack.c.b16 %v12079, %v12078
      %v12286 = vpack.c.b16 %v12080, %v12080
      %v12287 = vpack.c.b16 %v12082, %v12081
      %v12288 = vpack.c.b16 %v12084, %v12083
      %v12289 = vpack.c.b16 %v12086, %v12085
      %v12290 = vpack.c.b16 %v12087, %v12087
      %v12291 = vpack.c.b16 %v12089, %v12088
      %v12292 = vpack.c.b16 %v12091, %v12090
      %v12293 = vpack.c.b16 %v12093, %v12092
      %v12294 = vpack.c.b16 %v12094, %v12094
      %v12295 = vpack.c.b16 %v12096, %v12095
      %v12296 = vpack.c.b16 %v12098, %v12097
      %v12297 = vpack.c.b16 %v12100, %v12099
      %v12298 = vpack.c.b16 %v12101, %v12101
      %v12299 = vpack.c.b16 %v12103, %v12102
      %v12300 = vpack.c.b16 %v12105, %v12104
      %v12301 = vpack.c.b16 %v12107, %v12106
      %v12302 = vpack.c.b16 %v12108, %v12108
      %v12303 = vpack.c.b16 %v12110, %v12109
      %v12304 = vpack.c.b16 %v12112, %v12111
      %v12305 = vpack.c.b16 %v12114, %v12113
      %v12306 = vpack.c.b16 %v12115, %v12115
      %v12307 = vpack.c.b16 %v12117, %v12116
      %v12308 = vpack.c.b16 %v12119, %v12118
      %v12309 = vpack.c.b16 %v12121, %v12120
      %v12310 = vpack.c.b16 %v12122, %v12122
      %v12311 = vpack.c.b16 %v12124, %v12123
      %v12312 = vpack.c.b16 %v12126, %v12125
      %v12313 = vpack.c.b16 %v12128, %v12127
      %v12314 = vpack.c.b16 %v12129, %v12129
      %v12315 = vpack.c.b16 %v12131, %v12130
      %v12316 = vpack.c.b16 %v12133, %v12132
      %v12317 = vpack.c.b16 %v12135, %v12134
      %v12318 = vpack.c.b16 %v12136, %v12136
      %v12319 = vpack.c.b16 %v12138, %v12137
      %v12320 = vpack.c.b16 %v12140, %v12139
      %v12321 = vpack.c.b16 %v12142, %v12141
      %v12322 = vpack.c.b16 %v12143, %v12143
      %v12323 = vpack.c.b16 %v12145, %v12144
      %v12324 = vpack.c.b16 %v12147, %v12146
      %v12325 = vpack.c.b16 %v12149, %v12148
      %v12326 = vpack.c.b16 %v12150, %v12150
      %v12327 = vpack.c.b16 %v12152, %v12151
      %v12328 = vpack.c.b16 %v12154, %v12153
      %v12329 = vpack.c.b16 %v12156, %v12155
      %v12330 = vpack.c.b16 %v12157, %v12157
      %v12331 = vpack.c.b16 %v12159, %v12158
      %v12332 = vpack.c.b16 %v12161, %v12160
      %v12333 = vpack.c.b16 %v12163, %v12162
      %v12334 = vpack.c.b16 %v12164, %v12164
      %v12335 = vpack.c.b16 %v12166, %v12165
      %v12336 = vpack.c.b16 %v12168, %v12167
      %v12337 = vpack.c.b16 %v12170, %v12169
      %v12338 = vpack.c.b16 %v12171, %v12171
      %v12339 = vpack.c.b16 %v12173, %v12172
      %v12340 = vpack.c.b16 %v12175, %v12174
      %v12341 = vpack.c.b16 %v12177, %v12176
      %v12342 = vpack.c.b16 %v12178, %v12178
      %v12343 = vpack.c.b16 %v12180, %v12179
      %v12344 = vpack.c.b16 %v12182, %v12181
      %v12345 = vpack.c.b16 %v12184, %v12183
      %v12346 = vpack.c.b16 %v12185, %v12185
      %v12347 = vpack.c.b16 %v12187, %v12186
      %v12348 = vpack.c.b16 %v12189, %v12188
      %v12349 = vpack.c.b16 %v12191, %v12190
      %v12350 = vpack.c.b16 %v12192, %v12192
      %v12351 = vpack.c.b16 %v12194, %v12193
      %v12352 = vpack.c.b16 %v12196, %v12195
      %v12353 = vpack.c.b16 %v12198, %v12197
      %v12354 = vpack.c.b16 %v12199, %v12199
      %v12355 = vpack.c.b16 %v12201, %v12200
      %v12356 = vpack.c.b16 %v12203, %v12202
      %v12357 = vpack.c.b16 %v12205, %v12204
      %v12358 = vpack.c.b16 %v12206, %v12206
      %v12359 = vpack.c.b16 %v12208, %v12207
      %v12360 = vpack.c.b16 %v12210, %v12209
      %v12361 = vpack.c.b16 %v12212, %v12211
      %v12362 = vpack.c.b16 %v12213, %v12213
      %v12363 = vpack.c.b16 %v12215, %v12214
      %v12364 = vpack.c.b16 %v12217, %v12216
      %v12365 = vpack.c.b16 %v12219, %v12218
      %v12366 = vpack.c.b16 %v12220, %v12220
      %v12367 = vpack.c.b16 %v12222, %v12221
      %v12368 = vpack.c.b16 %v12224, %v12223
      %v12369 = vpack.c.b16 %v12226, %v12225
      %v12370 = vpack.c.b16 %v12227, %v12227
      %v12371 = vpack.c.b16 %v12229, %v12228
      %v12372 = vpack.c.b16 %v12231, %v12230
      %v12373 = vpack.c.b16 %v12233, %v12232
      %v12374 = vpack.c.b16 %v12234, %v12234
      %v12375 = vpack.c.b16 %v12236, %v12235
      %v12376 = vpack.c.b16 %v12238, %v12237
      %v12377 = vpack.c.b16 %v12240, %v12239
      %v12378 = vpack.c.b16 %v12241, %v12241
      %v12379 = vpack.c.b16 %v12243, %v12242
      %v12380 = vpack.c.b16 %v12245, %v12244
      %v12381 = vpack.c.b16 %v12247, %v12246
      %v12382 = vpack.c.b16 %v12248, %v12248
      %v12383 = vpack.c.b16 %v12250, %v12249
      %v12384 = vpack.c.b16 %v12252, %v12251
      %v12385 = vpack.c.b16 %v12254, %v12253
      %v12386 = vpack.c.b16 %v12255, %v12255
      %v12387 = vpack.c.b16 %v12257, %v12256
      %v12388 = vpack.c.b16 %v12259, %v12258
      %v12389 = vpack.c.b16 %v12261, %v12260
      %v12390 = vpack.c.b16 %v12262, %v12262
      %12519 = vst [vmem:[%s596] sm:$0xff] %v12263
      %12520 = vst [vmem:[%s596 + $0x8] sm:$0xff] %v12264
      %12521 = vst [vmem:[%s596 + $0x10] sm:$0xff] %v12265
      %vm12522 = vcmask 125952
      %12523 = vst.msk [vmem:[%s596 + $0x18] sm:$0xf] %vm12522, %v12266
      %12524 = vst [vmem:[%s596 + $0x1c] sm:$0xff] %v12267
      %12525 = vst [vmem:[%s596 + $0x24] sm:$0xff] %v12268
      %12526 = vst [vmem:[%s596 + $0x2c] sm:$0xff] %v12269
      %12527 = vst.msk [vmem:[%s596 + $0x34] sm:$0xf] %vm12522, %v12270
      %12528 = vst [vmem:[%s596 + $0x38] sm:$0xff] %v12271
      %12529 = vst [vmem:[%s596 + $0x40] sm:$0xff] %v12272
      %12530 = vst [vmem:[%s596 + $0x48] sm:$0xff] %v12273
      %12531 = vst.msk [vmem:[%s596 + $0x50] sm:$0xf] %vm12522, %v12274
      %12532 = vst [vmem:[%s596 + $0x54] sm:$0xff] %v12275
      %12533 = vst [vmem:[%s596 + $0x5c] sm:$0xff] %v12276
      %12534 = vst [vmem:[%s596 + $0x64] sm:$0xff] %v12277
      %12535 = vst.msk [vmem:[%s596 + $0x6c] sm:$0xf] %vm12522, %v12278
      %12536 = vst [vmem:[%s596 + $0x70] sm:$0xff] %v12279
      %12537 = vst [vmem:[%s596 + $0x78] sm:$0xff] %v12280
      %12538 = vst [vmem:[%s596 + $0x80] sm:$0xff] %v12281
      %12539 = vst.msk [vmem:[%s596 + $0x88] sm:$0xf] %vm12522, %v12282
      %12540 = vst [vmem:[%s596 + $0x8c] sm:$0xff] %v12283
      %12541 = vst [vmem:[%s596 + $0x94] sm:$0xff] %v12284
      %12542 = vst [vmem:[%s596 + $0x9c] sm:$0xff] %v12285
      %12543 = vst.msk [vmem:[%s596 + $0xa4] sm:$0xf] %vm12522, %v12286
      %12544 = vst [vmem:[%s596 + $0xa8] sm:$0xff] %v12287
      %12545 = vst [vmem:[%s596 + $0xb0] sm:$0xff] %v12288
      %12546 = vst [vmem:[%s596 + $0xb8] sm:$0xff] %v12289
      %12547 = vst.msk [vmem:[%s596 + $0xc0] sm:$0xf] %vm12522, %v12290
      %12548 = vst [vmem:[%s596 + $0xc4] sm:$0xff] %v12291
      %12549 = vst [vmem:[%s596 + $0xcc] sm:$0xff] %v12292
      %12550 = vst [vmem:[%s596 + $0xd4] sm:$0xff] %v12293
      %12551 = vst.msk [vmem:[%s596 + $0xdc] sm:$0xf] %vm12522, %v12294
      %12552 = vst [vmem:[%s596 + $0xe0] sm:$0xff] %v12295
      %12553 = vst [vmem:[%s596 + $0xe8] sm:$0xff] %v12296
      %12554 = vst [vmem:[%s596 + $0xf0] sm:$0xff] %v12297
      %12555 = vst.msk [vmem:[%s596 + $0xf8] sm:$0xf] %vm12522, %v12298
      %12556 = vst [vmem:[%s596 + $0xfc] sm:$0xff] %v12299
      %12557 = vst [vmem:[%s596 + $0x104] sm:$0xff] %v12300
      %12558 = vst [vmem:[%s596 + $0x10c] sm:$0xff] %v12301
      %12559 = vst.msk [vmem:[%s596 + $0x114] sm:$0xf] %vm12522, %v12302
      %12560 = vst [vmem:[%s596 + $0x118] sm:$0xff] %v12303
      %12561 = vst [vmem:[%s596 + $0x120] sm:$0xff] %v12304
      %12562 = vst [vmem:[%s596 + $0x128] sm:$0xff] %v12305
      %12563 = vst.msk [vmem:[%s596 + $0x130] sm:$0xf] %vm12522, %v12306
      %12564 = vst [vmem:[%s596 + $0x134] sm:$0xff] %v12307
      %12565 = vst [vmem:[%s596 + $0x13c] sm:$0xff] %v12308
      %12566 = vst [vmem:[%s596 + $0x144] sm:$0xff] %v12309
      %12567 = vst.msk [vmem:[%s596 + $0x14c] sm:$0xf] %vm12522, %v12310
      %12568 = vst [vmem:[%s596 + $0x150] sm:$0xff] %v12311
      %12569 = vst [vmem:[%s596 + $0x158] sm:$0xff] %v12312
      %12570 = vst [vmem:[%s596 + $0x160] sm:$0xff] %v12313
      %12571 = vst.msk [vmem:[%s596 + $0x168] sm:$0xf] %vm12522, %v12314
      %12572 = vst [vmem:[%s596 + $0x16c] sm:$0xff] %v12315
      %12573 = vst [vmem:[%s596 + $0x174] sm:$0xff] %v12316
      %12574 = vst [vmem:[%s596 + $0x17c] sm:$0xff] %v12317
      %12575 = vst.msk [vmem:[%s596 + $0x184] sm:$0xf] %vm12522, %v12318
      %12576 = vst [vmem:[%s596 + $0x188] sm:$0xff] %v12319
      %12577 = vst [vmem:[%s596 + $0x190] sm:$0xff] %v12320
      %12578 = vst [vmem:[%s596 + $0x198] sm:$0xff] %v12321
      %12579 = vst.msk [vmem:[%s596 + $0x1a0] sm:$0xf] %vm12522, %v12322
      %12580 = vst [vmem:[%s596 + $0x1a4] sm:$0xff] %v12323
      %12581 = vst [vmem:[%s596 + $0x1ac] sm:$0xff] %v12324
      %12582 = vst [vmem:[%s596 + $0x1b4] sm:$0xff] %v12325
      %12583 = vst.msk [vmem:[%s596 + $0x1bc] sm:$0xf] %vm12522, %v12326
      %12584 = vst [vmem:[%s596 + $0x1c0] sm:$0xff] %v12327
      %12585 = vst [vmem:[%s596 + $0x1c8] sm:$0xff] %v12328
      %12586 = vst [vmem:[%s596 + $0x1d0] sm:$0xff] %v12329
      %12587 = vst.msk [vmem:[%s596 + $0x1d8] sm:$0xf] %vm12522, %v12330
      %12588 = vst [vmem:[%s596 + $0x1dc] sm:$0xff] %v12331
      %12589 = vst [vmem:[%s596 + $0x1e4] sm:$0xff] %v12332
      %12590 = vst [vmem:[%s596 + $0x1ec] sm:$0xff] %v12333
      %12591 = vst.msk [vmem:[%s596 + $0x1f4] sm:$0xf] %vm12522, %v12334
      %12592 = vst [vmem:[%s596 + $0x1f8] sm:$0xff] %v12335
      %12593 = vst [vmem:[%s596 + $0x200] sm:$0xff] %v12336
      %12594 = vst [vmem:[%s596 + $0x208] sm:$0xff] %v12337
      %12595 = vst.msk [vmem:[%s596 + $0x210] sm:$0xf] %vm12522, %v12338
      %12596 = vst [vmem:[%s596 + $0x214] sm:$0xff] %v12339
      %12597 = vst [vmem:[%s596 + $0x21c] sm:$0xff] %v12340
      %12598 = vst [vmem:[%s596 + $0x224] sm:$0xff] %v12341
      %12599 = vst.msk [vmem:[%s596 + $0x22c] sm:$0xf] %vm12522, %v12342
      %12600 = vst [vmem:[%s596 + $0x230] sm:$0xff] %v12343
      %12601 = vst [vmem:[%s596 + $0x238] sm:$0xff] %v12344
      %12602 = vst [vmem:[%s596 + $0x240] sm:$0xff] %v12345
      %12603 = vst.msk [vmem:[%s596 + $0x248] sm:$0xf] %vm12522, %v12346
      %12604 = vst [vmem:[%s596 + $0x24c] sm:$0xff] %v12347
      %12605 = vst [vmem:[%s596 + $0x254] sm:$0xff] %v12348
      %12606 = vst [vmem:[%s596 + $0x25c] sm:$0xff] %v12349
      %12607 = vst.msk [vmem:[%s596 + $0x264] sm:$0xf] %vm12522, %v12350
      %12608 = vst [vmem:[%s596 + $0x268] sm:$0xff] %v12351
      %12609 = vst [vmem:[%s596 + $0x270] sm:$0xff] %v12352
      %12610 = vst [vmem:[%s596 + $0x278] sm:$0xff] %v12353
      %12611 = vst.msk [vmem:[%s596 + $0x280] sm:$0xf] %vm12522, %v12354
      %12612 = vst [vmem:[%s596 + $0x284] sm:$0xff] %v12355
      %12613 = vst [vmem:[%s596 + $0x28c] sm:$0xff] %v12356
      %12614 = vst [vmem:[%s596 + $0x294] sm:$0xff] %v12357
      %12615 = vst.msk [vmem:[%s596 + $0x29c] sm:$0xf] %vm12522, %v12358
      %12616 = vst [vmem:[%s596 + $0x2a0] sm:$0xff] %v12359
      %12617 = vst [vmem:[%s596 + $0x2a8] sm:$0xff] %v12360
      %12618 = vst [vmem:[%s596 + $0x2b0] sm:$0xff] %v12361
      %12619 = vst.msk [vmem:[%s596 + $0x2b8] sm:$0xf] %vm12522, %v12362
      %12620 = vst [vmem:[%s596 + $0x2bc] sm:$0xff] %v12363
      %12621 = vst [vmem:[%s596 + $0x2c4] sm:$0xff] %v12364
      %12622 = vst [vmem:[%s596 + $0x2cc] sm:$0xff] %v12365
      %12623 = vst.msk [vmem:[%s596 + $0x2d4] sm:$0xf] %vm12522, %v12366
      %12624 = vst [vmem:[%s596 + $0x2d8] sm:$0xff] %v12367
      %12625 = vst [vmem:[%s596 + $0x2e0] sm:$0xff] %v12368
      %12626 = vst [vmem:[%s596 + $0x2e8] sm:$0xff] %v12369
      %12627 = vst.msk [vmem:[%s596 + $0x2f0] sm:$0xf] %vm12522, %v12370
      %12628 = vst [vmem:[%s596 + $0x2f4] sm:$0xff] %v12371
      %12629 = vst [vmem:[%s596 + $0x2fc] sm:$0xff] %v12372
      %12630 = vst [vmem:[%s596 + $0x304] sm:$0xff] %v12373
      %12631 = vst.msk [vmem:[%s596 + $0x30c] sm:$0xf] %vm12522, %v12374
      %12632 = vst [vmem:[%s596 + $0x310] sm:$0xff] %v12375
      %12633 = vst [vmem:[%s596 + $0x318] sm:$0xff] %v12376
      %12634 = vst [vmem:[%s596 + $0x320] sm:$0xff] %v12377
      %12635 = vst.msk [vmem:[%s596 + $0x328] sm:$0xf] %vm12522, %v12378
      %12636 = vst [vmem:[%s596 + $0x32c] sm:$0xff] %v12379
      %12637 = vst [vmem:[%s596 + $0x334] sm:$0xff] %v12380
      %12638 = vst [vmem:[%s596 + $0x33c] sm:$0xff] %v12381
      %12639 = vst.msk [vmem:[%s596 + $0x344] sm:$0xf] %vm12522, %v12382
      %12640 = vst [vmem:[%s596 + $0x348] sm:$0xff] %v12383
      %12641 = vst [vmem:[%s596 + $0x350] sm:$0xff] %v12384
      %12642 = vst [vmem:[%s596 + $0x358] sm:$0xff] %v12385
      %12643 = vst.msk [vmem:[%s596 + $0x360] sm:$0xf] %vm12522, %v12386
      %12644 = vst [vmem:[%s596 + $0x364] sm:$0xff] %v12387
      %12645 = vst [vmem:[%s596 + $0x36c] sm:$0xff] %v12388
      %12646 = vst [vmem:[%s596 + $0x374] sm:$0xff] %v12389
      %12647 = vst.msk [vmem:[%s596 + $0x37c] sm:$0xf] %vm12522, %v12390
      %s12648 = smul.u32 32, %s30
      %p12649 = scmp.lt.s32.totalorder %s12648, 255
      %s12650 = scalar_select %p12649, %s12648, 255
      %s12651 = smul.addr %s12650, 4
      %s12652 = scalar_lea.vmem %s17, %s12651
      %s12653 = smul.u32 32, %s30
      %p12654 = scmp.lt.s32.totalorder %s12653, 255
      %s12655 = scalar_select %p12654, %s12653, 255
      %s12656 = smul.addr %s12655, 7
      %s12657 = smul.addr %s12656, 4
      %s12658 = scalar_lea.vmem %s18, %s12657
      // Predicated region
      $region89: #{autoencoder_forward.1} parent=87 // pred_check
        %p12659 = pneg %p410
      $region90: #{autoencoder_forward.1} parent=87 // pred_check_branch
        %12661 = sbr.rel (%p12659) target = $region92
      $region91: #{autoencoder_forward.1} parent=87 // pred_region
        %s12662 = smul.u32 32, %s30
      $region92: #{autoencoder_forward.1} parent=87 // pred_fallthru
        _
      // Predicated region
      $region93: #{autoencoder_forward.1} parent=87 // pred_check
        %p12663 = pneg %p436
      $region94: #{autoencoder_forward.1} parent=87 // pred_check_branch
        %12665 = sbr.rel (%p12663) target = $region96
      $region95: #{autoencoder_forward.1} parent=87 // pred_region
        %s12666 = smul.u32 32, %s30
      $region96: #{autoencoder_forward.1} parent=87 // pred_fallthru
        _
    $region88: #{autoencoder_forward.1} parent=5 // pred_fallthru
      _
    %p12667 = scmp.le.s32.totalorder 2, %s25
    // Predicated region
    $region97: #{autoencoder_forward.1} parent=5 // pred_check
      %p12668 = pneg %p12667
    $region98: #{autoencoder_forward.1} parent=5 // pred_check_branch
      %12670 = sbr.rel (%p12668) target = $region100
    $region99: #{autoencoder_forward.1} parent=5 // pred_region
      %s12671 = ssub.s32 %s25, 2
      // Predicated region
      $region101: #{autoencoder_forward.1} parent=99 // pred_check
        %p12672 = pneg %p416
      $region102: #{autoencoder_forward.1} parent=99 // pred_check_branch
        %12674 = sbr.rel (%p12672) target = $region104
      $region103: #{autoencoder_forward.1} parent=99 // pred_region
        %s12675 = smul.u32 32, %s31
        %p12676 = scmp.lt.s32.totalorder %s12675, 255
        %s12677 = scalar_select %p12676, %s12675, 255
        %s12678 = smul.addr %s12677, 4
        %s12679 = scalar_lea.vmem %s17, %s12678
      $region104: #{autoencoder_forward.1} parent=99 // pred_fallthru
        _
      // Predicated region
      $region105: #{autoencoder_forward.1} parent=99 // pred_check
        %p12680 = pneg %p442
      $region106: #{autoencoder_forward.1} parent=99 // pred_check_branch
        %12682 = sbr.rel (%p12680) target = $region108
      $region107: #{autoencoder_forward.1} parent=99 // pred_region
        %s12683 = smul.u32 32, %s31
        %p12684 = scmp.lt.s32.totalorder %s12683, 255
        %s12685 = scalar_select %p12684, %s12683, 255
        %s12686 = smul.addr %s12685, 7
        %s12687 = smul.addr %s12686, 4
        %s12688 = scalar_lea.vmem %s18, %s12687
      $region108: #{autoencoder_forward.1} parent=99 // pred_fallthru
        _
    $region100: #{autoencoder_forward.1} parent=5 // pred_fallthru
      _
  $region6: #{autoencoder_forward.1} parent=0 // loop_footer
    %s29 = sadd.s32 1, %s25
  $region7: #{autoencoder_forward.1} parent=0 // loop_footer_branch
    %24 = sbr.rel target = $region3
  $region8: #{autoencoder_forward.1} parent=0 // loop_exit
    _

</llo_original>
